<compile_context>
chip_gen: v5e
topology: v5e:2x2
jax: 0.10.0
libtpu: 0.0.40
codegen_flags: <defaults>
</compile_context>

<pallas_src>
import functools

import numpy as np
import jax
import jax.numpy as jnp
from jax.experimental import pallas as pl
from jax.experimental.pallas import tpu as pltpu

# Branch order: comb0_left(xr,5), comb0_right(xl,3), comb1_left(xl,5),
#               comb1_right(xl,3), comb4_left(xr,3)
BR_K = (5, 3, 5, 3, 3)


# ----------------------------------------------------------------------------
# Fused NormalCell kernel (one image per grid step)
# ----------------------------------------------------------------------------
def _normal_cell_kernel(
        xin_ref,                       # (H, W*(Cin_l+Cin_r)) f32, [xprev | x]
        wstem_ref, bstem_ref,          # (W*Cin_tot, 2*WC) bf16, (1, 2*WC) f32
        sh_ref,                        # (5, H, H) f32 shift matrices, di=idx-2
        wdw1_ref, wpw1_ref, bpw1_ref,  # (5,25,1,WC) f32, (5,WC,WC) bf16, (5,1,WC) f32
        wdw2_ref, wpw2_ref, bpw2_ref,
        wpool_ref, invh_ref,           # (9,1,2*WC) f32 (1/nw folded), (H,1) f32
        out_ref,                       # (6, H, WC) f32
        *, H, WC, C):
    f32 = jnp.float32
    bf16 = jnp.bfloat16

    def hshift(x, di):
        # H shift of rows via tiny banded (H,H) matrix; identity is skipped.
        if di == 0:
            return x
        return jnp.dot(sh_ref[di + 2], x, preferred_element_type=f32)

    def wroll(x, dj):
        # W shift via lane roll; zero-pad boundary is folded into tap weights.
        if dj == 0:
            return x
        return pltpu.roll(x, (-dj * C) % x.shape[1], axis=1)

    # --- merged stems: ReLU -> [1x1 conv_prev | 1x1 conv] (+folded BN) -------
    xin = jnp.maximum(xin_ref[...], 0.0).astype(bf16)
    xlr = (jnp.dot(xin, wstem_ref[...], preferred_element_type=f32)
           + bstem_ref[...])                         # (H, 2*WC) = [xl | xr]
    xl = xlr[:, :WC]
    xr = xlr[:, WC:]

    # --- 3x3/s1/p1 avg pool (count_include_pad=False) on the [xl|xr] stack ---
    pacc = None
    for i in range(3):
        xs = hshift(xlr, i - 1)
        for j in range(3):
            term = wroll(xs, j - 1) * wpool_ref[i * 3 + j]   # 1/nw folded in
            pacc = term if pacc is None else pacc + term
    pool = pacc * invh_ref[...]                               # row-broadcast 1/nh
    out_ref[0] = xl                                           # x_left
    out_ref[3] = pool[:, WC:] + xl                            # comb_iter_2
    out_ref[4] = 2.0 * pool[:, :WC]                           # comb_iter_3

    xl_act = jnp.maximum(xl, 0.0)                             # branch-input ReLU
    xr_act = jnp.maximum(xr, 0.0)

    def dw_pass_shared(src, wdw_ref, branch_ids):
        """Shared first depthwise sweep over one source; each branch only
        accumulates its own k*k taps (3x3 branches skip the 5x5 outer ring)."""
        offs = {b: (5 - BR_K[b]) // 2 for b in branch_ids}
        omin = min(offs.values())
        accs = {b: None for b in branch_ids}
        for i in range(omin, 5 - omin):
            xs = hshift(src, i - 2)
            for j in range(omin, 5 - omin):
                t = None
                for b in branch_ids:
                    o = offs[b]
                    if o <= i < 5 - o and o <= j < 5 - o:
                        if t is None:
                            t = wroll(xs, j - 2)
                        term = t * wdw_ref[b, i * 5 + j]
                        accs[b] = term if accs[b] is None else accs[b] + term
        return accs

    def dw_pass_single(src, wdw_ref, b):
        o = (5 - BR_K[b]) // 2
        acc = None
        for i in range(o, 5 - o):
            xs = hshift(src, i - 2)
            for j in range(o, 5 - o):
                term = wroll(xs, j - 2) * wdw_ref[b, i * 5 + j]
                acc = term if acc is None else acc + term
        return acc

    def branch_tail(b, acc1):
        """pw1(+BN1) -> ReLU -> dw2 -> pw2(+BN2) for one separable branch."""
        p1 = (jnp.dot(acc1.astype(bf16), wpw1_ref[b],
                      preferred_element_type=f32) + bpw1_ref[b])
        a1 = jnp.maximum(p1, 0.0)
        acc2 = dw_pass_single(a1, wdw2_ref, b)
        return (jnp.dot(acc2.astype(bf16), wpw2_ref[b],
                        preferred_element_type=f32) + bpw2_ref[b])

    # Shared tap sweeps (one per source), then retire branches pairwise.
    acc_r = dw_pass_shared(xr_act, wdw1_ref, (0, 4))
    acc_l = dw_pass_shared(xl_act, wdw1_ref, (1, 2, 3))

    out_ref[1] = branch_tail(0, acc_r[0]) + branch_tail(1, acc_l[1])  # comb_iter_0
    out_ref[2] = branch_tail(2, acc_l[2]) + branch_tail(3, acc_l[3])  # comb_iter_1
    out_ref[5] = branch_tail(4, acc_r[4]) + xr                        # comb_iter_4


# ----------------------------------------------------------------------------
# Wrapper
# ----------------------------------------------------------------------------
def normal_cell_forward(x, x_prev, operands, *, N, H, W, C, Cin_l, Cin_r):
    NH, WC = N * H, W * C
    Cin_tot = Cin_l + Cin_r
    # NCHW -> lane-dense (N*H, W*Cin), lane-concat [x_prev | x] for the merged stem.
    xprev_i = jnp.transpose(x_prev, (0, 2, 3, 1)).reshape(NH, W * Cin_l)
    x_i = jnp.transpose(x, (0, 2, 3, 1)).reshape(NH, W * Cin_r)
    xin = jnp.concatenate([xprev_i, x_i], axis=1).astype(jnp.float32)

    kernel = functools.partial(_normal_cell_kernel, H=H, WC=WC, C=C)

    def const_spec(a):
        # Full-array block, same for every grid step (stays resident in VMEM).
        return pl.BlockSpec(a.shape, lambda n, _z=(0,) * a.ndim: _z)

    in_specs = [pl.BlockSpec((H, W * Cin_tot), lambda n: (n, 0))]
    in_specs += [const_spec(op) for op in operands]

    out = pl.pallas_call(
        kernel,
        grid=(N,),
        out_shape=jax.ShapeDtypeStruct((6, NH, WC), jnp.float32),
        in_specs=in_specs,
        out_specs=pl.BlockSpec((6, H, WC), lambda n: (0, n, 0)),
        compiler_params=pltpu.CompilerParams(
            dimension_semantics=("parallel",)),
    )(xin, *operands)

    # (6, N*H, W*C) -> (N, 6*C, H, W)
    out = out.reshape(6, N, H, W, C)
    out = jnp.transpose(out, (1, 0, 4, 2, 3)).reshape(N, 6 * C, H, W)
    return out


# ----------------------------------------------------------------------------
# Deterministic parameter init (inference-mode BN) and operand packing
# ----------------------------------------------------------------------------
def init_bn(key, C, eps=1e-3):
    k1, k2, k3, k4 = jax.random.split(key, 4)
    gamma = 1.0 + 0.1 * jax.random.normal(k1, (C,), jnp.float32)
    beta = 0.1 * jax.random.normal(k2, (C,), jnp.float32)
    rmean = 0.1 * jax.random.normal(k3, (C,), jnp.float32)
    rvar = 1.0 + 0.1 * jax.random.uniform(k4, (C,), jnp.float32)
    scale = gamma / jnp.sqrt(rvar + eps)
    bias = beta - rmean * scale
    return np.asarray(scale), np.asarray(bias)


def init_branch(key, C, k):
    ks = jax.random.split(key, 6)
    dw1 = 0.1 * jax.random.normal(ks[0], (k, k, C), jnp.float32)
    pw1 = 0.1 * jax.random.normal(ks[1], (C, C), jnp.float32)
    s1, b1 = init_bn(ks[2], C)
    dw2 = 0.1 * jax.random.normal(ks[3], (k, k, C), jnp.float32)
    pw2 = 0.1 * jax.random.normal(ks[4], (C, C), jnp.float32)
    s2, b2 = init_bn(ks[5], C)
    return dict(k=k, dw1=np.asarray(dw1), pw1=np.asarray(pw1), s1=s1, b1=b1,
                dw2=np.asarray(dw2), pw2=np.asarray(pw2), s2=s2, b2=b2)


def init_params(key, Cin_l, Cin_r, C):
    ks = jax.random.split(key, 9)
    p = {}
    p['prev_w'] = np.asarray(0.1 * jax.random.normal(ks[0], (Cin_l, C), jnp.float32))
    p['prev_scale'], p['prev_bias'] = init_bn(ks[1], C)
    p['cur_w'] = np.asarray(0.1 * jax.random.normal(ks[2], (Cin_r, C), jnp.float32))
    p['cur_scale'], p['cur_bias'] = init_bn(ks[3], C)
    p['branches'] = [init_branch(ks[4 + i], C, BR_K[i]) for i in range(5)]
    return p


def pack_operands(params, H, W, C, Cin_l, Cin_r):
    """Pre-compute kernel operands: BN folded into weights, 1x1 convs as
    block-diag-over-W (kron) matrices (bf16), depthwise taps as masked lane
    vectors (f32), per-image H-shift matrices, factored avg-pool weights."""
    WC = W * C
    I_W = np.eye(W, dtype=np.float32)

    def stem_kron(w, scale):
        return np.kron(I_W, (np.asarray(w) * np.asarray(scale)[None, :])
                       ).astype(np.float32)

    # Merged stem: block-diag [kron_left 0; 0 kron_right] -> [xl | xr] lanes.
    kl = stem_kron(params['prev_w'], params['prev_scale'])     # (W*Cin_l, WC)
    kr = stem_kron(params['cur_w'], params['cur_scale'])       # (W*Cin_r, WC)
    wstem = np.zeros((W * (Cin_l + Cin_r), 2 * WC), np.float32)
    wstem[:W * Cin_l, :WC] = kl
    wstem[W * Cin_l:, WC:] = kr
    bstem = np.concatenate([np.tile(params['prev_bias'], W),
                            np.tile(params['cur_bias'], W)])[None, :].astype(np.float32)

    # Per-image H-shift matrices S_{di}, di = idx - 2 (zero outside the image).
    sh = np.zeros((5, H, H), np.float32)
    for idx in range(5):
        di = idx - 2
        for r in range(H):
            if 0 <= r + di < H:
                sh[idx, r, r + di] = 1.0

    # Depthwise lane weights: k x k kernels embedded in the 5x5 tap grid with
    # the W-boundary zero-pad mask folded in (unused taps stay exactly zero
    # and are skipped at trace time in the kernel).
    def dw_lane(dw, k):
        out = np.zeros((25, 1, WC), np.float32)
        off = (5 - k) // 2
        for i in range(k):
            for j in range(k):
                i5, j5 = i + off, j + off
                dj = j5 - 2
                for w in range(W):
                    if 0 <= w + dj < W:
                        out[i5 * 5 + j5, 0, w * C:(w + 1) * C] = dw[i, j, :]
        return out

    br = params['branches']
    wdw1 = np.stack([dw_lane(b['dw1'], b['k']) for b in br]).astype(np.float32)
    wdw2 = np.stack([dw_lane(b['dw2'], b['k']) for b in br]).astype(np.float32)
    wpw1 = np.stack([np.kron(I_W, b['pw1'] * b['s1'][None, :]) for b in br]).astype(np.float32)
    bpw1 = np.stack([np.tile(b['b1'], W)[None, :] for b in br]).astype(np.float32)
    wpw2 = np.stack([np.kron(I_W, b['pw2'] * b['s2'][None, :]) for b in br]).astype(np.float32)
    bpw2 = np.stack([np.tile(b['b2'], W)[None, :] for b in br]).astype(np.float32)

    # 3x3 avg pool (count_include_pad=False) on the [xl | xr] lane stack:
    # per-tap lane masks with the 1/nw_valid factor folded in, plus a per-row
    # (H,1) 1/nh_valid vector.
    wpool = np.zeros((9, 1, 2 * WC), np.float32)
    for i in range(3):
        for j in range(3):
            dj = j - 1
            for w in range(W):
                if 0 <= w + dj < W:
                    nw = sum(1 for d in (-1, 0, 1) if 0 <= w + d < W)
                    for part in range(2):
                        base = part * WC + w * C
                        wpool[i * 3 + j, 0, base:base + C] = 1.0 / nw
    invh = np.zeros((H, 1), np.float32)
    for h in range(H):
        nh = sum(1 for d in (-1, 0, 1) if 0 <= h + d < H)
        invh[h, 0] = 1.0 / nh

    return [
        jnp.asarray(wstem, jnp.bfloat16),    # MXU operand -> bf16
        jnp.asarray(bstem),
        jnp.asarray(sh),
        jnp.asarray(wdw1),                   # VPU taps -> f32
        jnp.asarray(wpw1, jnp.bfloat16),
        jnp.asarray(bpw1),
        jnp.asarray(wdw2),
        jnp.asarray(wpw2, jnp.bfloat16),
        jnp.asarray(bpw2),
        jnp.asarray(wpool),
        jnp.asarray(invh),
    ]


# ----------------------------------------------------------------------------
if __name__ == "__main__":
    key = jax.random.PRNGKey(0)
    k_params, k_x, k_prev = jax.random.split(key, 3)

    N, H, W = 2, 16, 16
    in_channels_left = in_channels_right = 16
    out_channels = 8          # out_channels_left == out_channels_right

    params = init_params(k_params, in_channels_left, in_channels_right,
                         out_channels)
    operands = pack_operands(params, H, W, out_channels,
                             in_channels_left, in_channels_right)

    x = jax.random.normal(k_x, (N, in_channels_right, H, W), jnp.float32)
    x_prev = jax.random.normal(k_prev, (N, in_channels_left, H, W), jnp.float32)

    fwd = jax.jit(functools.partial(
        normal_cell_forward, N=N, H=H, W=W, C=out_channels,
        Cin_l=in_channels_left, Cin_r=in_channels_right))
    out = jax.block_until_ready(fwd(x, x_prev, operands))

    assert out.shape == (N, 6 * out_channels, H, W), out.shape
    assert bool(jnp.all(jnp.isfinite(out)))
    print("KERNEL_OK")
</pallas_src>

<mosaic_0001>
module attributes {stable_mosaic.version = 11 : i64} {
  func.func @_normal_cell_kernel(%arg0: i32, %arg1: memref<16x512xf32, #tpu.memory_space<vmem>>, %arg2: memref<512x256xbf16, #tpu.memory_space<vmem>>, %arg3: memref<1x256xf32, #tpu.memory_space<vmem>>, %arg4: memref<5x16x16xf32, #tpu.memory_space<vmem>>, %arg5: memref<5x25x1x128xf32, #tpu.memory_space<vmem>>, %arg6: memref<5x128x128xbf16, #tpu.memory_space<vmem>>, %arg7: memref<5x1x128xf32, #tpu.memory_space<vmem>>, %arg8: memref<5x25x1x128xf32, #tpu.memory_space<vmem>>, %arg9: memref<5x128x128xbf16, #tpu.memory_space<vmem>>, %arg10: memref<5x1x128xf32, #tpu.memory_space<vmem>>, %arg11: memref<9x1x256xf32, #tpu.memory_space<vmem>>, %arg12: memref<16x1xf32, #tpu.memory_space<vmem>>, %arg13: memref<6x16x128xf32, #tpu.memory_space<vmem>>) attributes {dimension_semantics = [#tpu.dimension_semantics<parallel>], iteration_bounds = array<i64: 2>, scalar_prefetch = 0 : i64, scratch_operands = 0 : i64, tpu.core_type = #tpu.core_type<tc>, window_params = [{transform_indices = @transform_0, window_bounds = array<i64: 16, 512>}, {pipeline_mode = #tpu.pipeline_mode<synchronous>, transform_indices = @transform_1, window_bounds = array<i64: 512, 256>}, {pipeline_mode = #tpu.pipeline_mode<synchronous>, transform_indices = @transform_2, window_bounds = array<i64: 1, 256>}, {pipeline_mode = #tpu.pipeline_mode<synchronous>, transform_indices = @transform_3, window_bounds = array<i64: 5, 16, 16>}, {pipeline_mode = #tpu.pipeline_mode<synchronous>, transform_indices = @transform_4, window_bounds = array<i64: 5, 25, 1, 128>}, {pipeline_mode = #tpu.pipeline_mode<synchronous>, transform_indices = @transform_5, window_bounds = array<i64: 5, 128, 128>}, {pipeline_mode = #tpu.pipeline_mode<synchronous>, transform_indices = @transform_6, window_bounds = array<i64: 5, 1, 128>}, {pipeline_mode = #tpu.pipeline_mode<synchronous>, transform_indices = @transform_7, window_bounds = array<i64: 5, 25, 1, 128>}, {pipeline_mode = #tpu.pipeline_mode<synchronous>, transform_indices = @transform_8, window_bounds = array<i64: 5, 128, 128>}, {pipeline_mode = #tpu.pipeline_mode<synchronous>, transform_indices = @transform_9, window_bounds = array<i64: 5, 1, 128>}, {pipeline_mode = #tpu.pipeline_mode<synchronous>, transform_indices = @transform_10, window_bounds = array<i64: 9, 1, 256>}, {pipeline_mode = #tpu.pipeline_mode<synchronous>, transform_indices = @transform_11, window_bounds = array<i64: 16, 1>}, {transform_indices = @transform_12, window_bounds = array<i64: 6, 16, 128>}]} {
    %c0 = arith.constant 0 : index
    %c0_0 = arith.constant 0 : index
    %0 = vector.load %arg1[%c0, %c0_0] : memref<16x512xf32, #tpu.memory_space<vmem>>, vector<16x512xf32>
    %cst = arith.constant 0.000000e+00 : f32
    %1 = vector.broadcast %cst : f32 to vector<16x512xf32>
    %2 = arith.maximumf %0, %1 : vector<16x512xf32>
    %3 = arith.truncf %2 : vector<16x512xf32> to vector<16x512xbf16>
    %c0_1 = arith.constant 0 : index
    %c0_2 = arith.constant 0 : index
    %4 = vector.load %arg2[%c0_1, %c0_2] : memref<512x256xbf16, #tpu.memory_space<vmem>>, vector<512x256xbf16>
    %cst_3 = arith.constant dense<0.000000e+00> : vector<16x256xf32>
    %5 = tpu.matmul %3, %4, %cst_3 {dimension_numbers = #tpu.dot_dimension_numbers<[1], [0], [0], [1], [0, 0, 1, 1], [], []>} : vector<16x512xbf16>, vector<512x256xbf16>, vector<16x256xf32> -> vector<16x256xf32>
    %c0_4 = arith.constant 0 : index
    %c0_5 = arith.constant 0 : index
    %6 = vector.load %arg3[%c0_4, %c0_5] : memref<1x256xf32, #tpu.memory_space<vmem>>, vector<1x256xf32>
    %7 = vector.broadcast %6 : vector<1x256xf32> to vector<16x256xf32>
    %8 = arith.addf %5, %7 : vector<16x256xf32>
    %9 = vector.extract_strided_slice %8 {offsets = [0, 0], sizes = [16, 128], strides = [1, 1]} : vector<16x256xf32> to vector<16x128xf32>
    %10 = vector.extract_strided_slice %8 {offsets = [0, 128], sizes = [16, 128], strides = [1, 1]} : vector<16x256xf32> to vector<16x128xf32>
    %c1 = arith.constant 1 : index
    %c0_6 = arith.constant 0 : index
    %c0_7 = arith.constant 0 : index
    %11 = vector.load %arg4[%c1, %c0_6, %c0_7] : memref<5x16x16xf32, #tpu.memory_space<vmem>>, vector<1x16x16xf32>
    %12 = vector.shape_cast %11 : vector<1x16x16xf32> to vector<16x16xf32>
    %cst_8 = arith.constant dense<0.000000e+00> : vector<16x256xf32>
    %13 = tpu.matmul %12, %8, %cst_8 {dimension_numbers = #tpu.dot_dimension_numbers<[1], [0], [0], [1], [0, 0, 1, 1], [], []>} : vector<16x16xf32>, vector<16x256xf32>, vector<16x256xf32> -> vector<16x256xf32>
    %c8_i32 = arith.constant 8 : i32
    %14 = tpu.dynamic_rotate %13 by %c8_i32 dim 1 : vector<16x256xf32>, i32 -> vector<16x256xf32>
    %c0_9 = arith.constant 0 : index
    %c0_10 = arith.constant 0 : index
    %c0_11 = arith.constant 0 : index
    %15 = vector.load %arg11[%c0_9, %c0_10, %c0_11] : memref<9x1x256xf32, #tpu.memory_space<vmem>>, vector<1x1x256xf32>
    %16 = vector.shape_cast %15 : vector<1x1x256xf32> to vector<1x256xf32>
    %17 = vector.broadcast %16 : vector<1x256xf32> to vector<16x256xf32>
    %18 = arith.mulf %14, %17 : vector<16x256xf32>
    %c1_12 = arith.constant 1 : index
    %c0_13 = arith.constant 0 : index
    %c0_14 = arith.constant 0 : index
    %19 = vector.load %arg11[%c1_12, %c0_13, %c0_14] : memref<9x1x256xf32, #tpu.memory_space<vmem>>, vector<1x1x256xf32>
    %20 = vector.shape_cast %19 : vector<1x1x256xf32> to vector<1x256xf32>
    %21 = vector.broadcast %20 : vector<1x256xf32> to vector<16x256xf32>
    %22 = arith.mulf %13, %21 : vector<16x256xf32>
    %23 = arith.addf %18, %22 : vector<16x256xf32>
    %c248_i32 = arith.constant 248 : i32
    %24 = tpu.dynamic_rotate %13 by %c248_i32 dim 1 : vector<16x256xf32>, i32 -> vector<16x256xf32>
    %c2 = arith.constant 2 : index
    %c0_15 = arith.constant 0 : index
    %c0_16 = arith.constant 0 : index
    %25 = vector.load %arg11[%c2, %c0_15, %c0_16] : memref<9x1x256xf32, #tpu.memory_space<vmem>>, vector<1x1x256xf32>
    %26 = vector.shape_cast %25 : vector<1x1x256xf32> to vector<1x256xf32>
    %27 = vector.broadcast %26 : vector<1x256xf32> to vector<16x256xf32>
    %28 = arith.mulf %24, %27 : vector<16x256xf32>
    %29 = arith.addf %23, %28 : vector<16x256xf32>
    %c8_i32_17 = arith.constant 8 : i32
    %30 = tpu.dynamic_rotate %8 by %c8_i32_17 dim 1 : vector<16x256xf32>, i32 -> vector<16x256xf32>
    %c3 = arith.constant 3 : index
    %c0_18 = arith.constant 0 : index
    %c0_19 = arith.constant 0 : index
    %31 = vector.load %arg11[%c3, %c0_18, %c0_19] : memref<9x1x256xf32, #tpu.memory_space<vmem>>, vector<1x1x256xf32>
    %32 = vector.shape_cast %31 : vector<1x1x256xf32> to vector<1x256xf32>
    %33 = vector.broadcast %32 : vector<1x256xf32> to vector<16x256xf32>
    %34 = arith.mulf %30, %33 : vector<16x256xf32>
    %35 = arith.addf %29, %34 : vector<16x256xf32>
    %c4 = arith.constant 4 : index
    %c0_20 = arith.constant 0 : index
    %c0_21 = arith.constant 0 : index
    %36 = vector.load %arg11[%c4, %c0_20, %c0_21] : memref<9x1x256xf32, #tpu.memory_space<vmem>>, vector<1x1x256xf32>
    %37 = vector.shape_cast %36 : vector<1x1x256xf32> to vector<1x256xf32>
    %38 = vector.broadcast %37 : vector<1x256xf32> to vector<16x256xf32>
    %39 = arith.mulf %8, %38 : vector<16x256xf32>
    %40 = arith.addf %35, %39 : vector<16x256xf32>
    %c248_i32_22 = arith.constant 248 : i32
    %41 = tpu.dynamic_rotate %8 by %c248_i32_22 dim 1 : vector<16x256xf32>, i32 -> vector<16x256xf32>
    %c5 = arith.constant 5 : index
    %c0_23 = arith.constant 0 : index
    %c0_24 = arith.constant 0 : index
    %42 = vector.load %arg11[%c5, %c0_23, %c0_24] : memref<9x1x256xf32, #tpu.memory_space<vmem>>, vector<1x1x256xf32>
    %43 = vector.shape_cast %42 : vector<1x1x256xf32> to vector<1x256xf32>
    %44 = vector.broadcast %43 : vector<1x256xf32> to vector<16x256xf32>
    %45 = arith.mulf %41, %44 : vector<16x256xf32>
    %46 = arith.addf %40, %45 : vector<16x256xf32>
    %c3_25 = arith.constant 3 : index
    %c0_26 = arith.constant 0 : index
    %c0_27 = arith.constant 0 : index
    %47 = vector.load %arg4[%c3_25, %c0_26, %c0_27] : memref<5x16x16xf32, #tpu.memory_space<vmem>>, vector<1x16x16xf32>
    %48 = vector.shape_cast %47 : vector<1x16x16xf32> to vector<16x16xf32>
    %cst_28 = arith.constant dense<0.000000e+00> : vector<16x256xf32>
    %49 = tpu.matmul %48, %8, %cst_28 {dimension_numbers = #tpu.dot_dimension_numbers<[1], [0], [0], [1], [0, 0, 1, 1], [], []>} : vector<16x16xf32>, vector<16x256xf32>, vector<16x256xf32> -> vector<16x256xf32>
    %c8_i32_29 = arith.constant 8 : i32
    %50 = tpu.dynamic_rotate %49 by %c8_i32_29 dim 1 : vector<16x256xf32>, i32 -> vector<16x256xf32>
    %c6 = arith.constant 6 : index
    %c0_30 = arith.constant 0 : index
    %c0_31 = arith.constant 0 : index
    %51 = vector.load %arg11[%c6, %c0_30, %c0_31] : memref<9x1x256xf32, #tpu.memory_space<vmem>>, vector<1x1x256xf32>
    %52 = vector.shape_cast %51 : vector<1x1x256xf32> to vector<1x256xf32>
    %53 = vector.broadcast %52 : vector<1x256xf32> to vector<16x256xf32>
    %54 = arith.mulf %50, %53 : vector<16x256xf32>
    %55 = arith.addf %46, %54 : vector<16x256xf32>
    %c7 = arith.constant 7 : index
    %c0_32 = arith.constant 0 : index
    %c0_33 = arith.constant 0 : index
    %56 = vector.load %arg11[%c7, %c0_32, %c0_33] : memref<9x1x256xf32, #tpu.memory_space<vmem>>, vector<1x1x256xf32>
    %57 = vector.shape_cast %56 : vector<1x1x256xf32> to vector<1x256xf32>
    %58 = vector.broadcast %57 : vector<1x256xf32> to vector<16x256xf32>
    %59 = arith.mulf %49, %58 : vector<16x256xf32>
    %60 = arith.addf %55, %59 : vector<16x256xf32>
    %c248_i32_34 = arith.constant 248 : i32
    %61 = tpu.dynamic_rotate %49 by %c248_i32_34 dim 1 : vector<16x256xf32>, i32 -> vector<16x256xf32>
    %c8 = arith.constant 8 : index
    %c0_35 = arith.constant 0 : index
    %c0_36 = arith.constant 0 : index
    %62 = vector.load %arg11[%c8, %c0_35, %c0_36] : memref<9x1x256xf32, #tpu.memory_space<vmem>>, vector<1x1x256xf32>
    %63 = vector.shape_cast %62 : vector<1x1x256xf32> to vector<1x256xf32>
    %64 = vector.broadcast %63 : vector<1x256xf32> to vector<16x256xf32>
    %65 = arith.mulf %61, %64 : vector<16x256xf32>
    %66 = arith.addf %60, %65 : vector<16x256xf32>
    %c0_37 = arith.constant 0 : index
    %c0_38 = arith.constant 0 : index
    %67 = vector.load %arg12[%c0_37, %c0_38] : memref<16x1xf32, #tpu.memory_space<vmem>>, vector<16x1xf32>
    %68 = vector.broadcast %67 : vector<16x1xf32> to vector<16x256xf32>
    %69 = arith.mulf %66, %68 : vector<16x256xf32>
    %c0_39 = arith.constant 0 : index
    %c0_40 = arith.constant 0 : index
    %c0_41 = arith.constant 0 : index
    %70 = vector.load %arg13[%c0_39, %c0_40, %c0_41] : memref<6x16x128xf32, #tpu.memory_space<vmem>>, vector<1x16x128xf32>
    %71 = vector.shape_cast %70 : vector<1x16x128xf32> to vector<16x128xf32>
    %72 = vector.shape_cast %9 : vector<16x128xf32> to vector<1x16x128xf32>
    tpu.vector_store %arg13[%c0_39, %c0_40, %c0_41], %72 {strides = array<i32>} : memref<6x16x128xf32, #tpu.memory_space<vmem>>, vector<1x16x128xf32>,
    %73 = vector.extract_strided_slice %69 {offsets = [0, 128], sizes = [16, 128], strides = [1, 1]} : vector<16x256xf32> to vector<16x128xf32>
    %74 = arith.addf %73, %9 : vector<16x128xf32>
    %c3_42 = arith.constant 3 : index
    %c0_43 = arith.constant 0 : index
    %c0_44 = arith.constant 0 : index
    %75 = vector.load %arg13[%c3_42, %c0_43, %c0_44] : memref<6x16x128xf32, #tpu.memory_space<vmem>>, vector<1x16x128xf32>
    %76 = vector.shape_cast %75 : vector<1x16x128xf32> to vector<16x128xf32>
    %77 = vector.shape_cast %74 : vector<16x128xf32> to vector<1x16x128xf32>
    tpu.vector_store %arg13[%c3_42, %c0_43, %c0_44], %77 {strides = array<i32>} : memref<6x16x128xf32, #tpu.memory_space<vmem>>, vector<1x16x128xf32>,
    %78 = vector.extract_strided_slice %69 {offsets = [0, 0], sizes = [16, 128], strides = [1, 1]} : vector<16x256xf32> to vector<16x128xf32>
    %cst_45 = arith.constant 2.000000e+00 : f32
    %79 = vector.broadcast %cst_45 : f32 to vector<16x128xf32>
    %80 = arith.mulf %79, %78 : vector<16x128xf32>
    %c4_46 = arith.constant 4 : index
    %c0_47 = arith.constant 0 : index
    %c0_48 = arith.constant 0 : index
    %81 = vector.load %arg13[%c4_46, %c0_47, %c0_48] : memref<6x16x128xf32, #tpu.memory_space<vmem>>, vector<1x16x128xf32>
    %82 = vector.shape_cast %81 : vector<1x16x128xf32> to vector<16x128xf32>
    %83 = vector.shape_cast %80 : vector<16x128xf32> to vector<1x16x128xf32>
    tpu.vector_store %arg13[%c4_46, %c0_47, %c0_48], %83 {strides = array<i32>} : memref<6x16x128xf32, #tpu.memory_space<vmem>>, vector<1x16x128xf32>,
    %cst_49 = arith.constant 0.000000e+00 : f32
    %84 = vector.broadcast %cst_49 : f32 to vector<16x128xf32>
    %85 = arith.maximumf %9, %84 : vector<16x128xf32>
    %cst_50 = arith.constant 0.000000e+00 : f32
    %86 = vector.broadcast %cst_50 : f32 to vector<16x128xf32>
    %87 = arith.maximumf %10, %86 : vector<16x128xf32>
    %c0_51 = arith.constant 0 : index
    %c0_52 = arith.constant 0 : index
    %c0_53 = arith.constant 0 : index
    %88 = vector.load %arg4[%c0_51, %c0_52, %c0_53] : memref<5x16x16xf32, #tpu.memory_space<vmem>>, vector<1x16x16xf32>
    %89 = vector.shape_cast %88 : vector<1x16x16xf32> to vector<16x16xf32>
    %cst_54 = arith.constant dense<0.000000e+00> : vector<16x128xf32>
    %90 = tpu.matmul %89, %87, %cst_54 {dimension_numbers = #tpu.dot_dimension_numbers<[1], [0], [0], [1], [0, 0, 1, 1], [], []>} : vector<16x16xf32>, vector<16x128xf32>, vector<16x128xf32> -> vector<16x128xf32>
    %c16_i32 = arith.constant 16 : i32
    %91 = tpu.dynamic_rotate %90 by %c16_i32 dim 1 : vector<16x128xf32>, i32 -> vector<16x128xf32>
    %c0_55 = arith.constant 0 : index
    %c0_56 = arith.constant 0 : index
    %c0_57 = arith.constant 0 : index
    %c0_58 = arith.constant 0 : index
    %92 = vector.load %arg5[%c0_55, %c0_56, %c0_57, %c0_58] : memref<5x25x1x128xf32, #tpu.memory_space<vmem>>, vector<1x1x1x128xf32>
    %93 = vector.shape_cast %92 : vector<1x1x1x128xf32> to vector<1x128xf32>
    %94 = vector.broadcast %93 : vector<1x128xf32> to vector<16x128xf32>
    %95 = arith.mulf %91, %94 : vector<16x128xf32>
    %c8_i32_59 = arith.constant 8 : i32
    %96 = tpu.dynamic_rotate %90 by %c8_i32_59 dim 1 : vector<16x128xf32>, i32 -> vector<16x128xf32>
    %c0_60 = arith.constant 0 : index
    %c1_61 = arith.constant 1 : index
    %c0_62 = arith.constant 0 : index
    %c0_63 = arith.constant 0 : index
    %97 = vector.load %arg5[%c0_60, %c1_61, %c0_62, %c0_63] : memref<5x25x1x128xf32, #tpu.memory_space<vmem>>, vector<1x1x1x128xf32>
    %98 = vector.shape_cast %97 : vector<1x1x1x128xf32> to vector<1x128xf32>
    %99 = vector.broadcast %98 : vector<1x128xf32> to vector<16x128xf32>
    %100 = arith.mulf %96, %99 : vector<16x128xf32>
    %101 = arith.addf %95, %100 : vector<16x128xf32>
    %c0_64 = arith.constant 0 : index
    %c2_65 = arith.constant 2 : index
    %c0_66 = arith.constant 0 : index
    %c0_67 = arith.constant 0 : index
    %102 = vector.load %arg5[%c0_64, %c2_65, %c0_66, %c0_67] : memref<5x25x1x128xf32, #tpu.memory_space<vmem>>, vector<1x1x1x128xf32>
    %103 = vector.shape_cast %102 : vector<1x1x1x128xf32> to vector<1x128xf32>
    %104 = vector.broadcast %103 : vector<1x128xf32> to vector<16x128xf32>
    %105 = arith.mulf %90, %104 : vector<16x128xf32>
    %106 = arith.addf %101, %105 : vector<16x128xf32>
    %c120_i32 = arith.constant 120 : i32
    %107 = tpu.dynamic_rotate %90 by %c120_i32 dim 1 : vector<16x128xf32>, i32 -> vector<16x128xf32>
    %c0_68 = arith.constant 0 : index
    %c3_69 = arith.constant 3 : index
    %c0_70 = arith.constant 0 : index
    %c0_71 = arith.constant 0 : index
    %108 = vector.load %arg5[%c0_68, %c3_69, %c0_70, %c0_71] : memref<5x25x1x128xf32, #tpu.memory_space<vmem>>, vector<1x1x1x128xf32>
    %109 = vector.shape_cast %108 : vector<1x1x1x128xf32> to vector<1x128xf32>
    %110 = vector.broadcast %109 : vector<1x128xf32> to vector<16x128xf32>
    %111 = arith.mulf %107, %110 : vector<16x128xf32>
    %112 = arith.addf %106, %111 : vector<16x128xf32>
    %c112_i32 = arith.constant 112 : i32
    %113 = tpu.dynamic_rotate %90 by %c112_i32 dim 1 : vector<16x128xf32>, i32 -> vector<16x128xf32>
    %c0_72 = arith.constant 0 : index
    %c4_73 = arith.constant 4 : index
    %c0_74 = arith.constant 0 : index
    %c0_75 = arith.constant 0 : index
    %114 = vector.load %arg5[%c0_72, %c4_73, %c0_74, %c0_75] : memref<5x25x1x128xf32, #tpu.memory_space<vmem>>, vector<1x1x1x128xf32>
    %115 = vector.shape_cast %114 : vector<1x1x1x128xf32> to vector<1x128xf32>
    %116 = vector.broadcast %115 : vector<1x128xf32> to vector<16x128xf32>
    %117 = arith.mulf %113, %116 : vector<16x128xf32>
    %118 = arith.addf %112, %117 : vector<16x128xf32>
    %c1_76 = arith.constant 1 : index
    %c0_77 = arith.constant 0 : index
    %c0_78 = arith.constant 0 : index
    %119 = vector.load %arg4[%c1_76, %c0_77, %c0_78] : memref<5x16x16xf32, #tpu.memory_space<vmem>>, vector<1x16x16xf32>
    %120 = vector.shape_cast %119 : vector<1x16x16xf32> to vector<16x16xf32>
    %cst_79 = arith.constant dense<0.000000e+00> : vector<16x128xf32>
    %121 = tpu.matmul %120, %87, %cst_79 {dimension_numbers = #tpu.dot_dimension_numbers<[1], [0], [0], [1], [0, 0, 1, 1], [], []>} : vector<16x16xf32>, vector<16x128xf32>, vector<16x128xf32> -> vector<16x128xf32>
    %c16_i32_80 = arith.constant 16 : i32
    %122 = tpu.dynamic_rotate %121 by %c16_i32_80 dim 1 : vector<16x128xf32>, i32 -> vector<16x128xf32>
    %c0_81 = arith.constant 0 : index
    %c5_82 = arith.constant 5 : index
    %c0_83 = arith.constant 0 : index
    %c0_84 = arith.constant 0 : index
    %123 = vector.load %arg5[%c0_81, %c5_82, %c0_83, %c0_84] : memref<5x25x1x128xf32, #tpu.memory_space<vmem>>, vector<1x1x1x128xf32>
    %124 = vector.shape_cast %123 : vector<1x1x1x128xf32> to vector<1x128xf32>
    %125 = vector.broadcast %124 : vector<1x128xf32> to vector<16x128xf32>
    %126 = arith.mulf %122, %125 : vector<16x128xf32>
    %127 = arith.addf %118, %126 : vector<16x128xf32>
    %c8_i32_85 = arith.constant 8 : i32
    %128 = tpu.dynamic_rotate %121 by %c8_i32_85 dim 1 : vector<16x128xf32>, i32 -> vector<16x128xf32>
    %c0_86 = arith.constant 0 : index
    %c6_87 = arith.constant 6 : index
    %c0_88 = arith.constant 0 : index
    %c0_89 = arith.constant 0 : index
    %129 = vector.load %arg5[%c0_86, %c6_87, %c0_88, %c0_89] : memref<5x25x1x128xf32, #tpu.memory_space<vmem>>, vector<1x1x1x128xf32>
    %130 = vector.shape_cast %129 : vector<1x1x1x128xf32> to vector<1x128xf32>
    %131 = vector.broadcast %130 : vector<1x128xf32> to vector<16x128xf32>
    %132 = arith.mulf %128, %131 : vector<16x128xf32>
    %133 = arith.addf %127, %132 : vector<16x128xf32>
    %c4_90 = arith.constant 4 : index
    %c6_91 = arith.constant 6 : index
    %c0_92 = arith.constant 0 : index
    %c0_93 = arith.constant 0 : index
    %134 = vector.load %arg5[%c4_90, %c6_91, %c0_92, %c0_93] : memref<5x25x1x128xf32, #tpu.memory_space<vmem>>, vector<1x1x1x128xf32>
    %135 = vector.shape_cast %134 : vector<1x1x1x128xf32> to vector<1x128xf32>
    %136 = vector.broadcast %135 : vector<1x128xf32> to vector<16x128xf32>
    %137 = arith.mulf %128, %136 : vector<16x128xf32>
    %c0_94 = arith.constant 0 : index
    %c7_95 = arith.constant 7 : index
    %c0_96 = arith.constant 0 : index
    %c0_97 = arith.constant 0 : index
    %138 = vector.load %arg5[%c0_94, %c7_95, %c0_96, %c0_97] : memref<5x25x1x128xf32, #tpu.memory_space<vmem>>, vector<1x1x1x128xf32>
    %139 = vector.shape_cast %138 : vector<1x1x1x128xf32> to vector<1x128xf32>
    %140 = vector.broadcast %139 : vector<1x128xf32> to vector<16x128xf32>
    %141 = arith.mulf %121, %140 : vector<16x128xf32>
    %142 = arith.addf %133, %141 : vector<16x128xf32>
    %c4_98 = arith.constant 4 : index
    %c7_99 = arith.constant 7 : index
    %c0_100 = arith.constant 0 : index
    %c0_101 = arith.constant 0 : index
    %143 = vector.load %arg5[%c4_98, %c7_99, %c0_100, %c0_101] : memref<5x25x1x128xf32, #tpu.memory_space<vmem>>, vector<1x1x1x128xf32>
    %144 = vector.shape_cast %143 : vector<1x1x1x128xf32> to vector<1x128xf32>
    %145 = vector.broadcast %144 : vector<1x128xf32> to vector<16x128xf32>
    %146 = arith.mulf %121, %145 : vector<16x128xf32>
    %147 = arith.addf %137, %146 : vector<16x128xf32>
    %c120_i32_102 = arith.constant 120 : i32
    %148 = tpu.dynamic_rotate %121 by %c120_i32_102 dim 1 : vector<16x128xf32>, i32 -> vector<16x128xf32>
    %c0_103 = arith.constant 0 : index
    %c8_104 = arith.constant 8 : index
    %c0_105 = arith.constant 0 : index
    %c0_106 = arith.constant 0 : index
    %149 = vector.load %arg5[%c0_103, %c8_104, %c0_105, %c0_106] : memref<5x25x1x128xf32, #tpu.memory_space<vmem>>, vector<1x1x1x128xf32>
    %150 = vector.shape_cast %149 : vector<1x1x1x128xf32> to vector<1x128xf32>
    %151 = vector.broadcast %150 : vector<1x128xf32> to vector<16x128xf32>
    %152 = arith.mulf %148, %151 : vector<16x128xf32>
    %153 = arith.addf %142, %152 : vector<16x128xf32>
    %c4_107 = arith.constant 4 : index
    %c8_108 = arith.constant 8 : index
    %c0_109 = arith.constant 0 : index
    %c0_110 = arith.constant 0 : index
    %154 = vector.load %arg5[%c4_107, %c8_108, %c0_109, %c0_110] : memref<5x25x1x128xf32, #tpu.memory_space<vmem>>, vector<1x1x1x128xf32>
    %155 = vector.shape_cast %154 : vector<1x1x1x128xf32> to vector<1x128xf32>
    %156 = vector.broadcast %155 : vector<1x128xf32> to vector<16x128xf32>
    %157 = arith.mulf %148, %156 : vector<16x128xf32>
    %158 = arith.addf %147, %157 : vector<16x128xf32>
    %c112_i32_111 = arith.constant 112 : i32
    %159 = tpu.dynamic_rotate %121 by %c112_i32_111 dim 1 : vector<16x128xf32>, i32 -> vector<16x128xf32>
    %c0_112 = arith.constant 0 : index
    %c9 = arith.constant 9 : index
    %c0_113 = arith.constant 0 : index
    %c0_114 = arith.constant 0 : index
    %160 = vector.load %arg5[%c0_112, %c9, %c0_113, %c0_114] : memref<5x25x1x128xf32, #tpu.memory_space<vmem>>, vector<1x1x1x128xf32>
    %161 = vector.shape_cast %160 : vector<1x1x1x128xf32> to vector<1x128xf32>
    %162 = vector.broadcast %161 : vector<1x128xf32> to vector<16x128xf32>
    %163 = arith.mulf %159, %162 : vector<16x128xf32>
    %164 = arith.addf %153, %163 : vector<16x128xf32>
    %c16_i32_115 = arith.constant 16 : i32
    %165 = tpu.dynamic_rotate %87 by %c16_i32_115 dim 1 : vector<16x128xf32>, i32 -> vector<16x128xf32>
    %c0_116 = arith.constant 0 : index
    %c10 = arith.constant 10 : index
    %c0_117 = arith.constant 0 : index
    %c0_118 = arith.constant 0 : index
    %166 = vector.load %arg5[%c0_116, %c10, %c0_117, %c0_118] : memref<5x25x1x128xf32, #tpu.memory_space<vmem>>, vector<1x1x1x128xf32>
    %167 = vector.shape_cast %166 : vector<1x1x1x128xf32> to vector<1x128xf32>
    %168 = vector.broadcast %167 : vector<1x128xf32> to vector<16x128xf32>
    %169 = arith.mulf %165, %168 : vector<16x128xf32>
    %170 = arith.addf %164, %169 : vector<16x128xf32>
    %c8_i32_119 = arith.constant 8 : i32
    %171 = tpu.dynamic_rotate %87 by %c8_i32_119 dim 1 : vector<16x128xf32>, i32 -> vector<16x128xf32>
    %c0_120 = arith.constant 0 : index
    %c11 = arith.constant 11 : index
    %c0_121 = arith.constant 0 : index
    %c0_122 = arith.constant 0 : index
    %172 = vector.load %arg5[%c0_120, %c11, %c0_121, %c0_122] : memref<5x25x1x128xf32, #tpu.memory_space<vmem>>, vector<1x1x1x128xf32>
    %173 = vector.shape_cast %172 : vector<1x1x1x128xf32> to vector<1x128xf32>
    %174 = vector.broadcast %173 : vector<1x128xf32> to vector<16x128xf32>
    %175 = arith.mulf %171, %174 : vector<16x128xf32>
    %176 = arith.addf %170, %175 : vector<16x128xf32>
    %c4_123 = arith.constant 4 : index
    %c11_124 = arith.constant 11 : index
    %c0_125 = arith.constant 0 : index
    %c0_126 = arith.constant 0 : index
    %177 = vector.load %arg5[%c4_123, %c11_124, %c0_125, %c0_126] : memref<5x25x1x128xf32, #tpu.memory_space<vmem>>, vector<1x1x1x128xf32>
    %178 = vector.shape_cast %177 : vector<1x1x1x128xf32> to vector<1x128xf32>
    %179 = vector.broadcast %178 : vector<1x128xf32> to vector<16x128xf32>
    %180 = arith.mulf %171, %179 : vector<16x128xf32>
    %181 = arith.addf %158, %180 : vector<16x128xf32>
    %c0_127 = arith.constant 0 : index
    %c12 = arith.constant 12 : index
    %c0_128 = arith.constant 0 : index
    %c0_129 = arith.constant 0 : index
    %182 = vector.load %arg5[%c0_127, %c12, %c0_128, %c0_129] : memref<5x25x1x128xf32, #tpu.memory_space<vmem>>, vector<1x1x1x128xf32>
    %183 = vector.shape_cast %182 : vector<1x1x1x128xf32> to vector<1x128xf32>
    %184 = vector.broadcast %183 : vector<1x128xf32> to vector<16x128xf32>
    %185 = arith.mulf %87, %184 : vector<16x128xf32>
    %186 = arith.addf %176, %185 : vector<16x128xf32>
    %c4_130 = arith.constant 4 : index
    %c12_131 = arith.constant 12 : index
    %c0_132 = arith.constant 0 : index
    %c0_133 = arith.constant 0 : index
    %187 = vector.load %arg5[%c4_130, %c12_131, %c0_132, %c0_133] : memref<5x25x1x128xf32, #tpu.memory_space<vmem>>, vector<1x1x1x128xf32>
    %188 = vector.shape_cast %187 : vector<1x1x1x128xf32> to vector<1x128xf32>
    %189 = vector.broadcast %188 : vector<1x128xf32> to vector<16x128xf32>
    %190 = arith.mulf %87, %189 : vector<16x128xf32>
    %191 = arith.addf %181, %190 : vector<16x128xf32>
    %c120_i32_134 = arith.constant 120 : i32
    %192 = tpu.dynamic_rotate %87 by %c120_i32_134 dim 1 : vector<16x128xf32>, i32 -> vector<16x128xf32>
    %c0_135 = arith.constant 0 : index
    %c13 = arith.constant 13 : index
    %c0_136 = arith.constant 0 : index
    %c0_137 = arith.constant 0 : index
    %193 = vector.load %arg5[%c0_135, %c13, %c0_136, %c0_137] : memref<5x25x1x128xf32, #tpu.memory_space<vmem>>, vector<1x1x1x128xf32>
    %194 = vector.shape_cast %193 : vector<1x1x1x128xf32> to vector<1x128xf32>
    %195 = vector.broadcast %194 : vector<1x128xf32> to vector<16x128xf32>
    %196 = arith.mulf %192, %195 : vector<16x128xf32>
    %197 = arith.addf %186, %196 : vector<16x128xf32>
    %c4_138 = arith.constant 4 : index
    %c13_139 = arith.constant 13 : index
    %c0_140 = arith.constant 0 : index
    %c0_141 = arith.constant 0 : index
    %198 = vector.load %arg5[%c4_138, %c13_139, %c0_140, %c0_141] : memref<5x25x1x128xf32, #tpu.memory_space<vmem>>, vector<1x1x1x128xf32>
    %199 = vector.shape_cast %198 : vector<1x1x1x128xf32> to vector<1x128xf32>
    %200 = vector.broadcast %199 : vector<1x128xf32> to vector<16x128xf32>
    %201 = arith.mulf %192, %200 : vector<16x128xf32>
    %202 = arith.addf %191, %201 : vector<16x128xf32>
    %c112_i32_142 = arith.constant 112 : i32
    %203 = tpu.dynamic_rotate %87 by %c112_i32_142 dim 1 : vector<16x128xf32>, i32 -> vector<16x128xf32>
    %c0_143 = arith.constant 0 : index
    %c14 = arith.constant 14 : index
    %c0_144 = arith.constant 0 : index
    %c0_145 = arith.constant 0 : index
    %204 = vector.load %arg5[%c0_143, %c14, %c0_144, %c0_145] : memref<5x25x1x128xf32, #tpu.memory_space<vmem>>, vector<1x1x1x128xf32>
    %205 = vector.shape_cast %204 : vector<1x1x1x128xf32> to vector<1x128xf32>
    %206 = vector.broadcast %205 : vector<1x128xf32> to vector<16x128xf32>
    %207 = arith.mulf %203, %206 : vector<16x128xf32>
    %208 = arith.addf %197, %207 : vector<16x128xf32>
    %c3_146 = arith.constant 3 : index
    %c0_147 = arith.constant 0 : index
    %c0_148 = arith.constant 0 : index
    %209 = vector.load %arg4[%c3_146, %c0_147, %c0_148] : memref<5x16x16xf32, #tpu.memory_space<vmem>>, vector<1x16x16xf32>
    %210 = vector.shape_cast %209 : vector<1x16x16xf32> to vector<16x16xf32>
    %cst_149 = arith.constant dense<0.000000e+00> : vector<16x128xf32>
    %211 = tpu.matmul %210, %87, %cst_149 {dimension_numbers = #tpu.dot_dimension_numbers<[1], [0], [0], [1], [0, 0, 1, 1], [], []>} : vector<16x16xf32>, vector<16x128xf32>, vector<16x128xf32> -> vector<16x128xf32>
    %c16_i32_150 = arith.constant 16 : i32
    %212 = tpu.dynamic_rotate %211 by %c16_i32_150 dim 1 : vector<16x128xf32>, i32 -> vector<16x128xf32>
    %c0_151 = arith.constant 0 : index
    %c15 = arith.constant 15 : index
    %c0_152 = arith.constant 0 : index
    %c0_153 = arith.constant 0 : index
    %213 = vector.load %arg5[%c0_151, %c15, %c0_152, %c0_153] : memref<5x25x1x128xf32, #tpu.memory_space<vmem>>, vector<1x1x1x128xf32>
    %214 = vector.shape_cast %213 : vector<1x1x1x128xf32> to vector<1x128xf32>
    %215 = vector.broadcast %214 : vector<1x128xf32> to vector<16x128xf32>
    %216 = arith.mulf %212, %215 : vector<16x128xf32>
    %217 = arith.addf %208, %216 : vector<16x128xf32>
    %c8_i32_154 = arith.constant 8 : i32
    %218 = tpu.dynamic_rotate %211 by %c8_i32_154 dim 1 : vector<16x128xf32>, i32 -> vector<16x128xf32>
    %c0_155 = arith.constant 0 : index
    %c16 = arith.constant 16 : index
    %c0_156 = arith.constant 0 : index
    %c0_157 = arith.constant 0 : index
    %219 = vector.load %arg5[%c0_155, %c16, %c0_156, %c0_157] : memref<5x25x1x128xf32, #tpu.memory_space<vmem>>, vector<1x1x1x128xf32>
    %220 = vector.shape_cast %219 : vector<1x1x1x128xf32> to vector<1x128xf32>
    %221 = vector.broadcast %220 : vector<1x128xf32> to vector<16x128xf32>
    %222 = arith.mulf %218, %221 : vector<16x128xf32>
    %223 = arith.addf %217, %222 : vector<16x128xf32>
    %c4_158 = arith.constant 4 : index
    %c16_159 = arith.constant 16 : index
    %c0_160 = arith.constant 0 : index
    %c0_161 = arith.constant 0 : index
    %224 = vector.load %arg5[%c4_158, %c16_159, %c0_160, %c0_161] : memref<5x25x1x128xf32, #tpu.memory_space<vmem>>, vector<1x1x1x128xf32>
    %225 = vector.shape_cast %224 : vector<1x1x1x128xf32> to vector<1x128xf32>
    %226 = vector.broadcast %225 : vector<1x128xf32> to vector<16x128xf32>
    %227 = arith.mulf %218, %226 : vector<16x128xf32>
    %228 = arith.addf %202, %227 : vector<16x128xf32>
    %c0_162 = arith.constant 0 : index
    %c17 = arith.constant 17 : index
    %c0_163 = arith.constant 0 : index
    %c0_164 = arith.constant 0 : index
    %229 = vector.load %arg5[%c0_162, %c17, %c0_163, %c0_164] : memref<5x25x1x128xf32, #tpu.memory_space<vmem>>, vector<1x1x1x128xf32>
    %230 = vector.shape_cast %229 : vector<1x1x1x128xf32> to vector<1x128xf32>
    %231 = vector.broadcast %230 : vector<1x128xf32> to vector<16x128xf32>
    %232 = arith.mulf %211, %231 : vector<16x128xf32>
    %233 = arith.addf %223, %232 : vector<16x128xf32>
    %c4_165 = arith.constant 4 : index
    %c17_166 = arith.constant 17 : index
    %c0_167 = arith.constant 0 : index
    %c0_168 = arith.constant 0 : index
    %234 = vector.load %arg5[%c4_165, %c17_166, %c0_167, %c0_168] : memref<5x25x1x128xf32, #tpu.memory_space<vmem>>, vector<1x1x1x128xf32>
    %235 = vector.shape_cast %234 : vector<1x1x1x128xf32> to vector<1x128xf32>
    %236 = vector.broadcast %235 : vector<1x128xf32> to vector<16x128xf32>
    %237 = arith.mulf %211, %236 : vector<16x128xf32>
    %238 = arith.addf %228, %237 : vector<16x128xf32>
    %c120_i32_169 = arith.constant 120 : i32
    %239 = tpu.dynamic_rotate %211 by %c120_i32_169 dim 1 : vector<16x128xf32>, i32 -> vector<16x128xf32>
    %c0_170 = arith.constant 0 : index
    %c18 = arith.constant 18 : index
    %c0_171 = arith.constant 0 : index
    %c0_172 = arith.constant 0 : index
    %240 = vector.load %arg5[%c0_170, %c18, %c0_171, %c0_172] : memref<5x25x1x128xf32, #tpu.memory_space<vmem>>, vector<1x1x1x128xf32>
    %241 = vector.shape_cast %240 : vector<1x1x1x128xf32> to vector<1x128xf32>
    %242 = vector.broadcast %241 : vector<1x128xf32> to vector<16x128xf32>
    %243 = arith.mulf %239, %242 : vector<16x128xf32>
    %244 = arith.addf %233, %243 : vector<16x128xf32>
    %c4_173 = arith.constant 4 : index
    %c18_174 = arith.constant 18 : index
    %c0_175 = arith.constant 0 : index
    %c0_176 = arith.constant 0 : index
    %245 = vector.load %arg5[%c4_173, %c18_174, %c0_175, %c0_176] : memref<5x25x1x128xf32, #tpu.memory_space<vmem>>, vector<1x1x1x128xf32>
    %246 = vector.shape_cast %245 : vector<1x1x1x128xf32> to vector<1x128xf32>
    %247 = vector.broadcast %246 : vector<1x128xf32> to vector<16x128xf32>
    %248 = arith.mulf %239, %247 : vector<16x128xf32>
    %249 = arith.addf %238, %248 : vector<16x128xf32>
    %c112_i32_177 = arith.constant 112 : i32
    %250 = tpu.dynamic_rotate %211 by %c112_i32_177 dim 1 : vector<16x128xf32>, i32 -> vector<16x128xf32>
    %c0_178 = arith.constant 0 : index
    %c19 = arith.constant 19 : index
    %c0_179 = arith.constant 0 : index
    %c0_180 = arith.constant 0 : index
    %251 = vector.load %arg5[%c0_178, %c19, %c0_179, %c0_180] : memref<5x25x1x128xf32, #tpu.memory_space<vmem>>, vector<1x1x1x128xf32>
    %252 = vector.shape_cast %251 : vector<1x1x1x128xf32> to vector<1x128xf32>
    %253 = vector.broadcast %252 : vector<1x128xf32> to vector<16x128xf32>
    %254 = arith.mulf %250, %253 : vector<16x128xf32>
    %255 = arith.addf %244, %254 : vector<16x128xf32>
    %c4_181 = arith.constant 4 : index
    %c0_182 = arith.constant 0 : index
    %c0_183 = arith.constant 0 : index
    %256 = vector.load %arg4[%c4_181, %c0_182, %c0_183] : memref<5x16x16xf32, #tpu.memory_space<vmem>>, vector<1x16x16xf32>
    %257 = vector.shape_cast %256 : vector<1x16x16xf32> to vector<16x16xf32>
    %cst_184 = arith.constant dense<0.000000e+00> : vector<16x128xf32>
    %258 = tpu.matmul %257, %87, %cst_184 {dimension_numbers = #tpu.dot_dimension_numbers<[1], [0], [0], [1], [0, 0, 1, 1], [], []>} : vector<16x16xf32>, vector<16x128xf32>, vector<16x128xf32> -> vector<16x128xf32>
    %c16_i32_185 = arith.constant 16 : i32
    %259 = tpu.dynamic_rotate %258 by %c16_i32_185 dim 1 : vector<16x128xf32>, i32 -> vector<16x128xf32>
    %c0_186 = arith.constant 0 : index
    %c20 = arith.constant 20 : index
    %c0_187 = arith.constant 0 : index
    %c0_188 = arith.constant 0 : index
    %260 = vector.load %arg5[%c0_186, %c20, %c0_187, %c0_188] : memref<5x25x1x128xf32, #tpu.memory_space<vmem>>, vector<1x1x1x128xf32>
    %261 = vector.shape_cast %260 : vector<1x1x1x128xf32> to vector<1x128xf32>
    %262 = vector.broadcast %261 : vector<1x128xf32> to vector<16x128xf32>
    %263 = arith.mulf %259, %262 : vector<16x128xf32>
    %264 = arith.addf %255, %263 : vector<16x128xf32>
    %c8_i32_189 = arith.constant 8 : i32
    %265 = tpu.dynamic_rotate %258 by %c8_i32_189 dim 1 : vector<16x128xf32>, i32 -> vector<16x128xf32>
    %c0_190 = arith.constant 0 : index
    %c21 = arith.constant 21 : index
    %c0_191 = arith.constant 0 : index
    %c0_192 = arith.constant 0 : index
    %266 = vector.load %arg5[%c0_190, %c21, %c0_191, %c0_192] : memref<5x25x1x128xf32, #tpu.memory_space<vmem>>, vector<1x1x1x128xf32>
    %267 = vector.shape_cast %266 : vector<1x1x1x128xf32> to vector<1x128xf32>
    %268 = vector.broadcast %267 : vector<1x128xf32> to vector<16x128xf32>
    %269 = arith.mulf %265, %268 : vector<16x128xf32>
    %270 = arith.addf %264, %269 : vector<16x128xf32>
    %c0_193 = arith.constant 0 : index
    %c22 = arith.constant 22 : index
    %c0_194 = arith.constant 0 : index
    %c0_195 = arith.constant 0 : index
    %271 = vector.load %arg5[%c0_193, %c22, %c0_194, %c0_195] : memref<5x25x1x128xf32, #tpu.memory_space<vmem>>, vector<1x1x1x128xf32>
    %272 = vector.shape_cast %271 : vector<1x1x1x128xf32> to vector<1x128xf32>
    %273 = vector.broadcast %272 : vector<1x128xf32> to vector<16x128xf32>
    %274 = arith.mulf %258, %273 : vector<16x128xf32>
    %275 = arith.addf %270, %274 : vector<16x128xf32>
    %c120_i32_196 = arith.constant 120 : i32
    %276 = tpu.dynamic_rotate %258 by %c120_i32_196 dim 1 : vector<16x128xf32>, i32 -> vector<16x128xf32>
    %c0_197 = arith.constant 0 : index
    %c23 = arith.constant 23 : index
    %c0_198 = arith.constant 0 : index
    %c0_199 = arith.constant 0 : index
    %277 = vector.load %arg5[%c0_197, %c23, %c0_198, %c0_199] : memref<5x25x1x128xf32, #tpu.memory_space<vmem>>, vector<1x1x1x128xf32>
    %278 = vector.shape_cast %277 : vector<1x1x1x128xf32> to vector<1x128xf32>
    %279 = vector.broadcast %278 : vector<1x128xf32> to vector<16x128xf32>
    %280 = arith.mulf %276, %279 : vector<16x128xf32>
    %281 = arith.addf %275, %280 : vector<16x128xf32>
    %c112_i32_200 = arith.constant 112 : i32
    %282 = tpu.dynamic_rotate %258 by %c112_i32_200 dim 1 : vector<16x128xf32>, i32 -> vector<16x128xf32>
    %c0_201 = arith.constant 0 : index
    %c24 = arith.constant 24 : index
    %c0_202 = arith.constant 0 : index
    %c0_203 = arith.constant 0 : index
    %283 = vector.load %arg5[%c0_201, %c24, %c0_202, %c0_203] : memref<5x25x1x128xf32, #tpu.memory_space<vmem>>, vector<1x1x1x128xf32>
    %284 = vector.shape_cast %283 : vector<1x1x1x128xf32> to vector<1x128xf32>
    %285 = vector.broadcast %284 : vector<1x128xf32> to vector<16x128xf32>
    %286 = arith.mulf %282, %285 : vector<16x128xf32>
    %287 = arith.addf %281, %286 : vector<16x128xf32>
    %c0_204 = arith.constant 0 : index
    %c0_205 = arith.constant 0 : index
    %c0_206 = arith.constant 0 : index
    %288 = vector.load %arg4[%c0_204, %c0_205, %c0_206] : memref<5x16x16xf32, #tpu.memory_space<vmem>>, vector<1x16x16xf32>
    %289 = vector.shape_cast %288 : vector<1x16x16xf32> to vector<16x16xf32>
    %cst_207 = arith.constant dense<0.000000e+00> : vector<16x128xf32>
    %290 = tpu.matmul %289, %85, %cst_207 {dimension_numbers = #tpu.dot_dimension_numbers<[1], [0], [0], [1], [0, 0, 1, 1], [], []>} : vector<16x16xf32>, vector<16x128xf32>, vector<16x128xf32> -> vector<16x128xf32>
    %c16_i32_208 = arith.constant 16 : i32
    %291 = tpu.dynamic_rotate %290 by %c16_i32_208 dim 1 : vector<16x128xf32>, i32 -> vector<16x128xf32>
    %c2_209 = arith.constant 2 : index
    %c0_210 = arith.constant 0 : index
    %c0_211 = arith.constant 0 : index
    %c0_212 = arith.constant 0 : index
    %292 = vector.load %arg5[%c2_209, %c0_210, %c0_211, %c0_212] : memref<5x25x1x128xf32, #tpu.memory_space<vmem>>, vector<1x1x1x128xf32>
    %293 = vector.shape_cast %292 : vector<1x1x1x128xf32> to vector<1x128xf32>
    %294 = vector.broadcast %293 : vector<1x128xf32> to vector<16x128xf32>
    %295 = arith.mulf %291, %294 : vector<16x128xf32>
    %c8_i32_213 = arith.constant 8 : i32
    %296 = tpu.dynamic_rotate %290 by %c8_i32_213 dim 1 : vector<16x128xf32>, i32 -> vector<16x128xf32>
    %c2_214 = arith.constant 2 : index
    %c1_215 = arith.constant 1 : index
    %c0_216 = arith.constant 0 : index
    %c0_217 = arith.constant 0 : index
    %297 = vector.load %arg5[%c2_214, %c1_215, %c0_216, %c0_217] : memref<5x25x1x128xf32, #tpu.memory_space<vmem>>, vector<1x1x1x128xf32>
    %298 = vector.shape_cast %297 : vector<1x1x1x128xf32> to vector<1x128xf32>
    %299 = vector.broadcast %298 : vector<1x128xf32> to vector<16x128xf32>
    %300 = arith.mulf %296, %299 : vector<16x128xf32>
    %301 = arith.addf %295, %300 : vector<16x128xf32>
    %c2_218 = arith.constant 2 : index
    %c2_219 = arith.constant 2 : index
    %c0_220 = arith.constant 0 : index
    %c0_221 = arith.constant 0 : index
    %302 = vector.load %arg5[%c2_218, %c2_219, %c0_220, %c0_221] : memref<5x25x1x128xf32, #tpu.memory_space<vmem>>, vector<1x1x1x128xf32>
    %303 = vector.shape_cast %302 : vector<1x1x1x128xf32> to vector<1x128xf32>
    %304 = vector.broadcast %303 : vector<1x128xf32> to vector<16x128xf32>
    %305 = arith.mulf %290, %304 : vector<16x128xf32>
    %306 = arith.addf %301, %305 : vector<16x128xf32>
    %c120_i32_222 = arith.constant 120 : i32
    %307 = tpu.dynamic_rotate %290 by %c120_i32_222 dim 1 : vector<16x128xf32>, i32 -> vector<16x128xf32>
    %c2_223 = arith.constant 2 : index
    %c3_224 = arith.constant 3 : index
    %c0_225 = arith.constant 0 : index
    %c0_226 = arith.constant 0 : index
    %308 = vector.load %arg5[%c2_223, %c3_224, %c0_225, %c0_226] : memref<5x25x1x128xf32, #tpu.memory_space<vmem>>, vector<1x1x1x128xf32>
    %309 = vector.shape_cast %308 : vector<1x1x1x128xf32> to vector<1x128xf32>
    %310 = vector.broadcast %309 : vector<1x128xf32> to vector<16x128xf32>
    %311 = arith.mulf %307, %310 : vector<16x128xf32>
    %312 = arith.addf %306, %311 : vector<16x128xf32>
    %c112_i32_227 = arith.constant 112 : i32
    %313 = tpu.dynamic_rotate %290 by %c112_i32_227 dim 1 : vector<16x128xf32>, i32 -> vector<16x128xf32>
    %c2_228 = arith.constant 2 : index
    %c4_229 = arith.constant 4 : index
    %c0_230 = arith.constant 0 : index
    %c0_231 = arith.constant 0 : index
    %314 = vector.load %arg5[%c2_228, %c4_229, %c0_230, %c0_231] : memref<5x25x1x128xf32, #tpu.memory_space<vmem>>, vector<1x1x1x128xf32>
    %315 = vector.shape_cast %314 : vector<1x1x1x128xf32> to vector<1x128xf32>
    %316 = vector.broadcast %315 : vector<1x128xf32> to vector<16x128xf32>
    %317 = arith.mulf %313, %316 : vector<16x128xf32>
    %318 = arith.addf %312, %317 : vector<16x128xf32>
    %c1_232 = arith.constant 1 : index
    %c0_233 = arith.constant 0 : index
    %c0_234 = arith.constant 0 : index
    %319 = vector.load %arg4[%c1_232, %c0_233, %c0_234] : memref<5x16x16xf32, #tpu.memory_space<vmem>>, vector<1x16x16xf32>
    %320 = vector.shape_cast %319 : vector<1x16x16xf32> to vector<16x16xf32>
    %cst_235 = arith.constant dense<0.000000e+00> : vector<16x128xf32>
    %321 = tpu.matmul %320, %85, %cst_235 {dimension_numbers = #tpu.dot_dimension_numbers<[1], [0], [0], [1], [0, 0, 1, 1], [], []>} : vector<16x16xf32>, vector<16x128xf32>, vector<16x128xf32> -> vector<16x128xf32>
    %c16_i32_236 = arith.constant 16 : i32
    %322 = tpu.dynamic_rotate %321 by %c16_i32_236 dim 1 : vector<16x128xf32>, i32 -> vector<16x128xf32>
    %c2_237 = arith.constant 2 : index
    %c5_238 = arith.constant 5 : index
    %c0_239 = arith.constant 0 : index
    %c0_240 = arith.constant 0 : index
    %323 = vector.load %arg5[%c2_237, %c5_238, %c0_239, %c0_240] : memref<5x25x1x128xf32, #tpu.memory_space<vmem>>, vector<1x1x1x128xf32>
    %324 = vector.shape_cast %323 : vector<1x1x1x128xf32> to vector<1x128xf32>
    %325 = vector.broadcast %324 : vector<1x128xf32> to vector<16x128xf32>
    %326 = arith.mulf %322, %325 : vector<16x128xf32>
    %327 = arith.addf %318, %326 : vector<16x128xf32>
    %c8_i32_241 = arith.constant 8 : i32
    %328 = tpu.dynamic_rotate %321 by %c8_i32_241 dim 1 : vector<16x128xf32>, i32 -> vector<16x128xf32>
    %c1_242 = arith.constant 1 : index
    %c6_243 = arith.constant 6 : index
    %c0_244 = arith.constant 0 : index
    %c0_245 = arith.constant 0 : index
    %329 = vector.load %arg5[%c1_242, %c6_243, %c0_244, %c0_245] : memref<5x25x1x128xf32, #tpu.memory_space<vmem>>, vector<1x1x1x128xf32>
    %330 = vector.shape_cast %329 : vector<1x1x1x128xf32> to vector<1x128xf32>
    %331 = vector.broadcast %330 : vector<1x128xf32> to vector<16x128xf32>
    %332 = arith.mulf %328, %331 : vector<16x128xf32>
    %c2_246 = arith.constant 2 : index
    %c6_247 = arith.constant 6 : index
    %c0_248 = arith.constant 0 : index
    %c0_249 = arith.constant 0 : index
    %333 = vector.load %arg5[%c2_246, %c6_247, %c0_248, %c0_249] : memref<5x25x1x128xf32, #tpu.memory_space<vmem>>, vector<1x1x1x128xf32>
    %334 = vector.shape_cast %333 : vector<1x1x1x128xf32> to vector<1x128xf32>
    %335 = vector.broadcast %334 : vector<1x128xf32> to vector<16x128xf32>
    %336 = arith.mulf %328, %335 : vector<16x128xf32>
    %337 = arith.addf %327, %336 : vector<16x128xf32>
    %c3_250 = arith.constant 3 : index
    %c6_251 = arith.constant 6 : index
    %c0_252 = arith.constant 0 : index
    %c0_253 = arith.constant 0 : index
    %338 = vector.load %arg5[%c3_250, %c6_251, %c0_252, %c0_253] : memref<5x25x1x128xf32, #tpu.memory_space<vmem>>, vector<1x1x1x128xf32>
    %339 = vector.shape_cast %338 : vector<1x1x1x128xf32> to vector<1x128xf32>
    %340 = vector.broadcast %339 : vector<1x128xf32> to vector<16x128xf32>
    %341 = arith.mulf %328, %340 : vector<16x128xf32>
    %c1_254 = arith.constant 1 : index
    %c7_255 = arith.constant 7 : index
    %c0_256 = arith.constant 0 : index
    %c0_257 = arith.constant 0 : index
    %342 = vector.load %arg5[%c1_254, %c7_255, %c0_256, %c0_257] : memref<5x25x1x128xf32, #tpu.memory_space<vmem>>, vector<1x1x1x128xf32>
    %343 = vector.shape_cast %342 : vector<1x1x1x128xf32> to vector<1x128xf32>
    %344 = vector.broadcast %343 : vector<1x128xf32> to vector<16x128xf32>
    %345 = arith.mulf %321, %344 : vector<16x128xf32>
    %346 = arith.addf %332, %345 : vector<16x128xf32>
    %c2_258 = arith.constant 2 : index
    %c7_259 = arith.constant 7 : index
    %c0_260 = arith.constant 0 : index
    %c0_261 = arith.constant 0 : index
    %347 = vector.load %arg5[%c2_258, %c7_259, %c0_260, %c0_261] : memref<5x25x1x128xf32, #tpu.memory_space<vmem>>, vector<1x1x1x128xf32>
    %348 = vector.shape_cast %347 : vector<1x1x1x128xf32> to vector<1x128xf32>
    %349 = vector.broadcast %348 : vector<1x128xf32> to vector<16x128xf32>
    %350 = arith.mulf %321, %349 : vector<16x128xf32>
    %351 = arith.addf %337, %350 : vector<16x128xf32>
    %c3_262 = arith.constant 3 : index
    %c7_263 = arith.constant 7 : index
    %c0_264 = arith.constant 0 : index
    %c0_265 = arith.constant 0 : index
    %352 = vector.load %arg5[%c3_262, %c7_263, %c0_264, %c0_265] : memref<5x25x1x128xf32, #tpu.memory_space<vmem>>, vector<1x1x1x128xf32>
    %353 = vector.shape_cast %352 : vector<1x1x1x128xf32> to vector<1x128xf32>
    %354 = vector.broadcast %353 : vector<1x128xf32> to vector<16x128xf32>
    %355 = arith.mulf %321, %354 : vector<16x128xf32>
    %356 = arith.addf %341, %355 : vector<16x128xf32>
    %c120_i32_266 = arith.constant 120 : i32
    %357 = tpu.dynamic_rotate %321 by %c120_i32_266 dim 1 : vector<16x128xf32>, i32 -> vector<16x128xf32>
    %c1_267 = arith.constant 1 : index
    %c8_268 = arith.constant 8 : index
    %c0_269 = arith.constant 0 : index
    %c0_270 = arith.constant 0 : index
    %358 = vector.load %arg5[%c1_267, %c8_268, %c0_269, %c0_270] : memref<5x25x1x128xf32, #tpu.memory_space<vmem>>, vector<1x1x1x128xf32>
    %359 = vector.shape_cast %358 : vector<1x1x1x128xf32> to vector<1x128xf32>
    %360 = vector.broadcast %359 : vector<1x128xf32> to vector<16x128xf32>
    %361 = arith.mulf %357, %360 : vector<16x128xf32>
    %362 = arith.addf %346, %361 : vector<16x128xf32>
    %c2_271 = arith.constant 2 : index
    %c8_272 = arith.constant 8 : index
    %c0_273 = arith.constant 0 : index
    %c0_274 = arith.constant 0 : index
    %363 = vector.load %arg5[%c2_271, %c8_272, %c0_273, %c0_274] : memref<5x25x1x128xf32, #tpu.memory_space<vmem>>, vector<1x1x1x128xf32>
    %364 = vector.shape_cast %363 : vector<1x1x1x128xf32> to vector<1x128xf32>
    %365 = vector.broadcast %364 : vector<1x128xf32> to vector<16x128xf32>
    %366 = arith.mulf %357, %365 : vector<16x128xf32>
    %367 = arith.addf %351, %366 : vector<16x128xf32>
    %c3_275 = arith.constant 3 : index
    %c8_276 = arith.constant 8 : index
    %c0_277 = arith.constant 0 : index
    %c0_278 = arith.constant 0 : index
    %368 = vector.load %arg5[%c3_275, %c8_276, %c0_277, %c0_278] : memref<5x25x1x128xf32, #tpu.memory_space<vmem>>, vector<1x1x1x128xf32>
    %369 = vector.shape_cast %368 : vector<1x1x1x128xf32> to vector<1x128xf32>
    %370 = vector.broadcast %369 : vector<1x128xf32> to vector<16x128xf32>
    %371 = arith.mulf %357, %370 : vector<16x128xf32>
    %372 = arith.addf %356, %371 : vector<16x128xf32>
    %c112_i32_279 = arith.constant 112 : i32
    %373 = tpu.dynamic_rotate %321 by %c112_i32_279 dim 1 : vector<16x128xf32>, i32 -> vector<16x128xf32>
    %c2_280 = arith.constant 2 : index
    %c9_281 = arith.constant 9 : index
    %c0_282 = arith.constant 0 : index
    %c0_283 = arith.constant 0 : index
    %374 = vector.load %arg5[%c2_280, %c9_281, %c0_282, %c0_283] : memref<5x25x1x128xf32, #tpu.memory_space<vmem>>, vector<1x1x1x128xf32>
    %375 = vector.shape_cast %374 : vector<1x1x1x128xf32> to vector<1x128xf32>
    %376 = vector.broadcast %375 : vector<1x128xf32> to vector<16x128xf32>
    %377 = arith.mulf %373, %376 : vector<16x128xf32>
    %378 = arith.addf %367, %377 : vector<16x128xf32>
    %c16_i32_284 = arith.constant 16 : i32
    %379 = tpu.dynamic_rotate %85 by %c16_i32_284 dim 1 : vector<16x128xf32>, i32 -> vector<16x128xf32>
    %c2_285 = arith.constant 2 : index
    %c10_286 = arith.constant 10 : index
    %c0_287 = arith.constant 0 : index
    %c0_288 = arith.constant 0 : index
    %380 = vector.load %arg5[%c2_285, %c10_286, %c0_287, %c0_288] : memref<5x25x1x128xf32, #tpu.memory_space<vmem>>, vector<1x1x1x128xf32>
    %381 = vector.shape_cast %380 : vector<1x1x1x128xf32> to vector<1x128xf32>
    %382 = vector.broadcast %381 : vector<1x128xf32> to vector<16x128xf32>
    %383 = arith.mulf %379, %382 : vector<16x128xf32>
    %384 = arith.addf %378, %383 : vector<16x128xf32>
    %c8_i32_289 = arith.constant 8 : i32
    %385 = tpu.dynamic_rotate %85 by %c8_i32_289 dim 1 : vector<16x128xf32>, i32 -> vector<16x128xf32>
    %c1_290 = arith.constant 1 : index
    %c11_291 = arith.constant 11 : index
    %c0_292 = arith.constant 0 : index
    %c0_293 = arith.constant 0 : index
    %386 = vector.load %arg5[%c1_290, %c11_291, %c0_292, %c0_293] : memref<5x25x1x128xf32, #tpu.memory_space<vmem>>, vector<1x1x1x128xf32>
    %387 = vector.shape_cast %386 : vector<1x1x1x128xf32> to vector<1x128xf32>
    %388 = vector.broadcast %387 : vector<1x128xf32> to vector<16x128xf32>
    %389 = arith.mulf %385, %388 : vector<16x128xf32>
    %390 = arith.addf %362, %389 : vector<16x128xf32>
    %c2_294 = arith.constant 2 : index
    %c11_295 = arith.constant 11 : index
    %c0_296 = arith.constant 0 : index
    %c0_297 = arith.constant 0 : index
    %391 = vector.load %arg5[%c2_294, %c11_295, %c0_296, %c0_297] : memref<5x25x1x128xf32, #tpu.memory_space<vmem>>, vector<1x1x1x128xf32>
    %392 = vector.shape_cast %391 : vector<1x1x1x128xf32> to vector<1x128xf32>
    %393 = vector.broadcast %392 : vector<1x128xf32> to vector<16x128xf32>
    %394 = arith.mulf %385, %393 : vector<16x128xf32>
    %395 = arith.addf %384, %394 : vector<16x128xf32>
    %c3_298 = arith.constant 3 : index
    %c11_299 = arith.constant 11 : index
    %c0_300 = arith.constant 0 : index
    %c0_301 = arith.constant 0 : index
    %396 = vector.load %arg5[%c3_298, %c11_299, %c0_300, %c0_301] : memref<5x25x1x128xf32, #tpu.memory_space<vmem>>, vector<1x1x1x128xf32>
    %397 = vector.shape_cast %396 : vector<1x1x1x128xf32> to vector<1x128xf32>
    %398 = vector.broadcast %397 : vector<1x128xf32> to vector<16x128xf32>
    %399 = arith.mulf %385, %398 : vector<16x128xf32>
    %400 = arith.addf %372, %399 : vector<16x128xf32>
    %c1_302 = arith.constant 1 : index
    %c12_303 = arith.constant 12 : index
    %c0_304 = arith.constant 0 : index
    %c0_305 = arith.constant 0 : index
    %401 = vector.load %arg5[%c1_302, %c12_303, %c0_304, %c0_305] : memref<5x25x1x128xf32, #tpu.memory_space<vmem>>, vector<1x1x1x128xf32>
    %402 = vector.shape_cast %401 : vector<1x1x1x128xf32> to vector<1x128xf32>
    %403 = vector.broadcast %402 : vector<1x128xf32> to vector<16x128xf32>
    %404 = arith.mulf %85, %403 : vector<16x128xf32>
    %405 = arith.addf %390, %404 : vector<16x128xf32>
    %c2_306 = arith.constant 2 : index
    %c12_307 = arith.constant 12 : index
    %c0_308 = arith.constant 0 : index
    %c0_309 = arith.constant 0 : index
    %406 = vector.load %arg5[%c2_306, %c12_307, %c0_308, %c0_309] : memref<5x25x1x128xf32, #tpu.memory_space<vmem>>, vector<1x1x1x128xf32>
    %407 = vector.shape_cast %406 : vector<1x1x1x128xf32> to vector<1x128xf32>
    %408 = vector.broadcast %407 : vector<1x128xf32> to vector<16x128xf32>
    %409 = arith.mulf %85, %408 : vector<16x128xf32>
    %410 = arith.addf %395, %409 : vector<16x128xf32>
    %c3_310 = arith.constant 3 : index
    %c12_311 = arith.constant 12 : index
    %c0_312 = arith.constant 0 : index
    %c0_313 = arith.constant 0 : index
    %411 = vector.load %arg5[%c3_310, %c12_311, %c0_312, %c0_313] : memref<5x25x1x128xf32, #tpu.memory_space<vmem>>, vector<1x1x1x128xf32>
    %412 = vector.shape_cast %411 : vector<1x1x1x128xf32> to vector<1x128xf32>
    %413 = vector.broadcast %412 : vector<1x128xf32> to vector<16x128xf32>
    %414 = arith.mulf %85, %413 : vector<16x128xf32>
    %415 = arith.addf %400, %414 : vector<16x128xf32>
    %c120_i32_314 = arith.constant 120 : i32
    %416 = tpu.dynamic_rotate %85 by %c120_i32_314 dim 1 : vector<16x128xf32>, i32 -> vector<16x128xf32>
    %c1_315 = arith.constant 1 : index
    %c13_316 = arith.constant 13 : index
    %c0_317 = arith.constant 0 : index
    %c0_318 = arith.constant 0 : index
    %417 = vector.load %arg5[%c1_315, %c13_316, %c0_317, %c0_318] : memref<5x25x1x128xf32, #tpu.memory_space<vmem>>, vector<1x1x1x128xf32>
    %418 = vector.shape_cast %417 : vector<1x1x1x128xf32> to vector<1x128xf32>
    %419 = vector.broadcast %418 : vector<1x128xf32> to vector<16x128xf32>
    %420 = arith.mulf %416, %419 : vector<16x128xf32>
    %421 = arith.addf %405, %420 : vector<16x128xf32>
    %c2_319 = arith.constant 2 : index
    %c13_320 = arith.constant 13 : index
    %c0_321 = arith.constant 0 : index
    %c0_322 = arith.constant 0 : index
    %422 = vector.load %arg5[%c2_319, %c13_320, %c0_321, %c0_322] : memref<5x25x1x128xf32, #tpu.memory_space<vmem>>, vector<1x1x1x128xf32>
    %423 = vector.shape_cast %422 : vector<1x1x1x128xf32> to vector<1x128xf32>
    %424 = vector.broadcast %423 : vector<1x128xf32> to vector<16x128xf32>
    %425 = arith.mulf %416, %424 : vector<16x128xf32>
    %426 = arith.addf %410, %425 : vector<16x128xf32>
    %c3_323 = arith.constant 3 : index
    %c13_324 = arith.constant 13 : index
    %c0_325 = arith.constant 0 : index
    %c0_326 = arith.constant 0 : index
    %427 = vector.load %arg5[%c3_323, %c13_324, %c0_325, %c0_326] : memref<5x25x1x128xf32, #tpu.memory_space<vmem>>, vector<1x1x1x128xf32>
    %428 = vector.shape_cast %427 : vector<1x1x1x128xf32> to vector<1x128xf32>
    %429 = vector.broadcast %428 : vector<1x128xf32> to vector<16x128xf32>
    %430 = arith.mulf %416, %429 : vector<16x128xf32>
    %431 = arith.addf %415, %430 : vector<16x128xf32>
    %c112_i32_327 = arith.constant 112 : i32
    %432 = tpu.dynamic_rotate %85 by %c112_i32_327 dim 1 : vector<16x128xf32>, i32 -> vector<16x128xf32>
    %c2_328 = arith.constant 2 : index
    %c14_329 = arith.constant 14 : index
    %c0_330 = arith.constant 0 : index
    %c0_331 = arith.constant 0 : index
    %433 = vector.load %arg5[%c2_328, %c14_329, %c0_330, %c0_331] : memref<5x25x1x128xf32, #tpu.memory_space<vmem>>, vector<1x1x1x128xf32>
    %434 = vector.shape_cast %433 : vector<1x1x1x128xf32> to vector<1x128xf32>
    %435 = vector.broadcast %434 : vector<1x128xf32> to vector<16x128xf32>
    %436 = arith.mulf %432, %435 : vector<16x128xf32>
    %437 = arith.addf %426, %436 : vector<16x128xf32>
    %c3_332 = arith.constant 3 : index
    %c0_333 = arith.constant 0 : index
    %c0_334 = arith.constant 0 : index
    %438 = vector.load %arg4[%c3_332, %c0_333, %c0_334] : memref<5x16x16xf32, #tpu.memory_space<vmem>>, vector<1x16x16xf32>
    %439 = vector.shape_cast %438 : vector<1x16x16xf32> to vector<16x16xf32>
    %cst_335 = arith.constant dense<0.000000e+00> : vector<16x128xf32>
    %440 = tpu.matmul %439, %85, %cst_335 {dimension_numbers = #tpu.dot_dimension_numbers<[1], [0], [0], [1], [0, 0, 1, 1], [], []>} : vector<16x16xf32>, vector<16x128xf32>, vector<16x128xf32> -> vector<16x128xf32>
    %c16_i32_336 = arith.constant 16 : i32
    %441 = tpu.dynamic_rotate %440 by %c16_i32_336 dim 1 : vector<16x128xf32>, i32 -> vector<16x128xf32>
    %c2_337 = arith.constant 2 : index
    %c15_338 = arith.constant 15 : index
    %c0_339 = arith.constant 0 : index
    %c0_340 = arith.constant 0 : index
    %442 = vector.load %arg5[%c2_337, %c15_338, %c0_339, %c0_340] : memref<5x25x1x128xf32, #tpu.memory_space<vmem>>, vector<1x1x1x128xf32>
    %443 = vector.shape_cast %442 : vector<1x1x1x128xf32> to vector<1x128xf32>
    %444 = vector.broadcast %443 : vector<1x128xf32> to vector<16x128xf32>
    %445 = arith.mulf %441, %444 : vector<16x128xf32>
    %446 = arith.addf %437, %445 : vector<16x128xf32>
    %c8_i32_341 = arith.constant 8 : i32
    %447 = tpu.dynamic_rotate %440 by %c8_i32_341 dim 1 : vector<16x128xf32>, i32 -> vector<16x128xf32>
    %c1_342 = arith.constant 1 : index
    %c16_343 = arith.constant 16 : index
    %c0_344 = arith.constant 0 : index
    %c0_345 = arith.constant 0 : index
    %448 = vector.load %arg5[%c1_342, %c16_343, %c0_344, %c0_345] : memref<5x25x1x128xf32, #tpu.memory_space<vmem>>, vector<1x1x1x128xf32>
    %449 = vector.shape_cast %448 : vector<1x1x1x128xf32> to vector<1x128xf32>
    %450 = vector.broadcast %449 : vector<1x128xf32> to vector<16x128xf32>
    %451 = arith.mulf %447, %450 : vector<16x128xf32>
    %452 = arith.addf %421, %451 : vector<16x128xf32>
    %c2_346 = arith.constant 2 : index
    %c16_347 = arith.constant 16 : index
    %c0_348 = arith.constant 0 : index
    %c0_349 = arith.constant 0 : index
    %453 = vector.load %arg5[%c2_346, %c16_347, %c0_348, %c0_349] : memref<5x25x1x128xf32, #tpu.memory_space<vmem>>, vector<1x1x1x128xf32>
    %454 = vector.shape_cast %453 : vector<1x1x1x128xf32> to vector<1x128xf32>
    %455 = vector.broadcast %454 : vector<1x128xf32> to vector<16x128xf32>
    %456 = arith.mulf %447, %455 : vector<16x128xf32>
    %457 = arith.addf %446, %456 : vector<16x128xf32>
    %c3_350 = arith.constant 3 : index
    %c16_351 = arith.constant 16 : index
    %c0_352 = arith.constant 0 : index
    %c0_353 = arith.constant 0 : index
    %458 = vector.load %arg5[%c3_350, %c16_351, %c0_352, %c0_353] : memref<5x25x1x128xf32, #tpu.memory_space<vmem>>, vector<1x1x1x128xf32>
    %459 = vector.shape_cast %458 : vector<1x1x1x128xf32> to vector<1x128xf32>
    %460 = vector.broadcast %459 : vector<1x128xf32> to vector<16x128xf32>
    %461 = arith.mulf %447, %460 : vector<16x128xf32>
    %462 = arith.addf %431, %461 : vector<16x128xf32>
    %c1_354 = arith.constant 1 : index
    %c17_355 = arith.constant 17 : index
    %c0_356 = arith.constant 0 : index
    %c0_357 = arith.constant 0 : index
    %463 = vector.load %arg5[%c1_354, %c17_355, %c0_356, %c0_357] : memref<5x25x1x128xf32, #tpu.memory_space<vmem>>, vector<1x1x1x128xf32>
    %464 = vector.shape_cast %463 : vector<1x1x1x128xf32> to vector<1x128xf32>
    %465 = vector.broadcast %464 : vector<1x128xf32> to vector<16x128xf32>
    %466 = arith.mulf %440, %465 : vector<16x128xf32>
    %467 = arith.addf %452, %466 : vector<16x128xf32>
    %c2_358 = arith.constant 2 : index
    %c17_359 = arith.constant 17 : index
    %c0_360 = arith.constant 0 : index
    %c0_361 = arith.constant 0 : index
    %468 = vector.load %arg5[%c2_358, %c17_359, %c0_360, %c0_361] : memref<5x25x1x128xf32, #tpu.memory_space<vmem>>, vector<1x1x1x128xf32>
    %469 = vector.shape_cast %468 : vector<1x1x1x128xf32> to vector<1x128xf32>
    %470 = vector.broadcast %469 : vector<1x128xf32> to vector<16x128xf32>
    %471 = arith.mulf %440, %470 : vector<16x128xf32>
    %472 = arith.addf %457, %471 : vector<16x128xf32>
    %c3_362 = arith.constant 3 : index
    %c17_363 = arith.constant 17 : index
    %c0_364 = arith.constant 0 : index
    %c0_365 = arith.constant 0 : index
    %473 = vector.load %arg5[%c3_362, %c17_363, %c0_364, %c0_365] : memref<5x25x1x128xf32, #tpu.memory_space<vmem>>, vector<1x1x1x128xf32>
    %474 = vector.shape_cast %473 : vector<1x1x1x128xf32> to vector<1x128xf32>
    %475 = vector.broadcast %474 : vector<1x128xf32> to vector<16x128xf32>
    %476 = arith.mulf %440, %475 : vector<16x128xf32>
    %477 = arith.addf %462, %476 : vector<16x128xf32>
    %c120_i32_366 = arith.constant 120 : i32
    %478 = tpu.dynamic_rotate %440 by %c120_i32_366 dim 1 : vector<16x128xf32>, i32 -> vector<16x128xf32>
    %c1_367 = arith.constant 1 : index
    %c18_368 = arith.constant 18 : index
    %c0_369 = arith.constant 0 : index
    %c0_370 = arith.constant 0 : index
    %479 = vector.load %arg5[%c1_367, %c18_368, %c0_369, %c0_370] : memref<5x25x1x128xf32, #tpu.memory_space<vmem>>, vector<1x1x1x128xf32>
    %480 = vector.shape_cast %479 : vector<1x1x1x128xf32> to vector<1x128xf32>
    %481 = vector.broadcast %480 : vector<1x128xf32> to vector<16x128xf32>
    %482 = arith.mulf %478, %481 : vector<16x128xf32>
    %483 = arith.addf %467, %482 : vector<16x128xf32>
    %c2_371 = arith.constant 2 : index
    %c18_372 = arith.constant 18 : index
    %c0_373 = arith.constant 0 : index
    %c0_374 = arith.constant 0 : index
    %484 = vector.load %arg5[%c2_371, %c18_372, %c0_373, %c0_374] : memref<5x25x1x128xf32, #tpu.memory_space<vmem>>, vector<1x1x1x128xf32>
    %485 = vector.shape_cast %484 : vector<1x1x1x128xf32> to vector<1x128xf32>
    %486 = vector.broadcast %485 : vector<1x128xf32> to vector<16x128xf32>
    %487 = arith.mulf %478, %486 : vector<16x128xf32>
    %488 = arith.addf %472, %487 : vector<16x128xf32>
    %c3_375 = arith.constant 3 : index
    %c18_376 = arith.constant 18 : index
    %c0_377 = arith.constant 0 : index
    %c0_378 = arith.constant 0 : index
    %489 = vector.load %arg5[%c3_375, %c18_376, %c0_377, %c0_378] : memref<5x25x1x128xf32, #tpu.memory_space<vmem>>, vector<1x1x1x128xf32>
    %490 = vector.shape_cast %489 : vector<1x1x1x128xf32> to vector<1x128xf32>
    %491 = vector.broadcast %490 : vector<1x128xf32> to vector<16x128xf32>
    %492 = arith.mulf %478, %491 : vector<16x128xf32>
    %493 = arith.addf %477, %492 : vector<16x128xf32>
    %c112_i32_379 = arith.constant 112 : i32
    %494 = tpu.dynamic_rotate %440 by %c112_i32_379 dim 1 : vector<16x128xf32>, i32 -> vector<16x128xf32>
    %c2_380 = arith.constant 2 : index
    %c19_381 = arith.constant 19 : index
    %c0_382 = arith.constant 0 : index
    %c0_383 = arith.constant 0 : index
    %495 = vector.load %arg5[%c2_380, %c19_381, %c0_382, %c0_383] : memref<5x25x1x128xf32, #tpu.memory_space<vmem>>, vector<1x1x1x128xf32>
    %496 = vector.shape_cast %495 : vector<1x1x1x128xf32> to vector<1x128xf32>
    %497 = vector.broadcast %496 : vector<1x128xf32> to vector<16x128xf32>
    %498 = arith.mulf %494, %497 : vector<16x128xf32>
    %499 = arith.addf %488, %498 : vector<16x128xf32>
    %c4_384 = arith.constant 4 : index
    %c0_385 = arith.constant 0 : index
    %c0_386 = arith.constant 0 : index
    %500 = vector.load %arg4[%c4_384, %c0_385, %c0_386] : memref<5x16x16xf32, #tpu.memory_space<vmem>>, vector<1x16x16xf32>
    %501 = vector.shape_cast %500 : vector<1x16x16xf32> to vector<16x16xf32>
    %cst_387 = arith.constant dense<0.000000e+00> : vector<16x128xf32>
    %502 = tpu.matmul %501, %85, %cst_387 {dimension_numbers = #tpu.dot_dimension_numbers<[1], [0], [0], [1], [0, 0, 1, 1], [], []>} : vector<16x16xf32>, vector<16x128xf32>, vector<16x128xf32> -> vector<16x128xf32>
    %c16_i32_388 = arith.constant 16 : i32
    %503 = tpu.dynamic_rotate %502 by %c16_i32_388 dim 1 : vector<16x128xf32>, i32 -> vector<16x128xf32>
    %c2_389 = arith.constant 2 : index
    %c20_390 = arith.constant 20 : index
    %c0_391 = arith.constant 0 : index
    %c0_392 = arith.constant 0 : index
    %504 = vector.load %arg5[%c2_389, %c20_390, %c0_391, %c0_392] : memref<5x25x1x128xf32, #tpu.memory_space<vmem>>, vector<1x1x1x128xf32>
    %505 = vector.shape_cast %504 : vector<1x1x1x128xf32> to vector<1x128xf32>
    %506 = vector.broadcast %505 : vector<1x128xf32> to vector<16x128xf32>
    %507 = arith.mulf %503, %506 : vector<16x128xf32>
    %508 = arith.addf %499, %507 : vector<16x128xf32>
    %c8_i32_393 = arith.constant 8 : i32
    %509 = tpu.dynamic_rotate %502 by %c8_i32_393 dim 1 : vector<16x128xf32>, i32 -> vector<16x128xf32>
    %c2_394 = arith.constant 2 : index
    %c21_395 = arith.constant 21 : index
    %c0_396 = arith.constant 0 : index
    %c0_397 = arith.constant 0 : index
    %510 = vector.load %arg5[%c2_394, %c21_395, %c0_396, %c0_397] : memref<5x25x1x128xf32, #tpu.memory_space<vmem>>, vector<1x1x1x128xf32>
    %511 = vector.shape_cast %510 : vector<1x1x1x128xf32> to vector<1x128xf32>
    %512 = vector.broadcast %511 : vector<1x128xf32> to vector<16x128xf32>
    %513 = arith.mulf %509, %512 : vector<16x128xf32>
    %514 = arith.addf %508, %513 : vector<16x128xf32>
    %c2_398 = arith.constant 2 : index
    %c22_399 = arith.constant 22 : index
    %c0_400 = arith.constant 0 : index
    %c0_401 = arith.constant 0 : index
    %515 = vector.load %arg5[%c2_398, %c22_399, %c0_400, %c0_401] : memref<5x25x1x128xf32, #tpu.memory_space<vmem>>, vector<1x1x1x128xf32>
    %516 = vector.shape_cast %515 : vector<1x1x1x128xf32> to vector<1x128xf32>
    %517 = vector.broadcast %516 : vector<1x128xf32> to vector<16x128xf32>
    %518 = arith.mulf %502, %517 : vector<16x128xf32>
    %519 = arith.addf %514, %518 : vector<16x128xf32>
    %c120_i32_402 = arith.constant 120 : i32
    %520 = tpu.dynamic_rotate %502 by %c120_i32_402 dim 1 : vector<16x128xf32>, i32 -> vector<16x128xf32>
    %c2_403 = arith.constant 2 : index
    %c23_404 = arith.constant 23 : index
    %c0_405 = arith.constant 0 : index
    %c0_406 = arith.constant 0 : index
    %521 = vector.load %arg5[%c2_403, %c23_404, %c0_405, %c0_406] : memref<5x25x1x128xf32, #tpu.memory_space<vmem>>, vector<1x1x1x128xf32>
    %522 = vector.shape_cast %521 : vector<1x1x1x128xf32> to vector<1x128xf32>
    %523 = vector.broadcast %522 : vector<1x128xf32> to vector<16x128xf32>
    %524 = arith.mulf %520, %523 : vector<16x128xf32>
    %525 = arith.addf %519, %524 : vector<16x128xf32>
    %c112_i32_407 = arith.constant 112 : i32
    %526 = tpu.dynamic_rotate %502 by %c112_i32_407 dim 1 : vector<16x128xf32>, i32 -> vector<16x128xf32>
    %c2_408 = arith.constant 2 : index
    %c24_409 = arith.constant 24 : index
    %c0_410 = arith.constant 0 : index
    %c0_411 = arith.constant 0 : index
    %527 = vector.load %arg5[%c2_408, %c24_409, %c0_410, %c0_411] : memref<5x25x1x128xf32, #tpu.memory_space<vmem>>, vector<1x1x1x128xf32>
    %528 = vector.shape_cast %527 : vector<1x1x1x128xf32> to vector<1x128xf32>
    %529 = vector.broadcast %528 : vector<1x128xf32> to vector<16x128xf32>
    %530 = arith.mulf %526, %529 : vector<16x128xf32>
    %531 = arith.addf %525, %530 : vector<16x128xf32>
    %532 = arith.truncf %287 : vector<16x128xf32> to vector<16x128xbf16>
    %c0_412 = arith.constant 0 : index
    %c0_413 = arith.constant 0 : index
    %c0_414 = arith.constant 0 : index
    %533 = vector.load %arg6[%c0_412, %c0_413, %c0_414] : memref<5x128x128xbf16, #tpu.memory_space<vmem>>, vector<1x128x128xbf16>
    %534 = vector.shape_cast %533 : vector<1x128x128xbf16> to vector<128x128xbf16>
    %cst_415 = arith.constant dense<0.000000e+00> : vector<16x128xf32>
    %535 = tpu.matmul %532, %534, %cst_415 {dimension_numbers = #tpu.dot_dimension_numbers<[1], [0], [0], [1], [0, 0, 1, 1], [], []>} : vector<16x128xbf16>, vector<128x128xbf16>, vector<16x128xf32> -> vector<16x128xf32>
    %c0_416 = arith.constant 0 : index
    %c0_417 = arith.constant 0 : index
    %c0_418 = arith.constant 0 : index
    %536 = vector.load %arg7[%c0_416, %c0_417, %c0_418] : memref<5x1x128xf32, #tpu.memory_space<vmem>>, vector<1x1x128xf32>
    %537 = vector.shape_cast %536 : vector<1x1x128xf32> to vector<1x128xf32>
    %538 = vector.broadcast %537 : vector<1x128xf32> to vector<16x128xf32>
    %539 = arith.addf %535, %538 : vector<16x128xf32>
    %cst_419 = arith.constant 0.000000e+00 : f32
    %540 = vector.broadcast %cst_419 : f32 to vector<16x128xf32>
    %541 = arith.maximumf %539, %540 : vector<16x128xf32>
    %c0_420 = arith.constant 0 : index
    %c0_421 = arith.constant 0 : index
    %c0_422 = arith.constant 0 : index
    %542 = vector.load %arg4[%c0_420, %c0_421, %c0_422] : memref<5x16x16xf32, #tpu.memory_space<vmem>>, vector<1x16x16xf32>
    %543 = vector.shape_cast %542 : vector<1x16x16xf32> to vector<16x16xf32>
    %cst_423 = arith.constant dense<0.000000e+00> : vector<16x128xf32>
    %544 = tpu.matmul %543, %541, %cst_423 {dimension_numbers = #tpu.dot_dimension_numbers<[1], [0], [0], [1], [0, 0, 1, 1], [], []>} : vector<16x16xf32>, vector<16x128xf32>, vector<16x128xf32> -> vector<16x128xf32>
    %c16_i32_424 = arith.constant 16 : i32
    %545 = tpu.dynamic_rotate %544 by %c16_i32_424 dim 1 : vector<16x128xf32>, i32 -> vector<16x128xf32>
    %c0_425 = arith.constant 0 : index
    %c0_426 = arith.constant 0 : index
    %c0_427 = arith.constant 0 : index
    %c0_428 = arith.constant 0 : index
    %546 = vector.load %arg8[%c0_425, %c0_426, %c0_427, %c0_428] : memref<5x25x1x128xf32, #tpu.memory_space<vmem>>, vector<1x1x1x128xf32>
    %547 = vector.shape_cast %546 : vector<1x1x1x128xf32> to vector<1x128xf32>
    %548 = vector.broadcast %547 : vector<1x128xf32> to vector<16x128xf32>
    %549 = arith.mulf %545, %548 : vector<16x128xf32>
    %c8_i32_429 = arith.constant 8 : i32
    %550 = tpu.dynamic_rotate %544 by %c8_i32_429 dim 1 : vector<16x128xf32>, i32 -> vector<16x128xf32>
    %c0_430 = arith.constant 0 : index
    %c1_431 = arith.constant 1 : index
    %c0_432 = arith.constant 0 : index
    %c0_433 = arith.constant 0 : index
    %551 = vector.load %arg8[%c0_430, %c1_431, %c0_432, %c0_433] : memref<5x25x1x128xf32, #tpu.memory_space<vmem>>, vector<1x1x1x128xf32>
    %552 = vector.shape_cast %551 : vector<1x1x1x128xf32> to vector<1x128xf32>
    %553 = vector.broadcast %552 : vector<1x128xf32> to vector<16x128xf32>
    %554 = arith.mulf %550, %553 : vector<16x128xf32>
    %555 = arith.addf %549, %554 : vector<16x128xf32>
    %c0_434 = arith.constant 0 : index
    %c2_435 = arith.constant 2 : index
    %c0_436 = arith.constant 0 : index
    %c0_437 = arith.constant 0 : index
    %556 = vector.load %arg8[%c0_434, %c2_435, %c0_436, %c0_437] : memref<5x25x1x128xf32, #tpu.memory_space<vmem>>, vector<1x1x1x128xf32>
    %557 = vector.shape_cast %556 : vector<1x1x1x128xf32> to vector<1x128xf32>
    %558 = vector.broadcast %557 : vector<1x128xf32> to vector<16x128xf32>
    %559 = arith.mulf %544, %558 : vector<16x128xf32>
    %560 = arith.addf %555, %559 : vector<16x128xf32>
    %c120_i32_438 = arith.constant 120 : i32
    %561 = tpu.dynamic_rotate %544 by %c120_i32_438 dim 1 : vector<16x128xf32>, i32 -> vector<16x128xf32>
    %c0_439 = arith.constant 0 : index
    %c3_440 = arith.constant 3 : index
    %c0_441 = arith.constant 0 : index
    %c0_442 = arith.constant 0 : index
    %562 = vector.load %arg8[%c0_439, %c3_440, %c0_441, %c0_442] : memref<5x25x1x128xf32, #tpu.memory_space<vmem>>, vector<1x1x1x128xf32>
    %563 = vector.shape_cast %562 : vector<1x1x1x128xf32> to vector<1x128xf32>
    %564 = vector.broadcast %563 : vector<1x128xf32> to vector<16x128xf32>
    %565 = arith.mulf %561, %564 : vector<16x128xf32>
    %566 = arith.addf %560, %565 : vector<16x128xf32>
    %c112_i32_443 = arith.constant 112 : i32
    %567 = tpu.dynamic_rotate %544 by %c112_i32_443 dim 1 : vector<16x128xf32>, i32 -> vector<16x128xf32>
    %c0_444 = arith.constant 0 : index
    %c4_445 = arith.constant 4 : index
    %c0_446 = arith.constant 0 : index
    %c0_447 = arith.constant 0 : index
    %568 = vector.load %arg8[%c0_444, %c4_445, %c0_446, %c0_447] : memref<5x25x1x128xf32, #tpu.memory_space<vmem>>, vector<1x1x1x128xf32>
    %569 = vector.shape_cast %568 : vector<1x1x1x128xf32> to vector<1x128xf32>
    %570 = vector.broadcast %569 : vector<1x128xf32> to vector<16x128xf32>
    %571 = arith.mulf %567, %570 : vector<16x128xf32>
    %572 = arith.addf %566, %571 : vector<16x128xf32>
    %c1_448 = arith.constant 1 : index
    %c0_449 = arith.constant 0 : index
    %c0_450 = arith.constant 0 : index
    %573 = vector.load %arg4[%c1_448, %c0_449, %c0_450] : memref<5x16x16xf32, #tpu.memory_space<vmem>>, vector<1x16x16xf32>
    %574 = vector.shape_cast %573 : vector<1x16x16xf32> to vector<16x16xf32>
    %cst_451 = arith.constant dense<0.000000e+00> : vector<16x128xf32>
    %575 = tpu.matmul %574, %541, %cst_451 {dimension_numbers = #tpu.dot_dimension_numbers<[1], [0], [0], [1], [0, 0, 1, 1], [], []>} : vector<16x16xf32>, vector<16x128xf32>, vector<16x128xf32> -> vector<16x128xf32>
    %c16_i32_452 = arith.constant 16 : i32
    %576 = tpu.dynamic_rotate %575 by %c16_i32_452 dim 1 : vector<16x128xf32>, i32 -> vector<16x128xf32>
    %c0_453 = arith.constant 0 : index
    %c5_454 = arith.constant 5 : index
    %c0_455 = arith.constant 0 : index
    %c0_456 = arith.constant 0 : index
    %577 = vector.load %arg8[%c0_453, %c5_454, %c0_455, %c0_456] : memref<5x25x1x128xf32, #tpu.memory_space<vmem>>, vector<1x1x1x128xf32>
    %578 = vector.shape_cast %577 : vector<1x1x1x128xf32> to vector<1x128xf32>
    %579 = vector.broadcast %578 : vector<1x128xf32> to vector<16x128xf32>
    %580 = arith.mulf %576, %579 : vector<16x128xf32>
    %581 = arith.addf %572, %580 : vector<16x128xf32>
    %c8_i32_457 = arith.constant 8 : i32
    %582 = tpu.dynamic_rotate %575 by %c8_i32_457 dim 1 : vector<16x128xf32>, i32 -> vector<16x128xf32>
    %c0_458 = arith.constant 0 : index
    %c6_459 = arith.constant 6 : index
    %c0_460 = arith.constant 0 : index
    %c0_461 = arith.constant 0 : index
    %583 = vector.load %arg8[%c0_458, %c6_459, %c0_460, %c0_461] : memref<5x25x1x128xf32, #tpu.memory_space<vmem>>, vector<1x1x1x128xf32>
    %584 = vector.shape_cast %583 : vector<1x1x1x128xf32> to vector<1x128xf32>
    %585 = vector.broadcast %584 : vector<1x128xf32> to vector<16x128xf32>
    %586 = arith.mulf %582, %585 : vector<16x128xf32>
    %587 = arith.addf %581, %586 : vector<16x128xf32>
    %c0_462 = arith.constant 0 : index
    %c7_463 = arith.constant 7 : index
    %c0_464 = arith.constant 0 : index
    %c0_465 = arith.constant 0 : index
    %588 = vector.load %arg8[%c0_462, %c7_463, %c0_464, %c0_465] : memref<5x25x1x128xf32, #tpu.memory_space<vmem>>, vector<1x1x1x128xf32>
    %589 = vector.shape_cast %588 : vector<1x1x1x128xf32> to vector<1x128xf32>
    %590 = vector.broadcast %589 : vector<1x128xf32> to vector<16x128xf32>
    %591 = arith.mulf %575, %590 : vector<16x128xf32>
    %592 = arith.addf %587, %591 : vector<16x128xf32>
    %c120_i32_466 = arith.constant 120 : i32
    %593 = tpu.dynamic_rotate %575 by %c120_i32_466 dim 1 : vector<16x128xf32>, i32 -> vector<16x128xf32>
    %c0_467 = arith.constant 0 : index
    %c8_468 = arith.constant 8 : index
    %c0_469 = arith.constant 0 : index
    %c0_470 = arith.constant 0 : index
    %594 = vector.load %arg8[%c0_467, %c8_468, %c0_469, %c0_470] : memref<5x25x1x128xf32, #tpu.memory_space<vmem>>, vector<1x1x1x128xf32>
    %595 = vector.shape_cast %594 : vector<1x1x1x128xf32> to vector<1x128xf32>
    %596 = vector.broadcast %595 : vector<1x128xf32> to vector<16x128xf32>
    %597 = arith.mulf %593, %596 : vector<16x128xf32>
    %598 = arith.addf %592, %597 : vector<16x128xf32>
    %c112_i32_471 = arith.constant 112 : i32
    %599 = tpu.dynamic_rotate %575 by %c112_i32_471 dim 1 : vector<16x128xf32>, i32 -> vector<16x128xf32>
    %c0_472 = arith.constant 0 : index
    %c9_473 = arith.constant 9 : index
    %c0_474 = arith.constant 0 : index
    %c0_475 = arith.constant 0 : index
    %600 = vector.load %arg8[%c0_472, %c9_473, %c0_474, %c0_475] : memref<5x25x1x128xf32, #tpu.memory_space<vmem>>, vector<1x1x1x128xf32>
    %601 = vector.shape_cast %600 : vector<1x1x1x128xf32> to vector<1x128xf32>
    %602 = vector.broadcast %601 : vector<1x128xf32> to vector<16x128xf32>
    %603 = arith.mulf %599, %602 : vector<16x128xf32>
    %604 = arith.addf %598, %603 : vector<16x128xf32>
    %c16_i32_476 = arith.constant 16 : i32
    %605 = tpu.dynamic_rotate %541 by %c16_i32_476 dim 1 : vector<16x128xf32>, i32 -> vector<16x128xf32>
    %c0_477 = arith.constant 0 : index
    %c10_478 = arith.constant 10 : index
    %c0_479 = arith.constant 0 : index
    %c0_480 = arith.constant 0 : index
    %606 = vector.load %arg8[%c0_477, %c10_478, %c0_479, %c0_480] : memref<5x25x1x128xf32, #tpu.memory_space<vmem>>, vector<1x1x1x128xf32>
    %607 = vector.shape_cast %606 : vector<1x1x1x128xf32> to vector<1x128xf32>
    %608 = vector.broadcast %607 : vector<1x128xf32> to vector<16x128xf32>
    %609 = arith.mulf %605, %608 : vector<16x128xf32>
    %610 = arith.addf %604, %609 : vector<16x128xf32>
    %c8_i32_481 = arith.constant 8 : i32
    %611 = tpu.dynamic_rotate %541 by %c8_i32_481 dim 1 : vector<16x128xf32>, i32 -> vector<16x128xf32>
    %c0_482 = arith.constant 0 : index
    %c11_483 = arith.constant 11 : index
    %c0_484 = arith.constant 0 : index
    %c0_485 = arith.constant 0 : index
    %612 = vector.load %arg8[%c0_482, %c11_483, %c0_484, %c0_485] : memref<5x25x1x128xf32, #tpu.memory_space<vmem>>, vector<1x1x1x128xf32>
    %613 = vector.shape_cast %612 : vector<1x1x1x128xf32> to vector<1x128xf32>
    %614 = vector.broadcast %613 : vector<1x128xf32> to vector<16x128xf32>
    %615 = arith.mulf %611, %614 : vector<16x128xf32>
    %616 = arith.addf %610, %615 : vector<16x128xf32>
    %c0_486 = arith.constant 0 : index
    %c12_487 = arith.constant 12 : index
    %c0_488 = arith.constant 0 : index
    %c0_489 = arith.constant 0 : index
    %617 = vector.load %arg8[%c0_486, %c12_487, %c0_488, %c0_489] : memref<5x25x1x128xf32, #tpu.memory_space<vmem>>, vector<1x1x1x128xf32>
    %618 = vector.shape_cast %617 : vector<1x1x1x128xf32> to vector<1x128xf32>
    %619 = vector.broadcast %618 : vector<1x128xf32> to vector<16x128xf32>
    %620 = arith.mulf %541, %619 : vector<16x128xf32>
    %621 = arith.addf %616, %620 : vector<16x128xf32>
    %c120_i32_490 = arith.constant 120 : i32
    %622 = tpu.dynamic_rotate %541 by %c120_i32_490 dim 1 : vector<16x128xf32>, i32 -> vector<16x128xf32>
    %c0_491 = arith.constant 0 : index
    %c13_492 = arith.constant 13 : index
    %c0_493 = arith.constant 0 : index
    %c0_494 = arith.constant 0 : index
    %623 = vector.load %arg8[%c0_491, %c13_492, %c0_493, %c0_494] : memref<5x25x1x128xf32, #tpu.memory_space<vmem>>, vector<1x1x1x128xf32>
    %624 = vector.shape_cast %623 : vector<1x1x1x128xf32> to vector<1x128xf32>
    %625 = vector.broadcast %624 : vector<1x128xf32> to vector<16x128xf32>
    %626 = arith.mulf %622, %625 : vector<16x128xf32>
    %627 = arith.addf %621, %626 : vector<16x128xf32>
    %c112_i32_495 = arith.constant 112 : i32
    %628 = tpu.dynamic_rotate %541 by %c112_i32_495 dim 1 : vector<16x128xf32>, i32 -> vector<16x128xf32>
    %c0_496 = arith.constant 0 : index
    %c14_497 = arith.constant 14 : index
    %c0_498 = arith.constant 0 : index
    %c0_499 = arith.constant 0 : index
    %629 = vector.load %arg8[%c0_496, %c14_497, %c0_498, %c0_499] : memref<5x25x1x128xf32, #tpu.memory_space<vmem>>, vector<1x1x1x128xf32>
    %630 = vector.shape_cast %629 : vector<1x1x1x128xf32> to vector<1x128xf32>
    %631 = vector.broadcast %630 : vector<1x128xf32> to vector<16x128xf32>
    %632 = arith.mulf %628, %631 : vector<16x128xf32>
    %633 = arith.addf %627, %632 : vector<16x128xf32>
    %c3_500 = arith.constant 3 : index
    %c0_501 = arith.constant 0 : index
    %c0_502 = arith.constant 0 : index
    %634 = vector.load %arg4[%c3_500, %c0_501, %c0_502] : memref<5x16x16xf32, #tpu.memory_space<vmem>>, vector<1x16x16xf32>
    %635 = vector.shape_cast %634 : vector<1x16x16xf32> to vector<16x16xf32>
    %cst_503 = arith.constant dense<0.000000e+00> : vector<16x128xf32>
    %636 = tpu.matmul %635, %541, %cst_503 {dimension_numbers = #tpu.dot_dimension_numbers<[1], [0], [0], [1], [0, 0, 1, 1], [], []>} : vector<16x16xf32>, vector<16x128xf32>, vector<16x128xf32> -> vector<16x128xf32>
    %c16_i32_504 = arith.constant 16 : i32
    %637 = tpu.dynamic_rotate %636 by %c16_i32_504 dim 1 : vector<16x128xf32>, i32 -> vector<16x128xf32>
    %c0_505 = arith.constant 0 : index
    %c15_506 = arith.constant 15 : index
    %c0_507 = arith.constant 0 : index
    %c0_508 = arith.constant 0 : index
    %638 = vector.load %arg8[%c0_505, %c15_506, %c0_507, %c0_508] : memref<5x25x1x128xf32, #tpu.memory_space<vmem>>, vector<1x1x1x128xf32>
    %639 = vector.shape_cast %638 : vector<1x1x1x128xf32> to vector<1x128xf32>
    %640 = vector.broadcast %639 : vector<1x128xf32> to vector<16x128xf32>
    %641 = arith.mulf %637, %640 : vector<16x128xf32>
    %642 = arith.addf %633, %641 : vector<16x128xf32>
    %c8_i32_509 = arith.constant 8 : i32
    %643 = tpu.dynamic_rotate %636 by %c8_i32_509 dim 1 : vector<16x128xf32>, i32 -> vector<16x128xf32>
    %c0_510 = arith.constant 0 : index
    %c16_511 = arith.constant 16 : index
    %c0_512 = arith.constant 0 : index
    %c0_513 = arith.constant 0 : index
    %644 = vector.load %arg8[%c0_510, %c16_511, %c0_512, %c0_513] : memref<5x25x1x128xf32, #tpu.memory_space<vmem>>, vector<1x1x1x128xf32>
    %645 = vector.shape_cast %644 : vector<1x1x1x128xf32> to vector<1x128xf32>
    %646 = vector.broadcast %645 : vector<1x128xf32> to vector<16x128xf32>
    %647 = arith.mulf %643, %646 : vector<16x128xf32>
    %648 = arith.addf %642, %647 : vector<16x128xf32>
    %c0_514 = arith.constant 0 : index
    %c17_515 = arith.constant 17 : index
    %c0_516 = arith.constant 0 : index
    %c0_517 = arith.constant 0 : index
    %649 = vector.load %arg8[%c0_514, %c17_515, %c0_516, %c0_517] : memref<5x25x1x128xf32, #tpu.memory_space<vmem>>, vector<1x1x1x128xf32>
    %650 = vector.shape_cast %649 : vector<1x1x1x128xf32> to vector<1x128xf32>
    %651 = vector.broadcast %650 : vector<1x128xf32> to vector<16x128xf32>
    %652 = arith.mulf %636, %651 : vector<16x128xf32>
    %653 = arith.addf %648, %652 : vector<16x128xf32>
    %c120_i32_518 = arith.constant 120 : i32
    %654 = tpu.dynamic_rotate %636 by %c120_i32_518 dim 1 : vector<16x128xf32>, i32 -> vector<16x128xf32>
    %c0_519 = arith.constant 0 : index
    %c18_520 = arith.constant 18 : index
    %c0_521 = arith.constant 0 : index
    %c0_522 = arith.constant 0 : index
    %655 = vector.load %arg8[%c0_519, %c18_520, %c0_521, %c0_522] : memref<5x25x1x128xf32, #tpu.memory_space<vmem>>, vector<1x1x1x128xf32>
    %656 = vector.shape_cast %655 : vector<1x1x1x128xf32> to vector<1x128xf32>
    %657 = vector.broadcast %656 : vector<1x128xf32> to vector<16x128xf32>
    %658 = arith.mulf %654, %657 : vector<16x128xf32>
    %659 = arith.addf %653, %658 : vector<16x128xf32>
    %c112_i32_523 = arith.constant 112 : i32
    %660 = tpu.dynamic_rotate %636 by %c112_i32_523 dim 1 : vector<16x128xf32>, i32 -> vector<16x128xf32>
    %c0_524 = arith.constant 0 : index
    %c19_525 = arith.constant 19 : index
    %c0_526 = arith.constant 0 : index
    %c0_527 = arith.constant 0 : index
    %661 = vector.load %arg8[%c0_524, %c19_525, %c0_526, %c0_527] : memref<5x25x1x128xf32, #tpu.memory_space<vmem>>, vector<1x1x1x128xf32>
    %662 = vector.shape_cast %661 : vector<1x1x1x128xf32> to vector<1x128xf32>
    %663 = vector.broadcast %662 : vector<1x128xf32> to vector<16x128xf32>
    %664 = arith.mulf %660, %663 : vector<16x128xf32>
    %665 = arith.addf %659, %664 : vector<16x128xf32>
    %c4_528 = arith.constant 4 : index
    %c0_529 = arith.constant 0 : index
    %c0_530 = arith.constant 0 : index
    %666 = vector.load %arg4[%c4_528, %c0_529, %c0_530] : memref<5x16x16xf32, #tpu.memory_space<vmem>>, vector<1x16x16xf32>
    %667 = vector.shape_cast %666 : vector<1x16x16xf32> to vector<16x16xf32>
    %cst_531 = arith.constant dense<0.000000e+00> : vector<16x128xf32>
    %668 = tpu.matmul %667, %541, %cst_531 {dimension_numbers = #tpu.dot_dimension_numbers<[1], [0], [0], [1], [0, 0, 1, 1], [], []>} : vector<16x16xf32>, vector<16x128xf32>, vector<16x128xf32> -> vector<16x128xf32>
    %c16_i32_532 = arith.constant 16 : i32
    %669 = tpu.dynamic_rotate %668 by %c16_i32_532 dim 1 : vector<16x128xf32>, i32 -> vector<16x128xf32>
    %c0_533 = arith.constant 0 : index
    %c20_534 = arith.constant 20 : index
    %c0_535 = arith.constant 0 : index
    %c0_536 = arith.constant 0 : index
    %670 = vector.load %arg8[%c0_533, %c20_534, %c0_535, %c0_536] : memref<5x25x1x128xf32, #tpu.memory_space<vmem>>, vector<1x1x1x128xf32>
    %671 = vector.shape_cast %670 : vector<1x1x1x128xf32> to vector<1x128xf32>
    %672 = vector.broadcast %671 : vector<1x128xf32> to vector<16x128xf32>
    %673 = arith.mulf %669, %672 : vector<16x128xf32>
    %674 = arith.addf %665, %673 : vector<16x128xf32>
    %c8_i32_537 = arith.constant 8 : i32
    %675 = tpu.dynamic_rotate %668 by %c8_i32_537 dim 1 : vector<16x128xf32>, i32 -> vector<16x128xf32>
    %c0_538 = arith.constant 0 : index
    %c21_539 = arith.constant 21 : index
    %c0_540 = arith.constant 0 : index
    %c0_541 = arith.constant 0 : index
    %676 = vector.load %arg8[%c0_538, %c21_539, %c0_540, %c0_541] : memref<5x25x1x128xf32, #tpu.memory_space<vmem>>, vector<1x1x1x128xf32>
    %677 = vector.shape_cast %676 : vector<1x1x1x128xf32> to vector<1x128xf32>
    %678 = vector.broadcast %677 : vector<1x128xf32> to vector<16x128xf32>
    %679 = arith.mulf %675, %678 : vector<16x128xf32>
    %680 = arith.addf %674, %679 : vector<16x128xf32>
    %c0_542 = arith.constant 0 : index
    %c22_543 = arith.constant 22 : index
    %c0_544 = arith.constant 0 : index
    %c0_545 = arith.constant 0 : index
    %681 = vector.load %arg8[%c0_542, %c22_543, %c0_544, %c0_545] : memref<5x25x1x128xf32, #tpu.memory_space<vmem>>, vector<1x1x1x128xf32>
    %682 = vector.shape_cast %681 : vector<1x1x1x128xf32> to vector<1x128xf32>
    %683 = vector.broadcast %682 : vector<1x128xf32> to vector<16x128xf32>
    %684 = arith.mulf %668, %683 : vector<16x128xf32>
    %685 = arith.addf %680, %684 : vector<16x128xf32>
    %c120_i32_546 = arith.constant 120 : i32
    %686 = tpu.dynamic_rotate %668 by %c120_i32_546 dim 1 : vector<16x128xf32>, i32 -> vector<16x128xf32>
    %c0_547 = arith.constant 0 : index
    %c23_548 = arith.constant 23 : index
    %c0_549 = arith.constant 0 : index
    %c0_550 = arith.constant 0 : index
    %687 = vector.load %arg8[%c0_547, %c23_548, %c0_549, %c0_550] : memref<5x25x1x128xf32, #tpu.memory_space<vmem>>, vector<1x1x1x128xf32>
    %688 = vector.shape_cast %687 : vector<1x1x1x128xf32> to vector<1x128xf32>
    %689 = vector.broadcast %688 : vector<1x128xf32> to vector<16x128xf32>
    %690 = arith.mulf %686, %689 : vector<16x128xf32>
    %691 = arith.addf %685, %690 : vector<16x128xf32>
    %c112_i32_551 = arith.constant 112 : i32
    %692 = tpu.dynamic_rotate %668 by %c112_i32_551 dim 1 : vector<16x128xf32>, i32 -> vector<16x128xf32>
    %c0_552 = arith.constant 0 : index
    %c24_553 = arith.constant 24 : index
    %c0_554 = arith.constant 0 : index
    %c0_555 = arith.constant 0 : index
    %693 = vector.load %arg8[%c0_552, %c24_553, %c0_554, %c0_555] : memref<5x25x1x128xf32, #tpu.memory_space<vmem>>, vector<1x1x1x128xf32>
    %694 = vector.shape_cast %693 : vector<1x1x1x128xf32> to vector<1x128xf32>
    %695 = vector.broadcast %694 : vector<1x128xf32> to vector<16x128xf32>
    %696 = arith.mulf %692, %695 : vector<16x128xf32>
    %697 = arith.addf %691, %696 : vector<16x128xf32>
    %698 = arith.truncf %697 : vector<16x128xf32> to vector<16x128xbf16>
    %c0_556 = arith.constant 0 : index
    %c0_557 = arith.constant 0 : index
    %c0_558 = arith.constant 0 : index
    %699 = vector.load %arg9[%c0_556, %c0_557, %c0_558] : memref<5x128x128xbf16, #tpu.memory_space<vmem>>, vector<1x128x128xbf16>
    %700 = vector.shape_cast %699 : vector<1x128x128xbf16> to vector<128x128xbf16>
    %cst_559 = arith.constant dense<0.000000e+00> : vector<16x128xf32>
    %701 = tpu.matmul %698, %700, %cst_559 {dimension_numbers = #tpu.dot_dimension_numbers<[1], [0], [0], [1], [0, 0, 1, 1], [], []>} : vector<16x128xbf16>, vector<128x128xbf16>, vector<16x128xf32> -> vector<16x128xf32>
    %c0_560 = arith.constant 0 : index
    %c0_561 = arith.constant 0 : index
    %c0_562 = arith.constant 0 : index
    %702 = vector.load %arg10[%c0_560, %c0_561, %c0_562] : memref<5x1x128xf32, #tpu.memory_space<vmem>>, vector<1x1x128xf32>
    %703 = vector.shape_cast %702 : vector<1x1x128xf32> to vector<1x128xf32>
    %704 = vector.broadcast %703 : vector<1x128xf32> to vector<16x128xf32>
    %705 = arith.addf %701, %704 : vector<16x128xf32>
    %706 = arith.truncf %483 : vector<16x128xf32> to vector<16x128xbf16>
    %c1_563 = arith.constant 1 : index
    %c0_564 = arith.constant 0 : index
    %c0_565 = arith.constant 0 : index
    %707 = vector.load %arg6[%c1_563, %c0_564, %c0_565] : memref<5x128x128xbf16, #tpu.memory_space<vmem>>, vector<1x128x128xbf16>
    %708 = vector.shape_cast %707 : vector<1x128x128xbf16> to vector<128x128xbf16>
    %cst_566 = arith.constant dense<0.000000e+00> : vector<16x128xf32>
    %709 = tpu.matmul %706, %708, %cst_566 {dimension_numbers = #tpu.dot_dimension_numbers<[1], [0], [0], [1], [0, 0, 1, 1], [], []>} : vector<16x128xbf16>, vector<128x128xbf16>, vector<16x128xf32> -> vector<16x128xf32>
    %c1_567 = arith.constant 1 : index
    %c0_568 = arith.constant 0 : index
    %c0_569 = arith.constant 0 : index
    %710 = vector.load %arg7[%c1_567, %c0_568, %c0_569] : memref<5x1x128xf32, #tpu.memory_space<vmem>>, vector<1x1x128xf32>
    %711 = vector.shape_cast %710 : vector<1x1x128xf32> to vector<1x128xf32>
    %712 = vector.broadcast %711 : vector<1x128xf32> to vector<16x128xf32>
    %713 = arith.addf %709, %712 : vector<16x128xf32>
    %cst_570 = arith.constant 0.000000e+00 : f32
    %714 = vector.broadcast %cst_570 : f32 to vector<16x128xf32>
    %715 = arith.maximumf %713, %714 : vector<16x128xf32>
    %c1_571 = arith.constant 1 : index
    %c0_572 = arith.constant 0 : index
    %c0_573 = arith.constant 0 : index
    %716 = vector.load %arg4[%c1_571, %c0_572, %c0_573] : memref<5x16x16xf32, #tpu.memory_space<vmem>>, vector<1x16x16xf32>
    %717 = vector.shape_cast %716 : vector<1x16x16xf32> to vector<16x16xf32>
    %cst_574 = arith.constant dense<0.000000e+00> : vector<16x128xf32>
    %718 = tpu.matmul %717, %715, %cst_574 {dimension_numbers = #tpu.dot_dimension_numbers<[1], [0], [0], [1], [0, 0, 1, 1], [], []>} : vector<16x16xf32>, vector<16x128xf32>, vector<16x128xf32> -> vector<16x128xf32>
    %c8_i32_575 = arith.constant 8 : i32
    %719 = tpu.dynamic_rotate %718 by %c8_i32_575 dim 1 : vector<16x128xf32>, i32 -> vector<16x128xf32>
    %c1_576 = arith.constant 1 : index
    %c6_577 = arith.constant 6 : index
    %c0_578 = arith.constant 0 : index
    %c0_579 = arith.constant 0 : index
    %720 = vector.load %arg8[%c1_576, %c6_577, %c0_578, %c0_579] : memref<5x25x1x128xf32, #tpu.memory_space<vmem>>, vector<1x1x1x128xf32>
    %721 = vector.shape_cast %720 : vector<1x1x1x128xf32> to vector<1x128xf32>
    %722 = vector.broadcast %721 : vector<1x128xf32> to vector<16x128xf32>
    %723 = arith.mulf %719, %722 : vector<16x128xf32>
    %c1_580 = arith.constant 1 : index
    %c7_581 = arith.constant 7 : index
    %c0_582 = arith.constant 0 : index
    %c0_583 = arith.constant 0 : index
    %724 = vector.load %arg8[%c1_580, %c7_581, %c0_582, %c0_583] : memref<5x25x1x128xf32, #tpu.memory_space<vmem>>, vector<1x1x1x128xf32>
    %725 = vector.shape_cast %724 : vector<1x1x1x128xf32> to vector<1x128xf32>
    %726 = vector.broadcast %725 : vector<1x128xf32> to vector<16x128xf32>
    %727 = arith.mulf %718, %726 : vector<16x128xf32>
    %728 = arith.addf %723, %727 : vector<16x128xf32>
    %c120_i32_584 = arith.constant 120 : i32
    %729 = tpu.dynamic_rotate %718 by %c120_i32_584 dim 1 : vector<16x128xf32>, i32 -> vector<16x128xf32>
    %c1_585 = arith.constant 1 : index
    %c8_586 = arith.constant 8 : index
    %c0_587 = arith.constant 0 : index
    %c0_588 = arith.constant 0 : index
    %730 = vector.load %arg8[%c1_585, %c8_586, %c0_587, %c0_588] : memref<5x25x1x128xf32, #tpu.memory_space<vmem>>, vector<1x1x1x128xf32>
    %731 = vector.shape_cast %730 : vector<1x1x1x128xf32> to vector<1x128xf32>
    %732 = vector.broadcast %731 : vector<1x128xf32> to vector<16x128xf32>
    %733 = arith.mulf %729, %732 : vector<16x128xf32>
    %734 = arith.addf %728, %733 : vector<16x128xf32>
    %c8_i32_589 = arith.constant 8 : i32
    %735 = tpu.dynamic_rotate %715 by %c8_i32_589 dim 1 : vector<16x128xf32>, i32 -> vector<16x128xf32>
    %c1_590 = arith.constant 1 : index
    %c11_591 = arith.constant 11 : index
    %c0_592 = arith.constant 0 : index
    %c0_593 = arith.constant 0 : index
    %736 = vector.load %arg8[%c1_590, %c11_591, %c0_592, %c0_593] : memref<5x25x1x128xf32, #tpu.memory_space<vmem>>, vector<1x1x1x128xf32>
    %737 = vector.shape_cast %736 : vector<1x1x1x128xf32> to vector<1x128xf32>
    %738 = vector.broadcast %737 : vector<1x128xf32> to vector<16x128xf32>
    %739 = arith.mulf %735, %738 : vector<16x128xf32>
    %740 = arith.addf %734, %739 : vector<16x128xf32>
    %c1_594 = arith.constant 1 : index
    %c12_595 = arith.constant 12 : index
    %c0_596 = arith.constant 0 : index
    %c0_597 = arith.constant 0 : index
    %741 = vector.load %arg8[%c1_594, %c12_595, %c0_596, %c0_597] : memref<5x25x1x128xf32, #tpu.memory_space<vmem>>, vector<1x1x1x128xf32>
    %742 = vector.shape_cast %741 : vector<1x1x1x128xf32> to vector<1x128xf32>
    %743 = vector.broadcast %742 : vector<1x128xf32> to vector<16x128xf32>
    %744 = arith.mulf %715, %743 : vector<16x128xf32>
    %745 = arith.addf %740, %744 : vector<16x128xf32>
    %c120_i32_598 = arith.constant 120 : i32
    %746 = tpu.dynamic_rotate %715 by %c120_i32_598 dim 1 : vector<16x128xf32>, i32 -> vector<16x128xf32>
    %c1_599 = arith.constant 1 : index
    %c13_600 = arith.constant 13 : index
    %c0_601 = arith.constant 0 : index
    %c0_602 = arith.constant 0 : index
    %747 = vector.load %arg8[%c1_599, %c13_600, %c0_601, %c0_602] : memref<5x25x1x128xf32, #tpu.memory_space<vmem>>, vector<1x1x1x128xf32>
    %748 = vector.shape_cast %747 : vector<1x1x1x128xf32> to vector<1x128xf32>
    %749 = vector.broadcast %748 : vector<1x128xf32> to vector<16x128xf32>
    %750 = arith.mulf %746, %749 : vector<16x128xf32>
    %751 = arith.addf %745, %750 : vector<16x128xf32>
    %c3_603 = arith.constant 3 : index
    %c0_604 = arith.constant 0 : index
    %c0_605 = arith.constant 0 : index
    %752 = vector.load %arg4[%c3_603, %c0_604, %c0_605] : memref<5x16x16xf32, #tpu.memory_space<vmem>>, vector<1x16x16xf32>
    %753 = vector.shape_cast %752 : vector<1x16x16xf32> to vector<16x16xf32>
    %cst_606 = arith.constant dense<0.000000e+00> : vector<16x128xf32>
    %754 = tpu.matmul %753, %715, %cst_606 {dimension_numbers = #tpu.dot_dimension_numbers<[1], [0], [0], [1], [0, 0, 1, 1], [], []>} : vector<16x16xf32>, vector<16x128xf32>, vector<16x128xf32> -> vector<16x128xf32>
    %c8_i32_607 = arith.constant 8 : i32
    %755 = tpu.dynamic_rotate %754 by %c8_i32_607 dim 1 : vector<16x128xf32>, i32 -> vector<16x128xf32>
    %c1_608 = arith.constant 1 : index
    %c16_609 = arith.constant 16 : index
    %c0_610 = arith.constant 0 : index
    %c0_611 = arith.constant 0 : index
    %756 = vector.load %arg8[%c1_608, %c16_609, %c0_610, %c0_611] : memref<5x25x1x128xf32, #tpu.memory_space<vmem>>, vector<1x1x1x128xf32>
    %757 = vector.shape_cast %756 : vector<1x1x1x128xf32> to vector<1x128xf32>
    %758 = vector.broadcast %757 : vector<1x128xf32> to vector<16x128xf32>
    %759 = arith.mulf %755, %758 : vector<16x128xf32>
    %760 = arith.addf %751, %759 : vector<16x128xf32>
    %c1_612 = arith.constant 1 : index
    %c17_613 = arith.constant 17 : index
    %c0_614 = arith.constant 0 : index
    %c0_615 = arith.constant 0 : index
    %761 = vector.load %arg8[%c1_612, %c17_613, %c0_614, %c0_615] : memref<5x25x1x128xf32, #tpu.memory_space<vmem>>, vector<1x1x1x128xf32>
    %762 = vector.shape_cast %761 : vector<1x1x1x128xf32> to vector<1x128xf32>
    %763 = vector.broadcast %762 : vector<1x128xf32> to vector<16x128xf32>
    %764 = arith.mulf %754, %763 : vector<16x128xf32>
    %765 = arith.addf %760, %764 : vector<16x128xf32>
    %c120_i32_616 = arith.constant 120 : i32
    %766 = tpu.dynamic_rotate %754 by %c120_i32_616 dim 1 : vector<16x128xf32>, i32 -> vector<16x128xf32>
    %c1_617 = arith.constant 1 : index
    %c18_618 = arith.constant 18 : index
    %c0_619 = arith.constant 0 : index
    %c0_620 = arith.constant 0 : index
    %767 = vector.load %arg8[%c1_617, %c18_618, %c0_619, %c0_620] : memref<5x25x1x128xf32, #tpu.memory_space<vmem>>, vector<1x1x1x128xf32>
    %768 = vector.shape_cast %767 : vector<1x1x1x128xf32> to vector<1x128xf32>
    %769 = vector.broadcast %768 : vector<1x128xf32> to vector<16x128xf32>
    %770 = arith.mulf %766, %769 : vector<16x128xf32>
    %771 = arith.addf %765, %770 : vector<16x128xf32>
    %772 = arith.truncf %771 : vector<16x128xf32> to vector<16x128xbf16>
    %c1_621 = arith.constant 1 : index
    %c0_622 = arith.constant 0 : index
    %c0_623 = arith.constant 0 : index
    %773 = vector.load %arg9[%c1_621, %c0_622, %c0_623] : memref<5x128x128xbf16, #tpu.memory_space<vmem>>, vector<1x128x128xbf16>
    %774 = vector.shape_cast %773 : vector<1x128x128xbf16> to vector<128x128xbf16>
    %cst_624 = arith.constant dense<0.000000e+00> : vector<16x128xf32>
    %775 = tpu.matmul %772, %774, %cst_624 {dimension_numbers = #tpu.dot_dimension_numbers<[1], [0], [0], [1], [0, 0, 1, 1], [], []>} : vector<16x128xbf16>, vector<128x128xbf16>, vector<16x128xf32> -> vector<16x128xf32>
    %c1_625 = arith.constant 1 : index
    %c0_626 = arith.constant 0 : index
    %c0_627 = arith.constant 0 : index
    %776 = vector.load %arg10[%c1_625, %c0_626, %c0_627] : memref<5x1x128xf32, #tpu.memory_space<vmem>>, vector<1x1x128xf32>
    %777 = vector.shape_cast %776 : vector<1x1x128xf32> to vector<1x128xf32>
    %778 = vector.broadcast %777 : vector<1x128xf32> to vector<16x128xf32>
    %779 = arith.addf %775, %778 : vector<16x128xf32>
    %780 = arith.addf %705, %779 : vector<16x128xf32>
    %c1_628 = arith.constant 1 : index
    %c0_629 = arith.constant 0 : index
    %c0_630 = arith.constant 0 : index
    %781 = vector.load %arg13[%c1_628, %c0_629, %c0_630] : memref<6x16x128xf32, #tpu.memory_space<vmem>>, vector<1x16x128xf32>
    %782 = vector.shape_cast %781 : vector<1x16x128xf32> to vector<16x128xf32>
    %783 = vector.shape_cast %780 : vector<16x128xf32> to vector<1x16x128xf32>
    tpu.vector_store %arg13[%c1_628, %c0_629, %c0_630], %783 {strides = array<i32>} : memref<6x16x128xf32, #tpu.memory_space<vmem>>, vector<1x16x128xf32>,
    %784 = arith.truncf %531 : vector<16x128xf32> to vector<16x128xbf16>
    %c2_631 = arith.constant 2 : index
    %c0_632 = arith.constant 0 : index
    %c0_633 = arith.constant 0 : index
    %785 = vector.load %arg6[%c2_631, %c0_632, %c0_633] : memref<5x128x128xbf16, #tpu.memory_space<vmem>>, vector<1x128x128xbf16>
    %786 = vector.shape_cast %785 : vector<1x128x128xbf16> to vector<128x128xbf16>
    %cst_634 = arith.constant dense<0.000000e+00> : vector<16x128xf32>
    %787 = tpu.matmul %784, %786, %cst_634 {dimension_numbers = #tpu.dot_dimension_numbers<[1], [0], [0], [1], [0, 0, 1, 1], [], []>} : vector<16x128xbf16>, vector<128x128xbf16>, vector<16x128xf32> -> vector<16x128xf32>
    %c2_635 = arith.constant 2 : index
    %c0_636 = arith.constant 0 : index
    %c0_637 = arith.constant 0 : index
    %788 = vector.load %arg7[%c2_635, %c0_636, %c0_637] : memref<5x1x128xf32, #tpu.memory_space<vmem>>, vector<1x1x128xf32>
    %789 = vector.shape_cast %788 : vector<1x1x128xf32> to vector<1x128xf32>
    %790 = vector.broadcast %789 : vector<1x128xf32> to vector<16x128xf32>
    %791 = arith.addf %787, %790 : vector<16x128xf32>
    %cst_638 = arith.constant 0.000000e+00 : f32
    %792 = vector.broadcast %cst_638 : f32 to vector<16x128xf32>
    %793 = arith.maximumf %791, %792 : vector<16x128xf32>
    %c0_639 = arith.constant 0 : index
    %c0_640 = arith.constant 0 : index
    %c0_641 = arith.constant 0 : index
    %794 = vector.load %arg4[%c0_639, %c0_640, %c0_641] : memref<5x16x16xf32, #tpu.memory_space<vmem>>, vector<1x16x16xf32>
    %795 = vector.shape_cast %794 : vector<1x16x16xf32> to vector<16x16xf32>
    %cst_642 = arith.constant dense<0.000000e+00> : vector<16x128xf32>
    %796 = tpu.matmul %795, %793, %cst_642 {dimension_numbers = #tpu.dot_dimension_numbers<[1], [0], [0], [1], [0, 0, 1, 1], [], []>} : vector<16x16xf32>, vector<16x128xf32>, vector<16x128xf32> -> vector<16x128xf32>
    %c16_i32_643 = arith.constant 16 : i32
    %797 = tpu.dynamic_rotate %796 by %c16_i32_643 dim 1 : vector<16x128xf32>, i32 -> vector<16x128xf32>
    %c2_644 = arith.constant 2 : index
    %c0_645 = arith.constant 0 : index
    %c0_646 = arith.constant 0 : index
    %c0_647 = arith.constant 0 : index
    %798 = vector.load %arg8[%c2_644, %c0_645, %c0_646, %c0_647] : memref<5x25x1x128xf32, #tpu.memory_space<vmem>>, vector<1x1x1x128xf32>
    %799 = vector.shape_cast %798 : vector<1x1x1x128xf32> to vector<1x128xf32>
    %800 = vector.broadcast %799 : vector<1x128xf32> to vector<16x128xf32>
    %801 = arith.mulf %797, %800 : vector<16x128xf32>
    %c8_i32_648 = arith.constant 8 : i32
    %802 = tpu.dynamic_rotate %796 by %c8_i32_648 dim 1 : vector<16x128xf32>, i32 -> vector<16x128xf32>
    %c2_649 = arith.constant 2 : index
    %c1_650 = arith.constant 1 : index
    %c0_651 = arith.constant 0 : index
    %c0_652 = arith.constant 0 : index
    %803 = vector.load %arg8[%c2_649, %c1_650, %c0_651, %c0_652] : memref<5x25x1x128xf32, #tpu.memory_space<vmem>>, vector<1x1x1x128xf32>
    %804 = vector.shape_cast %803 : vector<1x1x1x128xf32> to vector<1x128xf32>
    %805 = vector.broadcast %804 : vector<1x128xf32> to vector<16x128xf32>
    %806 = arith.mulf %802, %805 : vector<16x128xf32>
    %807 = arith.addf %801, %806 : vector<16x128xf32>
    %c2_653 = arith.constant 2 : index
    %c2_654 = arith.constant 2 : index
    %c0_655 = arith.constant 0 : index
    %c0_656 = arith.constant 0 : index
    %808 = vector.load %arg8[%c2_653, %c2_654, %c0_655, %c0_656] : memref<5x25x1x128xf32, #tpu.memory_space<vmem>>, vector<1x1x1x128xf32>
    %809 = vector.shape_cast %808 : vector<1x1x1x128xf32> to vector<1x128xf32>
    %810 = vector.broadcast %809 : vector<1x128xf32> to vector<16x128xf32>
    %811 = arith.mulf %796, %810 : vector<16x128xf32>
    %812 = arith.addf %807, %811 : vector<16x128xf32>
    %c120_i32_657 = arith.constant 120 : i32
    %813 = tpu.dynamic_rotate %796 by %c120_i32_657 dim 1 : vector<16x128xf32>, i32 -> vector<16x128xf32>
    %c2_658 = arith.constant 2 : index
    %c3_659 = arith.constant 3 : index
    %c0_660 = arith.constant 0 : index
    %c0_661 = arith.constant 0 : index
    %814 = vector.load %arg8[%c2_658, %c3_659, %c0_660, %c0_661] : memref<5x25x1x128xf32, #tpu.memory_space<vmem>>, vector<1x1x1x128xf32>
    %815 = vector.shape_cast %814 : vector<1x1x1x128xf32> to vector<1x128xf32>
    %816 = vector.broadcast %815 : vector<1x128xf32> to vector<16x128xf32>
    %817 = arith.mulf %813, %816 : vector<16x128xf32>
    %818 = arith.addf %812, %817 : vector<16x128xf32>
    %c112_i32_662 = arith.constant 112 : i32
    %819 = tpu.dynamic_rotate %796 by %c112_i32_662 dim 1 : vector<16x128xf32>, i32 -> vector<16x128xf32>
    %c2_663 = arith.constant 2 : index
    %c4_664 = arith.constant 4 : index
    %c0_665 = arith.constant 0 : index
    %c0_666 = arith.constant 0 : index
    %820 = vector.load %arg8[%c2_663, %c4_664, %c0_665, %c0_666] : memref<5x25x1x128xf32, #tpu.memory_space<vmem>>, vector<1x1x1x128xf32>
    %821 = vector.shape_cast %820 : vector<1x1x1x128xf32> to vector<1x128xf32>
    %822 = vector.broadcast %821 : vector<1x128xf32> to vector<16x128xf32>
    %823 = arith.mulf %819, %822 : vector<16x128xf32>
    %824 = arith.addf %818, %823 : vector<16x128xf32>
    %c1_667 = arith.constant 1 : index
    %c0_668 = arith.constant 0 : index
    %c0_669 = arith.constant 0 : index
    %825 = vector.load %arg4[%c1_667, %c0_668, %c0_669] : memref<5x16x16xf32, #tpu.memory_space<vmem>>, vector<1x16x16xf32>
    %826 = vector.shape_cast %825 : vector<1x16x16xf32> to vector<16x16xf32>
    %cst_670 = arith.constant dense<0.000000e+00> : vector<16x128xf32>
    %827 = tpu.matmul %826, %793, %cst_670 {dimension_numbers = #tpu.dot_dimension_numbers<[1], [0], [0], [1], [0, 0, 1, 1], [], []>} : vector<16x16xf32>, vector<16x128xf32>, vector<16x128xf32> -> vector<16x128xf32>
    %c16_i32_671 = arith.constant 16 : i32
    %828 = tpu.dynamic_rotate %827 by %c16_i32_671 dim 1 : vector<16x128xf32>, i32 -> vector<16x128xf32>
    %c2_672 = arith.constant 2 : index
    %c5_673 = arith.constant 5 : index
    %c0_674 = arith.constant 0 : index
    %c0_675 = arith.constant 0 : index
    %829 = vector.load %arg8[%c2_672, %c5_673, %c0_674, %c0_675] : memref<5x25x1x128xf32, #tpu.memory_space<vmem>>, vector<1x1x1x128xf32>
    %830 = vector.shape_cast %829 : vector<1x1x1x128xf32> to vector<1x128xf32>
    %831 = vector.broadcast %830 : vector<1x128xf32> to vector<16x128xf32>
    %832 = arith.mulf %828, %831 : vector<16x128xf32>
    %833 = arith.addf %824, %832 : vector<16x128xf32>
    %c8_i32_676 = arith.constant 8 : i32
    %834 = tpu.dynamic_rotate %827 by %c8_i32_676 dim 1 : vector<16x128xf32>, i32 -> vector<16x128xf32>
    %c2_677 = arith.constant 2 : index
    %c6_678 = arith.constant 6 : index
    %c0_679 = arith.constant 0 : index
    %c0_680 = arith.constant 0 : index
    %835 = vector.load %arg8[%c2_677, %c6_678, %c0_679, %c0_680] : memref<5x25x1x128xf32, #tpu.memory_space<vmem>>, vector<1x1x1x128xf32>
    %836 = vector.shape_cast %835 : vector<1x1x1x128xf32> to vector<1x128xf32>
    %837 = vector.broadcast %836 : vector<1x128xf32> to vector<16x128xf32>
    %838 = arith.mulf %834, %837 : vector<16x128xf32>
    %839 = arith.addf %833, %838 : vector<16x128xf32>
    %c2_681 = arith.constant 2 : index
    %c7_682 = arith.constant 7 : index
    %c0_683 = arith.constant 0 : index
    %c0_684 = arith.constant 0 : index
    %840 = vector.load %arg8[%c2_681, %c7_682, %c0_683, %c0_684] : memref<5x25x1x128xf32, #tpu.memory_space<vmem>>, vector<1x1x1x128xf32>
    %841 = vector.shape_cast %840 : vector<1x1x1x128xf32> to vector<1x128xf32>
    %842 = vector.broadcast %841 : vector<1x128xf32> to vector<16x128xf32>
    %843 = arith.mulf %827, %842 : vector<16x128xf32>
    %844 = arith.addf %839, %843 : vector<16x128xf32>
    %c120_i32_685 = arith.constant 120 : i32
    %845 = tpu.dynamic_rotate %827 by %c120_i32_685 dim 1 : vector<16x128xf32>, i32 -> vector<16x128xf32>
    %c2_686 = arith.constant 2 : index
    %c8_687 = arith.constant 8 : index
    %c0_688 = arith.constant 0 : index
    %c0_689 = arith.constant 0 : index
    %846 = vector.load %arg8[%c2_686, %c8_687, %c0_688, %c0_689] : memref<5x25x1x128xf32, #tpu.memory_space<vmem>>, vector<1x1x1x128xf32>
    %847 = vector.shape_cast %846 : vector<1x1x1x128xf32> to vector<1x128xf32>
    %848 = vector.broadcast %847 : vector<1x128xf32> to vector<16x128xf32>
    %849 = arith.mulf %845, %848 : vector<16x128xf32>
    %850 = arith.addf %844, %849 : vector<16x128xf32>
    %c112_i32_690 = arith.constant 112 : i32
    %851 = tpu.dynamic_rotate %827 by %c112_i32_690 dim 1 : vector<16x128xf32>, i32 -> vector<16x128xf32>
    %c2_691 = arith.constant 2 : index
    %c9_692 = arith.constant 9 : index
    %c0_693 = arith.constant 0 : index
    %c0_694 = arith.constant 0 : index
    %852 = vector.load %arg8[%c2_691, %c9_692, %c0_693, %c0_694] : memref<5x25x1x128xf32, #tpu.memory_space<vmem>>, vector<1x1x1x128xf32>
    %853 = vector.shape_cast %852 : vector<1x1x1x128xf32> to vector<1x128xf32>
    %854 = vector.broadcast %853 : vector<1x128xf32> to vector<16x128xf32>
    %855 = arith.mulf %851, %854 : vector<16x128xf32>
    %856 = arith.addf %850, %855 : vector<16x128xf32>
    %c16_i32_695 = arith.constant 16 : i32
    %857 = tpu.dynamic_rotate %793 by %c16_i32_695 dim 1 : vector<16x128xf32>, i32 -> vector<16x128xf32>
    %c2_696 = arith.constant 2 : index
    %c10_697 = arith.constant 10 : index
    %c0_698 = arith.constant 0 : index
    %c0_699 = arith.constant 0 : index
    %858 = vector.load %arg8[%c2_696, %c10_697, %c0_698, %c0_699] : memref<5x25x1x128xf32, #tpu.memory_space<vmem>>, vector<1x1x1x128xf32>
    %859 = vector.shape_cast %858 : vector<1x1x1x128xf32> to vector<1x128xf32>
    %860 = vector.broadcast %859 : vector<1x128xf32> to vector<16x128xf32>
    %861 = arith.mulf %857, %860 : vector<16x128xf32>
    %862 = arith.addf %856, %861 : vector<16x128xf32>
    %c8_i32_700 = arith.constant 8 : i32
    %863 = tpu.dynamic_rotate %793 by %c8_i32_700 dim 1 : vector<16x128xf32>, i32 -> vector<16x128xf32>
    %c2_701 = arith.constant 2 : index
    %c11_702 = arith.constant 11 : index
    %c0_703 = arith.constant 0 : index
    %c0_704 = arith.constant 0 : index
    %864 = vector.load %arg8[%c2_701, %c11_702, %c0_703, %c0_704] : memref<5x25x1x128xf32, #tpu.memory_space<vmem>>, vector<1x1x1x128xf32>
    %865 = vector.shape_cast %864 : vector<1x1x1x128xf32> to vector<1x128xf32>
    %866 = vector.broadcast %865 : vector<1x128xf32> to vector<16x128xf32>
    %867 = arith.mulf %863, %866 : vector<16x128xf32>
    %868 = arith.addf %862, %867 : vector<16x128xf32>
    %c2_705 = arith.constant 2 : index
    %c12_706 = arith.constant 12 : index
    %c0_707 = arith.constant 0 : index
    %c0_708 = arith.constant 0 : index
    %869 = vector.load %arg8[%c2_705, %c12_706, %c0_707, %c0_708] : memref<5x25x1x128xf32, #tpu.memory_space<vmem>>, vector<1x1x1x128xf32>
    %870 = vector.shape_cast %869 : vector<1x1x1x128xf32> to vector<1x128xf32>
    %871 = vector.broadcast %870 : vector<1x128xf32> to vector<16x128xf32>
    %872 = arith.mulf %793, %871 : vector<16x128xf32>
    %873 = arith.addf %868, %872 : vector<16x128xf32>
    %c120_i32_709 = arith.constant 120 : i32
    %874 = tpu.dynamic_rotate %793 by %c120_i32_709 dim 1 : vector<16x128xf32>, i32 -> vector<16x128xf32>
    %c2_710 = arith.constant 2 : index
    %c13_711 = arith.constant 13 : index
    %c0_712 = arith.constant 0 : index
    %c0_713 = arith.constant 0 : index
    %875 = vector.load %arg8[%c2_710, %c13_711, %c0_712, %c0_713] : memref<5x25x1x128xf32, #tpu.memory_space<vmem>>, vector<1x1x1x128xf32>
    %876 = vector.shape_cast %875 : vector<1x1x1x128xf32> to vector<1x128xf32>
    %877 = vector.broadcast %876 : vector<1x128xf32> to vector<16x128xf32>
    %878 = arith.mulf %874, %877 : vector<16x128xf32>
    %879 = arith.addf %873, %878 : vector<16x128xf32>
    %c112_i32_714 = arith.constant 112 : i32
    %880 = tpu.dynamic_rotate %793 by %c112_i32_714 dim 1 : vector<16x128xf32>, i32 -> vector<16x128xf32>
    %c2_715 = arith.constant 2 : index
    %c14_716 = arith.constant 14 : index
    %c0_717 = arith.constant 0 : index
    %c0_718 = arith.constant 0 : index
    %881 = vector.load %arg8[%c2_715, %c14_716, %c0_717, %c0_718] : memref<5x25x1x128xf32, #tpu.memory_space<vmem>>, vector<1x1x1x128xf32>
    %882 = vector.shape_cast %881 : vector<1x1x1x128xf32> to vector<1x128xf32>
    %883 = vector.broadcast %882 : vector<1x128xf32> to vector<16x128xf32>
    %884 = arith.mulf %880, %883 : vector<16x128xf32>
    %885 = arith.addf %879, %884 : vector<16x128xf32>
    %c3_719 = arith.constant 3 : index
    %c0_720 = arith.constant 0 : index
    %c0_721 = arith.constant 0 : index
    %886 = vector.load %arg4[%c3_719, %c0_720, %c0_721] : memref<5x16x16xf32, #tpu.memory_space<vmem>>, vector<1x16x16xf32>
    %887 = vector.shape_cast %886 : vector<1x16x16xf32> to vector<16x16xf32>
    %cst_722 = arith.constant dense<0.000000e+00> : vector<16x128xf32>
    %888 = tpu.matmul %887, %793, %cst_722 {dimension_numbers = #tpu.dot_dimension_numbers<[1], [0], [0], [1], [0, 0, 1, 1], [], []>} : vector<16x16xf32>, vector<16x128xf32>, vector<16x128xf32> -> vector<16x128xf32>
    %c16_i32_723 = arith.constant 16 : i32
    %889 = tpu.dynamic_rotate %888 by %c16_i32_723 dim 1 : vector<16x128xf32>, i32 -> vector<16x128xf32>
    %c2_724 = arith.constant 2 : index
    %c15_725 = arith.constant 15 : index
    %c0_726 = arith.constant 0 : index
    %c0_727 = arith.constant 0 : index
    %890 = vector.load %arg8[%c2_724, %c15_725, %c0_726, %c0_727] : memref<5x25x1x128xf32, #tpu.memory_space<vmem>>, vector<1x1x1x128xf32>
    %891 = vector.shape_cast %890 : vector<1x1x1x128xf32> to vector<1x128xf32>
    %892 = vector.broadcast %891 : vector<1x128xf32> to vector<16x128xf32>
    %893 = arith.mulf %889, %892 : vector<16x128xf32>
    %894 = arith.addf %885, %893 : vector<16x128xf32>
    %c8_i32_728 = arith.constant 8 : i32
    %895 = tpu.dynamic_rotate %888 by %c8_i32_728 dim 1 : vector<16x128xf32>, i32 -> vector<16x128xf32>
    %c2_729 = arith.constant 2 : index
    %c16_730 = arith.constant 16 : index
    %c0_731 = arith.constant 0 : index
    %c0_732 = arith.constant 0 : index
    %896 = vector.load %arg8[%c2_729, %c16_730, %c0_731, %c0_732] : memref<5x25x1x128xf32, #tpu.memory_space<vmem>>, vector<1x1x1x128xf32>
    %897 = vector.shape_cast %896 : vector<1x1x1x128xf32> to vector<1x128xf32>
    %898 = vector.broadcast %897 : vector<1x128xf32> to vector<16x128xf32>
    %899 = arith.mulf %895, %898 : vector<16x128xf32>
    %900 = arith.addf %894, %899 : vector<16x128xf32>
    %c2_733 = arith.constant 2 : index
    %c17_734 = arith.constant 17 : index
    %c0_735 = arith.constant 0 : index
    %c0_736 = arith.constant 0 : index
    %901 = vector.load %arg8[%c2_733, %c17_734, %c0_735, %c0_736] : memref<5x25x1x128xf32, #tpu.memory_space<vmem>>, vector<1x1x1x128xf32>
    %902 = vector.shape_cast %901 : vector<1x1x1x128xf32> to vector<1x128xf32>
    %903 = vector.broadcast %902 : vector<1x128xf32> to vector<16x128xf32>
    %904 = arith.mulf %888, %903 : vector<16x128xf32>
    %905 = arith.addf %900, %904 : vector<16x128xf32>
    %c120_i32_737 = arith.constant 120 : i32
    %906 = tpu.dynamic_rotate %888 by %c120_i32_737 dim 1 : vector<16x128xf32>, i32 -> vector<16x128xf32>
    %c2_738 = arith.constant 2 : index
    %c18_739 = arith.constant 18 : index
    %c0_740 = arith.constant 0 : index
    %c0_741 = arith.constant 0 : index
    %907 = vector.load %arg8[%c2_738, %c18_739, %c0_740, %c0_741] : memref<5x25x1x128xf32, #tpu.memory_space<vmem>>, vector<1x1x1x128xf32>
    %908 = vector.shape_cast %907 : vector<1x1x1x128xf32> to vector<1x128xf32>
    %909 = vector.broadcast %908 : vector<1x128xf32> to vector<16x128xf32>
    %910 = arith.mulf %906, %909 : vector<16x128xf32>
    %911 = arith.addf %905, %910 : vector<16x128xf32>
    %c112_i32_742 = arith.constant 112 : i32
    %912 = tpu.dynamic_rotate %888 by %c112_i32_742 dim 1 : vector<16x128xf32>, i32 -> vector<16x128xf32>
    %c2_743 = arith.constant 2 : index
    %c19_744 = arith.constant 19 : index
    %c0_745 = arith.constant 0 : index
    %c0_746 = arith.constant 0 : index
    %913 = vector.load %arg8[%c2_743, %c19_744, %c0_745, %c0_746] : memref<5x25x1x128xf32, #tpu.memory_space<vmem>>, vector<1x1x1x128xf32>
    %914 = vector.shape_cast %913 : vector<1x1x1x128xf32> to vector<1x128xf32>
    %915 = vector.broadcast %914 : vector<1x128xf32> to vector<16x128xf32>
    %916 = arith.mulf %912, %915 : vector<16x128xf32>
    %917 = arith.addf %911, %916 : vector<16x128xf32>
    %c4_747 = arith.constant 4 : index
    %c0_748 = arith.constant 0 : index
    %c0_749 = arith.constant 0 : index
    %918 = vector.load %arg4[%c4_747, %c0_748, %c0_749] : memref<5x16x16xf32, #tpu.memory_space<vmem>>, vector<1x16x16xf32>
    %919 = vector.shape_cast %918 : vector<1x16x16xf32> to vector<16x16xf32>
    %cst_750 = arith.constant dense<0.000000e+00> : vector<16x128xf32>
    %920 = tpu.matmul %919, %793, %cst_750 {dimension_numbers = #tpu.dot_dimension_numbers<[1], [0], [0], [1], [0, 0, 1, 1], [], []>} : vector<16x16xf32>, vector<16x128xf32>, vector<16x128xf32> -> vector<16x128xf32>
    %c16_i32_751 = arith.constant 16 : i32
    %921 = tpu.dynamic_rotate %920 by %c16_i32_751 dim 1 : vector<16x128xf32>, i32 -> vector<16x128xf32>
    %c2_752 = arith.constant 2 : index
    %c20_753 = arith.constant 20 : index
    %c0_754 = arith.constant 0 : index
    %c0_755 = arith.constant 0 : index
    %922 = vector.load %arg8[%c2_752, %c20_753, %c0_754, %c0_755] : memref<5x25x1x128xf32, #tpu.memory_space<vmem>>, vector<1x1x1x128xf32>
    %923 = vector.shape_cast %922 : vector<1x1x1x128xf32> to vector<1x128xf32>
    %924 = vector.broadcast %923 : vector<1x128xf32> to vector<16x128xf32>
    %925 = arith.mulf %921, %924 : vector<16x128xf32>
    %926 = arith.addf %917, %925 : vector<16x128xf32>
    %c8_i32_756 = arith.constant 8 : i32
    %927 = tpu.dynamic_rotate %920 by %c8_i32_756 dim 1 : vector<16x128xf32>, i32 -> vector<16x128xf32>
    %c2_757 = arith.constant 2 : index
    %c21_758 = arith.constant 21 : index
    %c0_759 = arith.constant 0 : index
    %c0_760 = arith.constant 0 : index
    %928 = vector.load %arg8[%c2_757, %c21_758, %c0_759, %c0_760] : memref<5x25x1x128xf32, #tpu.memory_space<vmem>>, vector<1x1x1x128xf32>
    %929 = vector.shape_cast %928 : vector<1x1x1x128xf32> to vector<1x128xf32>
    %930 = vector.broadcast %929 : vector<1x128xf32> to vector<16x128xf32>
    %931 = arith.mulf %927, %930 : vector<16x128xf32>
    %932 = arith.addf %926, %931 : vector<16x128xf32>
    %c2_761 = arith.constant 2 : index
    %c22_762 = arith.constant 22 : index
    %c0_763 = arith.constant 0 : index
    %c0_764 = arith.constant 0 : index
    %933 = vector.load %arg8[%c2_761, %c22_762, %c0_763, %c0_764] : memref<5x25x1x128xf32, #tpu.memory_space<vmem>>, vector<1x1x1x128xf32>
    %934 = vector.shape_cast %933 : vector<1x1x1x128xf32> to vector<1x128xf32>
    %935 = vector.broadcast %934 : vector<1x128xf32> to vector<16x128xf32>
    %936 = arith.mulf %920, %935 : vector<16x128xf32>
    %937 = arith.addf %932, %936 : vector<16x128xf32>
    %c120_i32_765 = arith.constant 120 : i32
    %938 = tpu.dynamic_rotate %920 by %c120_i32_765 dim 1 : vector<16x128xf32>, i32 -> vector<16x128xf32>
    %c2_766 = arith.constant 2 : index
    %c23_767 = arith.constant 23 : index
    %c0_768 = arith.constant 0 : index
    %c0_769 = arith.constant 0 : index
    %939 = vector.load %arg8[%c2_766, %c23_767, %c0_768, %c0_769] : memref<5x25x1x128xf32, #tpu.memory_space<vmem>>, vector<1x1x1x128xf32>
    %940 = vector.shape_cast %939 : vector<1x1x1x128xf32> to vector<1x128xf32>
    %941 = vector.broadcast %940 : vector<1x128xf32> to vector<16x128xf32>
    %942 = arith.mulf %938, %941 : vector<16x128xf32>
    %943 = arith.addf %937, %942 : vector<16x128xf32>
    %c112_i32_770 = arith.constant 112 : i32
    %944 = tpu.dynamic_rotate %920 by %c112_i32_770 dim 1 : vector<16x128xf32>, i32 -> vector<16x128xf32>
    %c2_771 = arith.constant 2 : index
    %c24_772 = arith.constant 24 : index
    %c0_773 = arith.constant 0 : index
    %c0_774 = arith.constant 0 : index
    %945 = vector.load %arg8[%c2_771, %c24_772, %c0_773, %c0_774] : memref<5x25x1x128xf32, #tpu.memory_space<vmem>>, vector<1x1x1x128xf32>
    %946 = vector.shape_cast %945 : vector<1x1x1x128xf32> to vector<1x128xf32>
    %947 = vector.broadcast %946 : vector<1x128xf32> to vector<16x128xf32>
    %948 = arith.mulf %944, %947 : vector<16x128xf32>
    %949 = arith.addf %943, %948 : vector<16x128xf32>
    %950 = arith.truncf %949 : vector<16x128xf32> to vector<16x128xbf16>
    %c2_775 = arith.constant 2 : index
    %c0_776 = arith.constant 0 : index
    %c0_777 = arith.constant 0 : index
    %951 = vector.load %arg9[%c2_775, %c0_776, %c0_777] : memref<5x128x128xbf16, #tpu.memory_space<vmem>>, vector<1x128x128xbf16>
    %952 = vector.shape_cast %951 : vector<1x128x128xbf16> to vector<128x128xbf16>
    %cst_778 = arith.constant dense<0.000000e+00> : vector<16x128xf32>
    %953 = tpu.matmul %950, %952, %cst_778 {dimension_numbers = #tpu.dot_dimension_numbers<[1], [0], [0], [1], [0, 0, 1, 1], [], []>} : vector<16x128xbf16>, vector<128x128xbf16>, vector<16x128xf32> -> vector<16x128xf32>
    %c2_779 = arith.constant 2 : index
    %c0_780 = arith.constant 0 : index
    %c0_781 = arith.constant 0 : index
    %954 = vector.load %arg10[%c2_779, %c0_780, %c0_781] : memref<5x1x128xf32, #tpu.memory_space<vmem>>, vector<1x1x128xf32>
    %955 = vector.shape_cast %954 : vector<1x1x128xf32> to vector<1x128xf32>
    %956 = vector.broadcast %955 : vector<1x128xf32> to vector<16x128xf32>
    %957 = arith.addf %953, %956 : vector<16x128xf32>
    %958 = arith.truncf %493 : vector<16x128xf32> to vector<16x128xbf16>
    %c3_782 = arith.constant 3 : index
    %c0_783 = arith.constant 0 : index
    %c0_784 = arith.constant 0 : index
    %959 = vector.load %arg6[%c3_782, %c0_783, %c0_784] : memref<5x128x128xbf16, #tpu.memory_space<vmem>>, vector<1x128x128xbf16>
    %960 = vector.shape_cast %959 : vector<1x128x128xbf16> to vector<128x128xbf16>
    %cst_785 = arith.constant dense<0.000000e+00> : vector<16x128xf32>
    %961 = tpu.matmul %958, %960, %cst_785 {dimension_numbers = #tpu.dot_dimension_numbers<[1], [0], [0], [1], [0, 0, 1, 1], [], []>} : vector<16x128xbf16>, vector<128x128xbf16>, vector<16x128xf32> -> vector<16x128xf32>
    %c3_786 = arith.constant 3 : index
    %c0_787 = arith.constant 0 : index
    %c0_788 = arith.constant 0 : index
    %962 = vector.load %arg7[%c3_786, %c0_787, %c0_788] : memref<5x1x128xf32, #tpu.memory_space<vmem>>, vector<1x1x128xf32>
    %963 = vector.shape_cast %962 : vector<1x1x128xf32> to vector<1x128xf32>
    %964 = vector.broadcast %963 : vector<1x128xf32> to vector<16x128xf32>
    %965 = arith.addf %961, %964 : vector<16x128xf32>
    %cst_789 = arith.constant 0.000000e+00 : f32
    %966 = vector.broadcast %cst_789 : f32 to vector<16x128xf32>
    %967 = arith.maximumf %965, %966 : vector<16x128xf32>
    %c1_790 = arith.constant 1 : index
    %c0_791 = arith.constant 0 : index
    %c0_792 = arith.constant 0 : index
    %968 = vector.load %arg4[%c1_790, %c0_791, %c0_792] : memref<5x16x16xf32, #tpu.memory_space<vmem>>, vector<1x16x16xf32>
    %969 = vector.shape_cast %968 : vector<1x16x16xf32> to vector<16x16xf32>
    %cst_793 = arith.constant dense<0.000000e+00> : vector<16x128xf32>
    %970 = tpu.matmul %969, %967, %cst_793 {dimension_numbers = #tpu.dot_dimension_numbers<[1], [0], [0], [1], [0, 0, 1, 1], [], []>} : vector<16x16xf32>, vector<16x128xf32>, vector<16x128xf32> -> vector<16x128xf32>
    %c8_i32_794 = arith.constant 8 : i32
    %971 = tpu.dynamic_rotate %970 by %c8_i32_794 dim 1 : vector<16x128xf32>, i32 -> vector<16x128xf32>
    %c3_795 = arith.constant 3 : index
    %c6_796 = arith.constant 6 : index
    %c0_797 = arith.constant 0 : index
    %c0_798 = arith.constant 0 : index
    %972 = vector.load %arg8[%c3_795, %c6_796, %c0_797, %c0_798] : memref<5x25x1x128xf32, #tpu.memory_space<vmem>>, vector<1x1x1x128xf32>
    %973 = vector.shape_cast %972 : vector<1x1x1x128xf32> to vector<1x128xf32>
    %974 = vector.broadcast %973 : vector<1x128xf32> to vector<16x128xf32>
    %975 = arith.mulf %971, %974 : vector<16x128xf32>
    %c3_799 = arith.constant 3 : index
    %c7_800 = arith.constant 7 : index
    %c0_801 = arith.constant 0 : index
    %c0_802 = arith.constant 0 : index
    %976 = vector.load %arg8[%c3_799, %c7_800, %c0_801, %c0_802] : memref<5x25x1x128xf32, #tpu.memory_space<vmem>>, vector<1x1x1x128xf32>
    %977 = vector.shape_cast %976 : vector<1x1x1x128xf32> to vector<1x128xf32>
    %978 = vector.broadcast %977 : vector<1x128xf32> to vector<16x128xf32>
    %979 = arith.mulf %970, %978 : vector<16x128xf32>
    %980 = arith.addf %975, %979 : vector<16x128xf32>
    %c120_i32_803 = arith.constant 120 : i32
    %981 = tpu.dynamic_rotate %970 by %c120_i32_803 dim 1 : vector<16x128xf32>, i32 -> vector<16x128xf32>
    %c3_804 = arith.constant 3 : index
    %c8_805 = arith.constant 8 : index
    %c0_806 = arith.constant 0 : index
    %c0_807 = arith.constant 0 : index
    %982 = vector.load %arg8[%c3_804, %c8_805, %c0_806, %c0_807] : memref<5x25x1x128xf32, #tpu.memory_space<vmem>>, vector<1x1x1x128xf32>
    %983 = vector.shape_cast %982 : vector<1x1x1x128xf32> to vector<1x128xf32>
    %984 = vector.broadcast %983 : vector<1x128xf32> to vector<16x128xf32>
    %985 = arith.mulf %981, %984 : vector<16x128xf32>
    %986 = arith.addf %980, %985 : vector<16x128xf32>
    %c8_i32_808 = arith.constant 8 : i32
    %987 = tpu.dynamic_rotate %967 by %c8_i32_808 dim 1 : vector<16x128xf32>, i32 -> vector<16x128xf32>
    %c3_809 = arith.constant 3 : index
    %c11_810 = arith.constant 11 : index
    %c0_811 = arith.constant 0 : index
    %c0_812 = arith.constant 0 : index
    %988 = vector.load %arg8[%c3_809, %c11_810, %c0_811, %c0_812] : memref<5x25x1x128xf32, #tpu.memory_space<vmem>>, vector<1x1x1x128xf32>
    %989 = vector.shape_cast %988 : vector<1x1x1x128xf32> to vector<1x128xf32>
    %990 = vector.broadcast %989 : vector<1x128xf32> to vector<16x128xf32>
    %991 = arith.mulf %987, %990 : vector<16x128xf32>
    %992 = arith.addf %986, %991 : vector<16x128xf32>
    %c3_813 = arith.constant 3 : index
    %c12_814 = arith.constant 12 : index
    %c0_815 = arith.constant 0 : index
    %c0_816 = arith.constant 0 : index
    %993 = vector.load %arg8[%c3_813, %c12_814, %c0_815, %c0_816] : memref<5x25x1x128xf32, #tpu.memory_space<vmem>>, vector<1x1x1x128xf32>
    %994 = vector.shape_cast %993 : vector<1x1x1x128xf32> to vector<1x128xf32>
    %995 = vector.broadcast %994 : vector<1x128xf32> to vector<16x128xf32>
    %996 = arith.mulf %967, %995 : vector<16x128xf32>
    %997 = arith.addf %992, %996 : vector<16x128xf32>
    %c120_i32_817 = arith.constant 120 : i32
    %998 = tpu.dynamic_rotate %967 by %c120_i32_817 dim 1 : vector<16x128xf32>, i32 -> vector<16x128xf32>
    %c3_818 = arith.constant 3 : index
    %c13_819 = arith.constant 13 : index
    %c0_820 = arith.constant 0 : index
    %c0_821 = arith.constant 0 : index
    %999 = vector.load %arg8[%c3_818, %c13_819, %c0_820, %c0_821] : memref<5x25x1x128xf32, #tpu.memory_space<vmem>>, vector<1x1x1x128xf32>
    %1000 = vector.shape_cast %999 : vector<1x1x1x128xf32> to vector<1x128xf32>
    %1001 = vector.broadcast %1000 : vector<1x128xf32> to vector<16x128xf32>
    %1002 = arith.mulf %998, %1001 : vector<16x128xf32>
    %1003 = arith.addf %997, %1002 : vector<16x128xf32>
    %c3_822 = arith.constant 3 : index
    %c0_823 = arith.constant 0 : index
    %c0_824 = arith.constant 0 : index
    %1004 = vector.load %arg4[%c3_822, %c0_823, %c0_824] : memref<5x16x16xf32, #tpu.memory_space<vmem>>, vector<1x16x16xf32>
    %1005 = vector.shape_cast %1004 : vector<1x16x16xf32> to vector<16x16xf32>
    %cst_825 = arith.constant dense<0.000000e+00> : vector<16x128xf32>
    %1006 = tpu.matmul %1005, %967, %cst_825 {dimension_numbers = #tpu.dot_dimension_numbers<[1], [0], [0], [1], [0, 0, 1, 1], [], []>} : vector<16x16xf32>, vector<16x128xf32>, vector<16x128xf32> -> vector<16x128xf32>
    %c8_i32_826 = arith.constant 8 : i32
    %1007 = tpu.dynamic_rotate %1006 by %c8_i32_826 dim 1 : vector<16x128xf32>, i32 -> vector<16x128xf32>
    %c3_827 = arith.constant 3 : index
    %c16_828 = arith.constant 16 : index
    %c0_829 = arith.constant 0 : index
    %c0_830 = arith.constant 0 : index
    %1008 = vector.load %arg8[%c3_827, %c16_828, %c0_829, %c0_830] : memref<5x25x1x128xf32, #tpu.memory_space<vmem>>, vector<1x1x1x128xf32>
    %1009 = vector.shape_cast %1008 : vector<1x1x1x128xf32> to vector<1x128xf32>
    %1010 = vector.broadcast %1009 : vector<1x128xf32> to vector<16x128xf32>
    %1011 = arith.mulf %1007, %1010 : vector<16x128xf32>
    %1012 = arith.addf %1003, %1011 : vector<16x128xf32>
    %c3_831 = arith.constant 3 : index
    %c17_832 = arith.constant 17 : index
    %c0_833 = arith.constant 0 : index
    %c0_834 = arith.constant 0 : index
    %1013 = vector.load %arg8[%c3_831, %c17_832, %c0_833, %c0_834] : memref<5x25x1x128xf32, #tpu.memory_space<vmem>>, vector<1x1x1x128xf32>
    %1014 = vector.shape_cast %1013 : vector<1x1x1x128xf32> to vector<1x128xf32>
    %1015 = vector.broadcast %1014 : vector<1x128xf32> to vector<16x128xf32>
    %1016 = arith.mulf %1006, %1015 : vector<16x128xf32>
    %1017 = arith.addf %1012, %1016 : vector<16x128xf32>
    %c120_i32_835 = arith.constant 120 : i32
    %1018 = tpu.dynamic_rotate %1006 by %c120_i32_835 dim 1 : vector<16x128xf32>, i32 -> vector<16x128xf32>
    %c3_836 = arith.constant 3 : index
    %c18_837 = arith.constant 18 : index
    %c0_838 = arith.constant 0 : index
    %c0_839 = arith.constant 0 : index
    %1019 = vector.load %arg8[%c3_836, %c18_837, %c0_838, %c0_839] : memref<5x25x1x128xf32, #tpu.memory_space<vmem>>, vector<1x1x1x128xf32>
    %1020 = vector.shape_cast %1019 : vector<1x1x1x128xf32> to vector<1x128xf32>
    %1021 = vector.broadcast %1020 : vector<1x128xf32> to vector<16x128xf32>
    %1022 = arith.mulf %1018, %1021 : vector<16x128xf32>
    %1023 = arith.addf %1017, %1022 : vector<16x128xf32>
    %1024 = arith.truncf %1023 : vector<16x128xf32> to vector<16x128xbf16>
    %c3_840 = arith.constant 3 : index
    %c0_841 = arith.constant 0 : index
    %c0_842 = arith.constant 0 : index
    %1025 = vector.load %arg9[%c3_840, %c0_841, %c0_842] : memref<5x128x128xbf16, #tpu.memory_space<vmem>>, vector<1x128x128xbf16>
    %1026 = vector.shape_cast %1025 : vector<1x128x128xbf16> to vector<128x128xbf16>
    %cst_843 = arith.constant dense<0.000000e+00> : vector<16x128xf32>
    %1027 = tpu.matmul %1024, %1026, %cst_843 {dimension_numbers = #tpu.dot_dimension_numbers<[1], [0], [0], [1], [0, 0, 1, 1], [], []>} : vector<16x128xbf16>, vector<128x128xbf16>, vector<16x128xf32> -> vector<16x128xf32>
    %c3_844 = arith.constant 3 : index
    %c0_845 = arith.constant 0 : index
    %c0_846 = arith.constant 0 : index
    %1028 = vector.load %arg10[%c3_844, %c0_845, %c0_846] : memref<5x1x128xf32, #tpu.memory_space<vmem>>, vector<1x1x128xf32>
    %1029 = vector.shape_cast %1028 : vector<1x1x128xf32> to vector<1x128xf32>
    %1030 = vector.broadcast %1029 : vector<1x128xf32> to vector<16x128xf32>
    %1031 = arith.addf %1027, %1030 : vector<16x128xf32>
    %1032 = arith.addf %957, %1031 : vector<16x128xf32>
    %c2_847 = arith.constant 2 : index
    %c0_848 = arith.constant 0 : index
    %c0_849 = arith.constant 0 : index
    %1033 = vector.load %arg13[%c2_847, %c0_848, %c0_849] : memref<6x16x128xf32, #tpu.memory_space<vmem>>, vector<1x16x128xf32>
    %1034 = vector.shape_cast %1033 : vector<1x16x128xf32> to vector<16x128xf32>
    %1035 = vector.shape_cast %1032 : vector<16x128xf32> to vector<1x16x128xf32>
    tpu.vector_store %arg13[%c2_847, %c0_848, %c0_849], %1035 {strides = array<i32>} : memref<6x16x128xf32, #tpu.memory_space<vmem>>, vector<1x16x128xf32>,
    %1036 = arith.truncf %249 : vector<16x128xf32> to vector<16x128xbf16>
    %c4_850 = arith.constant 4 : index
    %c0_851 = arith.constant 0 : index
    %c0_852 = arith.constant 0 : index
    %1037 = vector.load %arg6[%c4_850, %c0_851, %c0_852] : memref<5x128x128xbf16, #tpu.memory_space<vmem>>, vector<1x128x128xbf16>
    %1038 = vector.shape_cast %1037 : vector<1x128x128xbf16> to vector<128x128xbf16>
    %cst_853 = arith.constant dense<0.000000e+00> : vector<16x128xf32>
    %1039 = tpu.matmul %1036, %1038, %cst_853 {dimension_numbers = #tpu.dot_dimension_numbers<[1], [0], [0], [1], [0, 0, 1, 1], [], []>} : vector<16x128xbf16>, vector<128x128xbf16>, vector<16x128xf32> -> vector<16x128xf32>
    %c4_854 = arith.constant 4 : index
    %c0_855 = arith.constant 0 : index
    %c0_856 = arith.constant 0 : index
    %1040 = vector.load %arg7[%c4_854, %c0_855, %c0_856] : memref<5x1x128xf32, #tpu.memory_space<vmem>>, vector<1x1x128xf32>
    %1041 = vector.shape_cast %1040 : vector<1x1x128xf32> to vector<1x128xf32>
    %1042 = vector.broadcast %1041 : vector<1x128xf32> to vector<16x128xf32>
    %1043 = arith.addf %1039, %1042 : vector<16x128xf32>
    %cst_857 = arith.constant 0.000000e+00 : f32
    %1044 = vector.broadcast %cst_857 : f32 to vector<16x128xf32>
    %1045 = arith.maximumf %1043, %1044 : vector<16x128xf32>
    %c1_858 = arith.constant 1 : index
    %c0_859 = arith.constant 0 : index
    %c0_860 = arith.constant 0 : index
    %1046 = vector.load %arg4[%c1_858, %c0_859, %c0_860] : memref<5x16x16xf32, #tpu.memory_space<vmem>>, vector<1x16x16xf32>
    %1047 = vector.shape_cast %1046 : vector<1x16x16xf32> to vector<16x16xf32>
    %cst_861 = arith.constant dense<0.000000e+00> : vector<16x128xf32>
    %1048 = tpu.matmul %1047, %1045, %cst_861 {dimension_numbers = #tpu.dot_dimension_numbers<[1], [0], [0], [1], [0, 0, 1, 1], [], []>} : vector<16x16xf32>, vector<16x128xf32>, vector<16x128xf32> -> vector<16x128xf32>
    %c8_i32_862 = arith.constant 8 : i32
    %1049 = tpu.dynamic_rotate %1048 by %c8_i32_862 dim 1 : vector<16x128xf32>, i32 -> vector<16x128xf32>
    %c4_863 = arith.constant 4 : index
    %c6_864 = arith.constant 6 : index
    %c0_865 = arith.constant 0 : index
    %c0_866 = arith.constant 0 : index
    %1050 = vector.load %arg8[%c4_863, %c6_864, %c0_865, %c0_866] : memref<5x25x1x128xf32, #tpu.memory_space<vmem>>, vector<1x1x1x128xf32>
    %1051 = vector.shape_cast %1050 : vector<1x1x1x128xf32> to vector<1x128xf32>
    %1052 = vector.broadcast %1051 : vector<1x128xf32> to vector<16x128xf32>
    %1053 = arith.mulf %1049, %1052 : vector<16x128xf32>
    %c4_867 = arith.constant 4 : index
    %c7_868 = arith.constant 7 : index
    %c0_869 = arith.constant 0 : index
    %c0_870 = arith.constant 0 : index
    %1054 = vector.load %arg8[%c4_867, %c7_868, %c0_869, %c0_870] : memref<5x25x1x128xf32, #tpu.memory_space<vmem>>, vector<1x1x1x128xf32>
    %1055 = vector.shape_cast %1054 : vector<1x1x1x128xf32> to vector<1x128xf32>
    %1056 = vector.broadcast %1055 : vector<1x128xf32> to vector<16x128xf32>
    %1057 = arith.mulf %1048, %1056 : vector<16x128xf32>
    %1058 = arith.addf %1053, %1057 : vector<16x128xf32>
    %c120_i32_871 = arith.constant 120 : i32
    %1059 = tpu.dynamic_rotate %1048 by %c120_i32_871 dim 1 : vector<16x128xf32>, i32 -> vector<16x128xf32>
    %c4_872 = arith.constant 4 : index
    %c8_873 = arith.constant 8 : index
    %c0_874 = arith.constant 0 : index
    %c0_875 = arith.constant 0 : index
    %1060 = vector.load %arg8[%c4_872, %c8_873, %c0_874, %c0_875] : memref<5x25x1x128xf32, #tpu.memory_space<vmem>>, vector<1x1x1x128xf32>
    %1061 = vector.shape_cast %1060 : vector<1x1x1x128xf32> to vector<1x128xf32>
    %1062 = vector.broadcast %1061 : vector<1x128xf32> to vector<16x128xf32>
    %1063 = arith.mulf %1059, %1062 : vector<16x128xf32>
    %1064 = arith.addf %1058, %1063 : vector<16x128xf32>
    %c8_i32_876 = arith.constant 8 : i32
    %1065 = tpu.dynamic_rotate %1045 by %c8_i32_876 dim 1 : vector<16x128xf32>, i32 -> vector<16x128xf32>
    %c4_877 = arith.constant 4 : index
    %c11_878 = arith.constant 11 : index
    %c0_879 = arith.constant 0 : index
    %c0_880 = arith.constant 0 : index
    %1066 = vector.load %arg8[%c4_877, %c11_878, %c0_879, %c0_880] : memref<5x25x1x128xf32, #tpu.memory_space<vmem>>, vector<1x1x1x128xf32>
    %1067 = vector.shape_cast %1066 : vector<1x1x1x128xf32> to vector<1x128xf32>
    %1068 = vector.broadcast %1067 : vector<1x128xf32> to vector<16x128xf32>
    %1069 = arith.mulf %1065, %1068 : vector<16x128xf32>
    %1070 = arith.addf %1064, %1069 : vector<16x128xf32>
    %c4_881 = arith.constant 4 : index
    %c12_882 = arith.constant 12 : index
    %c0_883 = arith.constant 0 : index
    %c0_884 = arith.constant 0 : index
    %1071 = vector.load %arg8[%c4_881, %c12_882, %c0_883, %c0_884] : memref<5x25x1x128xf32, #tpu.memory_space<vmem>>, vector<1x1x1x128xf32>
    %1072 = vector.shape_cast %1071 : vector<1x1x1x128xf32> to vector<1x128xf32>
    %1073 = vector.broadcast %1072 : vector<1x128xf32> to vector<16x128xf32>
    %1074 = arith.mulf %1045, %1073 : vector<16x128xf32>
    %1075 = arith.addf %1070, %1074 : vector<16x128xf32>
    %c120_i32_885 = arith.constant 120 : i32
    %1076 = tpu.dynamic_rotate %1045 by %c120_i32_885 dim 1 : vector<16x128xf32>, i32 -> vector<16x128xf32>
    %c4_886 = arith.constant 4 : index
    %c13_887 = arith.constant 13 : index
    %c0_888 = arith.constant 0 : index
    %c0_889 = arith.constant 0 : index
    %1077 = vector.load %arg8[%c4_886, %c13_887, %c0_888, %c0_889] : memref<5x25x1x128xf32, #tpu.memory_space<vmem>>, vector<1x1x1x128xf32>
    %1078 = vector.shape_cast %1077 : vector<1x1x1x128xf32> to vector<1x128xf32>
    %1079 = vector.broadcast %1078 : vector<1x128xf32> to vector<16x128xf32>
    %1080 = arith.mulf %1076, %1079 : vector<16x128xf32>
    %1081 = arith.addf %1075, %1080 : vector<16x128xf32>
    %c3_890 = arith.constant 3 : index
    %c0_891 = arith.constant 0 : index
    %c0_892 = arith.constant 0 : index
    %1082 = vector.load %arg4[%c3_890, %c0_891, %c0_892] : memref<5x16x16xf32, #tpu.memory_space<vmem>>, vector<1x16x16xf32>
    %1083 = vector.shape_cast %1082 : vector<1x16x16xf32> to vector<16x16xf32>
    %cst_893 = arith.constant dense<0.000000e+00> : vector<16x128xf32>
    %1084 = tpu.matmul %1083, %1045, %cst_893 {dimension_numbers = #tpu.dot_dimension_numbers<[1], [0], [0], [1], [0, 0, 1, 1], [], []>} : vector<16x16xf32>, vector<16x128xf32>, vector<16x128xf32> -> vector<16x128xf32>
    %c8_i32_894 = arith.constant 8 : i32
    %1085 = tpu.dynamic_rotate %1084 by %c8_i32_894 dim 1 : vector<16x128xf32>, i32 -> vector<16x128xf32>
    %c4_895 = arith.constant 4 : index
    %c16_896 = arith.constant 16 : index
    %c0_897 = arith.constant 0 : index
    %c0_898 = arith.constant 0 : index
    %1086 = vector.load %arg8[%c4_895, %c16_896, %c0_897, %c0_898] : memref<5x25x1x128xf32, #tpu.memory_space<vmem>>, vector<1x1x1x128xf32>
    %1087 = vector.shape_cast %1086 : vector<1x1x1x128xf32> to vector<1x128xf32>
    %1088 = vector.broadcast %1087 : vector<1x128xf32> to vector<16x128xf32>
    %1089 = arith.mulf %1085, %1088 : vector<16x128xf32>
    %1090 = arith.addf %1081, %1089 : vector<16x128xf32>
    %c4_899 = arith.constant 4 : index
    %c17_900 = arith.constant 17 : index
    %c0_901 = arith.constant 0 : index
    %c0_902 = arith.constant 0 : index
    %1091 = vector.load %arg8[%c4_899, %c17_900, %c0_901, %c0_902] : memref<5x25x1x128xf32, #tpu.memory_space<vmem>>, vector<1x1x1x128xf32>
    %1092 = vector.shape_cast %1091 : vector<1x1x1x128xf32> to vector<1x128xf32>
    %1093 = vector.broadcast %1092 : vector<1x128xf32> to vector<16x128xf32>
    %1094 = arith.mulf %1084, %1093 : vector<16x128xf32>
    %1095 = arith.addf %1090, %1094 : vector<16x128xf32>
    %c120_i32_903 = arith.constant 120 : i32
    %1096 = tpu.dynamic_rotate %1084 by %c120_i32_903 dim 1 : vector<16x128xf32>, i32 -> vector<16x128xf32>
    %c4_904 = arith.constant 4 : index
    %c18_905 = arith.constant 18 : index
    %c0_906 = arith.constant 0 : index
    %c0_907 = arith.constant 0 : index
    %1097 = vector.load %arg8[%c4_904, %c18_905, %c0_906, %c0_907] : memref<5x25x1x128xf32, #tpu.memory_space<vmem>>, vector<1x1x1x128xf32>
    %1098 = vector.shape_cast %1097 : vector<1x1x1x128xf32> to vector<1x128xf32>
    %1099 = vector.broadcast %1098 : vector<1x128xf32> to vector<16x128xf32>
    %1100 = arith.mulf %1096, %1099 : vector<16x128xf32>
    %1101 = arith.addf %1095, %1100 : vector<16x128xf32>
    %1102 = arith.truncf %1101 : vector<16x128xf32> to vector<16x128xbf16>
    %c4_908 = arith.constant 4 : index
    %c0_909 = arith.constant 0 : index
    %c0_910 = arith.constant 0 : index
    %1103 = vector.load %arg9[%c4_908, %c0_909, %c0_910] : memref<5x128x128xbf16, #tpu.memory_space<vmem>>, vector<1x128x128xbf16>
    %1104 = vector.shape_cast %1103 : vector<1x128x128xbf16> to vector<128x128xbf16>
    %cst_911 = arith.constant dense<0.000000e+00> : vector<16x128xf32>
    %1105 = tpu.matmul %1102, %1104, %cst_911 {dimension_numbers = #tpu.dot_dimension_numbers<[1], [0], [0], [1], [0, 0, 1, 1], [], []>} : vector<16x128xbf16>, vector<128x128xbf16>, vector<16x128xf32> -> vector<16x128xf32>
    %c4_912 = arith.constant 4 : index
    %c0_913 = arith.constant 0 : index
    %c0_914 = arith.constant 0 : index
    %1106 = vector.load %arg10[%c4_912, %c0_913, %c0_914] : memref<5x1x128xf32, #tpu.memory_space<vmem>>, vector<1x1x128xf32>
    %1107 = vector.shape_cast %1106 : vector<1x1x128xf32> to vector<1x128xf32>
    %1108 = vector.broadcast %1107 : vector<1x128xf32> to vector<16x128xf32>
    %1109 = arith.addf %1105, %1108 : vector<16x128xf32>
    %1110 = arith.addf %1109, %10 : vector<16x128xf32>
    %c5_915 = arith.constant 5 : index
    %c0_916 = arith.constant 0 : index
    %c0_917 = arith.constant 0 : index
    %1111 = vector.load %arg13[%c5_915, %c0_916, %c0_917] : memref<6x16x128xf32, #tpu.memory_space<vmem>>, vector<1x16x128xf32>
    %1112 = vector.shape_cast %1111 : vector<1x16x128xf32> to vector<16x128xf32>
    %1113 = vector.shape_cast %1110 : vector<16x128xf32> to vector<1x16x128xf32>
    tpu.vector_store %arg13[%c5_915, %c0_916, %c0_917], %1113 {strides = array<i32>} : memref<6x16x128xf32, #tpu.memory_space<vmem>>, vector<1x16x128xf32>,
    return
  }
  func.func @transform_0(%arg0: i32) -> (i32, i32) {
    %c0_i32 = arith.constant 0 : i32
    %c0_i32_0 = arith.constant 0 : i32
    return %arg0, %c0_i32 : i32, i32
  }
  func.func @transform_1(%arg0: i32) -> (i32, i32) {
    %c0_i32 = arith.constant 0 : i32
    %c0_i32_0 = arith.constant 0 : i32
    %c0_i32_1 = arith.constant 0 : i32
    return %c0_i32, %c0_i32_0 : i32, i32
  }
  func.func @transform_2(%arg0: i32) -> (i32, i32) {
    %c0_i32 = arith.constant 0 : i32
    %c0_i32_0 = arith.constant 0 : i32
    %c0_i32_1 = arith.constant 0 : i32
    return %c0_i32, %c0_i32_0 : i32, i32
  }
  func.func @transform_3(%arg0: i32) -> (i32, i32, i32) {
    %c0_i32 = arith.constant 0 : i32
    %c0_i32_0 = arith.constant 0 : i32
    %c0_i32_1 = arith.constant 0 : i32
    %c0_i32_2 = arith.constant 0 : i32
    return %c0_i32, %c0_i32_0, %c0_i32_1 : i32, i32, i32
  }
  func.func @transform_4(%arg0: i32) -> (i32, i32, i32, i32) {
    %c0_i32 = arith.constant 0 : i32
    %c0_i32_0 = arith.constant 0 : i32
    %c0_i32_1 = arith.constant 0 : i32
    %c0_i32_2 = arith.constant 0 : i32
    %c0_i32_3 = arith.constant 0 : i32
    return %c0_i32, %c0_i32_0, %c0_i32_1, %c0_i32_2 : i32, i32, i32, i32
  }
  func.func @transform_5(%arg0: i32) -> (i32, i32, i32) {
    %c0_i32 = arith.constant 0 : i32
    %c0_i32_0 = arith.constant 0 : i32
    %c0_i32_1 = arith.constant 0 : i32
    %c0_i32_2 = arith.constant 0 : i32
    return %c0_i32, %c0_i32_0, %c0_i32_1 : i32, i32, i32
  }
  func.func @transform_6(%arg0: i32) -> (i32, i32, i32) {
    %c0_i32 = arith.constant 0 : i32
    %c0_i32_0 = arith.constant 0 : i32
    %c0_i32_1 = arith.constant 0 : i32
    %c0_i32_2 = arith.constant 0 : i32
    return %c0_i32, %c0_i32_0, %c0_i32_1 : i32, i32, i32
  }
  func.func @transform_7(%arg0: i32) -> (i32, i32, i32, i32) {
    %c0_i32 = arith.constant 0 : i32
    %c0_i32_0 = arith.constant 0 : i32
    %c0_i32_1 = arith.constant 0 : i32
    %c0_i32_2 = arith.constant 0 : i32
    %c0_i32_3 = arith.constant 0 : i32
    return %c0_i32, %c0_i32_0, %c0_i32_1, %c0_i32_2 : i32, i32, i32, i32
  }
  func.func @transform_8(%arg0: i32) -> (i32, i32, i32) {
    %c0_i32 = arith.constant 0 : i32
    %c0_i32_0 = arith.constant 0 : i32
    %c0_i32_1 = arith.constant 0 : i32
    %c0_i32_2 = arith.constant 0 : i32
    return %c0_i32, %c0_i32_0, %c0_i32_1 : i32, i32, i32
  }
  func.func @transform_9(%arg0: i32) -> (i32, i32, i32) {
    %c0_i32 = arith.constant 0 : i32
    %c0_i32_0 = arith.constant 0 : i32
    %c0_i32_1 = arith.constant 0 : i32
    %c0_i32_2 = arith.constant 0 : i32
    return %c0_i32, %c0_i32_0, %c0_i32_1 : i32, i32, i32
  }
  func.func @transform_10(%arg0: i32) -> (i32, i32, i32) {
    %c0_i32 = arith.constant 0 : i32
    %c0_i32_0 = arith.constant 0 : i32
    %c0_i32_1 = arith.constant 0 : i32
    %c0_i32_2 = arith.constant 0 : i32
    return %c0_i32, %c0_i32_0, %c0_i32_1 : i32, i32, i32
  }
  func.func @transform_11(%arg0: i32) -> (i32, i32) {
    %c0_i32 = arith.constant 0 : i32
    %c0_i32_0 = arith.constant 0 : i32
    %c0_i32_1 = arith.constant 0 : i32
    return %c0_i32, %c0_i32_0 : i32, i32
  }
  func.func @transform_12(%arg0: i32) -> (i32, i32, i32) {
    %c0_i32 = arith.constant 0 : i32
    %c0_i32_0 = arith.constant 0 : i32
    %c0_i32_1 = arith.constant 0 : i32
    return %c0_i32, %arg0, %c0_i32_0 : i32, i32, i32
  }
}

</mosaic_0001>

<llo_original>
// kernel: normal_cell_forward.1
$region0: #{normal_cell_forward.1}
  #allocation0 [shape = 'u32[]', space=smem, size = 0x4, offset = 0x4, fixed_abs, tag = 'smem constant byte address 0x4 - core index']
  #allocation1 [shape = 'u32[72,128]{1,0:T(1,128)}', space=vmem, size = 0x9000, scoped, tag = 'internal scratch']
  %s0 = inlined_call_operand.vmem [shape: f32[32,512], index: 0, kind: input, shape index: {}]
  %s1 = inlined_call_operand.vmem [shape: bf16[512,256], index: 1, kind: input, shape index: {}]
  %s2 = inlined_call_operand.vmem [shape: f32[1,256], index: 2, kind: input, shape index: {}]
  %s3 = inlined_call_operand.vmem [shape: f32[5,16,16], index: 3, kind: input, shape index: {}]
  %s4 = inlined_call_operand.vmem [shape: f32[5,25,1,128], index: 4, kind: input, shape index: {}]
  %s5 = inlined_call_operand.vmem [shape: bf16[5,128,128], index: 5, kind: input, shape index: {}]
  %s6 = inlined_call_operand.vmem [shape: f32[5,1,128], index: 6, kind: input, shape index: {}]
  %s7 = inlined_call_operand.vmem [shape: f32[5,25,1,128], index: 7, kind: input, shape index: {}]
  %s8 = inlined_call_operand.vmem [shape: bf16[5,128,128], index: 8, kind: input, shape index: {}]
  %s9 = inlined_call_operand.vmem [shape: f32[5,1,128], index: 9, kind: input, shape index: {}]
  %s10 = inlined_call_operand.vmem [shape: f32[9,1,256], index: 10, kind: input, shape index: {}]
  %s11 = inlined_call_operand.vmem [shape: f32[16,1], index: 11, kind: input, shape index: {}]
  %s12 = inlined_call_operand.vmem [shape: f32[6,32,128], index: 12, kind: output, shape index: {}]
  %s13 = sld [smem:[#allocation0]]
  $region115: #{normal_cell_forward.1} parent=0
    _
  %s15 = ssub.s32 1, %s13
  %s16 = scalar_select 0, %s15, %s13
  $region1: #{normal_cell_forward.1} parent=0
    #allocation2 [shape = 'u8[98304]{0}', space=vmem, size = 0x18000, scoped, tag = 'output window, operand 0']
    loop: start=0, step=1, limit=4
    $region2: #{normal_cell_forward.1} parent=1 // loop_pre_header
      _
    $region3: #{normal_cell_forward.1} parent=1 // loop_header
      %s18 = sphi 0, %s22
      %p19 = scmp.ge.s32.totalorder %s18, 4
      %s28 = sphi 0, %s30
      %s31 = sphi 0, %s28
      %s32 = sphi 0, %s31
      %s48 = sphi 0, %s32
      %s52 = sphi 0, %s52
      %s54 = sphi 0, %s52
      %s55 = sphi 0, %s54
      %s69 = sphi 0, %s55
      %s73 = sphi 0, %s73
      %s75 = sphi 0, %s73
      %s76 = sphi 0, %s75
      %s90 = sphi 0, %s76
      %s94 = sphi 0, %s94
      %s96 = sphi 0, %s94
      %s97 = sphi 0, %s96
      %s111 = sphi 0, %s97
      %s115 = sphi 0, %s115
      %s117 = sphi 0, %s115
      %s118 = sphi 0, %s117
      %s132 = sphi 0, %s118
      %s136 = sphi 0, %s136
      %s138 = sphi 0, %s136
      %s139 = sphi 0, %s138
      %s153 = sphi 0, %s139
      %s157 = sphi 0, %s157
      %s159 = sphi 0, %s157
      %s160 = sphi 0, %s159
      %s174 = sphi 0, %s160
      %s178 = sphi 0, %s178
      %s180 = sphi 0, %s178
      %s181 = sphi 0, %s180
      %s195 = sphi 0, %s181
      %s199 = sphi 0, %s199
      %s201 = sphi 0, %s199
      %s202 = sphi 0, %s201
      %s216 = sphi 0, %s202
      %s220 = sphi 0, %s220
      %s222 = sphi 0, %s220
      %s223 = sphi 0, %s222
      %s237 = sphi 0, %s223
      %s241 = sphi 0, %s241
      %s243 = sphi 0, %s241
      %s244 = sphi 0, %s243
      %s258 = sphi 0, %s244
      %s262 = sphi 0, %s262
      %s264 = sphi 0, %s262
      %s265 = sphi 0, %s264
      %s279 = sphi 0, %s265
      %s285 = sphi 0, %s287
      %s288 = sphi 0, %s285
      %s289 = sphi 0, %s288
      %s305 = sphi 0, %s289
    $region4: #{normal_cell_forward.1} parent=1 // loop_header_branch
      %21 = sbr.rel (%p19) target = $region8
    $region5: #{normal_cell_forward.1} parent=1 // loop_body
      %s23 = ssub.s32 %s18, 1
      %s24 = ssub.s32 %s18, 2
      %s25 = sadd.s32 %s18, 1
      %s26 = ssub.s32 %s18, %s25
      %p27 = scmp.eq.s32.totalorder %s26, 0
      %s29 = sadd.s32 %s28, 1
      %s30 = scalar_select %p27, %s28, %s29
      %p33 = pneg %p27
      %p34 = scmp.eq.s32.totalorder %s18, 1
      %p35 = por %p33, %p34
      %p36 = scmp.ne.s32.totalorder %s28, %s31
      %p37 = scmp.eq.s32.totalorder %s18, 0
      %p38 = por %p36, %p37
      %p39 = scmp.ne.s32.totalorder %s28, %s31
      %p40 = scmp.eq.s32.totalorder %s23, 1
      %p41 = por %p39, %p40
      %p42 = scmp.ne.s32.totalorder %s31, %s32
      %p43 = scmp.eq.s32.totalorder %s23, 0
      %p44 = por %p42, %p43
      %p45 = scmp.ne.s32.totalorder %s31, %s32
      %p46 = scmp.eq.s32.totalorder %s24, 1
      %p47 = por %p45, %p46
      %p49 = scmp.ne.s32.totalorder %s32, %s48
      %p50 = scmp.eq.s32.totalorder %s24, 0
      %p51 = por %p49, %p50
      %s53 = sadd.s32 %s52, 1
      %p56 = scmp.eq.s32.totalorder %s18, 1
      %p57 = scmp.ne.s32.totalorder %s52, %s54
      %p58 = scmp.eq.s32.totalorder %s18, 0
      %p59 = por %p57, %p58
      %p60 = scmp.ne.s32.totalorder %s52, %s54
      %p61 = scmp.eq.s32.totalorder %s23, 1
      %p62 = por %p60, %p61
      %p63 = scmp.ne.s32.totalorder %s54, %s55
      %p64 = scmp.eq.s32.totalorder %s23, 0
      %p65 = por %p63, %p64
      %p66 = scmp.ne.s32.totalorder %s54, %s55
      %p67 = scmp.eq.s32.totalorder %s24, 1
      %p68 = por %p66, %p67
      %p70 = scmp.ne.s32.totalorder %s55, %s69
      %p71 = scmp.eq.s32.totalorder %s24, 0
      %p72 = por %p70, %p71
      %s74 = sadd.s32 %s73, 1
      %p77 = scmp.eq.s32.totalorder %s18, 1
      %p78 = scmp.ne.s32.totalorder %s73, %s75
      %p79 = scmp.eq.s32.totalorder %s18, 0
      %p80 = por %p78, %p79
      %p81 = scmp.ne.s32.totalorder %s73, %s75
      %p82 = scmp.eq.s32.totalorder %s23, 1
      %p83 = por %p81, %p82
      %p84 = scmp.ne.s32.totalorder %s75, %s76
      %p85 = scmp.eq.s32.totalorder %s23, 0
      %p86 = por %p84, %p85
      %p87 = scmp.ne.s32.totalorder %s75, %s76
      %p88 = scmp.eq.s32.totalorder %s24, 1
      %p89 = por %p87, %p88
      %p91 = scmp.ne.s32.totalorder %s76, %s90
      %p92 = scmp.eq.s32.totalorder %s24, 0
      %p93 = por %p91, %p92
      %s95 = sadd.s32 %s94, 1
      %p98 = scmp.eq.s32.totalorder %s18, 1
      %p99 = scmp.ne.s32.totalorder %s94, %s96
      %p100 = scmp.eq.s32.totalorder %s18, 0
      %p101 = por %p99, %p100
      %p102 = scmp.ne.s32.totalorder %s94, %s96
      %p103 = scmp.eq.s32.totalorder %s23, 1
      %p104 = por %p102, %p103
      %p105 = scmp.ne.s32.totalorder %s96, %s97
      %p106 = scmp.eq.s32.totalorder %s23, 0
      %p107 = por %p105, %p106
      %p108 = scmp.ne.s32.totalorder %s96, %s97
      %p109 = scmp.eq.s32.totalorder %s24, 1
      %p110 = por %p108, %p109
      %p112 = scmp.ne.s32.totalorder %s97, %s111
      %p113 = scmp.eq.s32.totalorder %s24, 0
      %p114 = por %p112, %p113
      %s116 = sadd.s32 %s115, 1
      %p119 = scmp.eq.s32.totalorder %s18, 1
      %p120 = scmp.ne.s32.totalorder %s115, %s117
      %p121 = scmp.eq.s32.totalorder %s18, 0
      %p122 = por %p120, %p121
      %p123 = scmp.ne.s32.totalorder %s115, %s117
      %p124 = scmp.eq.s32.totalorder %s23, 1
      %p125 = por %p123, %p124
      %p126 = scmp.ne.s32.totalorder %s117, %s118
      %p127 = scmp.eq.s32.totalorder %s23, 0
      %p128 = por %p126, %p127
      %p129 = scmp.ne.s32.totalorder %s117, %s118
      %p130 = scmp.eq.s32.totalorder %s24, 1
      %p131 = por %p129, %p130
      %p133 = scmp.ne.s32.totalorder %s118, %s132
      %p134 = scmp.eq.s32.totalorder %s24, 0
      %p135 = por %p133, %p134
      %s137 = sadd.s32 %s136, 1
      %p140 = scmp.eq.s32.totalorder %s18, 1
      %p141 = scmp.ne.s32.totalorder %s136, %s138
      %p142 = scmp.eq.s32.totalorder %s18, 0
      %p143 = por %p141, %p142
      %p144 = scmp.ne.s32.totalorder %s136, %s138
      %p145 = scmp.eq.s32.totalorder %s23, 1
      %p146 = por %p144, %p145
      %p147 = scmp.ne.s32.totalorder %s138, %s139
      %p148 = scmp.eq.s32.totalorder %s23, 0
      %p149 = por %p147, %p148
      %p150 = scmp.ne.s32.totalorder %s138, %s139
      %p151 = scmp.eq.s32.totalorder %s24, 1
      %p152 = por %p150, %p151
      %p154 = scmp.ne.s32.totalorder %s139, %s153
      %p155 = scmp.eq.s32.totalorder %s24, 0
      %p156 = por %p154, %p155
      %s158 = sadd.s32 %s157, 1
      %p161 = scmp.eq.s32.totalorder %s18, 1
      %p162 = scmp.ne.s32.totalorder %s157, %s159
      %p163 = scmp.eq.s32.totalorder %s18, 0
      %p164 = por %p162, %p163
      %p165 = scmp.ne.s32.totalorder %s157, %s159
      %p166 = scmp.eq.s32.totalorder %s23, 1
      %p167 = por %p165, %p166
      %p168 = scmp.ne.s32.totalorder %s159, %s160
      %p169 = scmp.eq.s32.totalorder %s23, 0
      %p170 = por %p168, %p169
      %p171 = scmp.ne.s32.totalorder %s159, %s160
      %p172 = scmp.eq.s32.totalorder %s24, 1
      %p173 = por %p171, %p172
      %p175 = scmp.ne.s32.totalorder %s160, %s174
      %p176 = scmp.eq.s32.totalorder %s24, 0
      %p177 = por %p175, %p176
      %s179 = sadd.s32 %s178, 1
      %p182 = scmp.eq.s32.totalorder %s18, 1
      %p183 = scmp.ne.s32.totalorder %s178, %s180
      %p184 = scmp.eq.s32.totalorder %s18, 0
      %p185 = por %p183, %p184
      %p186 = scmp.ne.s32.totalorder %s178, %s180
      %p187 = scmp.eq.s32.totalorder %s23, 1
      %p188 = por %p186, %p187
      %p189 = scmp.ne.s32.totalorder %s180, %s181
      %p190 = scmp.eq.s32.totalorder %s23, 0
      %p191 = por %p189, %p190
      %p192 = scmp.ne.s32.totalorder %s180, %s181
      %p193 = scmp.eq.s32.totalorder %s24, 1
      %p194 = por %p192, %p193
      %p196 = scmp.ne.s32.totalorder %s181, %s195
      %p197 = scmp.eq.s32.totalorder %s24, 0
      %p198 = por %p196, %p197
      %s200 = sadd.s32 %s199, 1
      %p203 = scmp.eq.s32.totalorder %s18, 1
      %p204 = scmp.ne.s32.totalorder %s199, %s201
      %p205 = scmp.eq.s32.totalorder %s18, 0
      %p206 = por %p204, %p205
      %p207 = scmp.ne.s32.totalorder %s199, %s201
      %p208 = scmp.eq.s32.totalorder %s23, 1
      %p209 = por %p207, %p208
      %p210 = scmp.ne.s32.totalorder %s201, %s202
      %p211 = scmp.eq.s32.totalorder %s23, 0
      %p212 = por %p210, %p211
      %p213 = scmp.ne.s32.totalorder %s201, %s202
      %p214 = scmp.eq.s32.totalorder %s24, 1
      %p215 = por %p213, %p214
      %p217 = scmp.ne.s32.totalorder %s202, %s216
      %p218 = scmp.eq.s32.totalorder %s24, 0
      %p219 = por %p217, %p218
      %s221 = sadd.s32 %s220, 1
      %p224 = scmp.eq.s32.totalorder %s18, 1
      %p225 = scmp.ne.s32.totalorder %s220, %s222
      %p226 = scmp.eq.s32.totalorder %s18, 0
      %p227 = por %p225, %p226
      %p228 = scmp.ne.s32.totalorder %s220, %s222
      %p229 = scmp.eq.s32.totalorder %s23, 1
      %p230 = por %p228, %p229
      %p231 = scmp.ne.s32.totalorder %s222, %s223
      %p232 = scmp.eq.s32.totalorder %s23, 0
      %p233 = por %p231, %p232
      %p234 = scmp.ne.s32.totalorder %s222, %s223
      %p235 = scmp.eq.s32.totalorder %s24, 1
      %p236 = por %p234, %p235
      %p238 = scmp.ne.s32.totalorder %s223, %s237
      %p239 = scmp.eq.s32.totalorder %s24, 0
      %p240 = por %p238, %p239
      %s242 = sadd.s32 %s241, 1
      %p245 = scmp.eq.s32.totalorder %s18, 1
      %p246 = scmp.ne.s32.totalorder %s241, %s243
      %p247 = scmp.eq.s32.totalorder %s18, 0
      %p248 = por %p246, %p247
      %p249 = scmp.ne.s32.totalorder %s241, %s243
      %p250 = scmp.eq.s32.totalorder %s23, 1
      %p251 = por %p249, %p250
      %p252 = scmp.ne.s32.totalorder %s243, %s244
      %p253 = scmp.eq.s32.totalorder %s23, 0
      %p254 = por %p252, %p253
      %p255 = scmp.ne.s32.totalorder %s243, %s244
      %p256 = scmp.eq.s32.totalorder %s24, 1
      %p257 = por %p255, %p256
      %p259 = scmp.ne.s32.totalorder %s244, %s258
      %p260 = scmp.eq.s32.totalorder %s24, 0
      %p261 = por %p259, %p260
      %s263 = sadd.s32 %s262, 1
      %p266 = scmp.eq.s32.totalorder %s18, 1
      %p267 = scmp.ne.s32.totalorder %s262, %s264
      %p268 = scmp.eq.s32.totalorder %s18, 0
      %p269 = por %p267, %p268
      %p270 = scmp.ne.s32.totalorder %s262, %s264
      %p271 = scmp.eq.s32.totalorder %s23, 1
      %p272 = por %p270, %p271
      %p273 = scmp.ne.s32.totalorder %s264, %s265
      %p274 = scmp.eq.s32.totalorder %s23, 0
      %p275 = por %p273, %p274
      %p276 = scmp.ne.s32.totalorder %s264, %s265
      %p277 = scmp.eq.s32.totalorder %s24, 1
      %p278 = por %p276, %p277
      %p280 = scmp.ne.s32.totalorder %s265, %s279
      %p281 = scmp.eq.s32.totalorder %s24, 0
      %p282 = por %p280, %p281
      %s283 = ssub.s32 %s18, %s25
      %p284 = scmp.eq.s32.totalorder %s283, 0
      %s286 = sadd.s32 %s285, 1
      %s287 = scalar_select %p284, %s285, %s286
      %p290 = pneg %p284
      %p291 = scmp.eq.s32.totalorder %s18, 1
      %p292 = por %p290, %p291
      %p293 = scmp.ne.s32.totalorder %s285, %s288
      %p294 = scmp.eq.s32.totalorder %s18, 0
      %p295 = por %p293, %p294
      %p296 = scmp.ne.s32.totalorder %s285, %s288
      %p297 = scmp.eq.s32.totalorder %s23, 1
      %p298 = por %p296, %p297
      %p299 = scmp.ne.s32.totalorder %s288, %s289
      %p300 = scmp.eq.s32.totalorder %s23, 0
      %p301 = por %p299, %p300
      %p302 = scmp.ne.s32.totalorder %s288, %s289
      %p303 = scmp.eq.s32.totalorder %s24, 1
      %p304 = por %p302, %p303
      %p306 = scmp.ne.s32.totalorder %s289, %s305
      %p307 = scmp.eq.s32.totalorder %s24, 0
      %p308 = por %p306, %p307
      %p309 = scmp.le.s32.totalorder 1, %s18
      %p310 = scmp.lt.s32.totalorder %s18, 3
      %p311 = pnand %p309, %p310
      %p312 = pneg %p311
      // Predicated region
      $region9: #{normal_cell_forward.1} parent=5 // pred_check
        _
      $region10: #{normal_cell_forward.1} parent=5 // pred_check_branch
        %314 = sbr.rel (%p311) target = $region12
      $region11: #{normal_cell_forward.1} parent=5 // pred_region
        %s315 = ssub.s32 %s18, 1
        // Predicated region
        $region13: #{normal_cell_forward.1} parent=11 // pred_check
          %p316 = pneg %p65
        $region14: #{normal_cell_forward.1} parent=11 // pred_check_branch
          %318 = sbr.rel (%p316) target = $region16
        $region15: #{normal_cell_forward.1} parent=11 // pred_region
          _
        $region16: #{normal_cell_forward.1} parent=11 // pred_fallthru
          _
        // Predicated region
        $region17: #{normal_cell_forward.1} parent=11 // pred_check
          %p319 = pneg %p86
        $region18: #{normal_cell_forward.1} parent=11 // pred_check_branch
          %321 = sbr.rel (%p319) target = $region20
        $region19: #{normal_cell_forward.1} parent=11 // pred_region
          _
        $region20: #{normal_cell_forward.1} parent=11 // pred_fallthru
          _
        // Predicated region
        $region21: #{normal_cell_forward.1} parent=11 // pred_check
          %p322 = pneg %p107
        $region22: #{normal_cell_forward.1} parent=11 // pred_check_branch
          %324 = sbr.rel (%p322) target = $region24
        $region23: #{normal_cell_forward.1} parent=11 // pred_region
          _
        $region24: #{normal_cell_forward.1} parent=11 // pred_fallthru
          _
        // Predicated region
        $region25: #{normal_cell_forward.1} parent=11 // pred_check
          %p325 = pneg %p128
        $region26: #{normal_cell_forward.1} parent=11 // pred_check_branch
          %327 = sbr.rel (%p325) target = $region28
        $region27: #{normal_cell_forward.1} parent=11 // pred_region
          _
        $region28: #{normal_cell_forward.1} parent=11 // pred_fallthru
          _
        // Predicated region
        $region29: #{normal_cell_forward.1} parent=11 // pred_check
          %p328 = pneg %p149
        $region30: #{normal_cell_forward.1} parent=11 // pred_check_branch
          %330 = sbr.rel (%p328) target = $region32
        $region31: #{normal_cell_forward.1} parent=11 // pred_region
          _
        $region32: #{normal_cell_forward.1} parent=11 // pred_fallthru
          _
        // Predicated region
        $region33: #{normal_cell_forward.1} parent=11 // pred_check
          %p331 = pneg %p170
        $region34: #{normal_cell_forward.1} parent=11 // pred_check_branch
          %333 = sbr.rel (%p331) target = $region36
        $region35: #{normal_cell_forward.1} parent=11 // pred_region
          _
        $region36: #{normal_cell_forward.1} parent=11 // pred_fallthru
          _
        // Predicated region
        $region37: #{normal_cell_forward.1} parent=11 // pred_check
          %p334 = pneg %p191
        $region38: #{normal_cell_forward.1} parent=11 // pred_check_branch
          %336 = sbr.rel (%p334) target = $region40
        $region39: #{normal_cell_forward.1} parent=11 // pred_region
          _
        $region40: #{normal_cell_forward.1} parent=11 // pred_fallthru
          _
        // Predicated region
        $region41: #{normal_cell_forward.1} parent=11 // pred_check
          %p337 = pneg %p212
        $region42: #{normal_cell_forward.1} parent=11 // pred_check_branch
          %339 = sbr.rel (%p337) target = $region44
        $region43: #{normal_cell_forward.1} parent=11 // pred_region
          _
        $region44: #{normal_cell_forward.1} parent=11 // pred_fallthru
          _
        // Predicated region
        $region45: #{normal_cell_forward.1} parent=11 // pred_check
          %p340 = pneg %p233
        $region46: #{normal_cell_forward.1} parent=11 // pred_check_branch
          %342 = sbr.rel (%p340) target = $region48
        $region47: #{normal_cell_forward.1} parent=11 // pred_region
          _
        $region48: #{normal_cell_forward.1} parent=11 // pred_fallthru
          _
        // Predicated region
        $region49: #{normal_cell_forward.1} parent=11 // pred_check
          %p343 = pneg %p254
        $region50: #{normal_cell_forward.1} parent=11 // pred_check_branch
          %345 = sbr.rel (%p343) target = $region52
        $region51: #{normal_cell_forward.1} parent=11 // pred_region
          _
        $region52: #{normal_cell_forward.1} parent=11 // pred_fallthru
          _
        // Predicated region
        $region53: #{normal_cell_forward.1} parent=11 // pred_check
          %p346 = pneg %p275
        $region54: #{normal_cell_forward.1} parent=11 // pred_check_branch
          %348 = sbr.rel (%p346) target = $region56
        $region55: #{normal_cell_forward.1} parent=11 // pred_region
          _
        $region56: #{normal_cell_forward.1} parent=11 // pred_fallthru
          _
      $region12: #{normal_cell_forward.1} parent=5 // pred_fallthru
        _
      %p349 = scmp.lt.s32.totalorder %s18, 2
      // Predicated region
      $region57: #{normal_cell_forward.1} parent=5 // pred_check
        %p350 = pneg %p349
      $region58: #{normal_cell_forward.1} parent=5 // pred_check_branch
        %352 = sbr.rel (%p350) target = $region60
      $region59: #{normal_cell_forward.1} parent=5 // pred_region
        // Predicated region
        $region61: #{normal_cell_forward.1} parent=59 // pred_check
          %p353 = pneg %p38
        $region62: #{normal_cell_forward.1} parent=59 // pred_check_branch
          %355 = sbr.rel (%p353) target = $region64
        $region63: #{normal_cell_forward.1} parent=59 // pred_region
          %s356 = smul.u32 2, %s18
          %p357 = scmp.lt.s32.totalorder %s356, 3
          %s358 = scalar_select %p357, %s356, 3
          %s359 = smul.addr %s358, 4
          %s360 = smul.addr %s359, 8
          %s361 = scalar_lea.vmem %s0, %s360
          %s362 = smul.u32 2, %s18
        $region64: #{normal_cell_forward.1} parent=59 // pred_fallthru
          _
      $region60: #{normal_cell_forward.1} parent=5 // pred_fallthru
        _
      %p363 = scmp.le.s32.totalorder 1, %s18
      %p364 = scmp.lt.s32.totalorder %s18, 3
      %p365 = pnand %p363, %p364
      %p366 = pneg %p365
      // Predicated region
      $region65: #{normal_cell_forward.1} parent=5 // pred_check
        _
      $region66: #{normal_cell_forward.1} parent=5 // pred_check_branch
        %368 = sbr.rel (%p365) target = $region68
      $region67: #{normal_cell_forward.1} parent=5 // pred_region
        %s369 = ssub.s32 %s18, 1
        %s370 = smul.u32 2, %s23
        %p371 = scmp.lt.s32.totalorder %s370, 3
        %s372 = scalar_select %p371, %s370, 3
        %s373 = smul.addr %s372, 4
        %s374 = smul.addr %s373, 8
        %s375 = scalar_lea.vmem %s0, %s374
        %p376 = pneg %p44
        %p377 = pneg %p41
        %p378 = pneg %p65
        %p379 = pneg %p62
        %p380 = pneg %p86
        %p381 = pneg %p83
        %p382 = pneg %p107
        %p383 = pneg %p104
        %p384 = pneg %p128
        %p385 = pneg %p125
        %p386 = pneg %p149
        %p387 = pneg %p146
        %p388 = pneg %p170
        %p389 = pneg %p167
        %p390 = pneg %p191
        %p391 = pneg %p188
        %p392 = pneg %p212
        %p393 = pneg %p209
        %p394 = pneg %p233
        %p395 = pneg %p230
        %p396 = pneg %p254
        %p397 = pneg %p251
        %p398 = pneg %p275
        %p399 = pneg %p272
        %p400 = pneg %p301
        %p401 = pneg %p298
        %s402 = sand.u32 %s288, 1
        %s403 = sand.u32 %s288, 1
        %s404 = smul.addr %s403, 96
        %s405 = scalar_lea.vmem [#allocation2], %s404
        %s406 = smul.u32 2, %s23
        %p407 = scmp.lt.s32.totalorder %s406, 3
        %s408 = scalar_select %p407, %s406, 3
        %s409 = smul.addr %s408, 4
        %s410 = smul.addr %s409, 8
        %s411 = scalar_lea.vmem %s0, %s410
        %s412 = smul.u32 2, %s23
        %s413 = smul.u32 2, %s23
        %v414 = vld [vmem:[%s411] sm:$0xff]
        %v415 = vld [vmem:[%s411 + $0x8] sm:$0xff]
        %v416 = vld [vmem:[%s411 + $0x10] sm:$0xff]
        %v417 = vld [vmem:[%s411 + $0x18] sm:$0xff]
        %v418 = vld [vmem:[%s411 + $0x20] sm:$0xff]
        %v419 = vld [vmem:[%s411 + $0x28] sm:$0xff]
        %v420 = vld [vmem:[%s411 + $0x30] sm:$0xff]
        %v421 = vld [vmem:[%s411 + $0x38] sm:$0xff]
        %v422 = vmax.f32 %v414, 0.0
        %v423 = vmax.f32 %v415, 0.0
        %v424 = vmax.f32 %v416, 0.0
        %v425 = vmax.f32 %v417, 0.0
        %v426 = vmax.f32 %v418, 0.0
        %v427 = vmax.f32 %v419, 0.0
        %v428 = vmax.f32 %v420, 0.0
        %v429 = vmax.f32 %v421, 0.0
        %v430 = vpack.c.bf16 %v426, %v422
        %v431 = vpack.c.bf16 %v427, %v423
        %v432 = vpack.c.bf16 %v428, %v424
        %v433 = vpack.c.bf16 %v429, %v425
        %v434 = vld [vmem:[%s1] sm:$0xff]
        %v435 = vld [vmem:[%s1 + $0x8] sm:$0xff]
        %v436 = vld [vmem:[%s1 + $0x10] sm:$0xff]
        %v437 = vld [vmem:[%s1 + $0x18] sm:$0xff]
        %v438 = vld [vmem:[%s1 + $0x20] sm:$0xff]
        %v439 = vld [vmem:[%s1 + $0x28] sm:$0xff]
        %v440 = vld [vmem:[%s1 + $0x30] sm:$0xff]
        %v441 = vld [vmem:[%s1 + $0x38] sm:$0xff]
        %v442 = vld [vmem:[%s1 + $0x40] sm:$0xff]
        %v443 = vld [vmem:[%s1 + $0x48] sm:$0xff]
        %v444 = vld [vmem:[%s1 + $0x50] sm:$0xff]
        %v445 = vld [vmem:[%s1 + $0x58] sm:$0xff]
        %v446 = vld [vmem:[%s1 + $0x60] sm:$0xff]
        %v447 = vld [vmem:[%s1 + $0x68] sm:$0xff]
        %v448 = vld [vmem:[%s1 + $0x70] sm:$0xff]
        %v449 = vld [vmem:[%s1 + $0x78] sm:$0xff]
        %v450 = vld [vmem:[%s1 + $0x80] sm:$0xff]
        %v451 = vld [vmem:[%s1 + $0x88] sm:$0xff]
        %v452 = vld [vmem:[%s1 + $0x90] sm:$0xff]
        %v453 = vld [vmem:[%s1 + $0x98] sm:$0xff]
        %v454 = vld [vmem:[%s1 + $0xa0] sm:$0xff]
        %v455 = vld [vmem:[%s1 + $0xa8] sm:$0xff]
        %v456 = vld [vmem:[%s1 + $0xb0] sm:$0xff]
        %v457 = vld [vmem:[%s1 + $0xb8] sm:$0xff]
        %v458 = vld [vmem:[%s1 + $0xc0] sm:$0xff]
        %v459 = vld [vmem:[%s1 + $0xc8] sm:$0xff]
        %v460 = vld [vmem:[%s1 + $0xd0] sm:$0xff]
        %v461 = vld [vmem:[%s1 + $0xd8] sm:$0xff]
        %v462 = vld [vmem:[%s1 + $0xe0] sm:$0xff]
        %v463 = vld [vmem:[%s1 + $0xe8] sm:$0xff]
        %v464 = vld [vmem:[%s1 + $0xf0] sm:$0xff]
        %v465 = vld [vmem:[%s1 + $0xf8] sm:$0xff]
        %v466 = vld [vmem:[%s1 + $0x100] sm:$0xff]
        %v467 = vld [vmem:[%s1 + $0x108] sm:$0xff]
        %v468 = vld [vmem:[%s1 + $0x110] sm:$0xff]
        %v469 = vld [vmem:[%s1 + $0x118] sm:$0xff]
        %v470 = vld [vmem:[%s1 + $0x120] sm:$0xff]
        %v471 = vld [vmem:[%s1 + $0x128] sm:$0xff]
        %v472 = vld [vmem:[%s1 + $0x130] sm:$0xff]
        %v473 = vld [vmem:[%s1 + $0x138] sm:$0xff]
        %v474 = vld [vmem:[%s1 + $0x140] sm:$0xff]
        %v475 = vld [vmem:[%s1 + $0x148] sm:$0xff]
        %v476 = vld [vmem:[%s1 + $0x150] sm:$0xff]
        %v477 = vld [vmem:[%s1 + $0x158] sm:$0xff]
        %v478 = vld [vmem:[%s1 + $0x160] sm:$0xff]
        %v479 = vld [vmem:[%s1 + $0x168] sm:$0xff]
        %v480 = vld [vmem:[%s1 + $0x170] sm:$0xff]
        %v481 = vld [vmem:[%s1 + $0x178] sm:$0xff]
        %v482 = vld [vmem:[%s1 + $0x180] sm:$0xff]
        %v483 = vld [vmem:[%s1 + $0x188] sm:$0xff]
        %v484 = vld [vmem:[%s1 + $0x190] sm:$0xff]
        %v485 = vld [vmem:[%s1 + $0x198] sm:$0xff]
        %v486 = vld [vmem:[%s1 + $0x1a0] sm:$0xff]
        %v487 = vld [vmem:[%s1 + $0x1a8] sm:$0xff]
        %v488 = vld [vmem:[%s1 + $0x1b0] sm:$0xff]
        %v489 = vld [vmem:[%s1 + $0x1b8] sm:$0xff]
        %v490 = vld [vmem:[%s1 + $0x1c0] sm:$0xff]
        %v491 = vld [vmem:[%s1 + $0x1c8] sm:$0xff]
        %v492 = vld [vmem:[%s1 + $0x1d0] sm:$0xff]
        %v493 = vld [vmem:[%s1 + $0x1d8] sm:$0xff]
        %v494 = vld [vmem:[%s1 + $0x1e0] sm:$0xff]
        %v495 = vld [vmem:[%s1 + $0x1e8] sm:$0xff]
        %v496 = vld [vmem:[%s1 + $0x1f0] sm:$0xff]
        %v497 = vld [vmem:[%s1 + $0x1f8] sm:$0xff]
        %v498 = vld [vmem:[%s2] sm:$0x3]
        %v500 = vperm.slane %v498, 0
        %v501 = vperm.slane %v498, 1
        %v568 = vunpack.c.l.b16 %v434
        %v569 = vunpack.c.h.b16 %v434
        %v570 = vunpack.c.l.b16 %v435
        %v571 = vunpack.c.h.b16 %v435
        %v572 = vunpack.c.l.b16 %v436
        %v573 = vunpack.c.h.b16 %v436
        %v574 = vunpack.c.l.b16 %v437
        %v575 = vunpack.c.h.b16 %v437
        %v576 = vunpack.c.l.b16 %v438
        %v577 = vunpack.c.h.b16 %v438
        %v578 = vunpack.c.l.b16 %v439
        %v579 = vunpack.c.h.b16 %v439
        %v580 = vunpack.c.l.b16 %v440
        %v581 = vunpack.c.h.b16 %v440
        %v582 = vunpack.c.l.b16 %v441
        %v583 = vunpack.c.h.b16 %v441
        %v584 = vunpack.c.l.b16 %v442
        %v585 = vunpack.c.h.b16 %v442
        %v586 = vunpack.c.l.b16 %v443
        %v587 = vunpack.c.h.b16 %v443
        %v588 = vunpack.c.l.b16 %v444
        %v589 = vunpack.c.h.b16 %v444
        %v590 = vunpack.c.l.b16 %v445
        %v591 = vunpack.c.h.b16 %v445
        %v592 = vunpack.c.l.b16 %v446
        %v593 = vunpack.c.h.b16 %v446
        %v594 = vunpack.c.l.b16 %v447
        %v595 = vunpack.c.h.b16 %v447
        %v596 = vunpack.c.l.b16 %v448
        %v597 = vunpack.c.h.b16 %v448
        %v598 = vunpack.c.l.b16 %v449
        %v599 = vunpack.c.h.b16 %v449
        %v600 = vunpack.c.l.b16 %v450
        %v601 = vunpack.c.h.b16 %v450
        %v602 = vunpack.c.l.b16 %v451
        %v603 = vunpack.c.h.b16 %v451
        %v604 = vunpack.c.l.b16 %v452
        %v605 = vunpack.c.h.b16 %v452
        %v606 = vunpack.c.l.b16 %v453
        %v607 = vunpack.c.h.b16 %v453
        %v608 = vunpack.c.l.b16 %v454
        %v609 = vunpack.c.h.b16 %v454
        %v610 = vunpack.c.l.b16 %v455
        %v611 = vunpack.c.h.b16 %v455
        %v612 = vunpack.c.l.b16 %v456
        %v613 = vunpack.c.h.b16 %v456
        %v614 = vunpack.c.l.b16 %v457
        %v615 = vunpack.c.h.b16 %v457
        %v616 = vunpack.c.l.b16 %v458
        %v617 = vunpack.c.h.b16 %v458
        %v618 = vunpack.c.l.b16 %v459
        %v619 = vunpack.c.h.b16 %v459
        %v620 = vunpack.c.l.b16 %v460
        %v621 = vunpack.c.h.b16 %v460
        %v622 = vunpack.c.l.b16 %v461
        %v623 = vunpack.c.h.b16 %v461
        %v624 = vunpack.c.l.b16 %v462
        %v625 = vunpack.c.h.b16 %v462
        %v626 = vunpack.c.l.b16 %v463
        %v627 = vunpack.c.h.b16 %v463
        %v628 = vunpack.c.l.b16 %v464
        %v629 = vunpack.c.h.b16 %v464
        %v630 = vunpack.c.l.b16 %v465
        %v631 = vunpack.c.h.b16 %v465
        %v632 = vunpack.c.l.b16 %v466
        %v633 = vunpack.c.h.b16 %v466
        %v634 = vunpack.c.l.b16 %v467
        %v635 = vunpack.c.h.b16 %v467
        %v636 = vunpack.c.l.b16 %v468
        %v637 = vunpack.c.h.b16 %v468
        %v638 = vunpack.c.l.b16 %v469
        %v639 = vunpack.c.h.b16 %v469
        %v640 = vunpack.c.l.b16 %v470
        %v641 = vunpack.c.h.b16 %v470
        %v642 = vunpack.c.l.b16 %v471
        %v643 = vunpack.c.h.b16 %v471
        %v644 = vunpack.c.l.b16 %v472
        %v645 = vunpack.c.h.b16 %v472
        %v646 = vunpack.c.l.b16 %v473
        %v647 = vunpack.c.h.b16 %v473
        %v648 = vunpack.c.l.b16 %v474
        %v649 = vunpack.c.h.b16 %v474
        %v650 = vunpack.c.l.b16 %v475
        %v651 = vunpack.c.h.b16 %v475
        %v652 = vunpack.c.l.b16 %v476
        %v653 = vunpack.c.h.b16 %v476
        %v654 = vunpack.c.l.b16 %v477
        %v655 = vunpack.c.h.b16 %v477
        %v656 = vunpack.c.l.b16 %v478
        %v657 = vunpack.c.h.b16 %v478
        %v658 = vunpack.c.l.b16 %v479
        %v659 = vunpack.c.h.b16 %v479
        %v660 = vunpack.c.l.b16 %v480
        %v661 = vunpack.c.h.b16 %v480
        %v662 = vunpack.c.l.b16 %v481
        %v663 = vunpack.c.h.b16 %v481
        %v664 = vunpack.c.l.b16 %v482
        %v665 = vunpack.c.h.b16 %v482
        %v666 = vunpack.c.l.b16 %v483
        %v667 = vunpack.c.h.b16 %v483
        %v668 = vunpack.c.l.b16 %v484
        %v669 = vunpack.c.h.b16 %v484
        %v670 = vunpack.c.l.b16 %v485
        %v671 = vunpack.c.h.b16 %v485
        %v672 = vunpack.c.l.b16 %v486
        %v673 = vunpack.c.h.b16 %v486
        %v674 = vunpack.c.l.b16 %v487
        %v675 = vunpack.c.h.b16 %v487
        %v676 = vunpack.c.l.b16 %v488
        %v677 = vunpack.c.h.b16 %v488
        %v678 = vunpack.c.l.b16 %v489
        %v679 = vunpack.c.h.b16 %v489
        %v680 = vunpack.c.l.b16 %v490
        %v681 = vunpack.c.h.b16 %v490
        %v682 = vunpack.c.l.b16 %v491
        %v683 = vunpack.c.h.b16 %v491
        %v684 = vunpack.c.l.b16 %v492
        %v685 = vunpack.c.h.b16 %v492
        %v686 = vunpack.c.l.b16 %v493
        %v687 = vunpack.c.h.b16 %v493
        %v688 = vunpack.c.l.b16 %v494
        %v689 = vunpack.c.h.b16 %v494
        %v690 = vunpack.c.l.b16 %v495
        %v691 = vunpack.c.h.b16 %v495
        %v692 = vunpack.c.l.b16 %v496
        %v693 = vunpack.c.h.b16 %v496
        %v694 = vunpack.c.l.b16 %v497
        %v695 = vunpack.c.h.b16 %v497
        %v696 = vpack.c.b16 %v570, %v568
        %v697 = vpack.c.b16 %v571, %v569
        %v698 = vpack.c.b16 %v574, %v572
        %v699 = vpack.c.b16 %v575, %v573
        %v700 = vpack.c.b16 %v578, %v576
        %v701 = vpack.c.b16 %v579, %v577
        %v702 = vpack.c.b16 %v582, %v580
        %v703 = vpack.c.b16 %v583, %v581
        %v704 = vpack.c.b16 %v586, %v584
        %v705 = vpack.c.b16 %v587, %v585
        %v706 = vpack.c.b16 %v590, %v588
        %v707 = vpack.c.b16 %v591, %v589
        %v708 = vpack.c.b16 %v594, %v592
        %v709 = vpack.c.b16 %v595, %v593
        %v710 = vpack.c.b16 %v598, %v596
        %v711 = vpack.c.b16 %v599, %v597
        %v712 = vpack.c.b16 %v602, %v600
        %v713 = vpack.c.b16 %v603, %v601
        %v714 = vpack.c.b16 %v606, %v604
        %v715 = vpack.c.b16 %v607, %v605
        %v716 = vpack.c.b16 %v610, %v608
        %v717 = vpack.c.b16 %v611, %v609
        %v718 = vpack.c.b16 %v614, %v612
        %v719 = vpack.c.b16 %v615, %v613
        %v720 = vpack.c.b16 %v618, %v616
        %v721 = vpack.c.b16 %v619, %v617
        %v722 = vpack.c.b16 %v622, %v620
        %v723 = vpack.c.b16 %v623, %v621
        %v724 = vpack.c.b16 %v626, %v624
        %v725 = vpack.c.b16 %v627, %v625
        %v726 = vpack.c.b16 %v630, %v628
        %v727 = vpack.c.b16 %v631, %v629
        %v728 = vpack.c.b16 %v634, %v632
        %v729 = vpack.c.b16 %v635, %v633
        %v730 = vpack.c.b16 %v638, %v636
        %v731 = vpack.c.b16 %v639, %v637
        %v732 = vpack.c.b16 %v642, %v640
        %v733 = vpack.c.b16 %v643, %v641
        %v734 = vpack.c.b16 %v646, %v644
        %v735 = vpack.c.b16 %v647, %v645
        %v736 = vpack.c.b16 %v650, %v648
        %v737 = vpack.c.b16 %v651, %v649
        %v738 = vpack.c.b16 %v654, %v652
        %v739 = vpack.c.b16 %v655, %v653
        %v740 = vpack.c.b16 %v658, %v656
        %v741 = vpack.c.b16 %v659, %v657
        %v742 = vpack.c.b16 %v662, %v660
        %v743 = vpack.c.b16 %v663, %v661
        %v744 = vpack.c.b16 %v666, %v664
        %v745 = vpack.c.b16 %v667, %v665
        %v746 = vpack.c.b16 %v670, %v668
        %v747 = vpack.c.b16 %v671, %v669
        %v748 = vpack.c.b16 %v674, %v672
        %v749 = vpack.c.b16 %v675, %v673
        %v750 = vpack.c.b16 %v678, %v676
        %v751 = vpack.c.b16 %v679, %v677
        %v752 = vpack.c.b16 %v682, %v680
        %v753 = vpack.c.b16 %v683, %v681
        %v754 = vpack.c.b16 %v686, %v684
        %v755 = vpack.c.b16 %v687, %v685
        %v756 = vpack.c.b16 %v690, %v688
        %v757 = vpack.c.b16 %v691, %v689
        %v758 = vpack.c.b16 %v694, %v692
        %v759 = vpack.c.b16 %v695, %v693
        %824 = vmatpush.bf16.msra.mxu0 %v710
        %825 = vmatpush.bf16.msra.mxu0 %v708
        %826 = vmatpush.bf16.msra.mxu0 %v706
        %827 = vmatpush.bf16.msra.mxu0 %v704
        %828 = vmatpush.bf16.msra.mxu0 %v702
        %829 = vmatpush.bf16.msra.mxu0 %v700
        %830 = vmatpush.bf16.msra.mxu0 %v698
        %831 = vmatpush.bf16.msra.mxu0 %v696
        %832 = vmatmul.bf16.gmra.mxu0 %v430
        %v833 = vpop.f32.mrf.mxu0
        %v834 = vadd.f32 %v500, %v833
        %v835 = vpop.f32.mrf.mxu0
        %v836 = vadd.f32 %v500, %v835
        %837 = vdwg.mxu0
        %838 = vmatpush.bf16.msra.mxu0 %v726
        %839 = vmatpush.bf16.msra.mxu0 %v724
        %840 = vmatpush.bf16.msra.mxu0 %v722
        %841 = vmatpush.bf16.msra.mxu0 %v720
        %842 = vmatpush.bf16.msra.mxu0 %v718
        %843 = vmatpush.bf16.msra.mxu0 %v716
        %844 = vmatpush.bf16.msra.mxu0 %v714
        %845 = vmatpush.bf16.msra.mxu0 %v712
        %846 = vmatmul.bf16.gmra.mxu0 %v431
        %v847 = vpop.f32.mrf.mxu0
        %v848 = vadd.f32 %v834, %v847
        %v849 = vpop.f32.mrf.mxu0
        %v850 = vadd.f32 %v836, %v849
        %851 = vdwg.mxu0
        %852 = vmatpush.bf16.msra.mxu0 %v742
        %853 = vmatpush.bf16.msra.mxu0 %v740
        %854 = vmatpush.bf16.msra.mxu0 %v738
        %855 = vmatpush.bf16.msra.mxu0 %v736
        %856 = vmatpush.bf16.msra.mxu0 %v734
        %857 = vmatpush.bf16.msra.mxu0 %v732
        %858 = vmatpush.bf16.msra.mxu0 %v730
        %859 = vmatpush.bf16.msra.mxu0 %v728
        %860 = vmatmul.bf16.gmra.mxu0 %v432
        %v861 = vpop.f32.mrf.mxu0
        %v862 = vadd.f32 %v848, %v861
        %v863 = vpop.f32.mrf.mxu0
        %v864 = vadd.f32 %v850, %v863
        %865 = vdwg.mxu0
        %866 = vmatpush.bf16.msra.mxu0 %v758
        %867 = vmatpush.bf16.msra.mxu0 %v756
        %868 = vmatpush.bf16.msra.mxu0 %v754
        %869 = vmatpush.bf16.msra.mxu0 %v752
        %870 = vmatpush.bf16.msra.mxu0 %v750
        %871 = vmatpush.bf16.msra.mxu0 %v748
        %872 = vmatpush.bf16.msra.mxu0 %v746
        %873 = vmatpush.bf16.msra.mxu0 %v744
        %874 = vmatmul.bf16.gmra.mxu0 %v433
        %v875 = vpop.f32.mrf.mxu0
        %v876 = vadd.f32 %v862, %v875
        %v877 = vpop.f32.mrf.mxu0
        %v878 = vadd.f32 %v864, %v877
        %879 = vdwg.mxu0
        %880 = vmatpush.bf16.msra.mxu0 %v711
        %881 = vmatpush.bf16.msra.mxu0 %v709
        %882 = vmatpush.bf16.msra.mxu0 %v707
        %883 = vmatpush.bf16.msra.mxu0 %v705
        %884 = vmatpush.bf16.msra.mxu0 %v703
        %885 = vmatpush.bf16.msra.mxu0 %v701
        %886 = vmatpush.bf16.msra.mxu0 %v699
        %887 = vmatpush.bf16.msra.mxu0 %v697
        %888 = vmatmul.bf16.gmra.mxu0 %v430
        %v889 = vpop.f32.mrf.mxu0
        %v890 = vadd.f32 %v501, %v889
        %v891 = vpop.f32.mrf.mxu0
        %v892 = vadd.f32 %v501, %v891
        %893 = vdwg.mxu0
        %894 = vmatpush.bf16.msra.mxu0 %v727
        %895 = vmatpush.bf16.msra.mxu0 %v725
        %896 = vmatpush.bf16.msra.mxu0 %v723
        %897 = vmatpush.bf16.msra.mxu0 %v721
        %898 = vmatpush.bf16.msra.mxu0 %v719
        %899 = vmatpush.bf16.msra.mxu0 %v717
        %900 = vmatpush.bf16.msra.mxu0 %v715
        %901 = vmatpush.bf16.msra.mxu0 %v713
        %902 = vmatmul.bf16.gmra.mxu0 %v431
        %v903 = vpop.f32.mrf.mxu0
        %v904 = vadd.f32 %v890, %v903
        %v905 = vpop.f32.mrf.mxu0
        %v906 = vadd.f32 %v892, %v905
        %907 = vdwg.mxu0
        %908 = vmatpush.bf16.msra.mxu0 %v743
        %909 = vmatpush.bf16.msra.mxu0 %v741
        %910 = vmatpush.bf16.msra.mxu0 %v739
        %911 = vmatpush.bf16.msra.mxu0 %v737
        %912 = vmatpush.bf16.msra.mxu0 %v735
        %913 = vmatpush.bf16.msra.mxu0 %v733
        %914 = vmatpush.bf16.msra.mxu0 %v731
        %915 = vmatpush.bf16.msra.mxu0 %v729
        %916 = vmatmul.bf16.gmra.mxu0 %v432
        %v917 = vpop.f32.mrf.mxu0
        %v918 = vadd.f32 %v904, %v917
        %v919 = vpop.f32.mrf.mxu0
        %v920 = vadd.f32 %v906, %v919
        %921 = vdwg.mxu0
        %922 = vmatpush.bf16.msra.mxu0 %v759
        %923 = vmatpush.bf16.msra.mxu0 %v757
        %924 = vmatpush.bf16.msra.mxu0 %v755
        %925 = vmatpush.bf16.msra.mxu0 %v753
        %926 = vmatpush.bf16.msra.mxu0 %v751
        %927 = vmatpush.bf16.msra.mxu0 %v749
        %928 = vmatpush.bf16.msra.mxu0 %v747
        %929 = vmatpush.bf16.msra.mxu0 %v745
        %930 = vmatmul.bf16.gmra.mxu0 %v433
        %v931 = vpop.f32.mrf.mxu0
        %v932 = vadd.f32 %v918, %v931
        %v933 = vpop.f32.mrf.mxu0
        %v934 = vadd.f32 %v920, %v933
        %935 = vdwg.mxu0
        %s936 = scalar_lea.vmem %s3, 16
        %v937 = vld [vmem:[%s936] sm:$0xff]
        %v938 = vld [vmem:[%s936 + $0x8] sm:$0xff]
        %vm939 = vcmask 130048
        %v941 = vsel %vm939, %v937, 0
        %v944 = vsel %vm939, %v938, 0
        %946 = vmatpush.msra.mxu0 0.0
        %947 = vmatpush.msra.mxu0 0.0
        %948 = vmatpush.msra.mxu0 0.0
        %949 = vmatpush.msra.mxu0 0.0
        %950 = vmatpush.msra.mxu0 0.0
        %951 = vmatpush.msra.mxu0 0.0
        %952 = vmatpush.msra.mxu0 0.0
        %953 = vmatpush.msra.mxu0 0.0
        %954 = vmatpush.msra.mxu0 0.0
        %955 = vmatpush.msra.mxu0 0.0
        %956 = vmatpush.msra.mxu0 0.0
        %957 = vmatpush.msra.mxu0 0.0
        %958 = vmatpush.msra.mxu0 0.0
        %959 = vmatpush.msra.mxu0 0.0
        %960 = vmatpush.msra.mxu0 %v878
        %961 = vmatpush.msra.mxu0 %v876
        %962 = vmatmul.f32.gmra.mxu0 %v941
        %v963 = vpop.f32.mrf.mxu0
        %v964 = vadd.f32 0.0, %v963
        %965 = vmatmul.f32.gmra.mxu0 %v944
        %v966 = vpop.f32.mrf.mxu0
        %v967 = vadd.f32 0.0, %v966
        %968 = vdwg.mxu0
        %969 = vmatpush.msra.mxu0 0.0
        %970 = vmatpush.msra.mxu0 0.0
        %971 = vmatpush.msra.mxu0 0.0
        %972 = vmatpush.msra.mxu0 0.0
        %973 = vmatpush.msra.mxu0 0.0
        %974 = vmatpush.msra.mxu0 0.0
        %975 = vmatpush.msra.mxu0 0.0
        %976 = vmatpush.msra.mxu0 0.0
        %977 = vmatpush.msra.mxu0 0.0
        %978 = vmatpush.msra.mxu0 0.0
        %979 = vmatpush.msra.mxu0 0.0
        %980 = vmatpush.msra.mxu0 0.0
        %981 = vmatpush.msra.mxu0 0.0
        %982 = vmatpush.msra.mxu0 0.0
        %983 = vmatpush.msra.mxu0 %v934
        %984 = vmatpush.msra.mxu0 %v932
        %985 = vmatmul.f32.gmra.mxu0 %v941
        %v986 = vpop.f32.mrf.mxu0
        %v987 = vadd.f32 0.0, %v986
        %988 = vmatmul.f32.gmra.mxu0 %v944
        %v989 = vpop.f32.mrf.mxu0
        %v990 = vadd.f32 0.0, %v989
        %991 = vdwg.mxu0
        %992 = vrot.lane.b32.xlu0 %v964, 8
        %v993 = vpop.permute.xlu0 %992
        %994 = vrot.lane.b32.xlu0 %v967, 8
        %v995 = vpop.permute.xlu0 %994
        %996 = vrot.lane.b32.xlu0 %v987, 8
        %v997 = vpop.permute.xlu0 %996
        %998 = vrot.lane.b32.xlu0 %v990, 8
        %v999 = vpop.permute.xlu0 %998
        %v1000 = vlaneseq
        %v1001 = vand.u32 %v1000, 127
        %vm1002 = vcmp.lt.s32.totalorder %v1001, 8
        %v1003 = vsel %vm1002, %v993, %v997
        %v1004 = vsel %vm1002, %v995, %v999
        %v1005 = vsel %vm1002, %v997, %v993
        %v1006 = vsel %vm1002, %v999, %v995
        %v1007 = vld [vmem:[%s10] sm:$0x3]
        %v1009 = vperm.slane %v1007, 0
        %v1010 = vperm.slane %v1007, 1
        %v1013 = vmul.f32 %v1005, %v1009
        %v1014 = vmul.f32 %v1003, %v1010
        %v1015 = vmul.f32 %v1006, %v1009
        %v1016 = vmul.f32 %v1004, %v1010
        %s1017 = scalar_lea.vmem %s10, 2
        %v1018 = vld [vmem:[%s1017] sm:$0x3]
        %v1020 = vperm.slane %v1018, 0
        %v1021 = vperm.slane %v1018, 1
        %v1024 = vmul.f32 %v964, %v1020
        %v1025 = vmul.f32 %v987, %v1021
        %v1026 = vmul.f32 %v967, %v1020
        %v1027 = vmul.f32 %v990, %v1021
        %v1028 = vadd.f32 %v1013, %v1024
        %v1029 = vadd.f32 %v1014, %v1025
        %v1030 = vadd.f32 %v1015, %v1026
        %v1031 = vadd.f32 %v1016, %v1027
        %1032 = vrot.lane.b32.xlu0 %v964, 120
        %v1033 = vpop.permute.xlu0 %1032
        %1034 = vrot.lane.b32.xlu0 %v967, 120
        %v1035 = vpop.permute.xlu0 %1034
        %1036 = vrot.lane.b32.xlu0 %v987, 120
        %v1037 = vpop.permute.xlu0 %1036
        %1038 = vrot.lane.b32.xlu0 %v990, 120
        %v1039 = vpop.permute.xlu0 %1038
        %vm1040 = vcmp.lt.s32.totalorder %v1001, 120
        %v1041 = vsel %vm1040, %v1033, %v1037
        %v1042 = vsel %vm1040, %v1035, %v1039
        %v1043 = vsel %vm1040, %v1037, %v1033
        %v1044 = vsel %vm1040, %v1039, %v1035
        %s1045 = scalar_lea.vmem %s10, 4
        %v1046 = vld [vmem:[%s1045] sm:$0x3]
        %v1048 = vperm.slane %v1046, 0
        %v1049 = vperm.slane %v1046, 1
        %v1052 = vmul.f32 %v1041, %v1048
        %v1053 = vmul.f32 %v1043, %v1049
        %v1054 = vmul.f32 %v1042, %v1048
        %v1055 = vmul.f32 %v1044, %v1049
        %v1056 = vadd.f32 %v1028, %v1052
        %v1057 = vadd.f32 %v1029, %v1053
        %v1058 = vadd.f32 %v1030, %v1054
        %v1059 = vadd.f32 %v1031, %v1055
        %1060 = vrot.lane.b32.xlu0 %v876, 8
        %v1061 = vpop.permute.xlu0 %1060
        %1062 = vrot.lane.b32.xlu0 %v878, 8
        %v1063 = vpop.permute.xlu0 %1062
        %1064 = vrot.lane.b32.xlu0 %v932, 8
        %v1065 = vpop.permute.xlu0 %1064
        %1066 = vrot.lane.b32.xlu0 %v934, 8
        %v1067 = vpop.permute.xlu0 %1066
        %v1068 = vsel %vm1002, %v1061, %v1065
        %v1069 = vsel %vm1002, %v1063, %v1067
        %v1070 = vsel %vm1002, %v1065, %v1061
        %v1071 = vsel %vm1002, %v1067, %v1063
        %s1072 = scalar_lea.vmem %s10, 6
        %v1073 = vld [vmem:[%s1072] sm:$0x3]
        %v1075 = vperm.slane %v1073, 0
        %v1076 = vperm.slane %v1073, 1
        %v1079 = vmul.f32 %v1070, %v1075
        %v1080 = vmul.f32 %v1068, %v1076
        %v1081 = vmul.f32 %v1071, %v1075
        %v1082 = vmul.f32 %v1069, %v1076
        %v1083 = vadd.f32 %v1056, %v1079
        %v1084 = vadd.f32 %v1057, %v1080
        %v1085 = vadd.f32 %v1058, %v1081
        %v1086 = vadd.f32 %v1059, %v1082
        %s1087 = scalar_lea.vmem %s10, 8
        %v1088 = vld [vmem:[%s1087] sm:$0x3]
        %v1090 = vperm.slane %v1088, 0
        %v1091 = vperm.slane %v1088, 1
        %v1094 = vmul.f32 %v876, %v1090
        %v1095 = vmul.f32 %v932, %v1091
        %v1096 = vmul.f32 %v878, %v1090
        %v1097 = vmul.f32 %v934, %v1091
        %v1098 = vadd.f32 %v1083, %v1094
        %v1099 = vadd.f32 %v1084, %v1095
        %v1100 = vadd.f32 %v1085, %v1096
        %v1101 = vadd.f32 %v1086, %v1097
        %1102 = vrot.lane.b32.xlu0 %v876, 120
        %v1103 = vpop.permute.xlu0 %1102
        %1104 = vrot.lane.b32.xlu0 %v878, 120
        %v1105 = vpop.permute.xlu0 %1104
        %1106 = vrot.lane.b32.xlu0 %v932, 120
        %v1107 = vpop.permute.xlu0 %1106
        %1108 = vrot.lane.b32.xlu0 %v934, 120
        %v1109 = vpop.permute.xlu0 %1108
        %v1110 = vsel %vm1040, %v1103, %v1107
        %v1111 = vsel %vm1040, %v1105, %v1109
        %v1112 = vsel %vm1040, %v1107, %v1103
        %v1113 = vsel %vm1040, %v1109, %v1105
        %s1114 = scalar_lea.vmem %s10, 10
        %v1115 = vld [vmem:[%s1114] sm:$0x3]
        %v1117 = vperm.slane %v1115, 0
        %v1118 = vperm.slane %v1115, 1
        %v1121 = vmul.f32 %v1110, %v1117
        %v1122 = vmul.f32 %v1112, %v1118
        %v1123 = vmul.f32 %v1111, %v1117
        %v1124 = vmul.f32 %v1113, %v1118
        %v1125 = vadd.f32 %v1098, %v1121
        %v1126 = vadd.f32 %v1099, %v1122
        %v1127 = vadd.f32 %v1100, %v1123
        %v1128 = vadd.f32 %v1101, %v1124
        %s1129 = scalar_lea.vmem %s3, 48
        %v1130 = vld [vmem:[%s1129] sm:$0xff]
        %v1131 = vld [vmem:[%s1129 + $0x8] sm:$0xff]
        %v1133 = vsel %vm939, %v1130, 0
        %v1136 = vsel %vm939, %v1131, 0
        %1138 = vmatpush.msra.mxu0 0.0
        %1139 = vmatpush.msra.mxu0 0.0
        %1140 = vmatpush.msra.mxu0 0.0
        %1141 = vmatpush.msra.mxu0 0.0
        %1142 = vmatpush.msra.mxu0 0.0
        %1143 = vmatpush.msra.mxu0 0.0
        %1144 = vmatpush.msra.mxu0 0.0
        %1145 = vmatpush.msra.mxu0 0.0
        %1146 = vmatpush.msra.mxu0 0.0
        %1147 = vmatpush.msra.mxu0 0.0
        %1148 = vmatpush.msra.mxu0 0.0
        %1149 = vmatpush.msra.mxu0 0.0
        %1150 = vmatpush.msra.mxu0 0.0
        %1151 = vmatpush.msra.mxu0 0.0
        %1152 = vmatpush.msra.mxu0 %v878
        %1153 = vmatpush.msra.mxu0 %v876
        %1154 = vmatmul.f32.gmra.mxu0 %v1133
        %v1155 = vpop.f32.mrf.mxu0
        %v1156 = vadd.f32 0.0, %v1155
        %1157 = vmatmul.f32.gmra.mxu0 %v1136
        %v1158 = vpop.f32.mrf.mxu0
        %v1159 = vadd.f32 0.0, %v1158
        %1160 = vdwg.mxu0
        %1161 = vmatpush.msra.mxu0 0.0
        %1162 = vmatpush.msra.mxu0 0.0
        %1163 = vmatpush.msra.mxu0 0.0
        %1164 = vmatpush.msra.mxu0 0.0
        %1165 = vmatpush.msra.mxu0 0.0
        %1166 = vmatpush.msra.mxu0 0.0
        %1167 = vmatpush.msra.mxu0 0.0
        %1168 = vmatpush.msra.mxu0 0.0
        %1169 = vmatpush.msra.mxu0 0.0
        %1170 = vmatpush.msra.mxu0 0.0
        %1171 = vmatpush.msra.mxu0 0.0
        %1172 = vmatpush.msra.mxu0 0.0
        %1173 = vmatpush.msra.mxu0 0.0
        %1174 = vmatpush.msra.mxu0 0.0
        %1175 = vmatpush.msra.mxu0 %v934
        %1176 = vmatpush.msra.mxu0 %v932
        %1177 = vmatmul.f32.gmra.mxu0 %v1133
        %v1178 = vpop.f32.mrf.mxu0
        %v1179 = vadd.f32 0.0, %v1178
        %1180 = vmatmul.f32.gmra.mxu0 %v1136
        %v1181 = vpop.f32.mrf.mxu0
        %v1182 = vadd.f32 0.0, %v1181
        %1183 = vdwg.mxu0
        %1184 = vrot.lane.b32.xlu0 %v1156, 8
        %v1185 = vpop.permute.xlu0 %1184
        %1186 = vrot.lane.b32.xlu0 %v1159, 8
        %v1187 = vpop.permute.xlu0 %1186
        %1188 = vrot.lane.b32.xlu0 %v1179, 8
        %v1189 = vpop.permute.xlu0 %1188
        %1190 = vrot.lane.b32.xlu0 %v1182, 8
        %v1191 = vpop.permute.xlu0 %1190
        %v1192 = vsel %vm1002, %v1185, %v1189
        %v1193 = vsel %vm1002, %v1187, %v1191
        %v1194 = vsel %vm1002, %v1189, %v1185
        %v1195 = vsel %vm1002, %v1191, %v1187
        %s1196 = scalar_lea.vmem %s10, 12
        %v1197 = vld [vmem:[%s1196] sm:$0x3]
        %v1199 = vperm.slane %v1197, 0
        %v1200 = vperm.slane %v1197, 1
        %v1203 = vmul.f32 %v1194, %v1199
        %v1204 = vmul.f32 %v1192, %v1200
        %v1205 = vmul.f32 %v1195, %v1199
        %v1206 = vmul.f32 %v1193, %v1200
        %v1207 = vadd.f32 %v1125, %v1203
        %v1208 = vadd.f32 %v1126, %v1204
        %v1209 = vadd.f32 %v1127, %v1205
        %v1210 = vadd.f32 %v1128, %v1206
        %s1211 = scalar_lea.vmem %s10, 14
        %v1212 = vld [vmem:[%s1211] sm:$0x3]
        %v1214 = vperm.slane %v1212, 0
        %v1215 = vperm.slane %v1212, 1
        %v1218 = vmul.f32 %v1156, %v1214
        %v1219 = vmul.f32 %v1179, %v1215
        %v1220 = vmul.f32 %v1159, %v1214
        %v1221 = vmul.f32 %v1182, %v1215
        %v1222 = vadd.f32 %v1207, %v1218
        %v1223 = vadd.f32 %v1208, %v1219
        %v1224 = vadd.f32 %v1209, %v1220
        %v1225 = vadd.f32 %v1210, %v1221
        %1226 = vrot.lane.b32.xlu0 %v1156, 120
        %v1227 = vpop.permute.xlu0 %1226
        %1228 = vrot.lane.b32.xlu0 %v1159, 120
        %v1229 = vpop.permute.xlu0 %1228
        %1230 = vrot.lane.b32.xlu0 %v1179, 120
        %v1231 = vpop.permute.xlu0 %1230
        %1232 = vrot.lane.b32.xlu0 %v1182, 120
        %v1233 = vpop.permute.xlu0 %1232
        %v1234 = vsel %vm1040, %v1227, %v1231
        %v1235 = vsel %vm1040, %v1229, %v1233
        %v1236 = vsel %vm1040, %v1231, %v1227
        %v1237 = vsel %vm1040, %v1233, %v1229
        %s1238 = scalar_lea.vmem %s10, 16
        %v1239 = vld [vmem:[%s1238] sm:$0x3]
        %v1241 = vperm.slane %v1239, 0
        %v1242 = vperm.slane %v1239, 1
        %v1245 = vmul.f32 %v1234, %v1241
        %v1246 = vmul.f32 %v1236, %v1242
        %v1247 = vmul.f32 %v1235, %v1241
        %v1248 = vmul.f32 %v1237, %v1242
        %v1249 = vadd.f32 %v1222, %v1245
        %v1250 = vadd.f32 %v1223, %v1246
        %v1251 = vadd.f32 %v1224, %v1247
        %v1252 = vadd.f32 %v1225, %v1248
        %v1253 = vld [vmem:[%s11] sm:$0xff]
        %v1254 = vld [vmem:[%s11 + $0x8] sm:$0xff]
        %1256 = vset.pattern.permute.xlu0 0
        %1257 = vperm.xlu0 %1256, %v1253
        %v1258 = vpop.permute.xlu0 %1257
        %1261 = vset.pattern.permute.xlu0 0
        %1262 = vperm.xlu0 %1261, %v1254
        %v1263 = vpop.permute.xlu0 %1262
        %v1265 = vmul.f32 %v1249, %v1258
        %v1266 = vmul.f32 %v1250, %v1258
        %v1267 = vmul.f32 %v1251, %v1263
        %v1268 = vmul.f32 %v1252, %v1263
        %1269 = vst [vmem:[%s405] sm:$0xff] %v876
        %1270 = vst [vmem:[%s405 + $0x8] sm:$0xff] %v878
        %v1271 = vadd.f32 %v1266, %v876
        %v1272 = vadd.f32 %v1268, %v878
        %s1273 = scalar_lea.vmem %s405, 48 [#allocation2]
        %1274 = vst [vmem:[%s1273] sm:$0xff] %v1271
        %1275 = vst [vmem:[%s1273 + $0x8] sm:$0xff] %v1272
        %v1276 = vmul.f32 %v1265, 2.0
        %v1277 = vmul.f32 %v1267, 2.0
        %s1278 = scalar_lea.vmem %s405, 64 [#allocation2]
        %1279 = vst [vmem:[%s1278] sm:$0xff] %v1276
        %1280 = vst [vmem:[%s1278 + $0x8] sm:$0xff] %v1277
        %v1281 = vmax.f32 %v876, 0.0
        %v1282 = vmax.f32 %v878, 0.0
        %v1283 = vmax.f32 %v932, 0.0
        %v1284 = vmax.f32 %v934, 0.0
        %v1285 = vld [vmem:[%s3] sm:$0xff]
        %v1286 = vld [vmem:[%s3 + $0x8] sm:$0xff]
        %v1288 = vsel %vm939, %v1285, 0
        %v1291 = vsel %vm939, %v1286, 0
        %1293 = vmatpush.msra.mxu0 0.0
        %1294 = vmatpush.msra.mxu0 0.0
        %1295 = vmatpush.msra.mxu0 0.0
        %1296 = vmatpush.msra.mxu0 0.0
        %1297 = vmatpush.msra.mxu0 0.0
        %1298 = vmatpush.msra.mxu0 0.0
        %1299 = vmatpush.msra.mxu0 0.0
        %1300 = vmatpush.msra.mxu0 0.0
        %1301 = vmatpush.msra.mxu0 0.0
        %1302 = vmatpush.msra.mxu0 0.0
        %1303 = vmatpush.msra.mxu0 0.0
        %1304 = vmatpush.msra.mxu0 0.0
        %1305 = vmatpush.msra.mxu0 0.0
        %1306 = vmatpush.msra.mxu0 0.0
        %1307 = vmatpush.msra.mxu0 %v1284
        %1308 = vmatpush.msra.mxu0 %v1283
        %1309 = vmatmul.f32.gmra.mxu0 %v1288
        %v1310 = vpop.f32.mrf.mxu0
        %v1311 = vadd.f32 0.0, %v1310
        %1312 = vmatmul.f32.gmra.mxu0 %v1291
        %v1313 = vpop.f32.mrf.mxu0
        %v1314 = vadd.f32 0.0, %v1313
        %1315 = vdwg.mxu0
        %1316 = vrot.lane.b32.xlu0 %v1311, 16
        %v1317 = vpop.permute.xlu0 %1316
        %1318 = vrot.lane.b32.xlu0 %v1314, 16
        %v1319 = vpop.permute.xlu0 %1318
        %v1320 = vld [vmem:[%s4] sm:$0x1]
        %v1322 = vperm.slane %v1320, 0
        %v1324 = vmul.f32 %v1317, %v1322
        %v1325 = vmul.f32 %v1319, %v1322
        %1326 = vrot.lane.b32.xlu0 %v1311, 8
        %v1327 = vpop.permute.xlu0 %1326
        %1328 = vrot.lane.b32.xlu0 %v1314, 8
        %v1329 = vpop.permute.xlu0 %1328
        %s1330 = scalar_lea.vmem %s4, 1
        %v1331 = vld [vmem:[%s1330] sm:$0x1]
        %v1333 = vperm.slane %v1331, 0
        %v1335 = vmul.f32 %v1327, %v1333
        %v1336 = vmul.f32 %v1329, %v1333
        %v1337 = vadd.f32 %v1324, %v1335
        %v1338 = vadd.f32 %v1325, %v1336
        %s1339 = scalar_lea.vmem %s4, 2
        %v1340 = vld [vmem:[%s1339] sm:$0x1]
        %v1342 = vperm.slane %v1340, 0
        %v1344 = vmul.f32 %v1311, %v1342
        %v1345 = vmul.f32 %v1314, %v1342
        %v1346 = vadd.f32 %v1337, %v1344
        %v1347 = vadd.f32 %v1338, %v1345
        %1348 = vrot.lane.b32.xlu0 %v1311, 120
        %v1349 = vpop.permute.xlu0 %1348
        %1350 = vrot.lane.b32.xlu0 %v1314, 120
        %v1351 = vpop.permute.xlu0 %1350
        %s1352 = scalar_lea.vmem %s4, 3
        %v1353 = vld [vmem:[%s1352] sm:$0x1]
        %v1355 = vperm.slane %v1353, 0
        %v1357 = vmul.f32 %v1349, %v1355
        %v1358 = vmul.f32 %v1351, %v1355
        %v1359 = vadd.f32 %v1346, %v1357
        %v1360 = vadd.f32 %v1347, %v1358
        %1361 = vrot.lane.b32.xlu0 %v1311, 112
        %v1362 = vpop.permute.xlu0 %1361
        %1363 = vrot.lane.b32.xlu0 %v1314, 112
        %v1364 = vpop.permute.xlu0 %1363
        %s1365 = scalar_lea.vmem %s4, 4
        %v1366 = vld [vmem:[%s1365] sm:$0x1]
        %v1368 = vperm.slane %v1366, 0
        %v1370 = vmul.f32 %v1362, %v1368
        %v1371 = vmul.f32 %v1364, %v1368
        %v1372 = vadd.f32 %v1359, %v1370
        %v1373 = vadd.f32 %v1360, %v1371
        %v1374 = vld [vmem:[%s936] sm:$0xff]
        %v1375 = vld [vmem:[%s936 + $0x8] sm:$0xff]
        %v1377 = vsel %vm939, %v1374, 0
        %v1380 = vsel %vm939, %v1375, 0
        %1382 = vmatpush.msra.mxu0 0.0
        %1383 = vmatpush.msra.mxu0 0.0
        %1384 = vmatpush.msra.mxu0 0.0
        %1385 = vmatpush.msra.mxu0 0.0
        %1386 = vmatpush.msra.mxu0 0.0
        %1387 = vmatpush.msra.mxu0 0.0
        %1388 = vmatpush.msra.mxu0 0.0
        %1389 = vmatpush.msra.mxu0 0.0
        %1390 = vmatpush.msra.mxu0 0.0
        %1391 = vmatpush.msra.mxu0 0.0
        %1392 = vmatpush.msra.mxu0 0.0
        %1393 = vmatpush.msra.mxu0 0.0
        %1394 = vmatpush.msra.mxu0 0.0
        %1395 = vmatpush.msra.mxu0 0.0
        %1396 = vmatpush.msra.mxu0 %v1284
        %1397 = vmatpush.msra.mxu0 %v1283
        %1398 = vmatmul.f32.gmra.mxu0 %v1377
        %v1399 = vpop.f32.mrf.mxu0
        %v1400 = vadd.f32 0.0, %v1399
        %1401 = vmatmul.f32.gmra.mxu0 %v1380
        %v1402 = vpop.f32.mrf.mxu0
        %v1403 = vadd.f32 0.0, %v1402
        %1404 = vdwg.mxu0
        %1405 = vrot.lane.b32.xlu0 %v1400, 16
        %v1406 = vpop.permute.xlu0 %1405
        %1407 = vrot.lane.b32.xlu0 %v1403, 16
        %v1408 = vpop.permute.xlu0 %1407
        %s1409 = scalar_lea.vmem %s4, 5
        %v1410 = vld [vmem:[%s1409] sm:$0x1]
        %v1412 = vperm.slane %v1410, 0
        %v1414 = vmul.f32 %v1406, %v1412
        %v1415 = vmul.f32 %v1408, %v1412
        %v1416 = vadd.f32 %v1372, %v1414
        %v1417 = vadd.f32 %v1373, %v1415
        %1418 = vrot.lane.b32.xlu0 %v1400, 8
        %v1419 = vpop.permute.xlu0 %1418
        %1420 = vrot.lane.b32.xlu0 %v1403, 8
        %v1421 = vpop.permute.xlu0 %1420
        %s1422 = scalar_lea.vmem %s4, 6
        %v1423 = vld [vmem:[%s1422] sm:$0x1]
        %v1425 = vperm.slane %v1423, 0
        %v1427 = vmul.f32 %v1419, %v1425
        %v1428 = vmul.f32 %v1421, %v1425
        %v1429 = vadd.f32 %v1416, %v1427
        %v1430 = vadd.f32 %v1417, %v1428
        %s1431 = scalar_lea.vmem %s4, 106
        %v1432 = vld [vmem:[%s1431] sm:$0x1]
        %v1434 = vperm.slane %v1432, 0
        %v1436 = vmul.f32 %v1419, %v1434
        %v1437 = vmul.f32 %v1421, %v1434
        %s1438 = scalar_lea.vmem %s4, 7
        %v1439 = vld [vmem:[%s1438] sm:$0x1]
        %v1441 = vperm.slane %v1439, 0
        %v1443 = vmul.f32 %v1400, %v1441
        %v1444 = vmul.f32 %v1403, %v1441
        %v1445 = vadd.f32 %v1429, %v1443
        %v1446 = vadd.f32 %v1430, %v1444
        %s1447 = scalar_lea.vmem %s4, 107
        %v1448 = vld [vmem:[%s1447] sm:$0x1]
        %v1450 = vperm.slane %v1448, 0
        %v1452 = vmul.f32 %v1400, %v1450
        %v1453 = vmul.f32 %v1403, %v1450
        %v1454 = vadd.f32 %v1436, %v1452
        %v1455 = vadd.f32 %v1437, %v1453
        %1456 = vrot.lane.b32.xlu0 %v1400, 120
        %v1457 = vpop.permute.xlu0 %1456
        %1458 = vrot.lane.b32.xlu0 %v1403, 120
        %v1459 = vpop.permute.xlu0 %1458
        %s1460 = scalar_lea.vmem %s4, 8
        %v1461 = vld [vmem:[%s1460] sm:$0x1]
        %v1463 = vperm.slane %v1461, 0
        %v1465 = vmul.f32 %v1457, %v1463
        %v1466 = vmul.f32 %v1459, %v1463
        %v1467 = vadd.f32 %v1445, %v1465
        %v1468 = vadd.f32 %v1446, %v1466
        %s1469 = scalar_lea.vmem %s4, 108
        %v1470 = vld [vmem:[%s1469] sm:$0x1]
        %v1472 = vperm.slane %v1470, 0
        %v1474 = vmul.f32 %v1457, %v1472
        %v1475 = vmul.f32 %v1459, %v1472
        %v1476 = vadd.f32 %v1454, %v1474
        %v1477 = vadd.f32 %v1455, %v1475
        %1478 = vrot.lane.b32.xlu0 %v1400, 112
        %v1479 = vpop.permute.xlu0 %1478
        %1480 = vrot.lane.b32.xlu0 %v1403, 112
        %v1481 = vpop.permute.xlu0 %1480
        %s1482 = scalar_lea.vmem %s4, 9
        %v1483 = vld [vmem:[%s1482] sm:$0x1]
        %v1485 = vperm.slane %v1483, 0
        %v1487 = vmul.f32 %v1479, %v1485
        %v1488 = vmul.f32 %v1481, %v1485
        %v1489 = vadd.f32 %v1467, %v1487
        %v1490 = vadd.f32 %v1468, %v1488
        %1491 = vrot.lane.b32.xlu0 %v1283, 16
        %v1492 = vpop.permute.xlu0 %1491
        %1493 = vrot.lane.b32.xlu0 %v1284, 16
        %v1494 = vpop.permute.xlu0 %1493
        %s1495 = scalar_lea.vmem %s4, 10
        %v1496 = vld [vmem:[%s1495] sm:$0x1]
        %v1498 = vperm.slane %v1496, 0
        %v1500 = vmul.f32 %v1492, %v1498
        %v1501 = vmul.f32 %v1494, %v1498
        %v1502 = vadd.f32 %v1489, %v1500
        %v1503 = vadd.f32 %v1490, %v1501
        %1504 = vrot.lane.b32.xlu0 %v1283, 8
        %v1505 = vpop.permute.xlu0 %1504
        %1506 = vrot.lane.b32.xlu0 %v1284, 8
        %v1507 = vpop.permute.xlu0 %1506
        %s1508 = scalar_lea.vmem %s4, 11
        %v1509 = vld [vmem:[%s1508] sm:$0x1]
        %v1511 = vperm.slane %v1509, 0
        %v1513 = vmul.f32 %v1505, %v1511
        %v1514 = vmul.f32 %v1507, %v1511
        %v1515 = vadd.f32 %v1502, %v1513
        %v1516 = vadd.f32 %v1503, %v1514
        %s1517 = scalar_lea.vmem %s4, 111
        %v1518 = vld [vmem:[%s1517] sm:$0x1]
        %v1520 = vperm.slane %v1518, 0
        %v1522 = vmul.f32 %v1505, %v1520
        %v1523 = vmul.f32 %v1507, %v1520
        %v1524 = vadd.f32 %v1476, %v1522
        %v1525 = vadd.f32 %v1477, %v1523
        %s1526 = scalar_lea.vmem %s4, 12
        %v1527 = vld [vmem:[%s1526] sm:$0x1]
        %v1529 = vperm.slane %v1527, 0
        %v1531 = vmul.f32 %v1283, %v1529
        %v1532 = vmul.f32 %v1284, %v1529
        %v1533 = vadd.f32 %v1515, %v1531
        %v1534 = vadd.f32 %v1516, %v1532
        %s1535 = scalar_lea.vmem %s4, 112
        %v1536 = vld [vmem:[%s1535] sm:$0x1]
        %v1538 = vperm.slane %v1536, 0
        %v1540 = vmul.f32 %v1283, %v1538
        %v1541 = vmul.f32 %v1284, %v1538
        %v1542 = vadd.f32 %v1524, %v1540
        %v1543 = vadd.f32 %v1525, %v1541
        %1544 = vrot.lane.b32.xlu0 %v1283, 120
        %v1545 = vpop.permute.xlu0 %1544
        %1546 = vrot.lane.b32.xlu0 %v1284, 120
        %v1547 = vpop.permute.xlu0 %1546
        %s1548 = scalar_lea.vmem %s4, 13
        %v1549 = vld [vmem:[%s1548] sm:$0x1]
        %v1551 = vperm.slane %v1549, 0
        %v1553 = vmul.f32 %v1545, %v1551
        %v1554 = vmul.f32 %v1547, %v1551
        %v1555 = vadd.f32 %v1533, %v1553
        %v1556 = vadd.f32 %v1534, %v1554
        %s1557 = scalar_lea.vmem %s4, 113
        %v1558 = vld [vmem:[%s1557] sm:$0x1]
        %v1560 = vperm.slane %v1558, 0
        %v1562 = vmul.f32 %v1545, %v1560
        %v1563 = vmul.f32 %v1547, %v1560
        %v1564 = vadd.f32 %v1542, %v1562
        %v1565 = vadd.f32 %v1543, %v1563
        %1566 = vrot.lane.b32.xlu0 %v1283, 112
        %v1567 = vpop.permute.xlu0 %1566
        %1568 = vrot.lane.b32.xlu0 %v1284, 112
        %v1569 = vpop.permute.xlu0 %1568
        %s1570 = scalar_lea.vmem %s4, 14
        %v1571 = vld [vmem:[%s1570] sm:$0x1]
        %v1573 = vperm.slane %v1571, 0
        %v1575 = vmul.f32 %v1567, %v1573
        %v1576 = vmul.f32 %v1569, %v1573
        %v1577 = vadd.f32 %v1555, %v1575
        %v1578 = vadd.f32 %v1556, %v1576
        %v1579 = vld [vmem:[%s1129] sm:$0xff]
        %v1580 = vld [vmem:[%s1129 + $0x8] sm:$0xff]
        %v1582 = vsel %vm939, %v1579, 0
        %v1585 = vsel %vm939, %v1580, 0
        %1587 = vmatpush.msra.mxu0 0.0
        %1588 = vmatpush.msra.mxu0 0.0
        %1589 = vmatpush.msra.mxu0 0.0
        %1590 = vmatpush.msra.mxu0 0.0
        %1591 = vmatpush.msra.mxu0 0.0
        %1592 = vmatpush.msra.mxu0 0.0
        %1593 = vmatpush.msra.mxu0 0.0
        %1594 = vmatpush.msra.mxu0 0.0
        %1595 = vmatpush.msra.mxu0 0.0
        %1596 = vmatpush.msra.mxu0 0.0
        %1597 = vmatpush.msra.mxu0 0.0
        %1598 = vmatpush.msra.mxu0 0.0
        %1599 = vmatpush.msra.mxu0 0.0
        %1600 = vmatpush.msra.mxu0 0.0
        %1601 = vmatpush.msra.mxu0 %v1284
        %1602 = vmatpush.msra.mxu0 %v1283
        %1603 = vmatmul.f32.gmra.mxu0 %v1582
        %v1604 = vpop.f32.mrf.mxu0
        %v1605 = vadd.f32 0.0, %v1604
        %1606 = vmatmul.f32.gmra.mxu0 %v1585
        %v1607 = vpop.f32.mrf.mxu0
        %v1608 = vadd.f32 0.0, %v1607
        %1609 = vdwg.mxu0
        %1610 = vrot.lane.b32.xlu0 %v1605, 16
        %v1611 = vpop.permute.xlu0 %1610
        %1612 = vrot.lane.b32.xlu0 %v1608, 16
        %v1613 = vpop.permute.xlu0 %1612
        %s1614 = scalar_lea.vmem %s4, 15
        %v1615 = vld [vmem:[%s1614] sm:$0x1]
        %v1617 = vperm.slane %v1615, 0
        %v1619 = vmul.f32 %v1611, %v1617
        %v1620 = vmul.f32 %v1613, %v1617
        %v1621 = vadd.f32 %v1577, %v1619
        %v1622 = vadd.f32 %v1578, %v1620
        %1623 = vrot.lane.b32.xlu0 %v1605, 8
        %v1624 = vpop.permute.xlu0 %1623
        %1625 = vrot.lane.b32.xlu0 %v1608, 8
        %v1626 = vpop.permute.xlu0 %1625
        %s1627 = scalar_lea.vmem %s4, 16
        %v1628 = vld [vmem:[%s1627] sm:$0x1]
        %v1630 = vperm.slane %v1628, 0
        %v1632 = vmul.f32 %v1624, %v1630
        %v1633 = vmul.f32 %v1626, %v1630
        %v1634 = vadd.f32 %v1621, %v1632
        %v1635 = vadd.f32 %v1622, %v1633
        %s1636 = scalar_lea.vmem %s4, 116
        %v1637 = vld [vmem:[%s1636] sm:$0x1]
        %v1639 = vperm.slane %v1637, 0
        %v1641 = vmul.f32 %v1624, %v1639
        %v1642 = vmul.f32 %v1626, %v1639
        %v1643 = vadd.f32 %v1564, %v1641
        %v1644 = vadd.f32 %v1565, %v1642
        %s1645 = scalar_lea.vmem %s4, 17
        %v1646 = vld [vmem:[%s1645] sm:$0x1]
        %v1648 = vperm.slane %v1646, 0
        %v1650 = vmul.f32 %v1605, %v1648
        %v1651 = vmul.f32 %v1608, %v1648
        %v1652 = vadd.f32 %v1634, %v1650
        %v1653 = vadd.f32 %v1635, %v1651
        %s1654 = scalar_lea.vmem %s4, 117
        %v1655 = vld [vmem:[%s1654] sm:$0x1]
        %v1657 = vperm.slane %v1655, 0
        %v1659 = vmul.f32 %v1605, %v1657
        %v1660 = vmul.f32 %v1608, %v1657
        %v1661 = vadd.f32 %v1643, %v1659
        %v1662 = vadd.f32 %v1644, %v1660
        %1663 = vrot.lane.b32.xlu0 %v1605, 120
        %v1664 = vpop.permute.xlu0 %1663
        %1665 = vrot.lane.b32.xlu0 %v1608, 120
        %v1666 = vpop.permute.xlu0 %1665
        %s1667 = scalar_lea.vmem %s4, 18
        %v1668 = vld [vmem:[%s1667] sm:$0x1]
        %v1670 = vperm.slane %v1668, 0
        %v1672 = vmul.f32 %v1664, %v1670
        %v1673 = vmul.f32 %v1666, %v1670
        %v1674 = vadd.f32 %v1652, %v1672
        %v1675 = vadd.f32 %v1653, %v1673
        %s1676 = scalar_lea.vmem %s4, 118
        %v1677 = vld [vmem:[%s1676] sm:$0x1]
        %v1679 = vperm.slane %v1677, 0
        %v1681 = vmul.f32 %v1664, %v1679
        %v1682 = vmul.f32 %v1666, %v1679
        %v1683 = vadd.f32 %v1661, %v1681
        %v1684 = vadd.f32 %v1662, %v1682
        %1685 = vrot.lane.b32.xlu0 %v1605, 112
        %v1686 = vpop.permute.xlu0 %1685
        %1687 = vrot.lane.b32.xlu0 %v1608, 112
        %v1688 = vpop.permute.xlu0 %1687
        %s1689 = scalar_lea.vmem %s4, 19
        %v1690 = vld [vmem:[%s1689] sm:$0x1]
        %v1692 = vperm.slane %v1690, 0
        %v1694 = vmul.f32 %v1686, %v1692
        %v1695 = vmul.f32 %v1688, %v1692
        %v1696 = vadd.f32 %v1674, %v1694
        %v1697 = vadd.f32 %v1675, %v1695
        %s1698 = scalar_lea.vmem %s3, 64
        %v1699 = vld [vmem:[%s1698] sm:$0xff]
        %v1700 = vld [vmem:[%s1698 + $0x8] sm:$0xff]
        %v1702 = vsel %vm939, %v1699, 0
        %v1705 = vsel %vm939, %v1700, 0
        %1707 = vmatpush.msra.mxu0 0.0
        %1708 = vmatpush.msra.mxu0 0.0
        %1709 = vmatpush.msra.mxu0 0.0
        %1710 = vmatpush.msra.mxu0 0.0
        %1711 = vmatpush.msra.mxu0 0.0
        %1712 = vmatpush.msra.mxu0 0.0
        %1713 = vmatpush.msra.mxu0 0.0
        %1714 = vmatpush.msra.mxu0 0.0
        %1715 = vmatpush.msra.mxu0 0.0
        %1716 = vmatpush.msra.mxu0 0.0
        %1717 = vmatpush.msra.mxu0 0.0
        %1718 = vmatpush.msra.mxu0 0.0
        %1719 = vmatpush.msra.mxu0 0.0
        %1720 = vmatpush.msra.mxu0 0.0
        %1721 = vmatpush.msra.mxu0 %v1284
        %1722 = vmatpush.msra.mxu0 %v1283
        %1723 = vmatmul.f32.gmra.mxu0 %v1702
        %v1724 = vpop.f32.mrf.mxu0
        %v1725 = vadd.f32 0.0, %v1724
        %1726 = vmatmul.f32.gmra.mxu0 %v1705
        %v1727 = vpop.f32.mrf.mxu0
        %v1728 = vadd.f32 0.0, %v1727
        %1729 = vdwg.mxu0
        %1730 = vrot.lane.b32.xlu0 %v1725, 16
        %v1731 = vpop.permute.xlu0 %1730
        %1732 = vrot.lane.b32.xlu0 %v1728, 16
        %v1733 = vpop.permute.xlu0 %1732
        %s1734 = scalar_lea.vmem %s4, 20
        %v1735 = vld [vmem:[%s1734] sm:$0x1]
        %v1737 = vperm.slane %v1735, 0
        %v1739 = vmul.f32 %v1731, %v1737
        %v1740 = vmul.f32 %v1733, %v1737
        %v1741 = vadd.f32 %v1696, %v1739
        %v1742 = vadd.f32 %v1697, %v1740
        %1743 = vrot.lane.b32.xlu0 %v1725, 8
        %v1744 = vpop.permute.xlu0 %1743
        %1745 = vrot.lane.b32.xlu0 %v1728, 8
        %v1746 = vpop.permute.xlu0 %1745
        %s1747 = scalar_lea.vmem %s4, 21
        %v1748 = vld [vmem:[%s1747] sm:$0x1]
        %v1750 = vperm.slane %v1748, 0
        %v1752 = vmul.f32 %v1744, %v1750
        %v1753 = vmul.f32 %v1746, %v1750
        %v1754 = vadd.f32 %v1741, %v1752
        %v1755 = vadd.f32 %v1742, %v1753
        %s1756 = scalar_lea.vmem %s4, 22
        %v1757 = vld [vmem:[%s1756] sm:$0x1]
        %v1759 = vperm.slane %v1757, 0
        %v1761 = vmul.f32 %v1725, %v1759
        %v1762 = vmul.f32 %v1728, %v1759
        %v1763 = vadd.f32 %v1754, %v1761
        %v1764 = vadd.f32 %v1755, %v1762
        %1765 = vrot.lane.b32.xlu0 %v1725, 120
        %v1766 = vpop.permute.xlu0 %1765
        %1767 = vrot.lane.b32.xlu0 %v1728, 120
        %v1768 = vpop.permute.xlu0 %1767
        %s1769 = scalar_lea.vmem %s4, 23
        %v1770 = vld [vmem:[%s1769] sm:$0x1]
        %v1772 = vperm.slane %v1770, 0
        %v1774 = vmul.f32 %v1766, %v1772
        %v1775 = vmul.f32 %v1768, %v1772
        %v1776 = vadd.f32 %v1763, %v1774
        %v1777 = vadd.f32 %v1764, %v1775
        %1778 = vrot.lane.b32.xlu0 %v1725, 112
        %v1779 = vpop.permute.xlu0 %1778
        %1780 = vrot.lane.b32.xlu0 %v1728, 112
        %v1781 = vpop.permute.xlu0 %1780
        %s1782 = scalar_lea.vmem %s4, 24
        %v1783 = vld [vmem:[%s1782] sm:$0x1]
        %v1785 = vperm.slane %v1783, 0
        %v1787 = vmul.f32 %v1779, %v1785
        %v1788 = vmul.f32 %v1781, %v1785
        %v1789 = vadd.f32 %v1776, %v1787
        %v1790 = vadd.f32 %v1777, %v1788
        %1791 = vmatpush.msra.mxu0 0.0
        %1792 = vmatpush.msra.mxu0 0.0
        %1793 = vmatpush.msra.mxu0 0.0
        %1794 = vmatpush.msra.mxu0 0.0
        %1795 = vmatpush.msra.mxu0 0.0
        %1796 = vmatpush.msra.mxu0 0.0
        %1797 = vmatpush.msra.mxu0 0.0
        %1798 = vmatpush.msra.mxu0 0.0
        %1799 = vmatpush.msra.mxu0 0.0
        %1800 = vmatpush.msra.mxu0 0.0
        %1801 = vmatpush.msra.mxu0 0.0
        %1802 = vmatpush.msra.mxu0 0.0
        %1803 = vmatpush.msra.mxu0 0.0
        %1804 = vmatpush.msra.mxu0 0.0
        %1805 = vmatpush.msra.mxu0 %v1282
        %1806 = vmatpush.msra.mxu0 %v1281
        %1807 = vmatmul.f32.gmra.mxu0 %v1288
        %v1808 = vpop.f32.mrf.mxu0
        %v1809 = vadd.f32 0.0, %v1808
        %1810 = vmatmul.f32.gmra.mxu0 %v1291
        %v1811 = vpop.f32.mrf.mxu0
        %v1812 = vadd.f32 0.0, %v1811
        %1813 = vdwg.mxu0
        %1814 = vrot.lane.b32.xlu0 %v1809, 16
        %v1815 = vpop.permute.xlu0 %1814
        %1816 = vrot.lane.b32.xlu0 %v1812, 16
        %v1817 = vpop.permute.xlu0 %1816
        %s1818 = scalar_lea.vmem %s4, 50
        %v1819 = vld [vmem:[%s1818] sm:$0x1]
        %v1821 = vperm.slane %v1819, 0
        %v1823 = vmul.f32 %v1815, %v1821
        %v1824 = vmul.f32 %v1817, %v1821
        %1825 = vrot.lane.b32.xlu0 %v1809, 8
        %v1826 = vpop.permute.xlu0 %1825
        %1827 = vrot.lane.b32.xlu0 %v1812, 8
        %v1828 = vpop.permute.xlu0 %1827
        %s1829 = scalar_lea.vmem %s4, 51
        %v1830 = vld [vmem:[%s1829] sm:$0x1]
        %v1832 = vperm.slane %v1830, 0
        %v1834 = vmul.f32 %v1826, %v1832
        %v1835 = vmul.f32 %v1828, %v1832
        %v1836 = vadd.f32 %v1823, %v1834
        %v1837 = vadd.f32 %v1824, %v1835
        %s1838 = scalar_lea.vmem %s4, 52
        %v1839 = vld [vmem:[%s1838] sm:$0x1]
        %v1841 = vperm.slane %v1839, 0
        %v1843 = vmul.f32 %v1809, %v1841
        %v1844 = vmul.f32 %v1812, %v1841
        %v1845 = vadd.f32 %v1836, %v1843
        %v1846 = vadd.f32 %v1837, %v1844
        %1847 = vrot.lane.b32.xlu0 %v1809, 120
        %v1848 = vpop.permute.xlu0 %1847
        %1849 = vrot.lane.b32.xlu0 %v1812, 120
        %v1850 = vpop.permute.xlu0 %1849
        %s1851 = scalar_lea.vmem %s4, 53
        %v1852 = vld [vmem:[%s1851] sm:$0x1]
        %v1854 = vperm.slane %v1852, 0
        %v1856 = vmul.f32 %v1848, %v1854
        %v1857 = vmul.f32 %v1850, %v1854
        %v1858 = vadd.f32 %v1845, %v1856
        %v1859 = vadd.f32 %v1846, %v1857
        %1860 = vrot.lane.b32.xlu0 %v1809, 112
        %v1861 = vpop.permute.xlu0 %1860
        %1862 = vrot.lane.b32.xlu0 %v1812, 112
        %v1863 = vpop.permute.xlu0 %1862
        %s1864 = scalar_lea.vmem %s4, 54
        %v1865 = vld [vmem:[%s1864] sm:$0x1]
        %v1867 = vperm.slane %v1865, 0
        %v1869 = vmul.f32 %v1861, %v1867
        %v1870 = vmul.f32 %v1863, %v1867
        %v1871 = vadd.f32 %v1858, %v1869
        %v1872 = vadd.f32 %v1859, %v1870
        %1873 = vmatpush.msra.mxu0 0.0
        %1874 = vmatpush.msra.mxu0 0.0
        %1875 = vmatpush.msra.mxu0 0.0
        %1876 = vmatpush.msra.mxu0 0.0
        %1877 = vmatpush.msra.mxu0 0.0
        %1878 = vmatpush.msra.mxu0 0.0
        %1879 = vmatpush.msra.mxu0 0.0
        %1880 = vmatpush.msra.mxu0 0.0
        %1881 = vmatpush.msra.mxu0 0.0
        %1882 = vmatpush.msra.mxu0 0.0
        %1883 = vmatpush.msra.mxu0 0.0
        %1884 = vmatpush.msra.mxu0 0.0
        %1885 = vmatpush.msra.mxu0 0.0
        %1886 = vmatpush.msra.mxu0 0.0
        %1887 = vmatpush.msra.mxu0 %v1282
        %1888 = vmatpush.msra.mxu0 %v1281
        %1889 = vmatmul.f32.gmra.mxu0 %v1377
        %v1890 = vpop.f32.mrf.mxu0
        %v1891 = vadd.f32 0.0, %v1890
        %1892 = vmatmul.f32.gmra.mxu0 %v1380
        %v1893 = vpop.f32.mrf.mxu0
        %v1894 = vadd.f32 0.0, %v1893
        %1895 = vdwg.mxu0
        %1896 = vrot.lane.b32.xlu0 %v1891, 16
        %v1897 = vpop.permute.xlu0 %1896
        %1898 = vrot.lane.b32.xlu0 %v1894, 16
        %v1899 = vpop.permute.xlu0 %1898
        %s1900 = scalar_lea.vmem %s4, 55
        %v1901 = vld [vmem:[%s1900] sm:$0x1]
        %v1903 = vperm.slane %v1901, 0
        %v1905 = vmul.f32 %v1897, %v1903
        %v1906 = vmul.f32 %v1899, %v1903
        %v1907 = vadd.f32 %v1871, %v1905
        %v1908 = vadd.f32 %v1872, %v1906
        %1909 = vrot.lane.b32.xlu0 %v1891, 8
        %v1910 = vpop.permute.xlu0 %1909
        %1911 = vrot.lane.b32.xlu0 %v1894, 8
        %v1912 = vpop.permute.xlu0 %1911
        %s1913 = scalar_lea.vmem %s4, 31
        %v1914 = vld [vmem:[%s1913] sm:$0x1]
        %v1916 = vperm.slane %v1914, 0
        %v1918 = vmul.f32 %v1910, %v1916
        %v1919 = vmul.f32 %v1912, %v1916
        %s1920 = scalar_lea.vmem %s4, 56
        %v1921 = vld [vmem:[%s1920] sm:$0x1]
        %v1923 = vperm.slane %v1921, 0
        %v1925 = vmul.f32 %v1910, %v1923
        %v1926 = vmul.f32 %v1912, %v1923
        %v1927 = vadd.f32 %v1907, %v1925
        %v1928 = vadd.f32 %v1908, %v1926
        %s1929 = scalar_lea.vmem %s4, 81
        %v1930 = vld [vmem:[%s1929] sm:$0x1]
        %v1932 = vperm.slane %v1930, 0
        %v1934 = vmul.f32 %v1910, %v1932
        %v1935 = vmul.f32 %v1912, %v1932
        %s1936 = scalar_lea.vmem %s4, 32
        %v1937 = vld [vmem:[%s1936] sm:$0x1]
        %v1939 = vperm.slane %v1937, 0
        %v1941 = vmul.f32 %v1891, %v1939
        %v1942 = vmul.f32 %v1894, %v1939
        %v1943 = vadd.f32 %v1918, %v1941
        %v1944 = vadd.f32 %v1919, %v1942
        %s1945 = scalar_lea.vmem %s4, 57
        %v1946 = vld [vmem:[%s1945] sm:$0x1]
        %v1948 = vperm.slane %v1946, 0
        %v1950 = vmul.f32 %v1891, %v1948
        %v1951 = vmul.f32 %v1894, %v1948
        %v1952 = vadd.f32 %v1927, %v1950
        %v1953 = vadd.f32 %v1928, %v1951
        %s1954 = scalar_lea.vmem %s4, 82
        %v1955 = vld [vmem:[%s1954] sm:$0x1]
        %v1957 = vperm.slane %v1955, 0
        %v1959 = vmul.f32 %v1891, %v1957
        %v1960 = vmul.f32 %v1894, %v1957
        %v1961 = vadd.f32 %v1934, %v1959
        %v1962 = vadd.f32 %v1935, %v1960
        %1963 = vrot.lane.b32.xlu0 %v1891, 120
        %v1964 = vpop.permute.xlu0 %1963
        %1965 = vrot.lane.b32.xlu0 %v1894, 120
        %v1966 = vpop.permute.xlu0 %1965
        %s1967 = scalar_lea.vmem %s4, 33
        %v1968 = vld [vmem:[%s1967] sm:$0x1]
        %v1970 = vperm.slane %v1968, 0
        %v1972 = vmul.f32 %v1964, %v1970
        %v1973 = vmul.f32 %v1966, %v1970
        %v1974 = vadd.f32 %v1943, %v1972
        %v1975 = vadd.f32 %v1944, %v1973
        %s1976 = scalar_lea.vmem %s4, 58
        %v1977 = vld [vmem:[%s1976] sm:$0x1]
        %v1979 = vperm.slane %v1977, 0
        %v1981 = vmul.f32 %v1964, %v1979
        %v1982 = vmul.f32 %v1966, %v1979
        %v1983 = vadd.f32 %v1952, %v1981
        %v1984 = vadd.f32 %v1953, %v1982
        %s1985 = scalar_lea.vmem %s4, 83
        %v1986 = vld [vmem:[%s1985] sm:$0x1]
        %v1988 = vperm.slane %v1986, 0
        %v1990 = vmul.f32 %v1964, %v1988
        %v1991 = vmul.f32 %v1966, %v1988
        %v1992 = vadd.f32 %v1961, %v1990
        %v1993 = vadd.f32 %v1962, %v1991
        %1994 = vrot.lane.b32.xlu0 %v1891, 112
        %v1995 = vpop.permute.xlu0 %1994
        %1996 = vrot.lane.b32.xlu0 %v1894, 112
        %v1997 = vpop.permute.xlu0 %1996
        %s1998 = scalar_lea.vmem %s4, 59
        %v1999 = vld [vmem:[%s1998] sm:$0x1]
        %v2001 = vperm.slane %v1999, 0
        %v2003 = vmul.f32 %v1995, %v2001
        %v2004 = vmul.f32 %v1997, %v2001
        %v2005 = vadd.f32 %v1983, %v2003
        %v2006 = vadd.f32 %v1984, %v2004
        %2007 = vrot.lane.b32.xlu0 %v1281, 16
        %v2008 = vpop.permute.xlu0 %2007
        %2009 = vrot.lane.b32.xlu0 %v1282, 16
        %v2010 = vpop.permute.xlu0 %2009
        %s2011 = scalar_lea.vmem %s4, 60
        %v2012 = vld [vmem:[%s2011] sm:$0x1]
        %v2014 = vperm.slane %v2012, 0
        %v2016 = vmul.f32 %v2008, %v2014
        %v2017 = vmul.f32 %v2010, %v2014
        %v2018 = vadd.f32 %v2005, %v2016
        %v2019 = vadd.f32 %v2006, %v2017
        %2020 = vrot.lane.b32.xlu0 %v1281, 8
        %v2021 = vpop.permute.xlu0 %2020
        %2022 = vrot.lane.b32.xlu0 %v1282, 8
        %v2023 = vpop.permute.xlu0 %2022
        %s2024 = scalar_lea.vmem %s4, 36
        %v2025 = vld [vmem:[%s2024] sm:$0x1]
        %v2027 = vperm.slane %v2025, 0
        %v2029 = vmul.f32 %v2021, %v2027
        %v2030 = vmul.f32 %v2023, %v2027
        %v2031 = vadd.f32 %v1974, %v2029
        %v2032 = vadd.f32 %v1975, %v2030
        %s2033 = scalar_lea.vmem %s4, 61
        %v2034 = vld [vmem:[%s2033] sm:$0x1]
        %v2036 = vperm.slane %v2034, 0
        %v2038 = vmul.f32 %v2021, %v2036
        %v2039 = vmul.f32 %v2023, %v2036
        %v2040 = vadd.f32 %v2018, %v2038
        %v2041 = vadd.f32 %v2019, %v2039
        %s2042 = scalar_lea.vmem %s4, 86
        %v2043 = vld [vmem:[%s2042] sm:$0x1]
        %v2045 = vperm.slane %v2043, 0
        %v2047 = vmul.f32 %v2021, %v2045
        %v2048 = vmul.f32 %v2023, %v2045
        %v2049 = vadd.f32 %v1992, %v2047
        %v2050 = vadd.f32 %v1993, %v2048
        %s2051 = scalar_lea.vmem %s4, 37
        %v2052 = vld [vmem:[%s2051] sm:$0x1]
        %v2054 = vperm.slane %v2052, 0
        %v2056 = vmul.f32 %v1281, %v2054
        %v2057 = vmul.f32 %v1282, %v2054
        %v2058 = vadd.f32 %v2031, %v2056
        %v2059 = vadd.f32 %v2032, %v2057
        %s2060 = scalar_lea.vmem %s4, 62
        %v2061 = vld [vmem:[%s2060] sm:$0x1]
        %v2063 = vperm.slane %v2061, 0
        %v2065 = vmul.f32 %v1281, %v2063
        %v2066 = vmul.f32 %v1282, %v2063
        %v2067 = vadd.f32 %v2040, %v2065
        %v2068 = vadd.f32 %v2041, %v2066
        %s2069 = scalar_lea.vmem %s4, 87
        %v2070 = vld [vmem:[%s2069] sm:$0x1]
        %v2072 = vperm.slane %v2070, 0
        %v2074 = vmul.f32 %v1281, %v2072
        %v2075 = vmul.f32 %v1282, %v2072
        %v2076 = vadd.f32 %v2049, %v2074
        %v2077 = vadd.f32 %v2050, %v2075
        %2078 = vrot.lane.b32.xlu0 %v1281, 120
        %v2079 = vpop.permute.xlu0 %2078
        %2080 = vrot.lane.b32.xlu0 %v1282, 120
        %v2081 = vpop.permute.xlu0 %2080
        %s2082 = scalar_lea.vmem %s4, 38
        %v2083 = vld [vmem:[%s2082] sm:$0x1]
        %v2085 = vperm.slane %v2083, 0
        %v2087 = vmul.f32 %v2079, %v2085
        %v2088 = vmul.f32 %v2081, %v2085
        %v2089 = vadd.f32 %v2058, %v2087
        %v2090 = vadd.f32 %v2059, %v2088
        %s2091 = scalar_lea.vmem %s4, 63
        %v2092 = vld [vmem:[%s2091] sm:$0x1]
        %v2094 = vperm.slane %v2092, 0
        %v2096 = vmul.f32 %v2079, %v2094
        %v2097 = vmul.f32 %v2081, %v2094
        %v2098 = vadd.f32 %v2067, %v2096
        %v2099 = vadd.f32 %v2068, %v2097
        %s2100 = scalar_lea.vmem %s4, 88
        %v2101 = vld [vmem:[%s2100] sm:$0x1]
        %v2103 = vperm.slane %v2101, 0
        %v2105 = vmul.f32 %v2079, %v2103
        %v2106 = vmul.f32 %v2081, %v2103
        %v2107 = vadd.f32 %v2076, %v2105
        %v2108 = vadd.f32 %v2077, %v2106
        %2109 = vrot.lane.b32.xlu0 %v1281, 112
        %v2110 = vpop.permute.xlu0 %2109
        %2111 = vrot.lane.b32.xlu0 %v1282, 112
        %v2112 = vpop.permute.xlu0 %2111
        %s2113 = scalar_lea.vmem %s4, 64
        %v2114 = vld [vmem:[%s2113] sm:$0x1]
        %v2116 = vperm.slane %v2114, 0
        %v2118 = vmul.f32 %v2110, %v2116
        %v2119 = vmul.f32 %v2112, %v2116
        %v2120 = vadd.f32 %v2098, %v2118
        %v2121 = vadd.f32 %v2099, %v2119
        %2122 = vmatpush.msra.mxu0 0.0
        %2123 = vmatpush.msra.mxu0 0.0
        %2124 = vmatpush.msra.mxu0 0.0
        %2125 = vmatpush.msra.mxu0 0.0
        %2126 = vmatpush.msra.mxu0 0.0
        %2127 = vmatpush.msra.mxu0 0.0
        %2128 = vmatpush.msra.mxu0 0.0
        %2129 = vmatpush.msra.mxu0 0.0
        %2130 = vmatpush.msra.mxu0 0.0
        %2131 = vmatpush.msra.mxu0 0.0
        %2132 = vmatpush.msra.mxu0 0.0
        %2133 = vmatpush.msra.mxu0 0.0
        %2134 = vmatpush.msra.mxu0 0.0
        %2135 = vmatpush.msra.mxu0 0.0
        %2136 = vmatpush.msra.mxu0 %v1282
        %2137 = vmatpush.msra.mxu0 %v1281
        %2138 = vmatmul.f32.gmra.mxu0 %v1582
        %v2139 = vpop.f32.mrf.mxu0
        %v2140 = vadd.f32 0.0, %v2139
        %2141 = vmatmul.f32.gmra.mxu0 %v1585
        %v2142 = vpop.f32.mrf.mxu0
        %v2143 = vadd.f32 0.0, %v2142
        %2144 = vdwg.mxu0
        %2145 = vrot.lane.b32.xlu0 %v2140, 16
        %v2146 = vpop.permute.xlu0 %2145
        %2147 = vrot.lane.b32.xlu0 %v2143, 16
        %v2148 = vpop.permute.xlu0 %2147
        %s2149 = scalar_lea.vmem %s4, 65
        %v2150 = vld [vmem:[%s2149] sm:$0x1]
        %v2152 = vperm.slane %v2150, 0
        %v2154 = vmul.f32 %v2146, %v2152
        %v2155 = vmul.f32 %v2148, %v2152
        %v2156 = vadd.f32 %v2120, %v2154
        %v2157 = vadd.f32 %v2121, %v2155
        %2158 = vrot.lane.b32.xlu0 %v2140, 8
        %v2159 = vpop.permute.xlu0 %2158
        %2160 = vrot.lane.b32.xlu0 %v2143, 8
        %v2161 = vpop.permute.xlu0 %2160
        %s2162 = scalar_lea.vmem %s4, 41
        %v2163 = vld [vmem:[%s2162] sm:$0x1]
        %v2165 = vperm.slane %v2163, 0
        %v2167 = vmul.f32 %v2159, %v2165
        %v2168 = vmul.f32 %v2161, %v2165
        %v2169 = vadd.f32 %v2089, %v2167
        %v2170 = vadd.f32 %v2090, %v2168
        %s2171 = scalar_lea.vmem %s4, 66
        %v2172 = vld [vmem:[%s2171] sm:$0x1]
        %v2174 = vperm.slane %v2172, 0
        %v2176 = vmul.f32 %v2159, %v2174
        %v2177 = vmul.f32 %v2161, %v2174
        %v2178 = vadd.f32 %v2156, %v2176
        %v2179 = vadd.f32 %v2157, %v2177
        %s2180 = scalar_lea.vmem %s4, 91
        %v2181 = vld [vmem:[%s2180] sm:$0x1]
        %v2183 = vperm.slane %v2181, 0
        %v2185 = vmul.f32 %v2159, %v2183
        %v2186 = vmul.f32 %v2161, %v2183
        %v2187 = vadd.f32 %v2107, %v2185
        %v2188 = vadd.f32 %v2108, %v2186
        %s2189 = scalar_lea.vmem %s4, 42
        %v2190 = vld [vmem:[%s2189] sm:$0x1]
        %v2192 = vperm.slane %v2190, 0
        %v2194 = vmul.f32 %v2140, %v2192
        %v2195 = vmul.f32 %v2143, %v2192
        %v2196 = vadd.f32 %v2169, %v2194
        %v2197 = vadd.f32 %v2170, %v2195
        %s2198 = scalar_lea.vmem %s4, 67
        %v2199 = vld [vmem:[%s2198] sm:$0x1]
        %v2201 = vperm.slane %v2199, 0
        %v2203 = vmul.f32 %v2140, %v2201
        %v2204 = vmul.f32 %v2143, %v2201
        %v2205 = vadd.f32 %v2178, %v2203
        %v2206 = vadd.f32 %v2179, %v2204
        %s2207 = scalar_lea.vmem %s4, 92
        %v2208 = vld [vmem:[%s2207] sm:$0x1]
        %v2210 = vperm.slane %v2208, 0
        %v2212 = vmul.f32 %v2140, %v2210
        %v2213 = vmul.f32 %v2143, %v2210
        %v2214 = vadd.f32 %v2187, %v2212
        %v2215 = vadd.f32 %v2188, %v2213
        %2216 = vrot.lane.b32.xlu0 %v2140, 120
        %v2217 = vpop.permute.xlu0 %2216
        %2218 = vrot.lane.b32.xlu0 %v2143, 120
        %v2219 = vpop.permute.xlu0 %2218
        %s2220 = scalar_lea.vmem %s4, 43
        %v2221 = vld [vmem:[%s2220] sm:$0x1]
        %v2223 = vperm.slane %v2221, 0
        %v2225 = vmul.f32 %v2217, %v2223
        %v2226 = vmul.f32 %v2219, %v2223
        %v2227 = vadd.f32 %v2196, %v2225
        %v2228 = vadd.f32 %v2197, %v2226
        %s2229 = scalar_lea.vmem %s4, 68
        %v2230 = vld [vmem:[%s2229] sm:$0x1]
        %v2232 = vperm.slane %v2230, 0
        %v2234 = vmul.f32 %v2217, %v2232
        %v2235 = vmul.f32 %v2219, %v2232
        %v2236 = vadd.f32 %v2205, %v2234
        %v2237 = vadd.f32 %v2206, %v2235
        %s2238 = scalar_lea.vmem %s4, 93
        %v2239 = vld [vmem:[%s2238] sm:$0x1]
        %v2241 = vperm.slane %v2239, 0
        %v2243 = vmul.f32 %v2217, %v2241
        %v2244 = vmul.f32 %v2219, %v2241
        %v2245 = vadd.f32 %v2214, %v2243
        %v2246 = vadd.f32 %v2215, %v2244
        %2247 = vrot.lane.b32.xlu0 %v2140, 112
        %v2248 = vpop.permute.xlu0 %2247
        %2249 = vrot.lane.b32.xlu0 %v2143, 112
        %v2250 = vpop.permute.xlu0 %2249
        %s2251 = scalar_lea.vmem %s4, 69
        %v2252 = vld [vmem:[%s2251] sm:$0x1]
        %v2254 = vperm.slane %v2252, 0
        %v2256 = vmul.f32 %v2248, %v2254
        %v2257 = vmul.f32 %v2250, %v2254
        %v2258 = vadd.f32 %v2236, %v2256
        %v2259 = vadd.f32 %v2237, %v2257
        %2260 = vmatpush.msra.mxu0 0.0
        %2261 = vmatpush.msra.mxu0 0.0
        %2262 = vmatpush.msra.mxu0 0.0
        %2263 = vmatpush.msra.mxu0 0.0
        %2264 = vmatpush.msra.mxu0 0.0
        %2265 = vmatpush.msra.mxu0 0.0
        %2266 = vmatpush.msra.mxu0 0.0
        %2267 = vmatpush.msra.mxu0 0.0
        %2268 = vmatpush.msra.mxu0 0.0
        %2269 = vmatpush.msra.mxu0 0.0
        %2270 = vmatpush.msra.mxu0 0.0
        %2271 = vmatpush.msra.mxu0 0.0
        %2272 = vmatpush.msra.mxu0 0.0
        %2273 = vmatpush.msra.mxu0 0.0
        %2274 = vmatpush.msra.mxu0 %v1282
        %2275 = vmatpush.msra.mxu0 %v1281
        %2276 = vmatmul.f32.gmra.mxu0 %v1702
        %v2277 = vpop.f32.mrf.mxu0
        %v2278 = vadd.f32 0.0, %v2277
        %2279 = vmatmul.f32.gmra.mxu0 %v1705
        %v2280 = vpop.f32.mrf.mxu0
        %v2281 = vadd.f32 0.0, %v2280
        %2282 = vdwg.mxu0
        %2283 = vrot.lane.b32.xlu0 %v2278, 16
        %v2284 = vpop.permute.xlu0 %2283
        %2285 = vrot.lane.b32.xlu0 %v2281, 16
        %v2286 = vpop.permute.xlu0 %2285
        %s2287 = scalar_lea.vmem %s4, 70
        %v2288 = vld [vmem:[%s2287] sm:$0x1]
        %v2290 = vperm.slane %v2288, 0
        %v2292 = vmul.f32 %v2284, %v2290
        %v2293 = vmul.f32 %v2286, %v2290
        %v2294 = vadd.f32 %v2258, %v2292
        %v2295 = vadd.f32 %v2259, %v2293
        %2296 = vrot.lane.b32.xlu0 %v2278, 8
        %v2297 = vpop.permute.xlu0 %2296
        %2298 = vrot.lane.b32.xlu0 %v2281, 8
        %v2299 = vpop.permute.xlu0 %2298
        %s2300 = scalar_lea.vmem %s4, 71
        %v2301 = vld [vmem:[%s2300] sm:$0x1]
        %v2303 = vperm.slane %v2301, 0
        %v2305 = vmul.f32 %v2297, %v2303
        %v2306 = vmul.f32 %v2299, %v2303
        %v2307 = vadd.f32 %v2294, %v2305
        %v2308 = vadd.f32 %v2295, %v2306
        %s2309 = scalar_lea.vmem %s4, 72
        %v2310 = vld [vmem:[%s2309] sm:$0x1]
        %v2312 = vperm.slane %v2310, 0
        %v2314 = vmul.f32 %v2278, %v2312
        %v2315 = vmul.f32 %v2281, %v2312
        %v2316 = vadd.f32 %v2307, %v2314
        %v2317 = vadd.f32 %v2308, %v2315
        %2318 = vrot.lane.b32.xlu0 %v2278, 120
        %v2319 = vpop.permute.xlu0 %2318
        %2320 = vrot.lane.b32.xlu0 %v2281, 120
        %v2321 = vpop.permute.xlu0 %2320
        %s2322 = scalar_lea.vmem %s4, 73
        %v2323 = vld [vmem:[%s2322] sm:$0x1]
        %v2325 = vperm.slane %v2323, 0
        %v2327 = vmul.f32 %v2319, %v2325
        %v2328 = vmul.f32 %v2321, %v2325
        %v2329 = vadd.f32 %v2316, %v2327
        %v2330 = vadd.f32 %v2317, %v2328
        %2331 = vrot.lane.b32.xlu0 %v2278, 112
        %v2332 = vpop.permute.xlu0 %2331
        %2333 = vrot.lane.b32.xlu0 %v2281, 112
        %v2334 = vpop.permute.xlu0 %2333
        %s2335 = scalar_lea.vmem %s4, 74
        %v2336 = vld [vmem:[%s2335] sm:$0x1]
        %v2338 = vperm.slane %v2336, 0
        %v2340 = vmul.f32 %v2332, %v2338
        %v2341 = vmul.f32 %v2334, %v2338
        %v2342 = vadd.f32 %v2329, %v2340
        %v2343 = vadd.f32 %v2330, %v2341
        %v2344 = vpack.c.bf16 %v1790, %v1789
        %v2345 = vld [vmem:[%s5] sm:$0xf]
        %v2346 = vld [vmem:[%s5 + $0x4] sm:$0xf]
        %v2347 = vld [vmem:[%s5 + $0x8] sm:$0xf]
        %v2348 = vld [vmem:[%s5 + $0xc] sm:$0xf]
        %v2349 = vld [vmem:[%s5 + $0x10] sm:$0xf]
        %v2350 = vld [vmem:[%s5 + $0x14] sm:$0xf]
        %v2351 = vld [vmem:[%s5 + $0x18] sm:$0xf]
        %v2352 = vld [vmem:[%s5 + $0x1c] sm:$0xf]
        %v2353 = vld [vmem:[%s5 + $0x20] sm:$0xf]
        %v2354 = vld [vmem:[%s5 + $0x24] sm:$0xf]
        %v2355 = vld [vmem:[%s5 + $0x28] sm:$0xf]
        %v2356 = vld [vmem:[%s5 + $0x2c] sm:$0xf]
        %v2357 = vld [vmem:[%s5 + $0x30] sm:$0xf]
        %v2358 = vld [vmem:[%s5 + $0x34] sm:$0xf]
        %v2359 = vld [vmem:[%s5 + $0x38] sm:$0xf]
        %v2360 = vld [vmem:[%s5 + $0x3c] sm:$0xf]
        %v2361 = vld [vmem:[%s6] sm:$0x1]
        %v2363 = vperm.slane %v2361, 0
        %v2381 = vunpack.c.l.b16 %v2345
        %v2382 = vunpack.c.l.b16 %v2346
        %v2383 = vunpack.c.l.b16 %v2347
        %v2384 = vunpack.c.l.b16 %v2348
        %v2385 = vunpack.c.l.b16 %v2349
        %v2386 = vunpack.c.l.b16 %v2350
        %v2387 = vunpack.c.l.b16 %v2351
        %v2388 = vunpack.c.l.b16 %v2352
        %v2389 = vunpack.c.l.b16 %v2353
        %v2390 = vunpack.c.l.b16 %v2354
        %v2391 = vunpack.c.l.b16 %v2355
        %v2392 = vunpack.c.l.b16 %v2356
        %v2393 = vunpack.c.l.b16 %v2357
        %v2394 = vunpack.c.l.b16 %v2358
        %v2395 = vunpack.c.l.b16 %v2359
        %v2396 = vunpack.c.l.b16 %v2360
        %v2397 = vpack.c.b16 %v2382, %v2381
        %v2398 = vpack.c.b16 %v2384, %v2383
        %v2399 = vpack.c.b16 %v2386, %v2385
        %v2400 = vpack.c.b16 %v2388, %v2387
        %v2401 = vpack.c.b16 %v2390, %v2389
        %v2402 = vpack.c.b16 %v2392, %v2391
        %v2403 = vpack.c.b16 %v2394, %v2393
        %v2404 = vpack.c.b16 %v2396, %v2395
        %2413 = vmatpush.bf16.msra.mxu0 %v2404
        %2414 = vmatpush.bf16.msra.mxu0 %v2403
        %2415 = vmatpush.bf16.msra.mxu0 %v2402
        %2416 = vmatpush.bf16.msra.mxu0 %v2401
        %2417 = vmatpush.bf16.msra.mxu0 %v2400
        %2418 = vmatpush.bf16.msra.mxu0 %v2399
        %2419 = vmatpush.bf16.msra.mxu0 %v2398
        %2420 = vmatpush.bf16.msra.mxu0 %v2397
        %2421 = vmatmul.bf16.gmra.mxu0 %v2344
        %v2422 = vpop.f32.mrf.mxu0
        %v2423 = vadd.f32 %v2363, %v2422
        %v2424 = vpop.f32.mrf.mxu0
        %v2425 = vadd.f32 %v2363, %v2424
        %2426 = vdwg.mxu0
        %v2427 = vmax.f32 %v2423, 0.0
        %v2428 = vmax.f32 %v2425, 0.0
        %2429 = vmatpush.msra.mxu0 0.0
        %2430 = vmatpush.msra.mxu0 0.0
        %2431 = vmatpush.msra.mxu0 0.0
        %2432 = vmatpush.msra.mxu0 0.0
        %2433 = vmatpush.msra.mxu0 0.0
        %2434 = vmatpush.msra.mxu0 0.0
        %2435 = vmatpush.msra.mxu0 0.0
        %2436 = vmatpush.msra.mxu0 0.0
        %2437 = vmatpush.msra.mxu0 0.0
        %2438 = vmatpush.msra.mxu0 0.0
        %2439 = vmatpush.msra.mxu0 0.0
        %2440 = vmatpush.msra.mxu0 0.0
        %2441 = vmatpush.msra.mxu0 0.0
        %2442 = vmatpush.msra.mxu0 0.0
        %2443 = vmatpush.msra.mxu0 %v2428
        %2444 = vmatpush.msra.mxu0 %v2427
        %2445 = vmatmul.f32.gmra.mxu0 %v1288
        %v2446 = vpop.f32.mrf.mxu0
        %v2447 = vadd.f32 0.0, %v2446
        %2448 = vmatmul.f32.gmra.mxu0 %v1291
        %v2449 = vpop.f32.mrf.mxu0
        %v2450 = vadd.f32 0.0, %v2449
        %2451 = vdwg.mxu0
        %2452 = vrot.lane.b32.xlu0 %v2447, 16
        %v2453 = vpop.permute.xlu0 %2452
        %2454 = vrot.lane.b32.xlu0 %v2450, 16
        %v2455 = vpop.permute.xlu0 %2454
        %v2456 = vld [vmem:[%s7] sm:$0x1]
        %v2458 = vperm.slane %v2456, 0
        %v2460 = vmul.f32 %v2453, %v2458
        %v2461 = vmul.f32 %v2455, %v2458
        %2462 = vrot.lane.b32.xlu0 %v2447, 8
        %v2463 = vpop.permute.xlu0 %2462
        %2464 = vrot.lane.b32.xlu0 %v2450, 8
        %v2465 = vpop.permute.xlu0 %2464
        %s2466 = scalar_lea.vmem %s7, 1
        %v2467 = vld [vmem:[%s2466] sm:$0x1]
        %v2469 = vperm.slane %v2467, 0
        %v2471 = vmul.f32 %v2463, %v2469
        %v2472 = vmul.f32 %v2465, %v2469
        %v2473 = vadd.f32 %v2460, %v2471
        %v2474 = vadd.f32 %v2461, %v2472
        %s2475 = scalar_lea.vmem %s7, 2
        %v2476 = vld [vmem:[%s2475] sm:$0x1]
        %v2478 = vperm.slane %v2476, 0
        %v2480 = vmul.f32 %v2447, %v2478
        %v2481 = vmul.f32 %v2450, %v2478
        %v2482 = vadd.f32 %v2473, %v2480
        %v2483 = vadd.f32 %v2474, %v2481
        %2484 = vrot.lane.b32.xlu0 %v2447, 120
        %v2485 = vpop.permute.xlu0 %2484
        %2486 = vrot.lane.b32.xlu0 %v2450, 120
        %v2487 = vpop.permute.xlu0 %2486
        %s2488 = scalar_lea.vmem %s7, 3
        %v2489 = vld [vmem:[%s2488] sm:$0x1]
        %v2491 = vperm.slane %v2489, 0
        %v2493 = vmul.f32 %v2485, %v2491
        %v2494 = vmul.f32 %v2487, %v2491
        %v2495 = vadd.f32 %v2482, %v2493
        %v2496 = vadd.f32 %v2483, %v2494
        %2497 = vrot.lane.b32.xlu0 %v2447, 112
        %v2498 = vpop.permute.xlu0 %2497
        %2499 = vrot.lane.b32.xlu0 %v2450, 112
        %v2500 = vpop.permute.xlu0 %2499
        %s2501 = scalar_lea.vmem %s7, 4
        %v2502 = vld [vmem:[%s2501] sm:$0x1]
        %v2504 = vperm.slane %v2502, 0
        %v2506 = vmul.f32 %v2498, %v2504
        %v2507 = vmul.f32 %v2500, %v2504
        %v2508 = vadd.f32 %v2495, %v2506
        %v2509 = vadd.f32 %v2496, %v2507
        %2510 = vmatpush.msra.mxu0 0.0
        %2511 = vmatpush.msra.mxu0 0.0
        %2512 = vmatpush.msra.mxu0 0.0
        %2513 = vmatpush.msra.mxu0 0.0
        %2514 = vmatpush.msra.mxu0 0.0
        %2515 = vmatpush.msra.mxu0 0.0
        %2516 = vmatpush.msra.mxu0 0.0
        %2517 = vmatpush.msra.mxu0 0.0
        %2518 = vmatpush.msra.mxu0 0.0
        %2519 = vmatpush.msra.mxu0 0.0
        %2520 = vmatpush.msra.mxu0 0.0
        %2521 = vmatpush.msra.mxu0 0.0
        %2522 = vmatpush.msra.mxu0 0.0
        %2523 = vmatpush.msra.mxu0 0.0
        %2524 = vmatpush.msra.mxu0 %v2428
        %2525 = vmatpush.msra.mxu0 %v2427
        %2526 = vmatmul.f32.gmra.mxu0 %v1377
        %v2527 = vpop.f32.mrf.mxu0
        %v2528 = vadd.f32 0.0, %v2527
        %2529 = vmatmul.f32.gmra.mxu0 %v1380
        %v2530 = vpop.f32.mrf.mxu0
        %v2531 = vadd.f32 0.0, %v2530
        %2532 = vdwg.mxu0
        %2533 = vrot.lane.b32.xlu0 %v2528, 16
        %v2534 = vpop.permute.xlu0 %2533
        %2535 = vrot.lane.b32.xlu0 %v2531, 16
        %v2536 = vpop.permute.xlu0 %2535
        %s2537 = scalar_lea.vmem %s7, 5
        %v2538 = vld [vmem:[%s2537] sm:$0x1]
        %v2540 = vperm.slane %v2538, 0
        %v2542 = vmul.f32 %v2534, %v2540
        %v2543 = vmul.f32 %v2536, %v2540
        %v2544 = vadd.f32 %v2508, %v2542
        %v2545 = vadd.f32 %v2509, %v2543
        %2546 = vrot.lane.b32.xlu0 %v2528, 8
        %v2547 = vpop.permute.xlu0 %2546
        %2548 = vrot.lane.b32.xlu0 %v2531, 8
        %v2549 = vpop.permute.xlu0 %2548
        %s2550 = scalar_lea.vmem %s7, 6
        %v2551 = vld [vmem:[%s2550] sm:$0x1]
        %v2553 = vperm.slane %v2551, 0
        %v2555 = vmul.f32 %v2547, %v2553
        %v2556 = vmul.f32 %v2549, %v2553
        %v2557 = vadd.f32 %v2544, %v2555
        %v2558 = vadd.f32 %v2545, %v2556
        %s2559 = scalar_lea.vmem %s7, 7
        %v2560 = vld [vmem:[%s2559] sm:$0x1]
        %v2562 = vperm.slane %v2560, 0
        %v2564 = vmul.f32 %v2528, %v2562
        %v2565 = vmul.f32 %v2531, %v2562
        %v2566 = vadd.f32 %v2557, %v2564
        %v2567 = vadd.f32 %v2558, %v2565
        %2568 = vrot.lane.b32.xlu0 %v2528, 120
        %v2569 = vpop.permute.xlu0 %2568
        %2570 = vrot.lane.b32.xlu0 %v2531, 120
        %v2571 = vpop.permute.xlu0 %2570
        %s2572 = scalar_lea.vmem %s7, 8
        %v2573 = vld [vmem:[%s2572] sm:$0x1]
        %v2575 = vperm.slane %v2573, 0
        %v2577 = vmul.f32 %v2569, %v2575
        %v2578 = vmul.f32 %v2571, %v2575
        %v2579 = vadd.f32 %v2566, %v2577
        %v2580 = vadd.f32 %v2567, %v2578
        %2581 = vrot.lane.b32.xlu0 %v2528, 112
        %v2582 = vpop.permute.xlu0 %2581
        %2583 = vrot.lane.b32.xlu0 %v2531, 112
        %v2584 = vpop.permute.xlu0 %2583
        %s2585 = scalar_lea.vmem %s7, 9
        %v2586 = vld [vmem:[%s2585] sm:$0x1]
        %v2588 = vperm.slane %v2586, 0
        %v2590 = vmul.f32 %v2582, %v2588
        %v2591 = vmul.f32 %v2584, %v2588
        %v2592 = vadd.f32 %v2579, %v2590
        %v2593 = vadd.f32 %v2580, %v2591
        %2594 = vrot.lane.b32.xlu0 %v2427, 16
        %v2595 = vpop.permute.xlu0 %2594
        %2596 = vrot.lane.b32.xlu0 %v2428, 16
        %v2597 = vpop.permute.xlu0 %2596
        %s2598 = scalar_lea.vmem %s7, 10
        %v2599 = vld [vmem:[%s2598] sm:$0x1]
        %v2601 = vperm.slane %v2599, 0
        %v2603 = vmul.f32 %v2595, %v2601
        %v2604 = vmul.f32 %v2597, %v2601
        %v2605 = vadd.f32 %v2592, %v2603
        %v2606 = vadd.f32 %v2593, %v2604
        %2607 = vrot.lane.b32.xlu0 %v2427, 8
        %v2608 = vpop.permute.xlu0 %2607
        %2609 = vrot.lane.b32.xlu0 %v2428, 8
        %v2610 = vpop.permute.xlu0 %2609
        %s2611 = scalar_lea.vmem %s7, 11
        %v2612 = vld [vmem:[%s2611] sm:$0x1]
        %v2614 = vperm.slane %v2612, 0
        %v2616 = vmul.f32 %v2608, %v2614
        %v2617 = vmul.f32 %v2610, %v2614
        %v2618 = vadd.f32 %v2605, %v2616
        %v2619 = vadd.f32 %v2606, %v2617
        %s2620 = scalar_lea.vmem %s7, 12
        %v2621 = vld [vmem:[%s2620] sm:$0x1]
        %v2623 = vperm.slane %v2621, 0
        %v2625 = vmul.f32 %v2427, %v2623
        %v2626 = vmul.f32 %v2428, %v2623
        %v2627 = vadd.f32 %v2618, %v2625
        %v2628 = vadd.f32 %v2619, %v2626
        %2629 = vrot.lane.b32.xlu0 %v2427, 120
        %v2630 = vpop.permute.xlu0 %2629
        %2631 = vrot.lane.b32.xlu0 %v2428, 120
        %v2632 = vpop.permute.xlu0 %2631
        %s2633 = scalar_lea.vmem %s7, 13
        %v2634 = vld [vmem:[%s2633] sm:$0x1]
        %v2636 = vperm.slane %v2634, 0
        %v2638 = vmul.f32 %v2630, %v2636
        %v2639 = vmul.f32 %v2632, %v2636
        %v2640 = vadd.f32 %v2627, %v2638
        %v2641 = vadd.f32 %v2628, %v2639
        %2642 = vrot.lane.b32.xlu0 %v2427, 112
        %v2643 = vpop.permute.xlu0 %2642
        %2644 = vrot.lane.b32.xlu0 %v2428, 112
        %v2645 = vpop.permute.xlu0 %2644
        %s2646 = scalar_lea.vmem %s7, 14
        %v2647 = vld [vmem:[%s2646] sm:$0x1]
        %v2649 = vperm.slane %v2647, 0
        %v2651 = vmul.f32 %v2643, %v2649
        %v2652 = vmul.f32 %v2645, %v2649
        %v2653 = vadd.f32 %v2640, %v2651
        %v2654 = vadd.f32 %v2641, %v2652
        %2655 = vmatpush.msra.mxu0 0.0
        %2656 = vmatpush.msra.mxu0 0.0
        %2657 = vmatpush.msra.mxu0 0.0
        %2658 = vmatpush.msra.mxu0 0.0
        %2659 = vmatpush.msra.mxu0 0.0
        %2660 = vmatpush.msra.mxu0 0.0
        %2661 = vmatpush.msra.mxu0 0.0
        %2662 = vmatpush.msra.mxu0 0.0
        %2663 = vmatpush.msra.mxu0 0.0
        %2664 = vmatpush.msra.mxu0 0.0
        %2665 = vmatpush.msra.mxu0 0.0
        %2666 = vmatpush.msra.mxu0 0.0
        %2667 = vmatpush.msra.mxu0 0.0
        %2668 = vmatpush.msra.mxu0 0.0
        %2669 = vmatpush.msra.mxu0 %v2428
        %2670 = vmatpush.msra.mxu0 %v2427
        %2671 = vmatmul.f32.gmra.mxu0 %v1582
        %v2672 = vpop.f32.mrf.mxu0
        %v2673 = vadd.f32 0.0, %v2672
        %2674 = vmatmul.f32.gmra.mxu0 %v1585
        %v2675 = vpop.f32.mrf.mxu0
        %v2676 = vadd.f32 0.0, %v2675
        %2677 = vdwg.mxu0
        %2678 = vrot.lane.b32.xlu0 %v2673, 16
        %v2679 = vpop.permute.xlu0 %2678
        %2680 = vrot.lane.b32.xlu0 %v2676, 16
        %v2681 = vpop.permute.xlu0 %2680
        %s2682 = scalar_lea.vmem %s7, 15
        %v2683 = vld [vmem:[%s2682] sm:$0x1]
        %v2685 = vperm.slane %v2683, 0
        %v2687 = vmul.f32 %v2679, %v2685
        %v2688 = vmul.f32 %v2681, %v2685
        %v2689 = vadd.f32 %v2653, %v2687
        %v2690 = vadd.f32 %v2654, %v2688
        %2691 = vrot.lane.b32.xlu0 %v2673, 8
        %v2692 = vpop.permute.xlu0 %2691
        %2693 = vrot.lane.b32.xlu0 %v2676, 8
        %v2694 = vpop.permute.xlu0 %2693
        %s2695 = scalar_lea.vmem %s7, 16
        %v2696 = vld [vmem:[%s2695] sm:$0x1]
        %v2698 = vperm.slane %v2696, 0
        %v2700 = vmul.f32 %v2692, %v2698
        %v2701 = vmul.f32 %v2694, %v2698
        %v2702 = vadd.f32 %v2689, %v2700
        %v2703 = vadd.f32 %v2690, %v2701
        %s2704 = scalar_lea.vmem %s7, 17
        %v2705 = vld [vmem:[%s2704] sm:$0x1]
        %v2707 = vperm.slane %v2705, 0
        %v2709 = vmul.f32 %v2673, %v2707
        %v2710 = vmul.f32 %v2676, %v2707
        %v2711 = vadd.f32 %v2702, %v2709
        %v2712 = vadd.f32 %v2703, %v2710
        %2713 = vrot.lane.b32.xlu0 %v2673, 120
        %v2714 = vpop.permute.xlu0 %2713
        %2715 = vrot.lane.b32.xlu0 %v2676, 120
        %v2716 = vpop.permute.xlu0 %2715
        %s2717 = scalar_lea.vmem %s7, 18
        %v2718 = vld [vmem:[%s2717] sm:$0x1]
        %v2720 = vperm.slane %v2718, 0
        %v2722 = vmul.f32 %v2714, %v2720
        %v2723 = vmul.f32 %v2716, %v2720
        %v2724 = vadd.f32 %v2711, %v2722
        %v2725 = vadd.f32 %v2712, %v2723
        %2726 = vrot.lane.b32.xlu0 %v2673, 112
        %v2727 = vpop.permute.xlu0 %2726
        %2728 = vrot.lane.b32.xlu0 %v2676, 112
        %v2729 = vpop.permute.xlu0 %2728
        %s2730 = scalar_lea.vmem %s7, 19
        %v2731 = vld [vmem:[%s2730] sm:$0x1]
        %v2733 = vperm.slane %v2731, 0
        %v2735 = vmul.f32 %v2727, %v2733
        %v2736 = vmul.f32 %v2729, %v2733
        %v2737 = vadd.f32 %v2724, %v2735
        %v2738 = vadd.f32 %v2725, %v2736
        %2739 = vmatpush.msra.mxu0 0.0
        %2740 = vmatpush.msra.mxu0 0.0
        %2741 = vmatpush.msra.mxu0 0.0
        %2742 = vmatpush.msra.mxu0 0.0
        %2743 = vmatpush.msra.mxu0 0.0
        %2744 = vmatpush.msra.mxu0 0.0
        %2745 = vmatpush.msra.mxu0 0.0
        %2746 = vmatpush.msra.mxu0 0.0
        %2747 = vmatpush.msra.mxu0 0.0
        %2748 = vmatpush.msra.mxu0 0.0
        %2749 = vmatpush.msra.mxu0 0.0
        %2750 = vmatpush.msra.mxu0 0.0
        %2751 = vmatpush.msra.mxu0 0.0
        %2752 = vmatpush.msra.mxu0 0.0
        %2753 = vmatpush.msra.mxu0 %v2428
        %2754 = vmatpush.msra.mxu0 %v2427
        %2755 = vmatmul.f32.gmra.mxu0 %v1702
        %v2756 = vpop.f32.mrf.mxu0
        %v2757 = vadd.f32 0.0, %v2756
        %2758 = vmatmul.f32.gmra.mxu0 %v1705
        %v2759 = vpop.f32.mrf.mxu0
        %v2760 = vadd.f32 0.0, %v2759
        %2761 = vdwg.mxu0
        %2762 = vrot.lane.b32.xlu0 %v2757, 16
        %v2763 = vpop.permute.xlu0 %2762
        %2764 = vrot.lane.b32.xlu0 %v2760, 16
        %v2765 = vpop.permute.xlu0 %2764
        %s2766 = scalar_lea.vmem %s7, 20
        %v2767 = vld [vmem:[%s2766] sm:$0x1]
        %v2769 = vperm.slane %v2767, 0
        %v2771 = vmul.f32 %v2763, %v2769
        %v2772 = vmul.f32 %v2765, %v2769
        %v2773 = vadd.f32 %v2737, %v2771
        %v2774 = vadd.f32 %v2738, %v2772
        %2775 = vrot.lane.b32.xlu0 %v2757, 8
        %v2776 = vpop.permute.xlu0 %2775
        %2777 = vrot.lane.b32.xlu0 %v2760, 8
        %v2778 = vpop.permute.xlu0 %2777
        %s2779 = scalar_lea.vmem %s7, 21
        %v2780 = vld [vmem:[%s2779] sm:$0x1]
        %v2782 = vperm.slane %v2780, 0
        %v2784 = vmul.f32 %v2776, %v2782
        %v2785 = vmul.f32 %v2778, %v2782
        %v2786 = vadd.f32 %v2773, %v2784
        %v2787 = vadd.f32 %v2774, %v2785
        %s2788 = scalar_lea.vmem %s7, 22
        %v2789 = vld [vmem:[%s2788] sm:$0x1]
        %v2791 = vperm.slane %v2789, 0
        %v2793 = vmul.f32 %v2757, %v2791
        %v2794 = vmul.f32 %v2760, %v2791
        %v2795 = vadd.f32 %v2786, %v2793
        %v2796 = vadd.f32 %v2787, %v2794
        %2797 = vrot.lane.b32.xlu0 %v2757, 120
        %v2798 = vpop.permute.xlu0 %2797
        %2799 = vrot.lane.b32.xlu0 %v2760, 120
        %v2800 = vpop.permute.xlu0 %2799
        %s2801 = scalar_lea.vmem %s7, 23
        %v2802 = vld [vmem:[%s2801] sm:$0x1]
        %v2804 = vperm.slane %v2802, 0
        %v2806 = vmul.f32 %v2798, %v2804
        %v2807 = vmul.f32 %v2800, %v2804
        %v2808 = vadd.f32 %v2795, %v2806
        %v2809 = vadd.f32 %v2796, %v2807
        %2810 = vrot.lane.b32.xlu0 %v2757, 112
        %v2811 = vpop.permute.xlu0 %2810
        %2812 = vrot.lane.b32.xlu0 %v2760, 112
        %v2813 = vpop.permute.xlu0 %2812
        %s2814 = scalar_lea.vmem %s7, 24
        %v2815 = vld [vmem:[%s2814] sm:$0x1]
        %v2817 = vperm.slane %v2815, 0
        %v2819 = vmul.f32 %v2811, %v2817
        %v2820 = vmul.f32 %v2813, %v2817
        %v2821 = vadd.f32 %v2808, %v2819
        %v2822 = vadd.f32 %v2809, %v2820
        %v2823 = vpack.c.bf16 %v2822, %v2821
        %v2824 = vld [vmem:[%s8] sm:$0xf]
        %v2825 = vld [vmem:[%s8 + $0x4] sm:$0xf]
        %v2826 = vld [vmem:[%s8 + $0x8] sm:$0xf]
        %v2827 = vld [vmem:[%s8 + $0xc] sm:$0xf]
        %v2828 = vld [vmem:[%s8 + $0x10] sm:$0xf]
        %v2829 = vld [vmem:[%s8 + $0x14] sm:$0xf]
        %v2830 = vld [vmem:[%s8 + $0x18] sm:$0xf]
        %v2831 = vld [vmem:[%s8 + $0x1c] sm:$0xf]
        %v2832 = vld [vmem:[%s8 + $0x20] sm:$0xf]
        %v2833 = vld [vmem:[%s8 + $0x24] sm:$0xf]
        %v2834 = vld [vmem:[%s8 + $0x28] sm:$0xf]
        %v2835 = vld [vmem:[%s8 + $0x2c] sm:$0xf]
        %v2836 = vld [vmem:[%s8 + $0x30] sm:$0xf]
        %v2837 = vld [vmem:[%s8 + $0x34] sm:$0xf]
        %v2838 = vld [vmem:[%s8 + $0x38] sm:$0xf]
        %v2839 = vld [vmem:[%s8 + $0x3c] sm:$0xf]
        %v2840 = vld [vmem:[%s9] sm:$0x1]
        %v2842 = vperm.slane %v2840, 0
        %v2860 = vunpack.c.l.b16 %v2824
        %v2861 = vunpack.c.l.b16 %v2825
        %v2862 = vunpack.c.l.b16 %v2826
        %v2863 = vunpack.c.l.b16 %v2827
        %v2864 = vunpack.c.l.b16 %v2828
        %v2865 = vunpack.c.l.b16 %v2829
        %v2866 = vunpack.c.l.b16 %v2830
        %v2867 = vunpack.c.l.b16 %v2831
        %v2868 = vunpack.c.l.b16 %v2832
        %v2869 = vunpack.c.l.b16 %v2833
        %v2870 = vunpack.c.l.b16 %v2834
        %v2871 = vunpack.c.l.b16 %v2835
        %v2872 = vunpack.c.l.b16 %v2836
        %v2873 = vunpack.c.l.b16 %v2837
        %v2874 = vunpack.c.l.b16 %v2838
        %v2875 = vunpack.c.l.b16 %v2839
        %v2876 = vpack.c.b16 %v2861, %v2860
        %v2877 = vpack.c.b16 %v2863, %v2862
        %v2878 = vpack.c.b16 %v2865, %v2864
        %v2879 = vpack.c.b16 %v2867, %v2866
        %v2880 = vpack.c.b16 %v2869, %v2868
        %v2881 = vpack.c.b16 %v2871, %v2870
        %v2882 = vpack.c.b16 %v2873, %v2872
        %v2883 = vpack.c.b16 %v2875, %v2874
        %2892 = vmatpush.bf16.msra.mxu0 %v2883
        %2893 = vmatpush.bf16.msra.mxu0 %v2882
        %2894 = vmatpush.bf16.msra.mxu0 %v2881
        %2895 = vmatpush.bf16.msra.mxu0 %v2880
        %2896 = vmatpush.bf16.msra.mxu0 %v2879
        %2897 = vmatpush.bf16.msra.mxu0 %v2878
        %2898 = vmatpush.bf16.msra.mxu0 %v2877
        %2899 = vmatpush.bf16.msra.mxu0 %v2876
        %2900 = vmatmul.bf16.gmra.mxu0 %v2823
        %v2901 = vpop.f32.mrf.mxu0
        %v2902 = vadd.f32 %v2842, %v2901
        %v2903 = vpop.f32.mrf.mxu0
        %v2904 = vadd.f32 %v2842, %v2903
        %2905 = vdwg.mxu0
        %v2906 = vpack.c.bf16 %v2228, %v2227
        %s2907 = scalar_lea.vmem %s5, 64
        %v2908 = vld [vmem:[%s2907] sm:$0xf]
        %v2909 = vld [vmem:[%s2907 + $0x4] sm:$0xf]
        %v2910 = vld [vmem:[%s2907 + $0x8] sm:$0xf]
        %v2911 = vld [vmem:[%s2907 + $0xc] sm:$0xf]
        %v2912 = vld [vmem:[%s2907 + $0x10] sm:$0xf]
        %v2913 = vld [vmem:[%s2907 + $0x14] sm:$0xf]
        %v2914 = vld [vmem:[%s2907 + $0x18] sm:$0xf]
        %v2915 = vld [vmem:[%s2907 + $0x1c] sm:$0xf]
        %v2916 = vld [vmem:[%s2907 + $0x20] sm:$0xf]
        %v2917 = vld [vmem:[%s2907 + $0x24] sm:$0xf]
        %v2918 = vld [vmem:[%s2907 + $0x28] sm:$0xf]
        %v2919 = vld [vmem:[%s2907 + $0x2c] sm:$0xf]
        %v2920 = vld [vmem:[%s2907 + $0x30] sm:$0xf]
        %v2921 = vld [vmem:[%s2907 + $0x34] sm:$0xf]
        %v2922 = vld [vmem:[%s2907 + $0x38] sm:$0xf]
        %v2923 = vld [vmem:[%s2907 + $0x3c] sm:$0xf]
        %s2924 = scalar_lea.vmem %s6, 1
        %v2925 = vld [vmem:[%s2924] sm:$0x1]
        %v2927 = vperm.slane %v2925, 0
        %v2945 = vunpack.c.l.b16 %v2908
        %v2946 = vunpack.c.l.b16 %v2909
        %v2947 = vunpack.c.l.b16 %v2910
        %v2948 = vunpack.c.l.b16 %v2911
        %v2949 = vunpack.c.l.b16 %v2912
        %v2950 = vunpack.c.l.b16 %v2913
        %v2951 = vunpack.c.l.b16 %v2914
        %v2952 = vunpack.c.l.b16 %v2915
        %v2953 = vunpack.c.l.b16 %v2916
        %v2954 = vunpack.c.l.b16 %v2917
        %v2955 = vunpack.c.l.b16 %v2918
        %v2956 = vunpack.c.l.b16 %v2919
        %v2957 = vunpack.c.l.b16 %v2920
        %v2958 = vunpack.c.l.b16 %v2921
        %v2959 = vunpack.c.l.b16 %v2922
        %v2960 = vunpack.c.l.b16 %v2923
        %v2961 = vpack.c.b16 %v2946, %v2945
        %v2962 = vpack.c.b16 %v2948, %v2947
        %v2963 = vpack.c.b16 %v2950, %v2949
        %v2964 = vpack.c.b16 %v2952, %v2951
        %v2965 = vpack.c.b16 %v2954, %v2953
        %v2966 = vpack.c.b16 %v2956, %v2955
        %v2967 = vpack.c.b16 %v2958, %v2957
        %v2968 = vpack.c.b16 %v2960, %v2959
        %2977 = vmatpush.bf16.msra.mxu0 %v2968
        %2978 = vmatpush.bf16.msra.mxu0 %v2967
        %2979 = vmatpush.bf16.msra.mxu0 %v2966
        %2980 = vmatpush.bf16.msra.mxu0 %v2965
        %2981 = vmatpush.bf16.msra.mxu0 %v2964
        %2982 = vmatpush.bf16.msra.mxu0 %v2963
        %2983 = vmatpush.bf16.msra.mxu0 %v2962
        %2984 = vmatpush.bf16.msra.mxu0 %v2961
        %2985 = vmatmul.bf16.gmra.mxu0 %v2906
        %v2986 = vpop.f32.mrf.mxu0
        %v2987 = vadd.f32 %v2927, %v2986
        %v2988 = vpop.f32.mrf.mxu0
        %v2989 = vadd.f32 %v2927, %v2988
        %2990 = vdwg.mxu0
        %v2991 = vmax.f32 %v2987, 0.0
        %v2992 = vmax.f32 %v2989, 0.0
        %2993 = vmatpush.msra.mxu0 0.0
        %2994 = vmatpush.msra.mxu0 0.0
        %2995 = vmatpush.msra.mxu0 0.0
        %2996 = vmatpush.msra.mxu0 0.0
        %2997 = vmatpush.msra.mxu0 0.0
        %2998 = vmatpush.msra.mxu0 0.0
        %2999 = vmatpush.msra.mxu0 0.0
        %3000 = vmatpush.msra.mxu0 0.0
        %3001 = vmatpush.msra.mxu0 0.0
        %3002 = vmatpush.msra.mxu0 0.0
        %3003 = vmatpush.msra.mxu0 0.0
        %3004 = vmatpush.msra.mxu0 0.0
        %3005 = vmatpush.msra.mxu0 0.0
        %3006 = vmatpush.msra.mxu0 0.0
        %3007 = vmatpush.msra.mxu0 %v2992
        %3008 = vmatpush.msra.mxu0 %v2991
        %3009 = vmatmul.f32.gmra.mxu0 %v1377
        %v3010 = vpop.f32.mrf.mxu0
        %v3011 = vadd.f32 0.0, %v3010
        %3012 = vmatmul.f32.gmra.mxu0 %v1380
        %v3013 = vpop.f32.mrf.mxu0
        %v3014 = vadd.f32 0.0, %v3013
        %3015 = vdwg.mxu0
        %3016 = vrot.lane.b32.xlu0 %v3011, 8
        %v3017 = vpop.permute.xlu0 %3016
        %3018 = vrot.lane.b32.xlu0 %v3014, 8
        %v3019 = vpop.permute.xlu0 %3018
        %s3020 = scalar_lea.vmem %s7, 31
        %v3021 = vld [vmem:[%s3020] sm:$0x1]
        %v3023 = vperm.slane %v3021, 0
        %v3025 = vmul.f32 %v3017, %v3023
        %v3026 = vmul.f32 %v3019, %v3023
        %s3027 = scalar_lea.vmem %s7, 32
        %v3028 = vld [vmem:[%s3027] sm:$0x1]
        %v3030 = vperm.slane %v3028, 0
        %v3032 = vmul.f32 %v3011, %v3030
        %v3033 = vmul.f32 %v3014, %v3030
        %v3034 = vadd.f32 %v3025, %v3032
        %v3035 = vadd.f32 %v3026, %v3033
        %3036 = vrot.lane.b32.xlu0 %v3011, 120
        %v3037 = vpop.permute.xlu0 %3036
        %3038 = vrot.lane.b32.xlu0 %v3014, 120
        %v3039 = vpop.permute.xlu0 %3038
        %s3040 = scalar_lea.vmem %s7, 33
        %v3041 = vld [vmem:[%s3040] sm:$0x1]
        %v3043 = vperm.slane %v3041, 0
        %v3045 = vmul.f32 %v3037, %v3043
        %v3046 = vmul.f32 %v3039, %v3043
        %v3047 = vadd.f32 %v3034, %v3045
        %v3048 = vadd.f32 %v3035, %v3046
        %3049 = vrot.lane.b32.xlu0 %v2991, 8
        %v3050 = vpop.permute.xlu0 %3049
        %3051 = vrot.lane.b32.xlu0 %v2992, 8
        %v3052 = vpop.permute.xlu0 %3051
        %s3053 = scalar_lea.vmem %s7, 36
        %v3054 = vld [vmem:[%s3053] sm:$0x1]
        %v3056 = vperm.slane %v3054, 0
        %v3058 = vmul.f32 %v3050, %v3056
        %v3059 = vmul.f32 %v3052, %v3056
        %v3060 = vadd.f32 %v3047, %v3058
        %v3061 = vadd.f32 %v3048, %v3059
        %s3062 = scalar_lea.vmem %s7, 37
        %v3063 = vld [vmem:[%s3062] sm:$0x1]
        %v3065 = vperm.slane %v3063, 0
        %v3067 = vmul.f32 %v2991, %v3065
        %v3068 = vmul.f32 %v2992, %v3065
        %v3069 = vadd.f32 %v3060, %v3067
        %v3070 = vadd.f32 %v3061, %v3068
        %3071 = vrot.lane.b32.xlu0 %v2991, 120
        %v3072 = vpop.permute.xlu0 %3071
        %3073 = vrot.lane.b32.xlu0 %v2992, 120
        %v3074 = vpop.permute.xlu0 %3073
        %s3075 = scalar_lea.vmem %s7, 38
        %v3076 = vld [vmem:[%s3075] sm:$0x1]
        %v3078 = vperm.slane %v3076, 0
        %v3080 = vmul.f32 %v3072, %v3078
        %v3081 = vmul.f32 %v3074, %v3078
        %v3082 = vadd.f32 %v3069, %v3080
        %v3083 = vadd.f32 %v3070, %v3081
        %3084 = vmatpush.msra.mxu0 0.0
        %3085 = vmatpush.msra.mxu0 0.0
        %3086 = vmatpush.msra.mxu0 0.0
        %3087 = vmatpush.msra.mxu0 0.0
        %3088 = vmatpush.msra.mxu0 0.0
        %3089 = vmatpush.msra.mxu0 0.0
        %3090 = vmatpush.msra.mxu0 0.0
        %3091 = vmatpush.msra.mxu0 0.0
        %3092 = vmatpush.msra.mxu0 0.0
        %3093 = vmatpush.msra.mxu0 0.0
        %3094 = vmatpush.msra.mxu0 0.0
        %3095 = vmatpush.msra.mxu0 0.0
        %3096 = vmatpush.msra.mxu0 0.0
        %3097 = vmatpush.msra.mxu0 0.0
        %3098 = vmatpush.msra.mxu0 %v2992
        %3099 = vmatpush.msra.mxu0 %v2991
        %3100 = vmatmul.f32.gmra.mxu0 %v1582
        %v3101 = vpop.f32.mrf.mxu0
        %v3102 = vadd.f32 0.0, %v3101
        %3103 = vmatmul.f32.gmra.mxu0 %v1585
        %v3104 = vpop.f32.mrf.mxu0
        %v3105 = vadd.f32 0.0, %v3104
        %3106 = vdwg.mxu0
        %3107 = vrot.lane.b32.xlu0 %v3102, 8
        %v3108 = vpop.permute.xlu0 %3107
        %3109 = vrot.lane.b32.xlu0 %v3105, 8
        %v3110 = vpop.permute.xlu0 %3109
        %s3111 = scalar_lea.vmem %s7, 41
        %v3112 = vld [vmem:[%s3111] sm:$0x1]
        %v3114 = vperm.slane %v3112, 0
        %v3116 = vmul.f32 %v3108, %v3114
        %v3117 = vmul.f32 %v3110, %v3114
        %v3118 = vadd.f32 %v3082, %v3116
        %v3119 = vadd.f32 %v3083, %v3117
        %s3120 = scalar_lea.vmem %s7, 42
        %v3121 = vld [vmem:[%s3120] sm:$0x1]
        %v3123 = vperm.slane %v3121, 0
        %v3125 = vmul.f32 %v3102, %v3123
        %v3126 = vmul.f32 %v3105, %v3123
        %v3127 = vadd.f32 %v3118, %v3125
        %v3128 = vadd.f32 %v3119, %v3126
        %3129 = vrot.lane.b32.xlu0 %v3102, 120
        %v3130 = vpop.permute.xlu0 %3129
        %3131 = vrot.lane.b32.xlu0 %v3105, 120
        %v3132 = vpop.permute.xlu0 %3131
        %s3133 = scalar_lea.vmem %s7, 43
        %v3134 = vld [vmem:[%s3133] sm:$0x1]
        %v3136 = vperm.slane %v3134, 0
        %v3138 = vmul.f32 %v3130, %v3136
        %v3139 = vmul.f32 %v3132, %v3136
        %v3140 = vadd.f32 %v3127, %v3138
        %v3141 = vadd.f32 %v3128, %v3139
        %v3142 = vpack.c.bf16 %v3141, %v3140
        %s3143 = scalar_lea.vmem %s8, 64
        %v3144 = vld [vmem:[%s3143] sm:$0xf]
        %v3145 = vld [vmem:[%s3143 + $0x4] sm:$0xf]
        %v3146 = vld [vmem:[%s3143 + $0x8] sm:$0xf]
        %v3147 = vld [vmem:[%s3143 + $0xc] sm:$0xf]
        %v3148 = vld [vmem:[%s3143 + $0x10] sm:$0xf]
        %v3149 = vld [vmem:[%s3143 + $0x14] sm:$0xf]
        %v3150 = vld [vmem:[%s3143 + $0x18] sm:$0xf]
        %v3151 = vld [vmem:[%s3143 + $0x1c] sm:$0xf]
        %v3152 = vld [vmem:[%s3143 + $0x20] sm:$0xf]
        %v3153 = vld [vmem:[%s3143 + $0x24] sm:$0xf]
        %v3154 = vld [vmem:[%s3143 + $0x28] sm:$0xf]
        %v3155 = vld [vmem:[%s3143 + $0x2c] sm:$0xf]
        %v3156 = vld [vmem:[%s3143 + $0x30] sm:$0xf]
        %v3157 = vld [vmem:[%s3143 + $0x34] sm:$0xf]
        %v3158 = vld [vmem:[%s3143 + $0x38] sm:$0xf]
        %v3159 = vld [vmem:[%s3143 + $0x3c] sm:$0xf]
        %s3160 = scalar_lea.vmem %s9, 1
        %v3161 = vld [vmem:[%s3160] sm:$0x1]
        %v3163 = vperm.slane %v3161, 0
        %v3181 = vunpack.c.l.b16 %v3144
        %v3182 = vunpack.c.l.b16 %v3145
        %v3183 = vunpack.c.l.b16 %v3146
        %v3184 = vunpack.c.l.b16 %v3147
        %v3185 = vunpack.c.l.b16 %v3148
        %v3186 = vunpack.c.l.b16 %v3149
        %v3187 = vunpack.c.l.b16 %v3150
        %v3188 = vunpack.c.l.b16 %v3151
        %v3189 = vunpack.c.l.b16 %v3152
        %v3190 = vunpack.c.l.b16 %v3153
        %v3191 = vunpack.c.l.b16 %v3154
        %v3192 = vunpack.c.l.b16 %v3155
        %v3193 = vunpack.c.l.b16 %v3156
        %v3194 = vunpack.c.l.b16 %v3157
        %v3195 = vunpack.c.l.b16 %v3158
        %v3196 = vunpack.c.l.b16 %v3159
        %v3197 = vpack.c.b16 %v3182, %v3181
        %v3198 = vpack.c.b16 %v3184, %v3183
        %v3199 = vpack.c.b16 %v3186, %v3185
        %v3200 = vpack.c.b16 %v3188, %v3187
        %v3201 = vpack.c.b16 %v3190, %v3189
        %v3202 = vpack.c.b16 %v3192, %v3191
        %v3203 = vpack.c.b16 %v3194, %v3193
        %v3204 = vpack.c.b16 %v3196, %v3195
        %3213 = vmatpush.bf16.msra.mxu0 %v3204
        %3214 = vmatpush.bf16.msra.mxu0 %v3203
        %3215 = vmatpush.bf16.msra.mxu0 %v3202
        %3216 = vmatpush.bf16.msra.mxu0 %v3201
        %3217 = vmatpush.bf16.msra.mxu0 %v3200
        %3218 = vmatpush.bf16.msra.mxu0 %v3199
        %3219 = vmatpush.bf16.msra.mxu0 %v3198
        %3220 = vmatpush.bf16.msra.mxu0 %v3197
        %3221 = vmatmul.bf16.gmra.mxu0 %v3142
        %v3222 = vpop.f32.mrf.mxu0
        %v3223 = vadd.f32 %v3163, %v3222
        %v3224 = vpop.f32.mrf.mxu0
        %v3225 = vadd.f32 %v3163, %v3224
        %3226 = vdwg.mxu0
        %v3227 = vadd.f32 %v2902, %v3223
        %v3228 = vadd.f32 %v2904, %v3225
        %s3229 = scalar_lea.vmem %s405, 16 [#allocation2]
        %3230 = vst [vmem:[%s3229] sm:$0xff] %v3227
        %3231 = vst [vmem:[%s3229 + $0x8] sm:$0xff] %v3228
        %v3232 = vpack.c.bf16 %v2343, %v2342
        %s3233 = scalar_lea.vmem %s5, 128
        %v3234 = vld [vmem:[%s3233] sm:$0xf]
        %v3235 = vld [vmem:[%s3233 + $0x4] sm:$0xf]
        %v3236 = vld [vmem:[%s3233 + $0x8] sm:$0xf]
        %v3237 = vld [vmem:[%s3233 + $0xc] sm:$0xf]
        %v3238 = vld [vmem:[%s3233 + $0x10] sm:$0xf]
        %v3239 = vld [vmem:[%s3233 + $0x14] sm:$0xf]
        %v3240 = vld [vmem:[%s3233 + $0x18] sm:$0xf]
        %v3241 = vld [vmem:[%s3233 + $0x1c] sm:$0xf]
        %v3242 = vld [vmem:[%s3233 + $0x20] sm:$0xf]
        %v3243 = vld [vmem:[%s3233 + $0x24] sm:$0xf]
        %v3244 = vld [vmem:[%s3233 + $0x28] sm:$0xf]
        %v3245 = vld [vmem:[%s3233 + $0x2c] sm:$0xf]
        %v3246 = vld [vmem:[%s3233 + $0x30] sm:$0xf]
        %v3247 = vld [vmem:[%s3233 + $0x34] sm:$0xf]
        %v3248 = vld [vmem:[%s3233 + $0x38] sm:$0xf]
        %v3249 = vld [vmem:[%s3233 + $0x3c] sm:$0xf]
        %s3250 = scalar_lea.vmem %s6, 2
        %v3251 = vld [vmem:[%s3250] sm:$0x1]
        %v3253 = vperm.slane %v3251, 0
        %v3271 = vunpack.c.l.b16 %v3234
        %v3272 = vunpack.c.l.b16 %v3235
        %v3273 = vunpack.c.l.b16 %v3236
        %v3274 = vunpack.c.l.b16 %v3237
        %v3275 = vunpack.c.l.b16 %v3238
        %v3276 = vunpack.c.l.b16 %v3239
        %v3277 = vunpack.c.l.b16 %v3240
        %v3278 = vunpack.c.l.b16 %v3241
        %v3279 = vunpack.c.l.b16 %v3242
        %v3280 = vunpack.c.l.b16 %v3243
        %v3281 = vunpack.c.l.b16 %v3244
        %v3282 = vunpack.c.l.b16 %v3245
        %v3283 = vunpack.c.l.b16 %v3246
        %v3284 = vunpack.c.l.b16 %v3247
        %v3285 = vunpack.c.l.b16 %v3248
        %v3286 = vunpack.c.l.b16 %v3249
        %v3287 = vpack.c.b16 %v3272, %v3271
        %v3288 = vpack.c.b16 %v3274, %v3273
        %v3289 = vpack.c.b16 %v3276, %v3275
        %v3290 = vpack.c.b16 %v3278, %v3277
        %v3291 = vpack.c.b16 %v3280, %v3279
        %v3292 = vpack.c.b16 %v3282, %v3281
        %v3293 = vpack.c.b16 %v3284, %v3283
        %v3294 = vpack.c.b16 %v3286, %v3285
        %3303 = vmatpush.bf16.msra.mxu0 %v3294
        %3304 = vmatpush.bf16.msra.mxu0 %v3293
        %3305 = vmatpush.bf16.msra.mxu0 %v3292
        %3306 = vmatpush.bf16.msra.mxu0 %v3291
        %3307 = vmatpush.bf16.msra.mxu0 %v3290
        %3308 = vmatpush.bf16.msra.mxu0 %v3289
        %3309 = vmatpush.bf16.msra.mxu0 %v3288
        %3310 = vmatpush.bf16.msra.mxu0 %v3287
        %3311 = vmatmul.bf16.gmra.mxu0 %v3232
        %v3312 = vpop.f32.mrf.mxu0
        %v3313 = vadd.f32 %v3253, %v3312
        %v3314 = vpop.f32.mrf.mxu0
        %v3315 = vadd.f32 %v3253, %v3314
        %3316 = vdwg.mxu0
        %v3317 = vmax.f32 %v3313, 0.0
        %v3318 = vmax.f32 %v3315, 0.0
        %v3319 = vld [vmem:[%s3] sm:$0xff]
        %v3320 = vld [vmem:[%s3 + $0x8] sm:$0xff]
        %v3322 = vsel %vm939, %v3319, 0
        %v3325 = vsel %vm939, %v3320, 0
        %3327 = vmatpush.msra.mxu0 0.0
        %3328 = vmatpush.msra.mxu0 0.0
        %3329 = vmatpush.msra.mxu0 0.0
        %3330 = vmatpush.msra.mxu0 0.0
        %3331 = vmatpush.msra.mxu0 0.0
        %3332 = vmatpush.msra.mxu0 0.0
        %3333 = vmatpush.msra.mxu0 0.0
        %3334 = vmatpush.msra.mxu0 0.0
        %3335 = vmatpush.msra.mxu0 0.0
        %3336 = vmatpush.msra.mxu0 0.0
        %3337 = vmatpush.msra.mxu0 0.0
        %3338 = vmatpush.msra.mxu0 0.0
        %3339 = vmatpush.msra.mxu0 0.0
        %3340 = vmatpush.msra.mxu0 0.0
        %3341 = vmatpush.msra.mxu0 %v3318
        %3342 = vmatpush.msra.mxu0 %v3317
        %3343 = vmatmul.f32.gmra.mxu0 %v3322
        %v3344 = vpop.f32.mrf.mxu0
        %v3345 = vadd.f32 0.0, %v3344
        %3346 = vmatmul.f32.gmra.mxu0 %v3325
        %v3347 = vpop.f32.mrf.mxu0
        %v3348 = vadd.f32 0.0, %v3347
        %3349 = vdwg.mxu0
        %3350 = vrot.lane.b32.xlu0 %v3345, 16
        %v3351 = vpop.permute.xlu0 %3350
        %3352 = vrot.lane.b32.xlu0 %v3348, 16
        %v3353 = vpop.permute.xlu0 %3352
        %s3354 = scalar_lea.vmem %s7, 50
        %v3355 = vld [vmem:[%s3354] sm:$0x1]
        %v3357 = vperm.slane %v3355, 0
        %v3359 = vmul.f32 %v3351, %v3357
        %v3360 = vmul.f32 %v3353, %v3357
        %3361 = vrot.lane.b32.xlu0 %v3345, 8
        %v3362 = vpop.permute.xlu0 %3361
        %3363 = vrot.lane.b32.xlu0 %v3348, 8
        %v3364 = vpop.permute.xlu0 %3363
        %s3365 = scalar_lea.vmem %s7, 51
        %v3366 = vld [vmem:[%s3365] sm:$0x1]
        %v3368 = vperm.slane %v3366, 0
        %v3370 = vmul.f32 %v3362, %v3368
        %v3371 = vmul.f32 %v3364, %v3368
        %v3372 = vadd.f32 %v3359, %v3370
        %v3373 = vadd.f32 %v3360, %v3371
        %s3374 = scalar_lea.vmem %s7, 52
        %v3375 = vld [vmem:[%s3374] sm:$0x1]
        %v3377 = vperm.slane %v3375, 0
        %v3379 = vmul.f32 %v3345, %v3377
        %v3380 = vmul.f32 %v3348, %v3377
        %v3381 = vadd.f32 %v3372, %v3379
        %v3382 = vadd.f32 %v3373, %v3380
        %3383 = vrot.lane.b32.xlu0 %v3345, 120
        %v3384 = vpop.permute.xlu0 %3383
        %3385 = vrot.lane.b32.xlu0 %v3348, 120
        %v3386 = vpop.permute.xlu0 %3385
        %s3387 = scalar_lea.vmem %s7, 53
        %v3388 = vld [vmem:[%s3387] sm:$0x1]
        %v3390 = vperm.slane %v3388, 0
        %v3392 = vmul.f32 %v3384, %v3390
        %v3393 = vmul.f32 %v3386, %v3390
        %v3394 = vadd.f32 %v3381, %v3392
        %v3395 = vadd.f32 %v3382, %v3393
        %3396 = vrot.lane.b32.xlu0 %v3345, 112
        %v3397 = vpop.permute.xlu0 %3396
        %3398 = vrot.lane.b32.xlu0 %v3348, 112
        %v3399 = vpop.permute.xlu0 %3398
        %s3400 = scalar_lea.vmem %s7, 54
        %v3401 = vld [vmem:[%s3400] sm:$0x1]
        %v3403 = vperm.slane %v3401, 0
        %v3405 = vmul.f32 %v3397, %v3403
        %v3406 = vmul.f32 %v3399, %v3403
        %v3407 = vadd.f32 %v3394, %v3405
        %v3408 = vadd.f32 %v3395, %v3406
        %v3409 = vld [vmem:[%s936] sm:$0xff]
        %v3410 = vld [vmem:[%s936 + $0x8] sm:$0xff]
        %v3412 = vsel %vm939, %v3409, 0
        %v3415 = vsel %vm939, %v3410, 0
        %3417 = vmatpush.msra.mxu0 0.0
        %3418 = vmatpush.msra.mxu0 0.0
        %3419 = vmatpush.msra.mxu0 0.0
        %3420 = vmatpush.msra.mxu0 0.0
        %3421 = vmatpush.msra.mxu0 0.0
        %3422 = vmatpush.msra.mxu0 0.0
        %3423 = vmatpush.msra.mxu0 0.0
        %3424 = vmatpush.msra.mxu0 0.0
        %3425 = vmatpush.msra.mxu0 0.0
        %3426 = vmatpush.msra.mxu0 0.0
        %3427 = vmatpush.msra.mxu0 0.0
        %3428 = vmatpush.msra.mxu0 0.0
        %3429 = vmatpush.msra.mxu0 0.0
        %3430 = vmatpush.msra.mxu0 0.0
        %3431 = vmatpush.msra.mxu0 %v3318
        %3432 = vmatpush.msra.mxu0 %v3317
        %3433 = vmatmul.f32.gmra.mxu0 %v3412
        %v3434 = vpop.f32.mrf.mxu0
        %v3435 = vadd.f32 0.0, %v3434
        %3436 = vmatmul.f32.gmra.mxu0 %v3415
        %v3437 = vpop.f32.mrf.mxu0
        %v3438 = vadd.f32 0.0, %v3437
        %3439 = vdwg.mxu0
        %3440 = vrot.lane.b32.xlu0 %v3435, 16
        %v3441 = vpop.permute.xlu0 %3440
        %3442 = vrot.lane.b32.xlu0 %v3438, 16
        %v3443 = vpop.permute.xlu0 %3442
        %s3444 = scalar_lea.vmem %s7, 55
        %v3445 = vld [vmem:[%s3444] sm:$0x1]
        %v3447 = vperm.slane %v3445, 0
        %v3449 = vmul.f32 %v3441, %v3447
        %v3450 = vmul.f32 %v3443, %v3447
        %v3451 = vadd.f32 %v3407, %v3449
        %v3452 = vadd.f32 %v3408, %v3450
        %3453 = vrot.lane.b32.xlu0 %v3435, 8
        %v3454 = vpop.permute.xlu0 %3453
        %3455 = vrot.lane.b32.xlu0 %v3438, 8
        %v3456 = vpop.permute.xlu0 %3455
        %s3457 = scalar_lea.vmem %s7, 56
        %v3458 = vld [vmem:[%s3457] sm:$0x1]
        %v3460 = vperm.slane %v3458, 0
        %v3462 = vmul.f32 %v3454, %v3460
        %v3463 = vmul.f32 %v3456, %v3460
        %v3464 = vadd.f32 %v3451, %v3462
        %v3465 = vadd.f32 %v3452, %v3463
        %s3466 = scalar_lea.vmem %s7, 57
        %v3467 = vld [vmem:[%s3466] sm:$0x1]
        %v3469 = vperm.slane %v3467, 0
        %v3471 = vmul.f32 %v3435, %v3469
        %v3472 = vmul.f32 %v3438, %v3469
        %v3473 = vadd.f32 %v3464, %v3471
        %v3474 = vadd.f32 %v3465, %v3472
        %3475 = vrot.lane.b32.xlu0 %v3435, 120
        %v3476 = vpop.permute.xlu0 %3475
        %3477 = vrot.lane.b32.xlu0 %v3438, 120
        %v3478 = vpop.permute.xlu0 %3477
        %s3479 = scalar_lea.vmem %s7, 58
        %v3480 = vld [vmem:[%s3479] sm:$0x1]
        %v3482 = vperm.slane %v3480, 0
        %v3484 = vmul.f32 %v3476, %v3482
        %v3485 = vmul.f32 %v3478, %v3482
        %v3486 = vadd.f32 %v3473, %v3484
        %v3487 = vadd.f32 %v3474, %v3485
        %3488 = vrot.lane.b32.xlu0 %v3435, 112
        %v3489 = vpop.permute.xlu0 %3488
        %3490 = vrot.lane.b32.xlu0 %v3438, 112
        %v3491 = vpop.permute.xlu0 %3490
        %s3492 = scalar_lea.vmem %s7, 59
        %v3493 = vld [vmem:[%s3492] sm:$0x1]
        %v3495 = vperm.slane %v3493, 0
        %v3497 = vmul.f32 %v3489, %v3495
        %v3498 = vmul.f32 %v3491, %v3495
        %v3499 = vadd.f32 %v3486, %v3497
        %v3500 = vadd.f32 %v3487, %v3498
        %3501 = vrot.lane.b32.xlu0 %v3317, 16
        %v3502 = vpop.permute.xlu0 %3501
        %3503 = vrot.lane.b32.xlu0 %v3318, 16
        %v3504 = vpop.permute.xlu0 %3503
        %s3505 = scalar_lea.vmem %s7, 60
        %v3506 = vld [vmem:[%s3505] sm:$0x1]
        %v3508 = vperm.slane %v3506, 0
        %v3510 = vmul.f32 %v3502, %v3508
        %v3511 = vmul.f32 %v3504, %v3508
        %v3512 = vadd.f32 %v3499, %v3510
        %v3513 = vadd.f32 %v3500, %v3511
        %3514 = vrot.lane.b32.xlu0 %v3317, 8
        %v3515 = vpop.permute.xlu0 %3514
        %3516 = vrot.lane.b32.xlu0 %v3318, 8
        %v3517 = vpop.permute.xlu0 %3516
        %s3518 = scalar_lea.vmem %s7, 61
        %v3519 = vld [vmem:[%s3518] sm:$0x1]
        %v3521 = vperm.slane %v3519, 0
        %v3523 = vmul.f32 %v3515, %v3521
        %v3524 = vmul.f32 %v3517, %v3521
        %v3525 = vadd.f32 %v3512, %v3523
        %v3526 = vadd.f32 %v3513, %v3524
        %s3527 = scalar_lea.vmem %s7, 62
        %v3528 = vld [vmem:[%s3527] sm:$0x1]
        %v3530 = vperm.slane %v3528, 0
        %v3532 = vmul.f32 %v3317, %v3530
        %v3533 = vmul.f32 %v3318, %v3530
        %v3534 = vadd.f32 %v3525, %v3532
        %v3535 = vadd.f32 %v3526, %v3533
        %3536 = vrot.lane.b32.xlu0 %v3317, 120
        %v3537 = vpop.permute.xlu0 %3536
        %3538 = vrot.lane.b32.xlu0 %v3318, 120
        %v3539 = vpop.permute.xlu0 %3538
        %s3540 = scalar_lea.vmem %s7, 63
        %v3541 = vld [vmem:[%s3540] sm:$0x1]
        %v3543 = vperm.slane %v3541, 0
        %v3545 = vmul.f32 %v3537, %v3543
        %v3546 = vmul.f32 %v3539, %v3543
        %v3547 = vadd.f32 %v3534, %v3545
        %v3548 = vadd.f32 %v3535, %v3546
        %3549 = vrot.lane.b32.xlu0 %v3317, 112
        %v3550 = vpop.permute.xlu0 %3549
        %3551 = vrot.lane.b32.xlu0 %v3318, 112
        %v3552 = vpop.permute.xlu0 %3551
        %s3553 = scalar_lea.vmem %s7, 64
        %v3554 = vld [vmem:[%s3553] sm:$0x1]
        %v3556 = vperm.slane %v3554, 0
        %v3558 = vmul.f32 %v3550, %v3556
        %v3559 = vmul.f32 %v3552, %v3556
        %v3560 = vadd.f32 %v3547, %v3558
        %v3561 = vadd.f32 %v3548, %v3559
        %v3562 = vld [vmem:[%s1129] sm:$0xff]
        %v3563 = vld [vmem:[%s1129 + $0x8] sm:$0xff]
        %v3565 = vsel %vm939, %v3562, 0
        %v3568 = vsel %vm939, %v3563, 0
        %3570 = vmatpush.msra.mxu0 0.0
        %3571 = vmatpush.msra.mxu0 0.0
        %3572 = vmatpush.msra.mxu0 0.0
        %3573 = vmatpush.msra.mxu0 0.0
        %3574 = vmatpush.msra.mxu0 0.0
        %3575 = vmatpush.msra.mxu0 0.0
        %3576 = vmatpush.msra.mxu0 0.0
        %3577 = vmatpush.msra.mxu0 0.0
        %3578 = vmatpush.msra.mxu0 0.0
        %3579 = vmatpush.msra.mxu0 0.0
        %3580 = vmatpush.msra.mxu0 0.0
        %3581 = vmatpush.msra.mxu0 0.0
        %3582 = vmatpush.msra.mxu0 0.0
        %3583 = vmatpush.msra.mxu0 0.0
        %3584 = vmatpush.msra.mxu0 %v3318
        %3585 = vmatpush.msra.mxu0 %v3317
        %3586 = vmatmul.f32.gmra.mxu0 %v3565
        %v3587 = vpop.f32.mrf.mxu0
        %v3588 = vadd.f32 0.0, %v3587
        %3589 = vmatmul.f32.gmra.mxu0 %v3568
        %v3590 = vpop.f32.mrf.mxu0
        %v3591 = vadd.f32 0.0, %v3590
        %3592 = vdwg.mxu0
        %3593 = vrot.lane.b32.xlu0 %v3588, 16
        %v3594 = vpop.permute.xlu0 %3593
        %3595 = vrot.lane.b32.xlu0 %v3591, 16
        %v3596 = vpop.permute.xlu0 %3595
        %s3597 = scalar_lea.vmem %s7, 65
        %v3598 = vld [vmem:[%s3597] sm:$0x1]
        %v3600 = vperm.slane %v3598, 0
        %v3602 = vmul.f32 %v3594, %v3600
        %v3603 = vmul.f32 %v3596, %v3600
        %v3604 = vadd.f32 %v3560, %v3602
        %v3605 = vadd.f32 %v3561, %v3603
        %3606 = vrot.lane.b32.xlu0 %v3588, 8
        %v3607 = vpop.permute.xlu0 %3606
        %3608 = vrot.lane.b32.xlu0 %v3591, 8
        %v3609 = vpop.permute.xlu0 %3608
        %s3610 = scalar_lea.vmem %s7, 66
        %v3611 = vld [vmem:[%s3610] sm:$0x1]
        %v3613 = vperm.slane %v3611, 0
        %v3615 = vmul.f32 %v3607, %v3613
        %v3616 = vmul.f32 %v3609, %v3613
        %v3617 = vadd.f32 %v3604, %v3615
        %v3618 = vadd.f32 %v3605, %v3616
        %s3619 = scalar_lea.vmem %s7, 67
        %v3620 = vld [vmem:[%s3619] sm:$0x1]
        %v3622 = vperm.slane %v3620, 0
        %v3624 = vmul.f32 %v3588, %v3622
        %v3625 = vmul.f32 %v3591, %v3622
        %v3626 = vadd.f32 %v3617, %v3624
        %v3627 = vadd.f32 %v3618, %v3625
        %3628 = vrot.lane.b32.xlu0 %v3588, 120
        %v3629 = vpop.permute.xlu0 %3628
        %3630 = vrot.lane.b32.xlu0 %v3591, 120
        %v3631 = vpop.permute.xlu0 %3630
        %s3632 = scalar_lea.vmem %s7, 68
        %v3633 = vld [vmem:[%s3632] sm:$0x1]
        %v3635 = vperm.slane %v3633, 0
        %v3637 = vmul.f32 %v3629, %v3635
        %v3638 = vmul.f32 %v3631, %v3635
        %v3639 = vadd.f32 %v3626, %v3637
        %v3640 = vadd.f32 %v3627, %v3638
        %3641 = vrot.lane.b32.xlu0 %v3588, 112
        %v3642 = vpop.permute.xlu0 %3641
        %3643 = vrot.lane.b32.xlu0 %v3591, 112
        %v3644 = vpop.permute.xlu0 %3643
        %s3645 = scalar_lea.vmem %s7, 69
        %v3646 = vld [vmem:[%s3645] sm:$0x1]
        %v3648 = vperm.slane %v3646, 0
        %v3650 = vmul.f32 %v3642, %v3648
        %v3651 = vmul.f32 %v3644, %v3648
        %v3652 = vadd.f32 %v3639, %v3650
        %v3653 = vadd.f32 %v3640, %v3651
        %v3654 = vld [vmem:[%s1698] sm:$0xff]
        %v3655 = vld [vmem:[%s1698 + $0x8] sm:$0xff]
        %v3657 = vsel %vm939, %v3654, 0
        %v3660 = vsel %vm939, %v3655, 0
        %3662 = vmatpush.msra.mxu0 0.0
        %3663 = vmatpush.msra.mxu0 0.0
        %3664 = vmatpush.msra.mxu0 0.0
        %3665 = vmatpush.msra.mxu0 0.0
        %3666 = vmatpush.msra.mxu0 0.0
        %3667 = vmatpush.msra.mxu0 0.0
        %3668 = vmatpush.msra.mxu0 0.0
        %3669 = vmatpush.msra.mxu0 0.0
        %3670 = vmatpush.msra.mxu0 0.0
        %3671 = vmatpush.msra.mxu0 0.0
        %3672 = vmatpush.msra.mxu0 0.0
        %3673 = vmatpush.msra.mxu0 0.0
        %3674 = vmatpush.msra.mxu0 0.0
        %3675 = vmatpush.msra.mxu0 0.0
        %3676 = vmatpush.msra.mxu0 %v3318
        %3677 = vmatpush.msra.mxu0 %v3317
        %3678 = vmatmul.f32.gmra.mxu0 %v3657
        %v3679 = vpop.f32.mrf.mxu0
        %v3680 = vadd.f32 0.0, %v3679
        %3681 = vmatmul.f32.gmra.mxu0 %v3660
        %v3682 = vpop.f32.mrf.mxu0
        %v3683 = vadd.f32 0.0, %v3682
        %3684 = vdwg.mxu0
        %3685 = vrot.lane.b32.xlu0 %v3680, 16
        %v3686 = vpop.permute.xlu0 %3685
        %3687 = vrot.lane.b32.xlu0 %v3683, 16
        %v3688 = vpop.permute.xlu0 %3687
        %s3689 = scalar_lea.vmem %s7, 70
        %v3690 = vld [vmem:[%s3689] sm:$0x1]
        %v3692 = vperm.slane %v3690, 0
        %v3694 = vmul.f32 %v3686, %v3692
        %v3695 = vmul.f32 %v3688, %v3692
        %v3696 = vadd.f32 %v3652, %v3694
        %v3697 = vadd.f32 %v3653, %v3695
        %3698 = vrot.lane.b32.xlu0 %v3680, 8
        %v3699 = vpop.permute.xlu0 %3698
        %3700 = vrot.lane.b32.xlu0 %v3683, 8
        %v3701 = vpop.permute.xlu0 %3700
        %s3702 = scalar_lea.vmem %s7, 71
        %v3703 = vld [vmem:[%s3702] sm:$0x1]
        %v3705 = vperm.slane %v3703, 0
        %v3707 = vmul.f32 %v3699, %v3705
        %v3708 = vmul.f32 %v3701, %v3705
        %v3709 = vadd.f32 %v3696, %v3707
        %v3710 = vadd.f32 %v3697, %v3708
        %s3711 = scalar_lea.vmem %s7, 72
        %v3712 = vld [vmem:[%s3711] sm:$0x1]
        %v3714 = vperm.slane %v3712, 0
        %v3716 = vmul.f32 %v3680, %v3714
        %v3717 = vmul.f32 %v3683, %v3714
        %v3718 = vadd.f32 %v3709, %v3716
        %v3719 = vadd.f32 %v3710, %v3717
        %3720 = vrot.lane.b32.xlu0 %v3680, 120
        %v3721 = vpop.permute.xlu0 %3720
        %3722 = vrot.lane.b32.xlu0 %v3683, 120
        %v3723 = vpop.permute.xlu0 %3722
        %s3724 = scalar_lea.vmem %s7, 73
        %v3725 = vld [vmem:[%s3724] sm:$0x1]
        %v3727 = vperm.slane %v3725, 0
        %v3729 = vmul.f32 %v3721, %v3727
        %v3730 = vmul.f32 %v3723, %v3727
        %v3731 = vadd.f32 %v3718, %v3729
        %v3732 = vadd.f32 %v3719, %v3730
        %3733 = vrot.lane.b32.xlu0 %v3680, 112
        %v3734 = vpop.permute.xlu0 %3733
        %3735 = vrot.lane.b32.xlu0 %v3683, 112
        %v3736 = vpop.permute.xlu0 %3735
        %s3737 = scalar_lea.vmem %s7, 74
        %v3738 = vld [vmem:[%s3737] sm:$0x1]
        %v3740 = vperm.slane %v3738, 0
        %v3742 = vmul.f32 %v3734, %v3740
        %v3743 = vmul.f32 %v3736, %v3740
        %v3744 = vadd.f32 %v3731, %v3742
        %v3745 = vadd.f32 %v3732, %v3743
        %v3746 = vpack.c.bf16 %v3745, %v3744
        %s3747 = scalar_lea.vmem %s8, 128
        %v3748 = vld [vmem:[%s3747] sm:$0xf]
        %v3749 = vld [vmem:[%s3747 + $0x4] sm:$0xf]
        %v3750 = vld [vmem:[%s3747 + $0x8] sm:$0xf]
        %v3751 = vld [vmem:[%s3747 + $0xc] sm:$0xf]
        %v3752 = vld [vmem:[%s3747 + $0x10] sm:$0xf]
        %v3753 = vld [vmem:[%s3747 + $0x14] sm:$0xf]
        %v3754 = vld [vmem:[%s3747 + $0x18] sm:$0xf]
        %v3755 = vld [vmem:[%s3747 + $0x1c] sm:$0xf]
        %v3756 = vld [vmem:[%s3747 + $0x20] sm:$0xf]
        %v3757 = vld [vmem:[%s3747 + $0x24] sm:$0xf]
        %v3758 = vld [vmem:[%s3747 + $0x28] sm:$0xf]
        %v3759 = vld [vmem:[%s3747 + $0x2c] sm:$0xf]
        %v3760 = vld [vmem:[%s3747 + $0x30] sm:$0xf]
        %v3761 = vld [vmem:[%s3747 + $0x34] sm:$0xf]
        %v3762 = vld [vmem:[%s3747 + $0x38] sm:$0xf]
        %v3763 = vld [vmem:[%s3747 + $0x3c] sm:$0xf]
        %s3764 = scalar_lea.vmem %s9, 2
        %v3765 = vld [vmem:[%s3764] sm:$0x1]
        %v3767 = vperm.slane %v3765, 0
        %v3785 = vunpack.c.l.b16 %v3748
        %v3786 = vunpack.c.l.b16 %v3749
        %v3787 = vunpack.c.l.b16 %v3750
        %v3788 = vunpack.c.l.b16 %v3751
        %v3789 = vunpack.c.l.b16 %v3752
        %v3790 = vunpack.c.l.b16 %v3753
        %v3791 = vunpack.c.l.b16 %v3754
        %v3792 = vunpack.c.l.b16 %v3755
        %v3793 = vunpack.c.l.b16 %v3756
        %v3794 = vunpack.c.l.b16 %v3757
        %v3795 = vunpack.c.l.b16 %v3758
        %v3796 = vunpack.c.l.b16 %v3759
        %v3797 = vunpack.c.l.b16 %v3760
        %v3798 = vunpack.c.l.b16 %v3761
        %v3799 = vunpack.c.l.b16 %v3762
        %v3800 = vunpack.c.l.b16 %v3763
        %v3801 = vpack.c.b16 %v3786, %v3785
        %v3802 = vpack.c.b16 %v3788, %v3787
        %v3803 = vpack.c.b16 %v3790, %v3789
        %v3804 = vpack.c.b16 %v3792, %v3791
        %v3805 = vpack.c.b16 %v3794, %v3793
        %v3806 = vpack.c.b16 %v3796, %v3795
        %v3807 = vpack.c.b16 %v3798, %v3797
        %v3808 = vpack.c.b16 %v3800, %v3799
        %3817 = vmatpush.bf16.msra.mxu0 %v3808
        %3818 = vmatpush.bf16.msra.mxu0 %v3807
        %3819 = vmatpush.bf16.msra.mxu0 %v3806
        %3820 = vmatpush.bf16.msra.mxu0 %v3805
        %3821 = vmatpush.bf16.msra.mxu0 %v3804
        %3822 = vmatpush.bf16.msra.mxu0 %v3803
        %3823 = vmatpush.bf16.msra.mxu0 %v3802
        %3824 = vmatpush.bf16.msra.mxu0 %v3801
        %3825 = vmatmul.bf16.gmra.mxu0 %v3746
        %v3826 = vpop.f32.mrf.mxu0
        %v3827 = vadd.f32 %v3767, %v3826
        %v3828 = vpop.f32.mrf.mxu0
        %v3829 = vadd.f32 %v3767, %v3828
        %3830 = vdwg.mxu0
        %v3831 = vpack.c.bf16 %v2246, %v2245
        %s3832 = scalar_lea.vmem %s5, 192
        %v3833 = vld [vmem:[%s3832] sm:$0xf]
        %v3834 = vld [vmem:[%s3832 + $0x4] sm:$0xf]
        %v3835 = vld [vmem:[%s3832 + $0x8] sm:$0xf]
        %v3836 = vld [vmem:[%s3832 + $0xc] sm:$0xf]
        %v3837 = vld [vmem:[%s3832 + $0x10] sm:$0xf]
        %v3838 = vld [vmem:[%s3832 + $0x14] sm:$0xf]
        %v3839 = vld [vmem:[%s3832 + $0x18] sm:$0xf]
        %v3840 = vld [vmem:[%s3832 + $0x1c] sm:$0xf]
        %v3841 = vld [vmem:[%s3832 + $0x20] sm:$0xf]
        %v3842 = vld [vmem:[%s3832 + $0x24] sm:$0xf]
        %v3843 = vld [vmem:[%s3832 + $0x28] sm:$0xf]
        %v3844 = vld [vmem:[%s3832 + $0x2c] sm:$0xf]
        %v3845 = vld [vmem:[%s3832 + $0x30] sm:$0xf]
        %v3846 = vld [vmem:[%s3832 + $0x34] sm:$0xf]
        %v3847 = vld [vmem:[%s3832 + $0x38] sm:$0xf]
        %v3848 = vld [vmem:[%s3832 + $0x3c] sm:$0xf]
        %s3849 = scalar_lea.vmem %s6, 3
        %v3850 = vld [vmem:[%s3849] sm:$0x1]
        %v3852 = vperm.slane %v3850, 0
        %v3870 = vunpack.c.l.b16 %v3833
        %v3871 = vunpack.c.l.b16 %v3834
        %v3872 = vunpack.c.l.b16 %v3835
        %v3873 = vunpack.c.l.b16 %v3836
        %v3874 = vunpack.c.l.b16 %v3837
        %v3875 = vunpack.c.l.b16 %v3838
        %v3876 = vunpack.c.l.b16 %v3839
        %v3877 = vunpack.c.l.b16 %v3840
        %v3878 = vunpack.c.l.b16 %v3841
        %v3879 = vunpack.c.l.b16 %v3842
        %v3880 = vunpack.c.l.b16 %v3843
        %v3881 = vunpack.c.l.b16 %v3844
        %v3882 = vunpack.c.l.b16 %v3845
        %v3883 = vunpack.c.l.b16 %v3846
        %v3884 = vunpack.c.l.b16 %v3847
        %v3885 = vunpack.c.l.b16 %v3848
        %v3886 = vpack.c.b16 %v3871, %v3870
        %v3887 = vpack.c.b16 %v3873, %v3872
        %v3888 = vpack.c.b16 %v3875, %v3874
        %v3889 = vpack.c.b16 %v3877, %v3876
        %v3890 = vpack.c.b16 %v3879, %v3878
        %v3891 = vpack.c.b16 %v3881, %v3880
        %v3892 = vpack.c.b16 %v3883, %v3882
        %v3893 = vpack.c.b16 %v3885, %v3884
        %3902 = vmatpush.bf16.msra.mxu0 %v3893
        %3903 = vmatpush.bf16.msra.mxu0 %v3892
        %3904 = vmatpush.bf16.msra.mxu0 %v3891
        %3905 = vmatpush.bf16.msra.mxu0 %v3890
        %3906 = vmatpush.bf16.msra.mxu0 %v3889
        %3907 = vmatpush.bf16.msra.mxu0 %v3888
        %3908 = vmatpush.bf16.msra.mxu0 %v3887
        %3909 = vmatpush.bf16.msra.mxu0 %v3886
        %3910 = vmatmul.bf16.gmra.mxu0 %v3831
        %v3911 = vpop.f32.mrf.mxu0
        %v3912 = vadd.f32 %v3852, %v3911
        %v3913 = vpop.f32.mrf.mxu0
        %v3914 = vadd.f32 %v3852, %v3913
        %3915 = vdwg.mxu0
        %v3916 = vmax.f32 %v3912, 0.0
        %v3917 = vmax.f32 %v3914, 0.0
        %3918 = vmatpush.msra.mxu0 0.0
        %3919 = vmatpush.msra.mxu0 0.0
        %3920 = vmatpush.msra.mxu0 0.0
        %3921 = vmatpush.msra.mxu0 0.0
        %3922 = vmatpush.msra.mxu0 0.0
        %3923 = vmatpush.msra.mxu0 0.0
        %3924 = vmatpush.msra.mxu0 0.0
        %3925 = vmatpush.msra.mxu0 0.0
        %3926 = vmatpush.msra.mxu0 0.0
        %3927 = vmatpush.msra.mxu0 0.0
        %3928 = vmatpush.msra.mxu0 0.0
        %3929 = vmatpush.msra.mxu0 0.0
        %3930 = vmatpush.msra.mxu0 0.0
        %3931 = vmatpush.msra.mxu0 0.0
        %3932 = vmatpush.msra.mxu0 %v3917
        %3933 = vmatpush.msra.mxu0 %v3916
        %3934 = vmatmul.f32.gmra.mxu0 %v3412
        %v3935 = vpop.f32.mrf.mxu0
        %v3936 = vadd.f32 0.0, %v3935
        %3937 = vmatmul.f32.gmra.mxu0 %v3415
        %v3938 = vpop.f32.mrf.mxu0
        %v3939 = vadd.f32 0.0, %v3938
        %3940 = vdwg.mxu0
        %3941 = vrot.lane.b32.xlu0 %v3936, 8
        %v3942 = vpop.permute.xlu0 %3941
        %3943 = vrot.lane.b32.xlu0 %v3939, 8
        %v3944 = vpop.permute.xlu0 %3943
        %s3945 = scalar_lea.vmem %s7, 81
        %v3946 = vld [vmem:[%s3945] sm:$0x1]
        %v3948 = vperm.slane %v3946, 0
        %v3950 = vmul.f32 %v3942, %v3948
        %v3951 = vmul.f32 %v3944, %v3948
        %s3952 = scalar_lea.vmem %s7, 82
        %v3953 = vld [vmem:[%s3952] sm:$0x1]
        %v3955 = vperm.slane %v3953, 0
        %v3957 = vmul.f32 %v3936, %v3955
        %v3958 = vmul.f32 %v3939, %v3955
        %v3959 = vadd.f32 %v3950, %v3957
        %v3960 = vadd.f32 %v3951, %v3958
        %3961 = vrot.lane.b32.xlu0 %v3936, 120
        %v3962 = vpop.permute.xlu0 %3961
        %3963 = vrot.lane.b32.xlu0 %v3939, 120
        %v3964 = vpop.permute.xlu0 %3963
        %s3965 = scalar_lea.vmem %s7, 83
        %v3966 = vld [vmem:[%s3965] sm:$0x1]
        %v3968 = vperm.slane %v3966, 0
        %v3970 = vmul.f32 %v3962, %v3968
        %v3971 = vmul.f32 %v3964, %v3968
        %v3972 = vadd.f32 %v3959, %v3970
        %v3973 = vadd.f32 %v3960, %v3971
        %3974 = vrot.lane.b32.xlu0 %v3916, 8
        %v3975 = vpop.permute.xlu0 %3974
        %3976 = vrot.lane.b32.xlu0 %v3917, 8
        %v3977 = vpop.permute.xlu0 %3976
        %s3978 = scalar_lea.vmem %s7, 86
        %v3979 = vld [vmem:[%s3978] sm:$0x1]
        %v3981 = vperm.slane %v3979, 0
        %v3983 = vmul.f32 %v3975, %v3981
        %v3984 = vmul.f32 %v3977, %v3981
        %v3985 = vadd.f32 %v3972, %v3983
        %v3986 = vadd.f32 %v3973, %v3984
        %s3987 = scalar_lea.vmem %s7, 87
        %v3988 = vld [vmem:[%s3987] sm:$0x1]
        %v3990 = vperm.slane %v3988, 0
        %v3992 = vmul.f32 %v3916, %v3990
        %v3993 = vmul.f32 %v3917, %v3990
        %v3994 = vadd.f32 %v3985, %v3992
        %v3995 = vadd.f32 %v3986, %v3993
        %3996 = vrot.lane.b32.xlu0 %v3916, 120
        %v3997 = vpop.permute.xlu0 %3996
        %3998 = vrot.lane.b32.xlu0 %v3917, 120
        %v3999 = vpop.permute.xlu0 %3998
        %s4000 = scalar_lea.vmem %s7, 88
        %v4001 = vld [vmem:[%s4000] sm:$0x1]
        %v4003 = vperm.slane %v4001, 0
        %v4005 = vmul.f32 %v3997, %v4003
        %v4006 = vmul.f32 %v3999, %v4003
        %v4007 = vadd.f32 %v3994, %v4005
        %v4008 = vadd.f32 %v3995, %v4006
        %4009 = vmatpush.msra.mxu0 0.0
        %4010 = vmatpush.msra.mxu0 0.0
        %4011 = vmatpush.msra.mxu0 0.0
        %4012 = vmatpush.msra.mxu0 0.0
        %4013 = vmatpush.msra.mxu0 0.0
        %4014 = vmatpush.msra.mxu0 0.0
        %4015 = vmatpush.msra.mxu0 0.0
        %4016 = vmatpush.msra.mxu0 0.0
        %4017 = vmatpush.msra.mxu0 0.0
        %4018 = vmatpush.msra.mxu0 0.0
        %4019 = vmatpush.msra.mxu0 0.0
        %4020 = vmatpush.msra.mxu0 0.0
        %4021 = vmatpush.msra.mxu0 0.0
        %4022 = vmatpush.msra.mxu0 0.0
        %4023 = vmatpush.msra.mxu0 %v3917
        %4024 = vmatpush.msra.mxu0 %v3916
        %4025 = vmatmul.f32.gmra.mxu0 %v3565
        %v4026 = vpop.f32.mrf.mxu0
        %v4027 = vadd.f32 0.0, %v4026
        %4028 = vmatmul.f32.gmra.mxu0 %v3568
        %v4029 = vpop.f32.mrf.mxu0
        %v4030 = vadd.f32 0.0, %v4029
        %4031 = vdwg.mxu0
        %4032 = vrot.lane.b32.xlu0 %v4027, 8
        %v4033 = vpop.permute.xlu0 %4032
        %4034 = vrot.lane.b32.xlu0 %v4030, 8
        %v4035 = vpop.permute.xlu0 %4034
        %s4036 = scalar_lea.vmem %s7, 91
        %v4037 = vld [vmem:[%s4036] sm:$0x1]
        %v4039 = vperm.slane %v4037, 0
        %v4041 = vmul.f32 %v4033, %v4039
        %v4042 = vmul.f32 %v4035, %v4039
        %v4043 = vadd.f32 %v4007, %v4041
        %v4044 = vadd.f32 %v4008, %v4042
        %s4045 = scalar_lea.vmem %s7, 92
        %v4046 = vld [vmem:[%s4045] sm:$0x1]
        %v4048 = vperm.slane %v4046, 0
        %v4050 = vmul.f32 %v4027, %v4048
        %v4051 = vmul.f32 %v4030, %v4048
        %v4052 = vadd.f32 %v4043, %v4050
        %v4053 = vadd.f32 %v4044, %v4051
        %4054 = vrot.lane.b32.xlu0 %v4027, 120
        %v4055 = vpop.permute.xlu0 %4054
        %4056 = vrot.lane.b32.xlu0 %v4030, 120
        %v4057 = vpop.permute.xlu0 %4056
        %s4058 = scalar_lea.vmem %s7, 93
        %v4059 = vld [vmem:[%s4058] sm:$0x1]
        %v4061 = vperm.slane %v4059, 0
        %v4063 = vmul.f32 %v4055, %v4061
        %v4064 = vmul.f32 %v4057, %v4061
        %v4065 = vadd.f32 %v4052, %v4063
        %v4066 = vadd.f32 %v4053, %v4064
        %v4067 = vpack.c.bf16 %v4066, %v4065
        %s4068 = scalar_lea.vmem %s8, 192
        %v4069 = vld [vmem:[%s4068] sm:$0xf]
        %v4070 = vld [vmem:[%s4068 + $0x4] sm:$0xf]
        %v4071 = vld [vmem:[%s4068 + $0x8] sm:$0xf]
        %v4072 = vld [vmem:[%s4068 + $0xc] sm:$0xf]
        %v4073 = vld [vmem:[%s4068 + $0x10] sm:$0xf]
        %v4074 = vld [vmem:[%s4068 + $0x14] sm:$0xf]
        %v4075 = vld [vmem:[%s4068 + $0x18] sm:$0xf]
        %v4076 = vld [vmem:[%s4068 + $0x1c] sm:$0xf]
        %v4077 = vld [vmem:[%s4068 + $0x20] sm:$0xf]
        %v4078 = vld [vmem:[%s4068 + $0x24] sm:$0xf]
        %v4079 = vld [vmem:[%s4068 + $0x28] sm:$0xf]
        %v4080 = vld [vmem:[%s4068 + $0x2c] sm:$0xf]
        %v4081 = vld [vmem:[%s4068 + $0x30] sm:$0xf]
        %v4082 = vld [vmem:[%s4068 + $0x34] sm:$0xf]
        %v4083 = vld [vmem:[%s4068 + $0x38] sm:$0xf]
        %v4084 = vld [vmem:[%s4068 + $0x3c] sm:$0xf]
        %s4085 = scalar_lea.vmem %s9, 3
        %v4086 = vld [vmem:[%s4085] sm:$0x1]
        %v4088 = vperm.slane %v4086, 0
        %v4106 = vunpack.c.l.b16 %v4069
        %v4107 = vunpack.c.l.b16 %v4070
        %v4108 = vunpack.c.l.b16 %v4071
        %v4109 = vunpack.c.l.b16 %v4072
        %v4110 = vunpack.c.l.b16 %v4073
        %v4111 = vunpack.c.l.b16 %v4074
        %v4112 = vunpack.c.l.b16 %v4075
        %v4113 = vunpack.c.l.b16 %v4076
        %v4114 = vunpack.c.l.b16 %v4077
        %v4115 = vunpack.c.l.b16 %v4078
        %v4116 = vunpack.c.l.b16 %v4079
        %v4117 = vunpack.c.l.b16 %v4080
        %v4118 = vunpack.c.l.b16 %v4081
        %v4119 = vunpack.c.l.b16 %v4082
        %v4120 = vunpack.c.l.b16 %v4083
        %v4121 = vunpack.c.l.b16 %v4084
        %v4122 = vpack.c.b16 %v4107, %v4106
        %v4123 = vpack.c.b16 %v4109, %v4108
        %v4124 = vpack.c.b16 %v4111, %v4110
        %v4125 = vpack.c.b16 %v4113, %v4112
        %v4126 = vpack.c.b16 %v4115, %v4114
        %v4127 = vpack.c.b16 %v4117, %v4116
        %v4128 = vpack.c.b16 %v4119, %v4118
        %v4129 = vpack.c.b16 %v4121, %v4120
        %4138 = vmatpush.bf16.msra.mxu0 %v4129
        %4139 = vmatpush.bf16.msra.mxu0 %v4128
        %4140 = vmatpush.bf16.msra.mxu0 %v4127
        %4141 = vmatpush.bf16.msra.mxu0 %v4126
        %4142 = vmatpush.bf16.msra.mxu0 %v4125
        %4143 = vmatpush.bf16.msra.mxu0 %v4124
        %4144 = vmatpush.bf16.msra.mxu0 %v4123
        %4145 = vmatpush.bf16.msra.mxu0 %v4122
        %4146 = vmatmul.bf16.gmra.mxu0 %v4067
        %v4147 = vpop.f32.mrf.mxu0
        %v4148 = vadd.f32 %v4088, %v4147
        %v4149 = vpop.f32.mrf.mxu0
        %v4150 = vadd.f32 %v4088, %v4149
        %4151 = vdwg.mxu0
        %v4152 = vadd.f32 %v3827, %v4148
        %v4153 = vadd.f32 %v3829, %v4150
        %s4154 = scalar_lea.vmem %s405, 32 [#allocation2]
        %4155 = vst [vmem:[%s4154] sm:$0xff] %v4152
        %4156 = vst [vmem:[%s4154 + $0x8] sm:$0xff] %v4153
        %v4157 = vpack.c.bf16 %v1684, %v1683
        %s4158 = scalar_lea.vmem %s5, 256
        %v4159 = vld [vmem:[%s4158] sm:$0xf]
        %v4160 = vld [vmem:[%s4158 + $0x4] sm:$0xf]
        %v4161 = vld [vmem:[%s4158 + $0x8] sm:$0xf]
        %v4162 = vld [vmem:[%s4158 + $0xc] sm:$0xf]
        %v4163 = vld [vmem:[%s4158 + $0x10] sm:$0xf]
        %v4164 = vld [vmem:[%s4158 + $0x14] sm:$0xf]
        %v4165 = vld [vmem:[%s4158 + $0x18] sm:$0xf]
        %v4166 = vld [vmem:[%s4158 + $0x1c] sm:$0xf]
        %v4167 = vld [vmem:[%s4158 + $0x20] sm:$0xf]
        %v4168 = vld [vmem:[%s4158 + $0x24] sm:$0xf]
        %v4169 = vld [vmem:[%s4158 + $0x28] sm:$0xf]
        %v4170 = vld [vmem:[%s4158 + $0x2c] sm:$0xf]
        %v4171 = vld [vmem:[%s4158 + $0x30] sm:$0xf]
        %v4172 = vld [vmem:[%s4158 + $0x34] sm:$0xf]
        %v4173 = vld [vmem:[%s4158 + $0x38] sm:$0xf]
        %v4174 = vld [vmem:[%s4158 + $0x3c] sm:$0xf]
        %s4175 = scalar_lea.vmem %s6, 4
        %v4176 = vld [vmem:[%s4175] sm:$0x1]
        %v4178 = vperm.slane %v4176, 0
        %v4196 = vunpack.c.l.b16 %v4159
        %v4197 = vunpack.c.l.b16 %v4160
        %v4198 = vunpack.c.l.b16 %v4161
        %v4199 = vunpack.c.l.b16 %v4162
        %v4200 = vunpack.c.l.b16 %v4163
        %v4201 = vunpack.c.l.b16 %v4164
        %v4202 = vunpack.c.l.b16 %v4165
        %v4203 = vunpack.c.l.b16 %v4166
        %v4204 = vunpack.c.l.b16 %v4167
        %v4205 = vunpack.c.l.b16 %v4168
        %v4206 = vunpack.c.l.b16 %v4169
        %v4207 = vunpack.c.l.b16 %v4170
        %v4208 = vunpack.c.l.b16 %v4171
        %v4209 = vunpack.c.l.b16 %v4172
        %v4210 = vunpack.c.l.b16 %v4173
        %v4211 = vunpack.c.l.b16 %v4174
        %v4212 = vpack.c.b16 %v4197, %v4196
        %v4213 = vpack.c.b16 %v4199, %v4198
        %v4214 = vpack.c.b16 %v4201, %v4200
        %v4215 = vpack.c.b16 %v4203, %v4202
        %v4216 = vpack.c.b16 %v4205, %v4204
        %v4217 = vpack.c.b16 %v4207, %v4206
        %v4218 = vpack.c.b16 %v4209, %v4208
        %v4219 = vpack.c.b16 %v4211, %v4210
        %4228 = vmatpush.bf16.msra.mxu0 %v4219
        %4229 = vmatpush.bf16.msra.mxu0 %v4218
        %4230 = vmatpush.bf16.msra.mxu0 %v4217
        %4231 = vmatpush.bf16.msra.mxu0 %v4216
        %4232 = vmatpush.bf16.msra.mxu0 %v4215
        %4233 = vmatpush.bf16.msra.mxu0 %v4214
        %4234 = vmatpush.bf16.msra.mxu0 %v4213
        %4235 = vmatpush.bf16.msra.mxu0 %v4212
        %4236 = vmatmul.bf16.gmra.mxu0 %v4157
        %v4237 = vpop.f32.mrf.mxu0
        %v4238 = vadd.f32 %v4178, %v4237
        %v4239 = vpop.f32.mrf.mxu0
        %v4240 = vadd.f32 %v4178, %v4239
        %4241 = vdwg.mxu0
        %v4242 = vmax.f32 %v4238, 0.0
        %v4243 = vmax.f32 %v4240, 0.0
        %v4244 = vld [vmem:[%s936] sm:$0xff]
        %v4245 = vld [vmem:[%s936 + $0x8] sm:$0xff]
        %v4247 = vsel %vm939, %v4244, 0
        %v4250 = vsel %vm939, %v4245, 0
        %4252 = vmatpush.msra.mxu0 0.0
        %4253 = vmatpush.msra.mxu0 0.0
        %4254 = vmatpush.msra.mxu0 0.0
        %4255 = vmatpush.msra.mxu0 0.0
        %4256 = vmatpush.msra.mxu0 0.0
        %4257 = vmatpush.msra.mxu0 0.0
        %4258 = vmatpush.msra.mxu0 0.0
        %4259 = vmatpush.msra.mxu0 0.0
        %4260 = vmatpush.msra.mxu0 0.0
        %4261 = vmatpush.msra.mxu0 0.0
        %4262 = vmatpush.msra.mxu0 0.0
        %4263 = vmatpush.msra.mxu0 0.0
        %4264 = vmatpush.msra.mxu0 0.0
        %4265 = vmatpush.msra.mxu0 0.0
        %4266 = vmatpush.msra.mxu0 %v4243
        %4267 = vmatpush.msra.mxu0 %v4242
        %4268 = vmatmul.f32.gmra.mxu0 %v4247
        %v4269 = vpop.f32.mrf.mxu0
        %v4270 = vadd.f32 0.0, %v4269
        %4271 = vmatmul.f32.gmra.mxu0 %v4250
        %v4272 = vpop.f32.mrf.mxu0
        %v4273 = vadd.f32 0.0, %v4272
        %4274 = vdwg.mxu0
        %4275 = vrot.lane.b32.xlu0 %v4270, 8
        %v4276 = vpop.permute.xlu0 %4275
        %4277 = vrot.lane.b32.xlu0 %v4273, 8
        %v4278 = vpop.permute.xlu0 %4277
        %s4279 = scalar_lea.vmem %s7, 106
        %v4280 = vld [vmem:[%s4279] sm:$0x1]
        %v4282 = vperm.slane %v4280, 0
        %v4284 = vmul.f32 %v4276, %v4282
        %v4285 = vmul.f32 %v4278, %v4282
        %s4286 = scalar_lea.vmem %s7, 107
        %v4287 = vld [vmem:[%s4286] sm:$0x1]
        %v4289 = vperm.slane %v4287, 0
        %v4291 = vmul.f32 %v4270, %v4289
        %v4292 = vmul.f32 %v4273, %v4289
        %v4293 = vadd.f32 %v4284, %v4291
        %v4294 = vadd.f32 %v4285, %v4292
        %4295 = vrot.lane.b32.xlu0 %v4270, 120
        %v4296 = vpop.permute.xlu0 %4295
        %4297 = vrot.lane.b32.xlu0 %v4273, 120
        %v4298 = vpop.permute.xlu0 %4297
        %s4299 = scalar_lea.vmem %s7, 108
        %v4300 = vld [vmem:[%s4299] sm:$0x1]
        %v4302 = vperm.slane %v4300, 0
        %v4304 = vmul.f32 %v4296, %v4302
        %v4305 = vmul.f32 %v4298, %v4302
        %v4306 = vadd.f32 %v4293, %v4304
        %v4307 = vadd.f32 %v4294, %v4305
        %4308 = vrot.lane.b32.xlu0 %v4242, 8
        %v4309 = vpop.permute.xlu0 %4308
        %4310 = vrot.lane.b32.xlu0 %v4243, 8
        %v4311 = vpop.permute.xlu0 %4310
        %s4312 = scalar_lea.vmem %s7, 111
        %v4313 = vld [vmem:[%s4312] sm:$0x1]
        %v4315 = vperm.slane %v4313, 0
        %v4317 = vmul.f32 %v4309, %v4315
        %v4318 = vmul.f32 %v4311, %v4315
        %v4319 = vadd.f32 %v4306, %v4317
        %v4320 = vadd.f32 %v4307, %v4318
        %s4321 = scalar_lea.vmem %s7, 112
        %v4322 = vld [vmem:[%s4321] sm:$0x1]
        %v4324 = vperm.slane %v4322, 0
        %v4326 = vmul.f32 %v4242, %v4324
        %v4327 = vmul.f32 %v4243, %v4324
        %v4328 = vadd.f32 %v4319, %v4326
        %v4329 = vadd.f32 %v4320, %v4327
        %4330 = vrot.lane.b32.xlu0 %v4242, 120
        %v4331 = vpop.permute.xlu0 %4330
        %4332 = vrot.lane.b32.xlu0 %v4243, 120
        %v4333 = vpop.permute.xlu0 %4332
        %s4334 = scalar_lea.vmem %s7, 113
        %v4335 = vld [vmem:[%s4334] sm:$0x1]
        %v4337 = vperm.slane %v4335, 0
        %v4339 = vmul.f32 %v4331, %v4337
        %v4340 = vmul.f32 %v4333, %v4337
        %v4341 = vadd.f32 %v4328, %v4339
        %v4342 = vadd.f32 %v4329, %v4340
        %v4343 = vld [vmem:[%s1129] sm:$0xff]
        %v4344 = vld [vmem:[%s1129 + $0x8] sm:$0xff]
        %v4346 = vsel %vm939, %v4343, 0
        %v4349 = vsel %vm939, %v4344, 0
        %4351 = vmatpush.msra.mxu0 0.0
        %4352 = vmatpush.msra.mxu0 0.0
        %4353 = vmatpush.msra.mxu0 0.0
        %4354 = vmatpush.msra.mxu0 0.0
        %4355 = vmatpush.msra.mxu0 0.0
        %4356 = vmatpush.msra.mxu0 0.0
        %4357 = vmatpush.msra.mxu0 0.0
        %4358 = vmatpush.msra.mxu0 0.0
        %4359 = vmatpush.msra.mxu0 0.0
        %4360 = vmatpush.msra.mxu0 0.0
        %4361 = vmatpush.msra.mxu0 0.0
        %4362 = vmatpush.msra.mxu0 0.0
        %4363 = vmatpush.msra.mxu0 0.0
        %4364 = vmatpush.msra.mxu0 0.0
        %4365 = vmatpush.msra.mxu0 %v4243
        %4366 = vmatpush.msra.mxu0 %v4242
        %4367 = vmatmul.f32.gmra.mxu0 %v4346
        %v4368 = vpop.f32.mrf.mxu0
        %v4369 = vadd.f32 0.0, %v4368
        %4370 = vmatmul.f32.gmra.mxu0 %v4349
        %v4371 = vpop.f32.mrf.mxu0
        %v4372 = vadd.f32 0.0, %v4371
        %4373 = vdwg.mxu0
        %4374 = vrot.lane.b32.xlu0 %v4369, 8
        %v4375 = vpop.permute.xlu0 %4374
        %4376 = vrot.lane.b32.xlu0 %v4372, 8
        %v4377 = vpop.permute.xlu0 %4376
        %s4378 = scalar_lea.vmem %s7, 116
        %v4379 = vld [vmem:[%s4378] sm:$0x1]
        %v4381 = vperm.slane %v4379, 0
        %v4383 = vmul.f32 %v4375, %v4381
        %v4384 = vmul.f32 %v4377, %v4381
        %v4385 = vadd.f32 %v4341, %v4383
        %v4386 = vadd.f32 %v4342, %v4384
        %s4387 = scalar_lea.vmem %s7, 117
        %v4388 = vld [vmem:[%s4387] sm:$0x1]
        %v4390 = vperm.slane %v4388, 0
        %v4392 = vmul.f32 %v4369, %v4390
        %v4393 = vmul.f32 %v4372, %v4390
        %v4394 = vadd.f32 %v4385, %v4392
        %v4395 = vadd.f32 %v4386, %v4393
        %4396 = vrot.lane.b32.xlu0 %v4369, 120
        %v4397 = vpop.permute.xlu0 %4396
        %4398 = vrot.lane.b32.xlu0 %v4372, 120
        %v4399 = vpop.permute.xlu0 %4398
        %s4400 = scalar_lea.vmem %s7, 118
        %v4401 = vld [vmem:[%s4400] sm:$0x1]
        %v4403 = vperm.slane %v4401, 0
        %v4405 = vmul.f32 %v4397, %v4403
        %v4406 = vmul.f32 %v4399, %v4403
        %v4407 = vadd.f32 %v4394, %v4405
        %v4408 = vadd.f32 %v4395, %v4406
        %v4409 = vpack.c.bf16 %v4408, %v4407
        %s4410 = scalar_lea.vmem %s8, 256
        %v4411 = vld [vmem:[%s4410] sm:$0xf]
        %v4412 = vld [vmem:[%s4410 + $0x4] sm:$0xf]
        %v4413 = vld [vmem:[%s4410 + $0x8] sm:$0xf]
        %v4414 = vld [vmem:[%s4410 + $0xc] sm:$0xf]
        %v4415 = vld [vmem:[%s4410 + $0x10] sm:$0xf]
        %v4416 = vld [vmem:[%s4410 + $0x14] sm:$0xf]
        %v4417 = vld [vmem:[%s4410 + $0x18] sm:$0xf]
        %v4418 = vld [vmem:[%s4410 + $0x1c] sm:$0xf]
        %v4419 = vld [vmem:[%s4410 + $0x20] sm:$0xf]
        %v4420 = vld [vmem:[%s4410 + $0x24] sm:$0xf]
        %v4421 = vld [vmem:[%s4410 + $0x28] sm:$0xf]
        %v4422 = vld [vmem:[%s4410 + $0x2c] sm:$0xf]
        %v4423 = vld [vmem:[%s4410 + $0x30] sm:$0xf]
        %v4424 = vld [vmem:[%s4410 + $0x34] sm:$0xf]
        %v4425 = vld [vmem:[%s4410 + $0x38] sm:$0xf]
        %v4426 = vld [vmem:[%s4410 + $0x3c] sm:$0xf]
        %s4427 = scalar_lea.vmem %s9, 4
        %v4428 = vld [vmem:[%s4427] sm:$0x1]
        %v4430 = vperm.slane %v4428, 0
        %v4448 = vunpack.c.l.b16 %v4411
        %v4449 = vunpack.c.l.b16 %v4412
        %v4450 = vunpack.c.l.b16 %v4413
        %v4451 = vunpack.c.l.b16 %v4414
        %v4452 = vunpack.c.l.b16 %v4415
        %v4453 = vunpack.c.l.b16 %v4416
        %v4454 = vunpack.c.l.b16 %v4417
        %v4455 = vunpack.c.l.b16 %v4418
        %v4456 = vunpack.c.l.b16 %v4419
        %v4457 = vunpack.c.l.b16 %v4420
        %v4458 = vunpack.c.l.b16 %v4421
        %v4459 = vunpack.c.l.b16 %v4422
        %v4460 = vunpack.c.l.b16 %v4423
        %v4461 = vunpack.c.l.b16 %v4424
        %v4462 = vunpack.c.l.b16 %v4425
        %v4463 = vunpack.c.l.b16 %v4426
        %v4464 = vpack.c.b16 %v4449, %v4448
        %v4465 = vpack.c.b16 %v4451, %v4450
        %v4466 = vpack.c.b16 %v4453, %v4452
        %v4467 = vpack.c.b16 %v4455, %v4454
        %v4468 = vpack.c.b16 %v4457, %v4456
        %v4469 = vpack.c.b16 %v4459, %v4458
        %v4470 = vpack.c.b16 %v4461, %v4460
        %v4471 = vpack.c.b16 %v4463, %v4462
        %4480 = vmatpush.bf16.msra.mxu0 %v4471
        %4481 = vmatpush.bf16.msra.mxu0 %v4470
        %4482 = vmatpush.bf16.msra.mxu0 %v4469
        %4483 = vmatpush.bf16.msra.mxu0 %v4468
        %4484 = vmatpush.bf16.msra.mxu0 %v4467
        %4485 = vmatpush.bf16.msra.mxu0 %v4466
        %4486 = vmatpush.bf16.msra.mxu0 %v4465
        %4487 = vmatpush.bf16.msra.mxu0 %v4464
        %4488 = vmatmul.bf16.gmra.mxu0 %v4409
        %v4489 = vpop.f32.mrf.mxu0
        %v4490 = vadd.f32 %v4430, %v4489
        %v4491 = vpop.f32.mrf.mxu0
        %v4492 = vadd.f32 %v4430, %v4491
        %4493 = vdwg.mxu0
        %v4494 = vadd.f32 %v4490, %v932
        %v4495 = vadd.f32 %v4492, %v934
        %s4496 = scalar_lea.vmem %s405, 80 [#allocation2]
        %4497 = vst [vmem:[%s4496] sm:$0xff] %v4494
        %4498 = vst [vmem:[%s4496 + $0x8] sm:$0xff] %v4495
        %s4499 = sand.u32 %s288, 1
        %s4500 = sand.u32 %s288, 1
        %s4501 = smul.addr %s4500, 96
        %s4502 = scalar_lea.vmem [#allocation2], %s4501
        // Predicated region
        $region69: #{normal_cell_forward.1} parent=67 // pred_check
          %p4503 = pneg %p298
        $region70: #{normal_cell_forward.1} parent=67 // pred_check_branch
          %4505 = sbr.rel (%p4503) target = $region72
        $region71: #{normal_cell_forward.1} parent=67 // pred_region
          %s4506 = smul.u32 2, %s23
          %s4507 = smul.addr %s4506, 8
          %s4508 = scalar_lea.vmem %s12, %s4507
          // Predicated region
          $region73: #{normal_cell_forward.1} parent=71 // pred_check
            _
          $region74: #{normal_cell_forward.1} parent=71 // pred_check_branch
            %4510 = sbr.rel (0) target = $region76
          $region75: #{normal_cell_forward.1} parent=71 // pred_region
            // Predicated region
            $region77: #{normal_cell_forward.1} parent=75 // pred_check
              _
            $region78: #{normal_cell_forward.1} parent=75 // pred_check_branch
              %4512 = sbr.rel (0) target = $region80
            $region79: #{normal_cell_forward.1} parent=75 // pred_region
              // Predicated region
              $region92: #{normal_cell_forward.1} parent=79 // pred_check
                _
              $region93: #{normal_cell_forward.1} parent=79 // pred_check_branch
                %4550 = sbr.rel (0) target = $region95
              $region94: #{normal_cell_forward.1} parent=79 // pred_region
                loop: start=0, step=1, limit=1
                $region96: #{normal_cell_forward.1} parent=94 // loop_pre_header
                  _
                $region97: #{normal_cell_forward.1} parent=94 // loop_header
                  %s4552 = sphi 0, %s4556
                  %p4553 = scmp.ge.s32.totalorder %s4552, 1
                  %s4557 = sphi %s4502, %s4502
                  %s4558 = sphi %s4508, %s4508
                $region98: #{normal_cell_forward.1} parent=94 // loop_header_branch
                  %4555 = sbr.rel (%p4553) target = $region102
                $region99: #{normal_cell_forward.1} parent=94 // loop_body
                  %v4559 = vld [vmem:[%s4557] sm:$0xff]
                  %4560 = vst [vmem:[%s4558] sm:$0xff] %v4559
                  %v4561 = vld [vmem:[%s4557 + $0x8] sm:$0xff]
                  %4562 = vst [vmem:[%s4558 + $0x8] sm:$0xff] %v4561
                  %v4563 = vld [vmem:[%s4557 + $0x10] sm:$0xff]
                  %4564 = vst [vmem:[%s4558 + $0x20] sm:$0xff] %v4563
                  %v4565 = vld [vmem:[%s4557 + $0x18] sm:$0xff]
                  %4566 = vst [vmem:[%s4558 + $0x28] sm:$0xff] %v4565
                  %v4567 = vld [vmem:[%s4557 + $0x20] sm:$0xff]
                  %4568 = vst [vmem:[%s4558 + $0x40] sm:$0xff] %v4567
                  %v4569 = vld [vmem:[%s4557 + $0x28] sm:$0xff]
                  %4570 = vst [vmem:[%s4558 + $0x48] sm:$0xff] %v4569
                  %v4571 = vld [vmem:[%s4557 + $0x30] sm:$0xff]
                  %4572 = vst [vmem:[%s4558 + $0x60] sm:$0xff] %v4571
                  %v4573 = vld [vmem:[%s4557 + $0x38] sm:$0xff]
                  %4574 = vst [vmem:[%s4558 + $0x68] sm:$0xff] %v4573
                  %v4575 = vld [vmem:[%s4557 + $0x40] sm:$0xff]
                  %4576 = vst [vmem:[%s4558 + $0x80] sm:$0xff] %v4575
                  %v4577 = vld [vmem:[%s4557 + $0x48] sm:$0xff]
                  %4578 = vst [vmem:[%s4558 + $0x88] sm:$0xff] %v4577
                  %v4579 = vld [vmem:[%s4557 + $0x50] sm:$0xff]
                  %4580 = vst [vmem:[%s4558 + $0xa0] sm:$0xff] %v4579
                  %v4581 = vld [vmem:[%s4557 + $0x58] sm:$0xff]
                  %4582 = vst [vmem:[%s4558 + $0xa8] sm:$0xff] %v4581
                $region100: #{normal_cell_forward.1} parent=94 // loop_footer
                  %s4556 = sadd.s32 1, %s4552
                $region101: #{normal_cell_forward.1} parent=94 // loop_footer_branch
                  %4551 = sbr.rel target = $region97
                $region102: #{normal_cell_forward.1} parent=94 // loop_exit
                  _
              $region95: #{normal_cell_forward.1} parent=79 // pred_fallthru
                _
              // Predicated region
              $region103: #{normal_cell_forward.1} parent=79 // pred_check
                _
              $region104: #{normal_cell_forward.1} parent=79 // pred_check_branch
                %4584 = sbr.rel target = $region106
              $region105: #{normal_cell_forward.1} parent=79 // pred_region
                _
              $region106: #{normal_cell_forward.1} parent=79 // pred_fallthru
                _
            $region80: #{normal_cell_forward.1} parent=75 // pred_fallthru
              _
            // Predicated region
            $region81: #{normal_cell_forward.1} parent=75 // pred_check
              _
            $region82: #{normal_cell_forward.1} parent=75 // pred_check_branch
              %4514 = sbr.rel target = $region84
            $region83: #{normal_cell_forward.1} parent=75 // pred_region
              %s4516 = ssub.s32 256, 1
              loop: start=0, step=1, limit=1
              $region85: #{normal_cell_forward.1} parent=83 // loop_pre_header
                _
              $region86: #{normal_cell_forward.1} parent=83 // loop_header
                %s4518 = sphi 0, %s4522
                %p4519 = scmp.ge.s32.totalorder %s4518, 1
                %s4523 = sphi %s4502, %s4502
                %s4524 = sphi %s4508, %s4508
              $region87: #{normal_cell_forward.1} parent=83 // loop_header_branch
                %4521 = sbr.rel (%p4519) target = $region91
              $region88: #{normal_cell_forward.1} parent=83 // loop_body
                %v4525 = vld [vmem:[%s4523] sm:%s4516]
                %4526 = vst [vmem:[%s4524] sm:%s4516] %v4525
                %v4527 = vld [vmem:[%s4523 + $0x8] sm:%s4516]
                %4528 = vst [vmem:[%s4524 + $0x8] sm:%s4516] %v4527
                %v4529 = vld [vmem:[%s4523 + $0x10] sm:%s4516]
                %4530 = vst [vmem:[%s4524 + $0x20] sm:%s4516] %v4529
                %v4531 = vld [vmem:[%s4523 + $0x18] sm:%s4516]
                %4532 = vst [vmem:[%s4524 + $0x28] sm:%s4516] %v4531
                %v4533 = vld [vmem:[%s4523 + $0x20] sm:%s4516]
                %4534 = vst [vmem:[%s4524 + $0x40] sm:%s4516] %v4533
                %v4535 = vld [vmem:[%s4523 + $0x28] sm:%s4516]
                %4536 = vst [vmem:[%s4524 + $0x48] sm:%s4516] %v4535
                %v4537 = vld [vmem:[%s4523 + $0x30] sm:%s4516]
                %4538 = vst [vmem:[%s4524 + $0x60] sm:%s4516] %v4537
                %v4539 = vld [vmem:[%s4523 + $0x38] sm:%s4516]
                %4540 = vst [vmem:[%s4524 + $0x68] sm:%s4516] %v4539
                %v4541 = vld [vmem:[%s4523 + $0x40] sm:%s4516]
                %4542 = vst [vmem:[%s4524 + $0x80] sm:%s4516] %v4541
                %v4543 = vld [vmem:[%s4523 + $0x48] sm:%s4516]
                %4544 = vst [vmem:[%s4524 + $0x88] sm:%s4516] %v4543
                %v4545 = vld [vmem:[%s4523 + $0x50] sm:%s4516]
                %4546 = vst [vmem:[%s4524 + $0xa0] sm:%s4516] %v4545
                %v4547 = vld [vmem:[%s4523 + $0x58] sm:%s4516]
                %4548 = vst [vmem:[%s4524 + $0xa8] sm:%s4516] %v4547
              $region89: #{normal_cell_forward.1} parent=83 // loop_footer
                %s4522 = sadd.s32 1, %s4518
              $region90: #{normal_cell_forward.1} parent=83 // loop_footer_branch
                %4517 = sbr.rel target = $region86
              $region91: #{normal_cell_forward.1} parent=83 // loop_exit
                _
            $region84: #{normal_cell_forward.1} parent=75 // pred_fallthru
              _
          $region76: #{normal_cell_forward.1} parent=71 // pred_fallthru
            _
          %4585 = vnop
        $region72: #{normal_cell_forward.1} parent=67 // pred_fallthru
          _
      $region68: #{normal_cell_forward.1} parent=5 // pred_fallthru
        _
      %p4586 = scmp.le.s32.totalorder 2, %s18
      // Predicated region
      $region107: #{normal_cell_forward.1} parent=5 // pred_check
        %p4587 = pneg %p4586
      $region108: #{normal_cell_forward.1} parent=5 // pred_check_branch
        %4589 = sbr.rel (%p4587) target = $region110
      $region109: #{normal_cell_forward.1} parent=5 // pred_region
        %s4590 = ssub.s32 %s18, 2
        // Predicated region
        $region111: #{normal_cell_forward.1} parent=109 // pred_check
          %p4591 = pneg %p304
        $region112: #{normal_cell_forward.1} parent=109 // pred_check_branch
          %4593 = sbr.rel (%p4591) target = $region114
        $region113: #{normal_cell_forward.1} parent=109 // pred_region
          %s4594 = sand.u32 %s289, 1
          %s4595 = sand.u32 %s289, 1
          %s4596 = smul.addr %s4595, 96
          %s4597 = scalar_lea.vmem [#allocation2], %s4596
        $region114: #{normal_cell_forward.1} parent=109 // pred_fallthru
          _
      $region110: #{normal_cell_forward.1} parent=5 // pred_fallthru
        _
    $region6: #{normal_cell_forward.1} parent=1 // loop_footer
      %s22 = sadd.s32 1, %s18
    $region7: #{normal_cell_forward.1} parent=1 // loop_footer_branch
      %17 = sbr.rel target = $region3
    $region8: #{normal_cell_forward.1} parent=1 // loop_exit
      _

</llo_original>
